<compile_context>
chip_gen: v6e
topology: v6e:2x2x1
jax: 0.10.0
libtpu: 0.0.40
codegen_flags: <defaults>
</compile_context>

<pallas_src>
import jax
import jax.numpy as jnp
from jax.experimental import pallas as pl
from jax.experimental.pallas import tpu as pltpu

HIDDEN_DIM = 200
HIDDEN_PAD = 256          # H padded to a lane multiple so gates are 256-aligned
INPUT_DIM = 3
INPUT_PAD = 128           # D padded to one lane tile for K-fusion with h1
LAYER_DIM = 2             # hard-wired as two stacked cells in the kernel
OUTPUT_DIM = 1


def _lstm_kernel(x_ref, w0_ref, w1_ref, b0_ref, b1_ref, wfc_ref, bfc_ref,
                 out_ref):
    """Whole 2-layer LSTM + fc forward in one invocation (no grid).

    x_ref  : (T, B, 128)  bf16  inputs, lanes [0, 3) real, rest zero.
    w0_ref : (384, 1024)  bf16  layer-0 [W_ih0 (pad to 128 rows) ; W_hh0 (pad)]
                                gates concatenated along N in 256-wide blocks.
    w1_ref : (512, 1024)  bf16  layer-1 [W_ih1 ; W_hh1], same gate packing.
    b0_ref : (1, 1024)    f32   folded layer-0 bias (b_ih0 + b_hh0), packed.
    b1_ref : (1, 1024)    f32   folded layer-1 bias.
    wfc_ref: (1, 256)     f32   fc weight, lane-padded with zeros.
    bfc_ref: (1, 1)       f32   fc bias.
    out_ref: (B, 1)       f32   fc(h2 at the last timestep).
    """
    T, B, _ = x_ref.shape
    Hp = wfc_ref.shape[1]                      # 256

    b0 = b0_ref[...]
    b1 = b1_ref[...]

    def sig(v):                                # one EUP push instead of exp+div
        return 0.5 * (jnp.tanh(0.5 * v) + 1.0)

    def cell(g, c):                            # g: (B, 4*Hp) gate preactivations
        i = sig(g[:, 0 * Hp:1 * Hp])
        f = sig(g[:, 1 * Hp:2 * Hp])
        gg = jnp.tanh(g[:, 2 * Hp:3 * Hp])
        o = sig(g[:, 3 * Hp:4 * Hp])
        c_new = f * c + i * gg
        return o * jnp.tanh(c_new), c_new

    zb = jnp.zeros((B, Hp), jnp.bfloat16)
    zf = jnp.zeros((B, Hp), jnp.float32)

    # --- prologue: layer-0 step 0 (h1 = 0, only the x projection contributes).
    lhs0 = jnp.concatenate([x_ref[0], zb], axis=-1)               # (B, 384)
    g0 = jnp.dot(lhs0, w0_ref[...], preferred_element_type=jnp.float32) + b0
    h1, c1 = cell(g0, zf)
    h2, c2 = zf, zf

    # --- wavefront loop: iteration s = layer-0 step s + layer-1 step s-1.
    # Both dots depend only on the previous iteration's state, so they issue
    # back-to-back into the MXU with no intra-iteration dependence.
    def step(s, carry):
        h1, c1, h2, c2 = carry
        h1b = h1.astype(jnp.bfloat16)
        h2b = h2.astype(jnp.bfloat16)
        lhs0 = jnp.concatenate([x_ref[s], h1b], axis=-1)          # (B, 384)
        lhs1 = jnp.concatenate([h1b, h2b], axis=-1)               # (B, 512)
        g0 = jnp.dot(lhs0, w0_ref[...], preferred_element_type=jnp.float32) + b0
        g1 = jnp.dot(lhs1, w1_ref[...], preferred_element_type=jnp.float32) + b1
        h1n, c1n = cell(g0, c1)
        h2n, c2n = cell(g1, c2)
        return h1n, c1n, h2n, c2n

    # T=8: full unroll is fine; cap the unroll factor if T grows.
    h1, c1, h2, c2 = jax.lax.fori_loop(1, T, step, (h1, c1, h2, c2),
                                       unroll=True)

    # --- epilogue: last layer-1 step, then the fused fc on h2_T.
    lhs1 = jnp.concatenate([h1.astype(jnp.bfloat16), h2.astype(jnp.bfloat16)],
                           axis=-1)
    g1 = jnp.dot(lhs1, w1_ref[...], preferred_element_type=jnp.float32) + b1
    h2, _ = cell(g1, c2)
    out_ref[...] = (jnp.sum(h2 * wfc_ref[...], axis=-1, keepdims=True)
                    + bfc_ref[...])


def _pack_gates(w, k_pad):
    """(k, 4H) -> (k_pad, 4*Hp): per-gate zero-pad H->Hp, zero-pad rows to k_pad."""
    k = w.shape[0]
    wg = w.reshape(k, 4, HIDDEN_DIM)
    out = jnp.zeros((k_pad, 4, HIDDEN_PAD), w.dtype)
    out = out.at[:k, :, :HIDDEN_DIM].set(wg)
    return out.reshape(k_pad, 4 * HIDDEN_PAD)


def lstm_model_forward(x, params):
    """x: (B, T, INPUT_DIM) float32. Returns (B, OUTPUT_DIM) float32."""
    (wih0, whh0, b0, wih1, whh1, b1, wfc, bfc) = params
    B, T, D = x.shape
    H, Hp = HIDDEN_DIM, HIDDEN_PAD
    assert D == INPUT_DIM

    # Time-major x, lane-padded to 128 so it can be lane-concatenated with the
    # (B, Hp) recurrent state inside the kernel.
    x_pad = jnp.zeros((T, B, INPUT_PAD), jnp.bfloat16)
    x_pad = x_pad.at[:, :, :D].set(
        jnp.transpose(x, (1, 0, 2)).astype(jnp.bfloat16))

    w0c = jnp.concatenate([_pack_gates(wih0, INPUT_PAD),
                           _pack_gates(whh0, Hp)], axis=0).astype(jnp.bfloat16)
    w1c = jnp.concatenate([_pack_gates(wih1, Hp),
                           _pack_gates(whh1, Hp)], axis=0).astype(jnp.bfloat16)
    b0p = _pack_gates(b0, 1)                                      # (1,1024) f32
    b1p = _pack_gates(b1, 1)
    wfc_p = jnp.zeros((1, Hp), jnp.float32).at[0, :H].set(wfc[:, 0])
    bfc_p = bfc.reshape(1, 1)

    vmem = pl.BlockSpec(memory_space=pltpu.MemorySpace.VMEM)
    return pl.pallas_call(
        _lstm_kernel,
        out_shape=jax.ShapeDtypeStruct((B, OUTPUT_DIM), jnp.float32),
        in_specs=[vmem] * 7,          # ~1.8 MB resident in VMEM, no grid
        out_specs=vmem,
    )(x_pad, w0c, w1c, b0p, b1p, wfc_p, bfc_p)


def init_params(key):
    """Deterministic init matching PyTorch nn.LSTM / nn.Linear shapes.

    Weights are kept pre-transposed for x @ W (gate order i, f, g, o) and the
    two LSTM biases per layer are folded into one.
    """
    H, D, O = HIDDEN_DIM, INPUT_DIM, OUTPUT_DIM
    bound = 1.0 / jnp.sqrt(H)
    ks = jax.random.split(key, 8)
    u = lambda k, shape: jax.random.uniform(k, shape, jnp.float32, -bound, bound)
    wih0 = u(ks[0], (D, 4 * H))
    whh0 = u(ks[1], (H, 4 * H))
    b0 = u(ks[2], (1, 4 * H)) + u(ks[3], (1, 4 * H))   # b_ih + b_hh
    wih1 = u(ks[4], (H, 4 * H))
    whh1 = u(ks[5], (H, 4 * H))
    b1 = u(ks[6], (1, 4 * H)) + u(ks[7], (1, 4 * H))
    kfc_w, kfc_b = jax.random.split(jax.random.fold_in(key, 123))
    wfc = jax.random.uniform(kfc_w, (H, O), jnp.float32, -bound, bound)
    bfc = jax.random.uniform(kfc_b, (1, O), jnp.float32, -bound, bound)
    return (wih0, whh0, b0, wih1, whh1, b1, wfc, bfc)


def lstm_model_reference(x, params):
    """Pure-JAX reference (lax.scan) mirroring the kernel's numerics.

    Same structure/semantics as the PyTorch module (gate order i,f,g,o, folded
    biases, fc on the last step); x and all matmul weights are cast to bf16
    with f32 accumulation and sigmoid is computed via tanh, exactly as in the
    kernel, so the comparison is tight. Against a pure-f32 PyTorch run the
    result agrees to ~1e-3.
    """
    (wih0, whh0, b0, wih1, whh1, b1, wfc, bfc) = params
    B = x.shape[0]
    H = HIDDEN_DIM
    bf = jnp.bfloat16
    wih0_b, whh0_b = wih0.astype(bf), whh0.astype(bf)
    wih1_b, whh1_b = wih1.astype(bf), whh1.astype(bf)

    def sig(v):
        return 0.5 * (jnp.tanh(0.5 * v) + 1.0)

    def cell(g, c):
        i = sig(g[:, 0 * H:1 * H])
        f = sig(g[:, 1 * H:2 * H])
        gg = jnp.tanh(g[:, 2 * H:3 * H])
        o = sig(g[:, 3 * H:4 * H])
        c_new = f * c + i * gg
        return o * jnp.tanh(c_new), c_new

    def step(carry, x_t):
        h1, c1, h2, c2 = carry
        g0 = (jnp.dot(x_t.astype(bf), wih0_b, preferred_element_type=jnp.float32)
              + jnp.dot(h1.astype(bf), whh0_b, preferred_element_type=jnp.float32)
              + b0)
        h1, c1 = cell(g0, c1)
        g1 = (jnp.dot(h1.astype(bf), wih1_b, preferred_element_type=jnp.float32)
              + jnp.dot(h2.astype(bf), whh1_b, preferred_element_type=jnp.float32)
              + b1)
        h2, c2 = cell(g1, c2)
        return (h1, c1, h2, c2), None

    z = jnp.zeros((B, H), jnp.float32)
    (_, _, h2, _), _ = jax.lax.scan(step, (z, z, z, z),
                                    jnp.transpose(x, (1, 0, 2)))
    return h2 @ wfc + bfc


if __name__ == "__main__":
    key = jax.random.PRNGKey(0)
    k_x, k_p = jax.random.split(key)

    B, T = 2, 8   # small batch / seq; feature dims fixed by the module
    x = jax.random.normal(k_x, (B, T, INPUT_DIM), jnp.float32)
    params = init_params(k_p)

    forward = jax.jit(lstm_model_forward)
    out = jax.block_until_ready(forward(x, params))

    ref = lstm_model_reference(x, params)
    assert out.shape == (B, OUTPUT_DIM)
    assert jnp.allclose(out, ref, rtol=1e-3, atol=2e-4), (out, ref)

    print("KERNEL_OK")
</pallas_src>

<mosaic_0001>
module attributes {stable_mosaic.version = 11 : i64} {
  func.func @_lstm_kernel(%arg0: memref<8x2x128xbf16, #tpu.memory_space<vmem>>, %arg1: memref<384x1024xbf16, #tpu.memory_space<vmem>>, %arg2: memref<512x1024xbf16, #tpu.memory_space<vmem>>, %arg3: memref<1x1024xf32, #tpu.memory_space<vmem>>, %arg4: memref<1x1024xf32, #tpu.memory_space<vmem>>, %arg5: memref<1x256xf32, #tpu.memory_space<vmem>>, %arg6: memref<1x1xf32, #tpu.memory_space<vmem>>, %arg7: memref<2x1xf32, #tpu.memory_space<vmem>>) attributes {dimension_semantics = [], scalar_prefetch = 0 : i64, scratch_operands = 0 : i64, tpu.core_type = #tpu.core_type<tc>} {
    %c0 = arith.constant 0 : index
    %c0_0 = arith.constant 0 : index
    %0 = vector.load %arg3[%c0, %c0_0] : memref<1x1024xf32, #tpu.memory_space<vmem>>, vector<1x1024xf32>
    %c0_1 = arith.constant 0 : index
    %c0_2 = arith.constant 0 : index
    %1 = vector.load %arg4[%c0_1, %c0_2] : memref<1x1024xf32, #tpu.memory_space<vmem>>, vector<1x1024xf32>
    %cst = arith.constant 0.000000e+00 : bf16
    %2 = vector.broadcast %cst : bf16 to vector<2x256xbf16>
    %cst_3 = arith.constant 0.000000e+00 : f32
    %3 = vector.broadcast %cst_3 : f32 to vector<2x256xf32>
    %c0_4 = arith.constant 0 : index
    %c0_5 = arith.constant 0 : index
    %c0_6 = arith.constant 0 : index
    %4 = vector.load %arg0[%c0_4, %c0_5, %c0_6] : memref<8x2x128xbf16, #tpu.memory_space<vmem>>, vector<1x2x128xbf16>
    %5 = vector.shape_cast %4 : vector<1x2x128xbf16> to vector<2x128xbf16>
    %6 = tpu.concatenate %5, %2 in 1 : vector<2x128xbf16>, vector<2x256xbf16> -> vector<2x384xbf16>
    %c0_7 = arith.constant 0 : index
    %c0_8 = arith.constant 0 : index
    %7 = vector.load %arg1[%c0_7, %c0_8] : memref<384x1024xbf16, #tpu.memory_space<vmem>>, vector<384x1024xbf16>
    %cst_9 = arith.constant dense<0.000000e+00> : vector<2x1024xf32>
    %8 = tpu.matmul %6, %7, %cst_9 {dimension_numbers = #tpu.dot_dimension_numbers<[1], [0], [0], [1], [0, 0, 1, 1], [], []>} : vector<2x384xbf16>, vector<384x1024xbf16>, vector<2x1024xf32> -> vector<2x1024xf32>
    %9 = vector.broadcast %0 : vector<1x1024xf32> to vector<2x1024xf32>
    %10 = arith.addf %8, %9 : vector<2x1024xf32>
    %11 = vector.extract_strided_slice %10 {offsets = [0, 0], sizes = [2, 256], strides = [1, 1]} : vector<2x1024xf32> to vector<2x256xf32>
    %cst_10 = arith.constant 5.000000e-01 : f32
    %12 = vector.broadcast %cst_10 : f32 to vector<2x256xf32>
    %13 = arith.mulf %12, %11 : vector<2x256xf32>
    %14 = math.tanh %13 : vector<2x256xf32>
    %cst_11 = arith.constant 1.000000e+00 : f32
    %15 = vector.broadcast %cst_11 : f32 to vector<2x256xf32>
    %16 = arith.addf %14, %15 : vector<2x256xf32>
    %cst_12 = arith.constant 5.000000e-01 : f32
    %17 = vector.broadcast %cst_12 : f32 to vector<2x256xf32>
    %18 = arith.mulf %17, %16 : vector<2x256xf32>
    %19 = vector.extract_strided_slice %10 {offsets = [0, 256], sizes = [2, 256], strides = [1, 1]} : vector<2x1024xf32> to vector<2x256xf32>
    %cst_13 = arith.constant 5.000000e-01 : f32
    %20 = vector.broadcast %cst_13 : f32 to vector<2x256xf32>
    %21 = arith.mulf %20, %19 : vector<2x256xf32>
    %22 = math.tanh %21 : vector<2x256xf32>
    %cst_14 = arith.constant 1.000000e+00 : f32
    %23 = vector.broadcast %cst_14 : f32 to vector<2x256xf32>
    %24 = arith.addf %22, %23 : vector<2x256xf32>
    %cst_15 = arith.constant 5.000000e-01 : f32
    %25 = vector.broadcast %cst_15 : f32 to vector<2x256xf32>
    %26 = arith.mulf %25, %24 : vector<2x256xf32>
    %27 = vector.extract_strided_slice %10 {offsets = [0, 512], sizes = [2, 256], strides = [1, 1]} : vector<2x1024xf32> to vector<2x256xf32>
    %28 = math.tanh %27 : vector<2x256xf32>
    %29 = vector.extract_strided_slice %10 {offsets = [0, 768], sizes = [2, 256], strides = [1, 1]} : vector<2x1024xf32> to vector<2x256xf32>
    %cst_16 = arith.constant 5.000000e-01 : f32
    %30 = vector.broadcast %cst_16 : f32 to vector<2x256xf32>
    %31 = arith.mulf %30, %29 : vector<2x256xf32>
    %32 = math.tanh %31 : vector<2x256xf32>
    %cst_17 = arith.constant 1.000000e+00 : f32
    %33 = vector.broadcast %cst_17 : f32 to vector<2x256xf32>
    %34 = arith.addf %32, %33 : vector<2x256xf32>
    %cst_18 = arith.constant 5.000000e-01 : f32
    %35 = vector.broadcast %cst_18 : f32 to vector<2x256xf32>
    %36 = arith.mulf %35, %34 : vector<2x256xf32>
    %37 = arith.mulf %26, %3 : vector<2x256xf32>
    %38 = arith.mulf %18, %28 : vector<2x256xf32>
    %39 = arith.addf %37, %38 : vector<2x256xf32>
    %40 = math.tanh %39 : vector<2x256xf32>
    %41 = arith.mulf %36, %40 : vector<2x256xf32>
    %c1_i32 = arith.constant 1 : i32
    %42 = arith.truncf %41 : vector<2x256xf32> to vector<2x256xbf16>
    %43 = arith.truncf %3 : vector<2x256xf32> to vector<2x256xbf16>
    %44 = arith.index_cast %c1_i32 : i32 to index
    %c0_19 = arith.constant 0 : index
    %c0_20 = arith.constant 0 : index
    %45 = vector.load %arg0[%44, %c0_19, %c0_20] : memref<8x2x128xbf16, #tpu.memory_space<vmem>>, vector<1x2x128xbf16>
    %46 = vector.shape_cast %45 : vector<1x2x128xbf16> to vector<2x128xbf16>
    %47 = tpu.concatenate %46, %42 in 1 : vector<2x128xbf16>, vector<2x256xbf16> -> vector<2x384xbf16>
    %48 = tpu.concatenate %42, %43 in 1 : vector<2x256xbf16>, vector<2x256xbf16> -> vector<2x512xbf16>
    %c0_21 = arith.constant 0 : index
    %c0_22 = arith.constant 0 : index
    %49 = vector.load %arg1[%c0_21, %c0_22] : memref<384x1024xbf16, #tpu.memory_space<vmem>>, vector<384x1024xbf16>
    %cst_23 = arith.constant dense<0.000000e+00> : vector<2x1024xf32>
    %50 = tpu.matmul %47, %49, %cst_23 {dimension_numbers = #tpu.dot_dimension_numbers<[1], [0], [0], [1], [0, 0, 1, 1], [], []>} : vector<2x384xbf16>, vector<384x1024xbf16>, vector<2x1024xf32> -> vector<2x1024xf32>
    %51 = vector.broadcast %0 : vector<1x1024xf32> to vector<2x1024xf32>
    %52 = arith.addf %50, %51 : vector<2x1024xf32>
    %c0_24 = arith.constant 0 : index
    %c0_25 = arith.constant 0 : index
    %53 = vector.load %arg2[%c0_24, %c0_25] : memref<512x1024xbf16, #tpu.memory_space<vmem>>, vector<512x1024xbf16>
    %cst_26 = arith.constant dense<0.000000e+00> : vector<2x1024xf32>
    %54 = tpu.matmul %48, %53, %cst_26 {dimension_numbers = #tpu.dot_dimension_numbers<[1], [0], [0], [1], [0, 0, 1, 1], [], []>} : vector<2x512xbf16>, vector<512x1024xbf16>, vector<2x1024xf32> -> vector<2x1024xf32>
    %55 = vector.broadcast %1 : vector<1x1024xf32> to vector<2x1024xf32>
    %56 = arith.addf %54, %55 : vector<2x1024xf32>
    %57 = vector.extract_strided_slice %52 {offsets = [0, 0], sizes = [2, 256], strides = [1, 1]} : vector<2x1024xf32> to vector<2x256xf32>
    %cst_27 = arith.constant 5.000000e-01 : f32
    %58 = vector.broadcast %cst_27 : f32 to vector<2x256xf32>
    %59 = arith.mulf %58, %57 : vector<2x256xf32>
    %60 = math.tanh %59 : vector<2x256xf32>
    %cst_28 = arith.constant 1.000000e+00 : f32
    %61 = vector.broadcast %cst_28 : f32 to vector<2x256xf32>
    %62 = arith.addf %60, %61 : vector<2x256xf32>
    %cst_29 = arith.constant 5.000000e-01 : f32
    %63 = vector.broadcast %cst_29 : f32 to vector<2x256xf32>
    %64 = arith.mulf %63, %62 : vector<2x256xf32>
    %65 = vector.extract_strided_slice %52 {offsets = [0, 256], sizes = [2, 256], strides = [1, 1]} : vector<2x1024xf32> to vector<2x256xf32>
    %cst_30 = arith.constant 5.000000e-01 : f32
    %66 = vector.broadcast %cst_30 : f32 to vector<2x256xf32>
    %67 = arith.mulf %66, %65 : vector<2x256xf32>
    %68 = math.tanh %67 : vector<2x256xf32>
    %cst_31 = arith.constant 1.000000e+00 : f32
    %69 = vector.broadcast %cst_31 : f32 to vector<2x256xf32>
    %70 = arith.addf %68, %69 : vector<2x256xf32>
    %cst_32 = arith.constant 5.000000e-01 : f32
    %71 = vector.broadcast %cst_32 : f32 to vector<2x256xf32>
    %72 = arith.mulf %71, %70 : vector<2x256xf32>
    %73 = vector.extract_strided_slice %52 {offsets = [0, 512], sizes = [2, 256], strides = [1, 1]} : vector<2x1024xf32> to vector<2x256xf32>
    %74 = math.tanh %73 : vector<2x256xf32>
    %75 = vector.extract_strided_slice %52 {offsets = [0, 768], sizes = [2, 256], strides = [1, 1]} : vector<2x1024xf32> to vector<2x256xf32>
    %cst_33 = arith.constant 5.000000e-01 : f32
    %76 = vector.broadcast %cst_33 : f32 to vector<2x256xf32>
    %77 = arith.mulf %76, %75 : vector<2x256xf32>
    %78 = math.tanh %77 : vector<2x256xf32>
    %cst_34 = arith.constant 1.000000e+00 : f32
    %79 = vector.broadcast %cst_34 : f32 to vector<2x256xf32>
    %80 = arith.addf %78, %79 : vector<2x256xf32>
    %cst_35 = arith.constant 5.000000e-01 : f32
    %81 = vector.broadcast %cst_35 : f32 to vector<2x256xf32>
    %82 = arith.mulf %81, %80 : vector<2x256xf32>
    %83 = arith.mulf %72, %39 : vector<2x256xf32>
    %84 = arith.mulf %64, %74 : vector<2x256xf32>
    %85 = arith.addf %83, %84 : vector<2x256xf32>
    %86 = math.tanh %85 : vector<2x256xf32>
    %87 = arith.mulf %82, %86 : vector<2x256xf32>
    %88 = vector.extract_strided_slice %56 {offsets = [0, 0], sizes = [2, 256], strides = [1, 1]} : vector<2x1024xf32> to vector<2x256xf32>
    %cst_36 = arith.constant 5.000000e-01 : f32
    %89 = vector.broadcast %cst_36 : f32 to vector<2x256xf32>
    %90 = arith.mulf %89, %88 : vector<2x256xf32>
    %91 = math.tanh %90 : vector<2x256xf32>
    %cst_37 = arith.constant 1.000000e+00 : f32
    %92 = vector.broadcast %cst_37 : f32 to vector<2x256xf32>
    %93 = arith.addf %91, %92 : vector<2x256xf32>
    %cst_38 = arith.constant 5.000000e-01 : f32
    %94 = vector.broadcast %cst_38 : f32 to vector<2x256xf32>
    %95 = arith.mulf %94, %93 : vector<2x256xf32>
    %96 = vector.extract_strided_slice %56 {offsets = [0, 256], sizes = [2, 256], strides = [1, 1]} : vector<2x1024xf32> to vector<2x256xf32>
    %cst_39 = arith.constant 5.000000e-01 : f32
    %97 = vector.broadcast %cst_39 : f32 to vector<2x256xf32>
    %98 = arith.mulf %97, %96 : vector<2x256xf32>
    %99 = math.tanh %98 : vector<2x256xf32>
    %cst_40 = arith.constant 1.000000e+00 : f32
    %100 = vector.broadcast %cst_40 : f32 to vector<2x256xf32>
    %101 = arith.addf %99, %100 : vector<2x256xf32>
    %cst_41 = arith.constant 5.000000e-01 : f32
    %102 = vector.broadcast %cst_41 : f32 to vector<2x256xf32>
    %103 = arith.mulf %102, %101 : vector<2x256xf32>
    %104 = vector.extract_strided_slice %56 {offsets = [0, 512], sizes = [2, 256], strides = [1, 1]} : vector<2x1024xf32> to vector<2x256xf32>
    %105 = math.tanh %104 : vector<2x256xf32>
    %106 = vector.extract_strided_slice %56 {offsets = [0, 768], sizes = [2, 256], strides = [1, 1]} : vector<2x1024xf32> to vector<2x256xf32>
    %cst_42 = arith.constant 5.000000e-01 : f32
    %107 = vector.broadcast %cst_42 : f32 to vector<2x256xf32>
    %108 = arith.mulf %107, %106 : vector<2x256xf32>
    %109 = math.tanh %108 : vector<2x256xf32>
    %cst_43 = arith.constant 1.000000e+00 : f32
    %110 = vector.broadcast %cst_43 : f32 to vector<2x256xf32>
    %111 = arith.addf %109, %110 : vector<2x256xf32>
    %cst_44 = arith.constant 5.000000e-01 : f32
    %112 = vector.broadcast %cst_44 : f32 to vector<2x256xf32>
    %113 = arith.mulf %112, %111 : vector<2x256xf32>
    %114 = arith.mulf %103, %3 : vector<2x256xf32>
    %115 = arith.mulf %95, %105 : vector<2x256xf32>
    %116 = arith.addf %114, %115 : vector<2x256xf32>
    %117 = math.tanh %116 : vector<2x256xf32>
    %118 = arith.mulf %113, %117 : vector<2x256xf32>
    %c2_i32 = arith.constant 2 : i32
    %119 = arith.truncf %87 : vector<2x256xf32> to vector<2x256xbf16>
    %120 = arith.truncf %118 : vector<2x256xf32> to vector<2x256xbf16>
    %121 = arith.index_cast %c2_i32 : i32 to index
    %c0_45 = arith.constant 0 : index
    %c0_46 = arith.constant 0 : index
    %122 = vector.load %arg0[%121, %c0_45, %c0_46] : memref<8x2x128xbf16, #tpu.memory_space<vmem>>, vector<1x2x128xbf16>
    %123 = vector.shape_cast %122 : vector<1x2x128xbf16> to vector<2x128xbf16>
    %124 = tpu.concatenate %123, %119 in 1 : vector<2x128xbf16>, vector<2x256xbf16> -> vector<2x384xbf16>
    %125 = tpu.concatenate %119, %120 in 1 : vector<2x256xbf16>, vector<2x256xbf16> -> vector<2x512xbf16>
    %c0_47 = arith.constant 0 : index
    %c0_48 = arith.constant 0 : index
    %126 = vector.load %arg1[%c0_47, %c0_48] : memref<384x1024xbf16, #tpu.memory_space<vmem>>, vector<384x1024xbf16>
    %cst_49 = arith.constant dense<0.000000e+00> : vector<2x1024xf32>
    %127 = tpu.matmul %124, %126, %cst_49 {dimension_numbers = #tpu.dot_dimension_numbers<[1], [0], [0], [1], [0, 0, 1, 1], [], []>} : vector<2x384xbf16>, vector<384x1024xbf16>, vector<2x1024xf32> -> vector<2x1024xf32>
    %128 = vector.broadcast %0 : vector<1x1024xf32> to vector<2x1024xf32>
    %129 = arith.addf %127, %128 : vector<2x1024xf32>
    %c0_50 = arith.constant 0 : index
    %c0_51 = arith.constant 0 : index
    %130 = vector.load %arg2[%c0_50, %c0_51] : memref<512x1024xbf16, #tpu.memory_space<vmem>>, vector<512x1024xbf16>
    %cst_52 = arith.constant dense<0.000000e+00> : vector<2x1024xf32>
    %131 = tpu.matmul %125, %130, %cst_52 {dimension_numbers = #tpu.dot_dimension_numbers<[1], [0], [0], [1], [0, 0, 1, 1], [], []>} : vector<2x512xbf16>, vector<512x1024xbf16>, vector<2x1024xf32> -> vector<2x1024xf32>
    %132 = vector.broadcast %1 : vector<1x1024xf32> to vector<2x1024xf32>
    %133 = arith.addf %131, %132 : vector<2x1024xf32>
    %134 = vector.extract_strided_slice %129 {offsets = [0, 0], sizes = [2, 256], strides = [1, 1]} : vector<2x1024xf32> to vector<2x256xf32>
    %cst_53 = arith.constant 5.000000e-01 : f32
    %135 = vector.broadcast %cst_53 : f32 to vector<2x256xf32>
    %136 = arith.mulf %135, %134 : vector<2x256xf32>
    %137 = math.tanh %136 : vector<2x256xf32>
    %cst_54 = arith.constant 1.000000e+00 : f32
    %138 = vector.broadcast %cst_54 : f32 to vector<2x256xf32>
    %139 = arith.addf %137, %138 : vector<2x256xf32>
    %cst_55 = arith.constant 5.000000e-01 : f32
    %140 = vector.broadcast %cst_55 : f32 to vector<2x256xf32>
    %141 = arith.mulf %140, %139 : vector<2x256xf32>
    %142 = vector.extract_strided_slice %129 {offsets = [0, 256], sizes = [2, 256], strides = [1, 1]} : vector<2x1024xf32> to vector<2x256xf32>
    %cst_56 = arith.constant 5.000000e-01 : f32
    %143 = vector.broadcast %cst_56 : f32 to vector<2x256xf32>
    %144 = arith.mulf %143, %142 : vector<2x256xf32>
    %145 = math.tanh %144 : vector<2x256xf32>
    %cst_57 = arith.constant 1.000000e+00 : f32
    %146 = vector.broadcast %cst_57 : f32 to vector<2x256xf32>
    %147 = arith.addf %145, %146 : vector<2x256xf32>
    %cst_58 = arith.constant 5.000000e-01 : f32
    %148 = vector.broadcast %cst_58 : f32 to vector<2x256xf32>
    %149 = arith.mulf %148, %147 : vector<2x256xf32>
    %150 = vector.extract_strided_slice %129 {offsets = [0, 512], sizes = [2, 256], strides = [1, 1]} : vector<2x1024xf32> to vector<2x256xf32>
    %151 = math.tanh %150 : vector<2x256xf32>
    %152 = vector.extract_strided_slice %129 {offsets = [0, 768], sizes = [2, 256], strides = [1, 1]} : vector<2x1024xf32> to vector<2x256xf32>
    %cst_59 = arith.constant 5.000000e-01 : f32
    %153 = vector.broadcast %cst_59 : f32 to vector<2x256xf32>
    %154 = arith.mulf %153, %152 : vector<2x256xf32>
    %155 = math.tanh %154 : vector<2x256xf32>
    %cst_60 = arith.constant 1.000000e+00 : f32
    %156 = vector.broadcast %cst_60 : f32 to vector<2x256xf32>
    %157 = arith.addf %155, %156 : vector<2x256xf32>
    %cst_61 = arith.constant 5.000000e-01 : f32
    %158 = vector.broadcast %cst_61 : f32 to vector<2x256xf32>
    %159 = arith.mulf %158, %157 : vector<2x256xf32>
    %160 = arith.mulf %149, %85 : vector<2x256xf32>
    %161 = arith.mulf %141, %151 : vector<2x256xf32>
    %162 = arith.addf %160, %161 : vector<2x256xf32>
    %163 = math.tanh %162 : vector<2x256xf32>
    %164 = arith.mulf %159, %163 : vector<2x256xf32>
    %165 = vector.extract_strided_slice %133 {offsets = [0, 0], sizes = [2, 256], strides = [1, 1]} : vector<2x1024xf32> to vector<2x256xf32>
    %cst_62 = arith.constant 5.000000e-01 : f32
    %166 = vector.broadcast %cst_62 : f32 to vector<2x256xf32>
    %167 = arith.mulf %166, %165 : vector<2x256xf32>
    %168 = math.tanh %167 : vector<2x256xf32>
    %cst_63 = arith.constant 1.000000e+00 : f32
    %169 = vector.broadcast %cst_63 : f32 to vector<2x256xf32>
    %170 = arith.addf %168, %169 : vector<2x256xf32>
    %cst_64 = arith.constant 5.000000e-01 : f32
    %171 = vector.broadcast %cst_64 : f32 to vector<2x256xf32>
    %172 = arith.mulf %171, %170 : vector<2x256xf32>
    %173 = vector.extract_strided_slice %133 {offsets = [0, 256], sizes = [2, 256], strides = [1, 1]} : vector<2x1024xf32> to vector<2x256xf32>
    %cst_65 = arith.constant 5.000000e-01 : f32
    %174 = vector.broadcast %cst_65 : f32 to vector<2x256xf32>
    %175 = arith.mulf %174, %173 : vector<2x256xf32>
    %176 = math.tanh %175 : vector<2x256xf32>
    %cst_66 = arith.constant 1.000000e+00 : f32
    %177 = vector.broadcast %cst_66 : f32 to vector<2x256xf32>
    %178 = arith.addf %176, %177 : vector<2x256xf32>
    %cst_67 = arith.constant 5.000000e-01 : f32
    %179 = vector.broadcast %cst_67 : f32 to vector<2x256xf32>
    %180 = arith.mulf %179, %178 : vector<2x256xf32>
    %181 = vector.extract_strided_slice %133 {offsets = [0, 512], sizes = [2, 256], strides = [1, 1]} : vector<2x1024xf32> to vector<2x256xf32>
    %182 = math.tanh %181 : vector<2x256xf32>
    %183 = vector.extract_strided_slice %133 {offsets = [0, 768], sizes = [2, 256], strides = [1, 1]} : vector<2x1024xf32> to vector<2x256xf32>
    %cst_68 = arith.constant 5.000000e-01 : f32
    %184 = vector.broadcast %cst_68 : f32 to vector<2x256xf32>
    %185 = arith.mulf %184, %183 : vector<2x256xf32>
    %186 = math.tanh %185 : vector<2x256xf32>
    %cst_69 = arith.constant 1.000000e+00 : f32
    %187 = vector.broadcast %cst_69 : f32 to vector<2x256xf32>
    %188 = arith.addf %186, %187 : vector<2x256xf32>
    %cst_70 = arith.constant 5.000000e-01 : f32
    %189 = vector.broadcast %cst_70 : f32 to vector<2x256xf32>
    %190 = arith.mulf %189, %188 : vector<2x256xf32>
    %191 = arith.mulf %180, %116 : vector<2x256xf32>
    %192 = arith.mulf %172, %182 : vector<2x256xf32>
    %193 = arith.addf %191, %192 : vector<2x256xf32>
    %194 = math.tanh %193 : vector<2x256xf32>
    %195 = arith.mulf %190, %194 : vector<2x256xf32>
    %c3_i32 = arith.constant 3 : i32
    %196 = arith.truncf %164 : vector<2x256xf32> to vector<2x256xbf16>
    %197 = arith.truncf %195 : vector<2x256xf32> to vector<2x256xbf16>
    %198 = arith.index_cast %c3_i32 : i32 to index
    %c0_71 = arith.constant 0 : index
    %c0_72 = arith.constant 0 : index
    %199 = vector.load %arg0[%198, %c0_71, %c0_72] : memref<8x2x128xbf16, #tpu.memory_space<vmem>>, vector<1x2x128xbf16>
    %200 = vector.shape_cast %199 : vector<1x2x128xbf16> to vector<2x128xbf16>
    %201 = tpu.concatenate %200, %196 in 1 : vector<2x128xbf16>, vector<2x256xbf16> -> vector<2x384xbf16>
    %202 = tpu.concatenate %196, %197 in 1 : vector<2x256xbf16>, vector<2x256xbf16> -> vector<2x512xbf16>
    %c0_73 = arith.constant 0 : index
    %c0_74 = arith.constant 0 : index
    %203 = vector.load %arg1[%c0_73, %c0_74] : memref<384x1024xbf16, #tpu.memory_space<vmem>>, vector<384x1024xbf16>
    %cst_75 = arith.constant dense<0.000000e+00> : vector<2x1024xf32>
    %204 = tpu.matmul %201, %203, %cst_75 {dimension_numbers = #tpu.dot_dimension_numbers<[1], [0], [0], [1], [0, 0, 1, 1], [], []>} : vector<2x384xbf16>, vector<384x1024xbf16>, vector<2x1024xf32> -> vector<2x1024xf32>
    %205 = vector.broadcast %0 : vector<1x1024xf32> to vector<2x1024xf32>
    %206 = arith.addf %204, %205 : vector<2x1024xf32>
    %c0_76 = arith.constant 0 : index
    %c0_77 = arith.constant 0 : index
    %207 = vector.load %arg2[%c0_76, %c0_77] : memref<512x1024xbf16, #tpu.memory_space<vmem>>, vector<512x1024xbf16>
    %cst_78 = arith.constant dense<0.000000e+00> : vector<2x1024xf32>
    %208 = tpu.matmul %202, %207, %cst_78 {dimension_numbers = #tpu.dot_dimension_numbers<[1], [0], [0], [1], [0, 0, 1, 1], [], []>} : vector<2x512xbf16>, vector<512x1024xbf16>, vector<2x1024xf32> -> vector<2x1024xf32>
    %209 = vector.broadcast %1 : vector<1x1024xf32> to vector<2x1024xf32>
    %210 = arith.addf %208, %209 : vector<2x1024xf32>
    %211 = vector.extract_strided_slice %206 {offsets = [0, 0], sizes = [2, 256], strides = [1, 1]} : vector<2x1024xf32> to vector<2x256xf32>
    %cst_79 = arith.constant 5.000000e-01 : f32
    %212 = vector.broadcast %cst_79 : f32 to vector<2x256xf32>
    %213 = arith.mulf %212, %211 : vector<2x256xf32>
    %214 = math.tanh %213 : vector<2x256xf32>
    %cst_80 = arith.constant 1.000000e+00 : f32
    %215 = vector.broadcast %cst_80 : f32 to vector<2x256xf32>
    %216 = arith.addf %214, %215 : vector<2x256xf32>
    %cst_81 = arith.constant 5.000000e-01 : f32
    %217 = vector.broadcast %cst_81 : f32 to vector<2x256xf32>
    %218 = arith.mulf %217, %216 : vector<2x256xf32>
    %219 = vector.extract_strided_slice %206 {offsets = [0, 256], sizes = [2, 256], strides = [1, 1]} : vector<2x1024xf32> to vector<2x256xf32>
    %cst_82 = arith.constant 5.000000e-01 : f32
    %220 = vector.broadcast %cst_82 : f32 to vector<2x256xf32>
    %221 = arith.mulf %220, %219 : vector<2x256xf32>
    %222 = math.tanh %221 : vector<2x256xf32>
    %cst_83 = arith.constant 1.000000e+00 : f32
    %223 = vector.broadcast %cst_83 : f32 to vector<2x256xf32>
    %224 = arith.addf %222, %223 : vector<2x256xf32>
    %cst_84 = arith.constant 5.000000e-01 : f32
    %225 = vector.broadcast %cst_84 : f32 to vector<2x256xf32>
    %226 = arith.mulf %225, %224 : vector<2x256xf32>
    %227 = vector.extract_strided_slice %206 {offsets = [0, 512], sizes = [2, 256], strides = [1, 1]} : vector<2x1024xf32> to vector<2x256xf32>
    %228 = math.tanh %227 : vector<2x256xf32>
    %229 = vector.extract_strided_slice %206 {offsets = [0, 768], sizes = [2, 256], strides = [1, 1]} : vector<2x1024xf32> to vector<2x256xf32>
    %cst_85 = arith.constant 5.000000e-01 : f32
    %230 = vector.broadcast %cst_85 : f32 to vector<2x256xf32>
    %231 = arith.mulf %230, %229 : vector<2x256xf32>
    %232 = math.tanh %231 : vector<2x256xf32>
    %cst_86 = arith.constant 1.000000e+00 : f32
    %233 = vector.broadcast %cst_86 : f32 to vector<2x256xf32>
    %234 = arith.addf %232, %233 : vector<2x256xf32>
    %cst_87 = arith.constant 5.000000e-01 : f32
    %235 = vector.broadcast %cst_87 : f32 to vector<2x256xf32>
    %236 = arith.mulf %235, %234 : vector<2x256xf32>
    %237 = arith.mulf %226, %162 : vector<2x256xf32>
    %238 = arith.mulf %218, %228 : vector<2x256xf32>
    %239 = arith.addf %237, %238 : vector<2x256xf32>
    %240 = math.tanh %239 : vector<2x256xf32>
    %241 = arith.mulf %236, %240 : vector<2x256xf32>
    %242 = vector.extract_strided_slice %210 {offsets = [0, 0], sizes = [2, 256], strides = [1, 1]} : vector<2x1024xf32> to vector<2x256xf32>
    %cst_88 = arith.constant 5.000000e-01 : f32
    %243 = vector.broadcast %cst_88 : f32 to vector<2x256xf32>
    %244 = arith.mulf %243, %242 : vector<2x256xf32>
    %245 = math.tanh %244 : vector<2x256xf32>
    %cst_89 = arith.constant 1.000000e+00 : f32
    %246 = vector.broadcast %cst_89 : f32 to vector<2x256xf32>
    %247 = arith.addf %245, %246 : vector<2x256xf32>
    %cst_90 = arith.constant 5.000000e-01 : f32
    %248 = vector.broadcast %cst_90 : f32 to vector<2x256xf32>
    %249 = arith.mulf %248, %247 : vector<2x256xf32>
    %250 = vector.extract_strided_slice %210 {offsets = [0, 256], sizes = [2, 256], strides = [1, 1]} : vector<2x1024xf32> to vector<2x256xf32>
    %cst_91 = arith.constant 5.000000e-01 : f32
    %251 = vector.broadcast %cst_91 : f32 to vector<2x256xf32>
    %252 = arith.mulf %251, %250 : vector<2x256xf32>
    %253 = math.tanh %252 : vector<2x256xf32>
    %cst_92 = arith.constant 1.000000e+00 : f32
    %254 = vector.broadcast %cst_92 : f32 to vector<2x256xf32>
    %255 = arith.addf %253, %254 : vector<2x256xf32>
    %cst_93 = arith.constant 5.000000e-01 : f32
    %256 = vector.broadcast %cst_93 : f32 to vector<2x256xf32>
    %257 = arith.mulf %256, %255 : vector<2x256xf32>
    %258 = vector.extract_strided_slice %210 {offsets = [0, 512], sizes = [2, 256], strides = [1, 1]} : vector<2x1024xf32> to vector<2x256xf32>
    %259 = math.tanh %258 : vector<2x256xf32>
    %260 = vector.extract_strided_slice %210 {offsets = [0, 768], sizes = [2, 256], strides = [1, 1]} : vector<2x1024xf32> to vector<2x256xf32>
    %cst_94 = arith.constant 5.000000e-01 : f32
    %261 = vector.broadcast %cst_94 : f32 to vector<2x256xf32>
    %262 = arith.mulf %261, %260 : vector<2x256xf32>
    %263 = math.tanh %262 : vector<2x256xf32>
    %cst_95 = arith.constant 1.000000e+00 : f32
    %264 = vector.broadcast %cst_95 : f32 to vector<2x256xf32>
    %265 = arith.addf %263, %264 : vector<2x256xf32>
    %cst_96 = arith.constant 5.000000e-01 : f32
    %266 = vector.broadcast %cst_96 : f32 to vector<2x256xf32>
    %267 = arith.mulf %266, %265 : vector<2x256xf32>
    %268 = arith.mulf %257, %193 : vector<2x256xf32>
    %269 = arith.mulf %249, %259 : vector<2x256xf32>
    %270 = arith.addf %268, %269 : vector<2x256xf32>
    %271 = math.tanh %270 : vector<2x256xf32>
    %272 = arith.mulf %267, %271 : vector<2x256xf32>
    %c4_i32 = arith.constant 4 : i32
    %273 = arith.truncf %241 : vector<2x256xf32> to vector<2x256xbf16>
    %274 = arith.truncf %272 : vector<2x256xf32> to vector<2x256xbf16>
    %275 = arith.index_cast %c4_i32 : i32 to index
    %c0_97 = arith.constant 0 : index
    %c0_98 = arith.constant 0 : index
    %276 = vector.load %arg0[%275, %c0_97, %c0_98] : memref<8x2x128xbf16, #tpu.memory_space<vmem>>, vector<1x2x128xbf16>
    %277 = vector.shape_cast %276 : vector<1x2x128xbf16> to vector<2x128xbf16>
    %278 = tpu.concatenate %277, %273 in 1 : vector<2x128xbf16>, vector<2x256xbf16> -> vector<2x384xbf16>
    %279 = tpu.concatenate %273, %274 in 1 : vector<2x256xbf16>, vector<2x256xbf16> -> vector<2x512xbf16>
    %c0_99 = arith.constant 0 : index
    %c0_100 = arith.constant 0 : index
    %280 = vector.load %arg1[%c0_99, %c0_100] : memref<384x1024xbf16, #tpu.memory_space<vmem>>, vector<384x1024xbf16>
    %cst_101 = arith.constant dense<0.000000e+00> : vector<2x1024xf32>
    %281 = tpu.matmul %278, %280, %cst_101 {dimension_numbers = #tpu.dot_dimension_numbers<[1], [0], [0], [1], [0, 0, 1, 1], [], []>} : vector<2x384xbf16>, vector<384x1024xbf16>, vector<2x1024xf32> -> vector<2x1024xf32>
    %282 = vector.broadcast %0 : vector<1x1024xf32> to vector<2x1024xf32>
    %283 = arith.addf %281, %282 : vector<2x1024xf32>
    %c0_102 = arith.constant 0 : index
    %c0_103 = arith.constant 0 : index
    %284 = vector.load %arg2[%c0_102, %c0_103] : memref<512x1024xbf16, #tpu.memory_space<vmem>>, vector<512x1024xbf16>
    %cst_104 = arith.constant dense<0.000000e+00> : vector<2x1024xf32>
    %285 = tpu.matmul %279, %284, %cst_104 {dimension_numbers = #tpu.dot_dimension_numbers<[1], [0], [0], [1], [0, 0, 1, 1], [], []>} : vector<2x512xbf16>, vector<512x1024xbf16>, vector<2x1024xf32> -> vector<2x1024xf32>
    %286 = vector.broadcast %1 : vector<1x1024xf32> to vector<2x1024xf32>
    %287 = arith.addf %285, %286 : vector<2x1024xf32>
    %288 = vector.extract_strided_slice %283 {offsets = [0, 0], sizes = [2, 256], strides = [1, 1]} : vector<2x1024xf32> to vector<2x256xf32>
    %cst_105 = arith.constant 5.000000e-01 : f32
    %289 = vector.broadcast %cst_105 : f32 to vector<2x256xf32>
    %290 = arith.mulf %289, %288 : vector<2x256xf32>
    %291 = math.tanh %290 : vector<2x256xf32>
    %cst_106 = arith.constant 1.000000e+00 : f32
    %292 = vector.broadcast %cst_106 : f32 to vector<2x256xf32>
    %293 = arith.addf %291, %292 : vector<2x256xf32>
    %cst_107 = arith.constant 5.000000e-01 : f32
    %294 = vector.broadcast %cst_107 : f32 to vector<2x256xf32>
    %295 = arith.mulf %294, %293 : vector<2x256xf32>
    %296 = vector.extract_strided_slice %283 {offsets = [0, 256], sizes = [2, 256], strides = [1, 1]} : vector<2x1024xf32> to vector<2x256xf32>
    %cst_108 = arith.constant 5.000000e-01 : f32
    %297 = vector.broadcast %cst_108 : f32 to vector<2x256xf32>
    %298 = arith.mulf %297, %296 : vector<2x256xf32>
    %299 = math.tanh %298 : vector<2x256xf32>
    %cst_109 = arith.constant 1.000000e+00 : f32
    %300 = vector.broadcast %cst_109 : f32 to vector<2x256xf32>
    %301 = arith.addf %299, %300 : vector<2x256xf32>
    %cst_110 = arith.constant 5.000000e-01 : f32
    %302 = vector.broadcast %cst_110 : f32 to vector<2x256xf32>
    %303 = arith.mulf %302, %301 : vector<2x256xf32>
    %304 = vector.extract_strided_slice %283 {offsets = [0, 512], sizes = [2, 256], strides = [1, 1]} : vector<2x1024xf32> to vector<2x256xf32>
    %305 = math.tanh %304 : vector<2x256xf32>
    %306 = vector.extract_strided_slice %283 {offsets = [0, 768], sizes = [2, 256], strides = [1, 1]} : vector<2x1024xf32> to vector<2x256xf32>
    %cst_111 = arith.constant 5.000000e-01 : f32
    %307 = vector.broadcast %cst_111 : f32 to vector<2x256xf32>
    %308 = arith.mulf %307, %306 : vector<2x256xf32>
    %309 = math.tanh %308 : vector<2x256xf32>
    %cst_112 = arith.constant 1.000000e+00 : f32
    %310 = vector.broadcast %cst_112 : f32 to vector<2x256xf32>
    %311 = arith.addf %309, %310 : vector<2x256xf32>
    %cst_113 = arith.constant 5.000000e-01 : f32
    %312 = vector.broadcast %cst_113 : f32 to vector<2x256xf32>
    %313 = arith.mulf %312, %311 : vector<2x256xf32>
    %314 = arith.mulf %303, %239 : vector<2x256xf32>
    %315 = arith.mulf %295, %305 : vector<2x256xf32>
    %316 = arith.addf %314, %315 : vector<2x256xf32>
    %317 = math.tanh %316 : vector<2x256xf32>
    %318 = arith.mulf %313, %317 : vector<2x256xf32>
    %319 = vector.extract_strided_slice %287 {offsets = [0, 0], sizes = [2, 256], strides = [1, 1]} : vector<2x1024xf32> to vector<2x256xf32>
    %cst_114 = arith.constant 5.000000e-01 : f32
    %320 = vector.broadcast %cst_114 : f32 to vector<2x256xf32>
    %321 = arith.mulf %320, %319 : vector<2x256xf32>
    %322 = math.tanh %321 : vector<2x256xf32>
    %cst_115 = arith.constant 1.000000e+00 : f32
    %323 = vector.broadcast %cst_115 : f32 to vector<2x256xf32>
    %324 = arith.addf %322, %323 : vector<2x256xf32>
    %cst_116 = arith.constant 5.000000e-01 : f32
    %325 = vector.broadcast %cst_116 : f32 to vector<2x256xf32>
    %326 = arith.mulf %325, %324 : vector<2x256xf32>
    %327 = vector.extract_strided_slice %287 {offsets = [0, 256], sizes = [2, 256], strides = [1, 1]} : vector<2x1024xf32> to vector<2x256xf32>
    %cst_117 = arith.constant 5.000000e-01 : f32
    %328 = vector.broadcast %cst_117 : f32 to vector<2x256xf32>
    %329 = arith.mulf %328, %327 : vector<2x256xf32>
    %330 = math.tanh %329 : vector<2x256xf32>
    %cst_118 = arith.constant 1.000000e+00 : f32
    %331 = vector.broadcast %cst_118 : f32 to vector<2x256xf32>
    %332 = arith.addf %330, %331 : vector<2x256xf32>
    %cst_119 = arith.constant 5.000000e-01 : f32
    %333 = vector.broadcast %cst_119 : f32 to vector<2x256xf32>
    %334 = arith.mulf %333, %332 : vector<2x256xf32>
    %335 = vector.extract_strided_slice %287 {offsets = [0, 512], sizes = [2, 256], strides = [1, 1]} : vector<2x1024xf32> to vector<2x256xf32>
    %336 = math.tanh %335 : vector<2x256xf32>
    %337 = vector.extract_strided_slice %287 {offsets = [0, 768], sizes = [2, 256], strides = [1, 1]} : vector<2x1024xf32> to vector<2x256xf32>
    %cst_120 = arith.constant 5.000000e-01 : f32
    %338 = vector.broadcast %cst_120 : f32 to vector<2x256xf32>
    %339 = arith.mulf %338, %337 : vector<2x256xf32>
    %340 = math.tanh %339 : vector<2x256xf32>
    %cst_121 = arith.constant 1.000000e+00 : f32
    %341 = vector.broadcast %cst_121 : f32 to vector<2x256xf32>
    %342 = arith.addf %340, %341 : vector<2x256xf32>
    %cst_122 = arith.constant 5.000000e-01 : f32
    %343 = vector.broadcast %cst_122 : f32 to vector<2x256xf32>
    %344 = arith.mulf %343, %342 : vector<2x256xf32>
    %345 = arith.mulf %334, %270 : vector<2x256xf32>
    %346 = arith.mulf %326, %336 : vector<2x256xf32>
    %347 = arith.addf %345, %346 : vector<2x256xf32>
    %348 = math.tanh %347 : vector<2x256xf32>
    %349 = arith.mulf %344, %348 : vector<2x256xf32>
    %c5_i32 = arith.constant 5 : i32
    %350 = arith.truncf %318 : vector<2x256xf32> to vector<2x256xbf16>
    %351 = arith.truncf %349 : vector<2x256xf32> to vector<2x256xbf16>
    %352 = arith.index_cast %c5_i32 : i32 to index
    %c0_123 = arith.constant 0 : index
    %c0_124 = arith.constant 0 : index
    %353 = vector.load %arg0[%352, %c0_123, %c0_124] : memref<8x2x128xbf16, #tpu.memory_space<vmem>>, vector<1x2x128xbf16>
    %354 = vector.shape_cast %353 : vector<1x2x128xbf16> to vector<2x128xbf16>
    %355 = tpu.concatenate %354, %350 in 1 : vector<2x128xbf16>, vector<2x256xbf16> -> vector<2x384xbf16>
    %356 = tpu.concatenate %350, %351 in 1 : vector<2x256xbf16>, vector<2x256xbf16> -> vector<2x512xbf16>
    %c0_125 = arith.constant 0 : index
    %c0_126 = arith.constant 0 : index
    %357 = vector.load %arg1[%c0_125, %c0_126] : memref<384x1024xbf16, #tpu.memory_space<vmem>>, vector<384x1024xbf16>
    %cst_127 = arith.constant dense<0.000000e+00> : vector<2x1024xf32>
    %358 = tpu.matmul %355, %357, %cst_127 {dimension_numbers = #tpu.dot_dimension_numbers<[1], [0], [0], [1], [0, 0, 1, 1], [], []>} : vector<2x384xbf16>, vector<384x1024xbf16>, vector<2x1024xf32> -> vector<2x1024xf32>
    %359 = vector.broadcast %0 : vector<1x1024xf32> to vector<2x1024xf32>
    %360 = arith.addf %358, %359 : vector<2x1024xf32>
    %c0_128 = arith.constant 0 : index
    %c0_129 = arith.constant 0 : index
    %361 = vector.load %arg2[%c0_128, %c0_129] : memref<512x1024xbf16, #tpu.memory_space<vmem>>, vector<512x1024xbf16>
    %cst_130 = arith.constant dense<0.000000e+00> : vector<2x1024xf32>
    %362 = tpu.matmul %356, %361, %cst_130 {dimension_numbers = #tpu.dot_dimension_numbers<[1], [0], [0], [1], [0, 0, 1, 1], [], []>} : vector<2x512xbf16>, vector<512x1024xbf16>, vector<2x1024xf32> -> vector<2x1024xf32>
    %363 = vector.broadcast %1 : vector<1x1024xf32> to vector<2x1024xf32>
    %364 = arith.addf %362, %363 : vector<2x1024xf32>
    %365 = vector.extract_strided_slice %360 {offsets = [0, 0], sizes = [2, 256], strides = [1, 1]} : vector<2x1024xf32> to vector<2x256xf32>
    %cst_131 = arith.constant 5.000000e-01 : f32
    %366 = vector.broadcast %cst_131 : f32 to vector<2x256xf32>
    %367 = arith.mulf %366, %365 : vector<2x256xf32>
    %368 = math.tanh %367 : vector<2x256xf32>
    %cst_132 = arith.constant 1.000000e+00 : f32
    %369 = vector.broadcast %cst_132 : f32 to vector<2x256xf32>
    %370 = arith.addf %368, %369 : vector<2x256xf32>
    %cst_133 = arith.constant 5.000000e-01 : f32
    %371 = vector.broadcast %cst_133 : f32 to vector<2x256xf32>
    %372 = arith.mulf %371, %370 : vector<2x256xf32>
    %373 = vector.extract_strided_slice %360 {offsets = [0, 256], sizes = [2, 256], strides = [1, 1]} : vector<2x1024xf32> to vector<2x256xf32>
    %cst_134 = arith.constant 5.000000e-01 : f32
    %374 = vector.broadcast %cst_134 : f32 to vector<2x256xf32>
    %375 = arith.mulf %374, %373 : vector<2x256xf32>
    %376 = math.tanh %375 : vector<2x256xf32>
    %cst_135 = arith.constant 1.000000e+00 : f32
    %377 = vector.broadcast %cst_135 : f32 to vector<2x256xf32>
    %378 = arith.addf %376, %377 : vector<2x256xf32>
    %cst_136 = arith.constant 5.000000e-01 : f32
    %379 = vector.broadcast %cst_136 : f32 to vector<2x256xf32>
    %380 = arith.mulf %379, %378 : vector<2x256xf32>
    %381 = vector.extract_strided_slice %360 {offsets = [0, 512], sizes = [2, 256], strides = [1, 1]} : vector<2x1024xf32> to vector<2x256xf32>
    %382 = math.tanh %381 : vector<2x256xf32>
    %383 = vector.extract_strided_slice %360 {offsets = [0, 768], sizes = [2, 256], strides = [1, 1]} : vector<2x1024xf32> to vector<2x256xf32>
    %cst_137 = arith.constant 5.000000e-01 : f32
    %384 = vector.broadcast %cst_137 : f32 to vector<2x256xf32>
    %385 = arith.mulf %384, %383 : vector<2x256xf32>
    %386 = math.tanh %385 : vector<2x256xf32>
    %cst_138 = arith.constant 1.000000e+00 : f32
    %387 = vector.broadcast %cst_138 : f32 to vector<2x256xf32>
    %388 = arith.addf %386, %387 : vector<2x256xf32>
    %cst_139 = arith.constant 5.000000e-01 : f32
    %389 = vector.broadcast %cst_139 : f32 to vector<2x256xf32>
    %390 = arith.mulf %389, %388 : vector<2x256xf32>
    %391 = arith.mulf %380, %316 : vector<2x256xf32>
    %392 = arith.mulf %372, %382 : vector<2x256xf32>
    %393 = arith.addf %391, %392 : vector<2x256xf32>
    %394 = math.tanh %393 : vector<2x256xf32>
    %395 = arith.mulf %390, %394 : vector<2x256xf32>
    %396 = vector.extract_strided_slice %364 {offsets = [0, 0], sizes = [2, 256], strides = [1, 1]} : vector<2x1024xf32> to vector<2x256xf32>
    %cst_140 = arith.constant 5.000000e-01 : f32
    %397 = vector.broadcast %cst_140 : f32 to vector<2x256xf32>
    %398 = arith.mulf %397, %396 : vector<2x256xf32>
    %399 = math.tanh %398 : vector<2x256xf32>
    %cst_141 = arith.constant 1.000000e+00 : f32
    %400 = vector.broadcast %cst_141 : f32 to vector<2x256xf32>
    %401 = arith.addf %399, %400 : vector<2x256xf32>
    %cst_142 = arith.constant 5.000000e-01 : f32
    %402 = vector.broadcast %cst_142 : f32 to vector<2x256xf32>
    %403 = arith.mulf %402, %401 : vector<2x256xf32>
    %404 = vector.extract_strided_slice %364 {offsets = [0, 256], sizes = [2, 256], strides = [1, 1]} : vector<2x1024xf32> to vector<2x256xf32>
    %cst_143 = arith.constant 5.000000e-01 : f32
    %405 = vector.broadcast %cst_143 : f32 to vector<2x256xf32>
    %406 = arith.mulf %405, %404 : vector<2x256xf32>
    %407 = math.tanh %406 : vector<2x256xf32>
    %cst_144 = arith.constant 1.000000e+00 : f32
    %408 = vector.broadcast %cst_144 : f32 to vector<2x256xf32>
    %409 = arith.addf %407, %408 : vector<2x256xf32>
    %cst_145 = arith.constant 5.000000e-01 : f32
    %410 = vector.broadcast %cst_145 : f32 to vector<2x256xf32>
    %411 = arith.mulf %410, %409 : vector<2x256xf32>
    %412 = vector.extract_strided_slice %364 {offsets = [0, 512], sizes = [2, 256], strides = [1, 1]} : vector<2x1024xf32> to vector<2x256xf32>
    %413 = math.tanh %412 : vector<2x256xf32>
    %414 = vector.extract_strided_slice %364 {offsets = [0, 768], sizes = [2, 256], strides = [1, 1]} : vector<2x1024xf32> to vector<2x256xf32>
    %cst_146 = arith.constant 5.000000e-01 : f32
    %415 = vector.broadcast %cst_146 : f32 to vector<2x256xf32>
    %416 = arith.mulf %415, %414 : vector<2x256xf32>
    %417 = math.tanh %416 : vector<2x256xf32>
    %cst_147 = arith.constant 1.000000e+00 : f32
    %418 = vector.broadcast %cst_147 : f32 to vector<2x256xf32>
    %419 = arith.addf %417, %418 : vector<2x256xf32>
    %cst_148 = arith.constant 5.000000e-01 : f32
    %420 = vector.broadcast %cst_148 : f32 to vector<2x256xf32>
    %421 = arith.mulf %420, %419 : vector<2x256xf32>
    %422 = arith.mulf %411, %347 : vector<2x256xf32>
    %423 = arith.mulf %403, %413 : vector<2x256xf32>
    %424 = arith.addf %422, %423 : vector<2x256xf32>
    %425 = math.tanh %424 : vector<2x256xf32>
    %426 = arith.mulf %421, %425 : vector<2x256xf32>
    %c6_i32 = arith.constant 6 : i32
    %427 = arith.truncf %395 : vector<2x256xf32> to vector<2x256xbf16>
    %428 = arith.truncf %426 : vector<2x256xf32> to vector<2x256xbf16>
    %429 = arith.index_cast %c6_i32 : i32 to index
    %c0_149 = arith.constant 0 : index
    %c0_150 = arith.constant 0 : index
    %430 = vector.load %arg0[%429, %c0_149, %c0_150] : memref<8x2x128xbf16, #tpu.memory_space<vmem>>, vector<1x2x128xbf16>
    %431 = vector.shape_cast %430 : vector<1x2x128xbf16> to vector<2x128xbf16>
    %432 = tpu.concatenate %431, %427 in 1 : vector<2x128xbf16>, vector<2x256xbf16> -> vector<2x384xbf16>
    %433 = tpu.concatenate %427, %428 in 1 : vector<2x256xbf16>, vector<2x256xbf16> -> vector<2x512xbf16>
    %c0_151 = arith.constant 0 : index
    %c0_152 = arith.constant 0 : index
    %434 = vector.load %arg1[%c0_151, %c0_152] : memref<384x1024xbf16, #tpu.memory_space<vmem>>, vector<384x1024xbf16>
    %cst_153 = arith.constant dense<0.000000e+00> : vector<2x1024xf32>
    %435 = tpu.matmul %432, %434, %cst_153 {dimension_numbers = #tpu.dot_dimension_numbers<[1], [0], [0], [1], [0, 0, 1, 1], [], []>} : vector<2x384xbf16>, vector<384x1024xbf16>, vector<2x1024xf32> -> vector<2x1024xf32>
    %436 = vector.broadcast %0 : vector<1x1024xf32> to vector<2x1024xf32>
    %437 = arith.addf %435, %436 : vector<2x1024xf32>
    %c0_154 = arith.constant 0 : index
    %c0_155 = arith.constant 0 : index
    %438 = vector.load %arg2[%c0_154, %c0_155] : memref<512x1024xbf16, #tpu.memory_space<vmem>>, vector<512x1024xbf16>
    %cst_156 = arith.constant dense<0.000000e+00> : vector<2x1024xf32>
    %439 = tpu.matmul %433, %438, %cst_156 {dimension_numbers = #tpu.dot_dimension_numbers<[1], [0], [0], [1], [0, 0, 1, 1], [], []>} : vector<2x512xbf16>, vector<512x1024xbf16>, vector<2x1024xf32> -> vector<2x1024xf32>
    %440 = vector.broadcast %1 : vector<1x1024xf32> to vector<2x1024xf32>
    %441 = arith.addf %439, %440 : vector<2x1024xf32>
    %442 = vector.extract_strided_slice %437 {offsets = [0, 0], sizes = [2, 256], strides = [1, 1]} : vector<2x1024xf32> to vector<2x256xf32>
    %cst_157 = arith.constant 5.000000e-01 : f32
    %443 = vector.broadcast %cst_157 : f32 to vector<2x256xf32>
    %444 = arith.mulf %443, %442 : vector<2x256xf32>
    %445 = math.tanh %444 : vector<2x256xf32>
    %cst_158 = arith.constant 1.000000e+00 : f32
    %446 = vector.broadcast %cst_158 : f32 to vector<2x256xf32>
    %447 = arith.addf %445, %446 : vector<2x256xf32>
    %cst_159 = arith.constant 5.000000e-01 : f32
    %448 = vector.broadcast %cst_159 : f32 to vector<2x256xf32>
    %449 = arith.mulf %448, %447 : vector<2x256xf32>
    %450 = vector.extract_strided_slice %437 {offsets = [0, 256], sizes = [2, 256], strides = [1, 1]} : vector<2x1024xf32> to vector<2x256xf32>
    %cst_160 = arith.constant 5.000000e-01 : f32
    %451 = vector.broadcast %cst_160 : f32 to vector<2x256xf32>
    %452 = arith.mulf %451, %450 : vector<2x256xf32>
    %453 = math.tanh %452 : vector<2x256xf32>
    %cst_161 = arith.constant 1.000000e+00 : f32
    %454 = vector.broadcast %cst_161 : f32 to vector<2x256xf32>
    %455 = arith.addf %453, %454 : vector<2x256xf32>
    %cst_162 = arith.constant 5.000000e-01 : f32
    %456 = vector.broadcast %cst_162 : f32 to vector<2x256xf32>
    %457 = arith.mulf %456, %455 : vector<2x256xf32>
    %458 = vector.extract_strided_slice %437 {offsets = [0, 512], sizes = [2, 256], strides = [1, 1]} : vector<2x1024xf32> to vector<2x256xf32>
    %459 = math.tanh %458 : vector<2x256xf32>
    %460 = vector.extract_strided_slice %437 {offsets = [0, 768], sizes = [2, 256], strides = [1, 1]} : vector<2x1024xf32> to vector<2x256xf32>
    %cst_163 = arith.constant 5.000000e-01 : f32
    %461 = vector.broadcast %cst_163 : f32 to vector<2x256xf32>
    %462 = arith.mulf %461, %460 : vector<2x256xf32>
    %463 = math.tanh %462 : vector<2x256xf32>
    %cst_164 = arith.constant 1.000000e+00 : f32
    %464 = vector.broadcast %cst_164 : f32 to vector<2x256xf32>
    %465 = arith.addf %463, %464 : vector<2x256xf32>
    %cst_165 = arith.constant 5.000000e-01 : f32
    %466 = vector.broadcast %cst_165 : f32 to vector<2x256xf32>
    %467 = arith.mulf %466, %465 : vector<2x256xf32>
    %468 = arith.mulf %457, %393 : vector<2x256xf32>
    %469 = arith.mulf %449, %459 : vector<2x256xf32>
    %470 = arith.addf %468, %469 : vector<2x256xf32>
    %471 = math.tanh %470 : vector<2x256xf32>
    %472 = arith.mulf %467, %471 : vector<2x256xf32>
    %473 = vector.extract_strided_slice %441 {offsets = [0, 0], sizes = [2, 256], strides = [1, 1]} : vector<2x1024xf32> to vector<2x256xf32>
    %cst_166 = arith.constant 5.000000e-01 : f32
    %474 = vector.broadcast %cst_166 : f32 to vector<2x256xf32>
    %475 = arith.mulf %474, %473 : vector<2x256xf32>
    %476 = math.tanh %475 : vector<2x256xf32>
    %cst_167 = arith.constant 1.000000e+00 : f32
    %477 = vector.broadcast %cst_167 : f32 to vector<2x256xf32>
    %478 = arith.addf %476, %477 : vector<2x256xf32>
    %cst_168 = arith.constant 5.000000e-01 : f32
    %479 = vector.broadcast %cst_168 : f32 to vector<2x256xf32>
    %480 = arith.mulf %479, %478 : vector<2x256xf32>
    %481 = vector.extract_strided_slice %441 {offsets = [0, 256], sizes = [2, 256], strides = [1, 1]} : vector<2x1024xf32> to vector<2x256xf32>
    %cst_169 = arith.constant 5.000000e-01 : f32
    %482 = vector.broadcast %cst_169 : f32 to vector<2x256xf32>
    %483 = arith.mulf %482, %481 : vector<2x256xf32>
    %484 = math.tanh %483 : vector<2x256xf32>
    %cst_170 = arith.constant 1.000000e+00 : f32
    %485 = vector.broadcast %cst_170 : f32 to vector<2x256xf32>
    %486 = arith.addf %484, %485 : vector<2x256xf32>
    %cst_171 = arith.constant 5.000000e-01 : f32
    %487 = vector.broadcast %cst_171 : f32 to vector<2x256xf32>
    %488 = arith.mulf %487, %486 : vector<2x256xf32>
    %489 = vector.extract_strided_slice %441 {offsets = [0, 512], sizes = [2, 256], strides = [1, 1]} : vector<2x1024xf32> to vector<2x256xf32>
    %490 = math.tanh %489 : vector<2x256xf32>
    %491 = vector.extract_strided_slice %441 {offsets = [0, 768], sizes = [2, 256], strides = [1, 1]} : vector<2x1024xf32> to vector<2x256xf32>
    %cst_172 = arith.constant 5.000000e-01 : f32
    %492 = vector.broadcast %cst_172 : f32 to vector<2x256xf32>
    %493 = arith.mulf %492, %491 : vector<2x256xf32>
    %494 = math.tanh %493 : vector<2x256xf32>
    %cst_173 = arith.constant 1.000000e+00 : f32
    %495 = vector.broadcast %cst_173 : f32 to vector<2x256xf32>
    %496 = arith.addf %494, %495 : vector<2x256xf32>
    %cst_174 = arith.constant 5.000000e-01 : f32
    %497 = vector.broadcast %cst_174 : f32 to vector<2x256xf32>
    %498 = arith.mulf %497, %496 : vector<2x256xf32>
    %499 = arith.mulf %488, %424 : vector<2x256xf32>
    %500 = arith.mulf %480, %490 : vector<2x256xf32>
    %501 = arith.addf %499, %500 : vector<2x256xf32>
    %502 = math.tanh %501 : vector<2x256xf32>
    %503 = arith.mulf %498, %502 : vector<2x256xf32>
    %c7_i32 = arith.constant 7 : i32
    %504 = arith.truncf %472 : vector<2x256xf32> to vector<2x256xbf16>
    %505 = arith.truncf %503 : vector<2x256xf32> to vector<2x256xbf16>
    %506 = arith.index_cast %c7_i32 : i32 to index
    %c0_175 = arith.constant 0 : index
    %c0_176 = arith.constant 0 : index
    %507 = vector.load %arg0[%506, %c0_175, %c0_176] : memref<8x2x128xbf16, #tpu.memory_space<vmem>>, vector<1x2x128xbf16>
    %508 = vector.shape_cast %507 : vector<1x2x128xbf16> to vector<2x128xbf16>
    %509 = tpu.concatenate %508, %504 in 1 : vector<2x128xbf16>, vector<2x256xbf16> -> vector<2x384xbf16>
    %510 = tpu.concatenate %504, %505 in 1 : vector<2x256xbf16>, vector<2x256xbf16> -> vector<2x512xbf16>
    %c0_177 = arith.constant 0 : index
    %c0_178 = arith.constant 0 : index
    %511 = vector.load %arg1[%c0_177, %c0_178] : memref<384x1024xbf16, #tpu.memory_space<vmem>>, vector<384x1024xbf16>
    %cst_179 = arith.constant dense<0.000000e+00> : vector<2x1024xf32>
    %512 = tpu.matmul %509, %511, %cst_179 {dimension_numbers = #tpu.dot_dimension_numbers<[1], [0], [0], [1], [0, 0, 1, 1], [], []>} : vector<2x384xbf16>, vector<384x1024xbf16>, vector<2x1024xf32> -> vector<2x1024xf32>
    %513 = vector.broadcast %0 : vector<1x1024xf32> to vector<2x1024xf32>
    %514 = arith.addf %512, %513 : vector<2x1024xf32>
    %c0_180 = arith.constant 0 : index
    %c0_181 = arith.constant 0 : index
    %515 = vector.load %arg2[%c0_180, %c0_181] : memref<512x1024xbf16, #tpu.memory_space<vmem>>, vector<512x1024xbf16>
    %cst_182 = arith.constant dense<0.000000e+00> : vector<2x1024xf32>
    %516 = tpu.matmul %510, %515, %cst_182 {dimension_numbers = #tpu.dot_dimension_numbers<[1], [0], [0], [1], [0, 0, 1, 1], [], []>} : vector<2x512xbf16>, vector<512x1024xbf16>, vector<2x1024xf32> -> vector<2x1024xf32>
    %517 = vector.broadcast %1 : vector<1x1024xf32> to vector<2x1024xf32>
    %518 = arith.addf %516, %517 : vector<2x1024xf32>
    %519 = vector.extract_strided_slice %514 {offsets = [0, 0], sizes = [2, 256], strides = [1, 1]} : vector<2x1024xf32> to vector<2x256xf32>
    %cst_183 = arith.constant 5.000000e-01 : f32
    %520 = vector.broadcast %cst_183 : f32 to vector<2x256xf32>
    %521 = arith.mulf %520, %519 : vector<2x256xf32>
    %522 = math.tanh %521 : vector<2x256xf32>
    %cst_184 = arith.constant 1.000000e+00 : f32
    %523 = vector.broadcast %cst_184 : f32 to vector<2x256xf32>
    %524 = arith.addf %522, %523 : vector<2x256xf32>
    %cst_185 = arith.constant 5.000000e-01 : f32
    %525 = vector.broadcast %cst_185 : f32 to vector<2x256xf32>
    %526 = arith.mulf %525, %524 : vector<2x256xf32>
    %527 = vector.extract_strided_slice %514 {offsets = [0, 256], sizes = [2, 256], strides = [1, 1]} : vector<2x1024xf32> to vector<2x256xf32>
    %cst_186 = arith.constant 5.000000e-01 : f32
    %528 = vector.broadcast %cst_186 : f32 to vector<2x256xf32>
    %529 = arith.mulf %528, %527 : vector<2x256xf32>
    %530 = math.tanh %529 : vector<2x256xf32>
    %cst_187 = arith.constant 1.000000e+00 : f32
    %531 = vector.broadcast %cst_187 : f32 to vector<2x256xf32>
    %532 = arith.addf %530, %531 : vector<2x256xf32>
    %cst_188 = arith.constant 5.000000e-01 : f32
    %533 = vector.broadcast %cst_188 : f32 to vector<2x256xf32>
    %534 = arith.mulf %533, %532 : vector<2x256xf32>
    %535 = vector.extract_strided_slice %514 {offsets = [0, 512], sizes = [2, 256], strides = [1, 1]} : vector<2x1024xf32> to vector<2x256xf32>
    %536 = math.tanh %535 : vector<2x256xf32>
    %537 = vector.extract_strided_slice %514 {offsets = [0, 768], sizes = [2, 256], strides = [1, 1]} : vector<2x1024xf32> to vector<2x256xf32>
    %cst_189 = arith.constant 5.000000e-01 : f32
    %538 = vector.broadcast %cst_189 : f32 to vector<2x256xf32>
    %539 = arith.mulf %538, %537 : vector<2x256xf32>
    %540 = math.tanh %539 : vector<2x256xf32>
    %cst_190 = arith.constant 1.000000e+00 : f32
    %541 = vector.broadcast %cst_190 : f32 to vector<2x256xf32>
    %542 = arith.addf %540, %541 : vector<2x256xf32>
    %cst_191 = arith.constant 5.000000e-01 : f32
    %543 = vector.broadcast %cst_191 : f32 to vector<2x256xf32>
    %544 = arith.mulf %543, %542 : vector<2x256xf32>
    %545 = arith.mulf %534, %470 : vector<2x256xf32>
    %546 = arith.mulf %526, %536 : vector<2x256xf32>
    %547 = arith.addf %545, %546 : vector<2x256xf32>
    %548 = math.tanh %547 : vector<2x256xf32>
    %549 = arith.mulf %544, %548 : vector<2x256xf32>
    %550 = vector.extract_strided_slice %518 {offsets = [0, 0], sizes = [2, 256], strides = [1, 1]} : vector<2x1024xf32> to vector<2x256xf32>
    %cst_192 = arith.constant 5.000000e-01 : f32
    %551 = vector.broadcast %cst_192 : f32 to vector<2x256xf32>
    %552 = arith.mulf %551, %550 : vector<2x256xf32>
    %553 = math.tanh %552 : vector<2x256xf32>
    %cst_193 = arith.constant 1.000000e+00 : f32
    %554 = vector.broadcast %cst_193 : f32 to vector<2x256xf32>
    %555 = arith.addf %553, %554 : vector<2x256xf32>
    %cst_194 = arith.constant 5.000000e-01 : f32
    %556 = vector.broadcast %cst_194 : f32 to vector<2x256xf32>
    %557 = arith.mulf %556, %555 : vector<2x256xf32>
    %558 = vector.extract_strided_slice %518 {offsets = [0, 256], sizes = [2, 256], strides = [1, 1]} : vector<2x1024xf32> to vector<2x256xf32>
    %cst_195 = arith.constant 5.000000e-01 : f32
    %559 = vector.broadcast %cst_195 : f32 to vector<2x256xf32>
    %560 = arith.mulf %559, %558 : vector<2x256xf32>
    %561 = math.tanh %560 : vector<2x256xf32>
    %cst_196 = arith.constant 1.000000e+00 : f32
    %562 = vector.broadcast %cst_196 : f32 to vector<2x256xf32>
    %563 = arith.addf %561, %562 : vector<2x256xf32>
    %cst_197 = arith.constant 5.000000e-01 : f32
    %564 = vector.broadcast %cst_197 : f32 to vector<2x256xf32>
    %565 = arith.mulf %564, %563 : vector<2x256xf32>
    %566 = vector.extract_strided_slice %518 {offsets = [0, 512], sizes = [2, 256], strides = [1, 1]} : vector<2x1024xf32> to vector<2x256xf32>
    %567 = math.tanh %566 : vector<2x256xf32>
    %568 = vector.extract_strided_slice %518 {offsets = [0, 768], sizes = [2, 256], strides = [1, 1]} : vector<2x1024xf32> to vector<2x256xf32>
    %cst_198 = arith.constant 5.000000e-01 : f32
    %569 = vector.broadcast %cst_198 : f32 to vector<2x256xf32>
    %570 = arith.mulf %569, %568 : vector<2x256xf32>
    %571 = math.tanh %570 : vector<2x256xf32>
    %cst_199 = arith.constant 1.000000e+00 : f32
    %572 = vector.broadcast %cst_199 : f32 to vector<2x256xf32>
    %573 = arith.addf %571, %572 : vector<2x256xf32>
    %cst_200 = arith.constant 5.000000e-01 : f32
    %574 = vector.broadcast %cst_200 : f32 to vector<2x256xf32>
    %575 = arith.mulf %574, %573 : vector<2x256xf32>
    %576 = arith.mulf %565, %501 : vector<2x256xf32>
    %577 = arith.mulf %557, %567 : vector<2x256xf32>
    %578 = arith.addf %576, %577 : vector<2x256xf32>
    %579 = math.tanh %578 : vector<2x256xf32>
    %580 = arith.mulf %575, %579 : vector<2x256xf32>
    %c7_i32_201 = arith.constant 7 : i32
    %581 = arith.truncf %549 : vector<2x256xf32> to vector<2x256xbf16>
    %582 = arith.truncf %580 : vector<2x256xf32> to vector<2x256xbf16>
    %583 = tpu.concatenate %581, %582 in 1 : vector<2x256xbf16>, vector<2x256xbf16> -> vector<2x512xbf16>
    %c0_202 = arith.constant 0 : index
    %c0_203 = arith.constant 0 : index
    %584 = vector.load %arg2[%c0_202, %c0_203] : memref<512x1024xbf16, #tpu.memory_space<vmem>>, vector<512x1024xbf16>
    %cst_204 = arith.constant dense<0.000000e+00> : vector<2x1024xf32>
    %585 = tpu.matmul %583, %584, %cst_204 {dimension_numbers = #tpu.dot_dimension_numbers<[1], [0], [0], [1], [0, 0, 1, 1], [], []>} : vector<2x512xbf16>, vector<512x1024xbf16>, vector<2x1024xf32> -> vector<2x1024xf32>
    %586 = vector.broadcast %1 : vector<1x1024xf32> to vector<2x1024xf32>
    %587 = arith.addf %585, %586 : vector<2x1024xf32>
    %588 = vector.extract_strided_slice %587 {offsets = [0, 0], sizes = [2, 256], strides = [1, 1]} : vector<2x1024xf32> to vector<2x256xf32>
    %cst_205 = arith.constant 5.000000e-01 : f32
    %589 = vector.broadcast %cst_205 : f32 to vector<2x256xf32>
    %590 = arith.mulf %589, %588 : vector<2x256xf32>
    %591 = math.tanh %590 : vector<2x256xf32>
    %cst_206 = arith.constant 1.000000e+00 : f32
    %592 = vector.broadcast %cst_206 : f32 to vector<2x256xf32>
    %593 = arith.addf %591, %592 : vector<2x256xf32>
    %cst_207 = arith.constant 5.000000e-01 : f32
    %594 = vector.broadcast %cst_207 : f32 to vector<2x256xf32>
    %595 = arith.mulf %594, %593 : vector<2x256xf32>
    %596 = vector.extract_strided_slice %587 {offsets = [0, 256], sizes = [2, 256], strides = [1, 1]} : vector<2x1024xf32> to vector<2x256xf32>
    %cst_208 = arith.constant 5.000000e-01 : f32
    %597 = vector.broadcast %cst_208 : f32 to vector<2x256xf32>
    %598 = arith.mulf %597, %596 : vector<2x256xf32>
    %599 = math.tanh %598 : vector<2x256xf32>
    %cst_209 = arith.constant 1.000000e+00 : f32
    %600 = vector.broadcast %cst_209 : f32 to vector<2x256xf32>
    %601 = arith.addf %599, %600 : vector<2x256xf32>
    %cst_210 = arith.constant 5.000000e-01 : f32
    %602 = vector.broadcast %cst_210 : f32 to vector<2x256xf32>
    %603 = arith.mulf %602, %601 : vector<2x256xf32>
    %604 = vector.extract_strided_slice %587 {offsets = [0, 512], sizes = [2, 256], strides = [1, 1]} : vector<2x1024xf32> to vector<2x256xf32>
    %605 = math.tanh %604 : vector<2x256xf32>
    %606 = vector.extract_strided_slice %587 {offsets = [0, 768], sizes = [2, 256], strides = [1, 1]} : vector<2x1024xf32> to vector<2x256xf32>
    %cst_211 = arith.constant 5.000000e-01 : f32
    %607 = vector.broadcast %cst_211 : f32 to vector<2x256xf32>
    %608 = arith.mulf %607, %606 : vector<2x256xf32>
    %609 = math.tanh %608 : vector<2x256xf32>
    %cst_212 = arith.constant 1.000000e+00 : f32
    %610 = vector.broadcast %cst_212 : f32 to vector<2x256xf32>
    %611 = arith.addf %609, %610 : vector<2x256xf32>
    %cst_213 = arith.constant 5.000000e-01 : f32
    %612 = vector.broadcast %cst_213 : f32 to vector<2x256xf32>
    %613 = arith.mulf %612, %611 : vector<2x256xf32>
    %614 = arith.mulf %603, %578 : vector<2x256xf32>
    %615 = arith.mulf %595, %605 : vector<2x256xf32>
    %616 = arith.addf %614, %615 : vector<2x256xf32>
    %617 = math.tanh %616 : vector<2x256xf32>
    %618 = arith.mulf %613, %617 : vector<2x256xf32>
    %c0_214 = arith.constant 0 : index
    %c0_215 = arith.constant 0 : index
    %619 = vector.load %arg5[%c0_214, %c0_215] : memref<1x256xf32, #tpu.memory_space<vmem>>, vector<1x256xf32>
    %620 = vector.broadcast %619 : vector<1x256xf32> to vector<2x256xf32>
    %621 = arith.mulf %618, %620 : vector<2x256xf32>
    %cst_216 = arith.constant dense<0.000000e+00> : vector<2xf32>
    %622 = vector.multi_reduction <add>, %621, %cst_216 [1] : vector<2x256xf32> to vector<2xf32>
    %623 = vector.shape_cast %622 : vector<2xf32> to vector<2x1xf32>
    %c0_217 = arith.constant 0 : index
    %c0_218 = arith.constant 0 : index
    %624 = vector.load %arg6[%c0_217, %c0_218] : memref<1x1xf32, #tpu.memory_space<vmem>>, vector<1x1xf32>
    %625 = vector.broadcast %624 : vector<1x1xf32> to vector<2x1xf32>
    %626 = arith.addf %623, %625 : vector<2x1xf32>
    %c0_219 = arith.constant 0 : index
    %c0_220 = arith.constant 0 : index
    %627 = vector.load %arg7[%c0_219, %c0_220] : memref<2x1xf32, #tpu.memory_space<vmem>>, vector<2x1xf32>
    tpu.vector_store %arg7[%c0_219, %c0_220], %626 {strides = array<i32>} : memref<2x1xf32, #tpu.memory_space<vmem>>, vector<2x1xf32>,
    return
  }
}

</mosaic_0001>

<llo_original>
// kernel: lstm_model_forward.1
$region0: #{lstm_model_forward.1}
  #allocation0 [shape = 'u32[]', space=smem, size = 0x4, offset = 0x4, fixed_abs, tag = 'smem constant byte address 0x4 - core index']
  #allocation1 [shape = 'u32[144,128]{1,0:T(1,128)}', space=vmem, size = 0x12000, scoped, tag = 'internal scratch']
  #allocation2 [shape = 'f32[1,1]{1,0:T(1,128)S(1)}', space=vmem, size = 0x200, scoped, tag = 'scoped memory for lstm_model_forward.1']
  %s0 = inlined_call_operand.vmem [shape: bf16[8,2,128], index: 0, kind: input, shape index: {}]
  %s1 = inlined_call_operand.vmem [shape: bf16[384,1024], index: 1, kind: input, shape index: {}]
  %s2 = inlined_call_operand.vmem [shape: bf16[512,1024], index: 2, kind: input, shape index: {}]
  %s3 = inlined_call_operand.vmem [shape: f32[1,1024], index: 3, kind: input, shape index: {}]
  %s4 = inlined_call_operand.vmem [shape: f32[1,1024], index: 4, kind: input, shape index: {}]
  %s5 = inlined_call_operand.vmem [shape: f32[1,256], index: 5, kind: input, shape index: {}]
  %s6 = inlined_call_operand.<no memory space> [shape: f32[1,1], index: 6, kind: input, shape index: {}]
  %s7 = inlined_call_operand.vmem [shape: f32[2,1], index: 7, kind: output, shape index: {}]
  %s8 = sld [smem:[#allocation0]]
  $region38: #{lstm_model_forward.1} parent=0
    _
  %s10 = ssub.s32 1, %s8
  %s11 = scalar_select 0, %s10, %s8
  %v12 = vstv %s6
  %13 = vst [vmem:[#allocation2] sm:$0x1] %v12
  // Predicated region
  $region2: #{lstm_model_forward.1} parent=0 // pred_check
    _
  $region3: #{lstm_model_forward.1} parent=0 // pred_check_branch
    %15 = sbr.rel (0) target = $region5
  $region4: #{lstm_model_forward.1} parent=0 // pred_region
    _
  $region5: #{lstm_model_forward.1} parent=0 // pred_fallthru
    _
  // Predicated region
  $region6: #{lstm_model_forward.1} parent=0 // pred_check
    _
  $region7: #{lstm_model_forward.1} parent=0 // pred_check_branch
    %17 = sbr.rel (0) target = $region9
  $region8: #{lstm_model_forward.1} parent=0 // pred_region
    _
  $region9: #{lstm_model_forward.1} parent=0 // pred_fallthru
    _
  // Predicated region
  $region10: #{lstm_model_forward.1} parent=0 // pred_check
    _
  $region11: #{lstm_model_forward.1} parent=0 // pred_check_branch
    %19 = sbr.rel (0) target = $region13
  $region12: #{lstm_model_forward.1} parent=0 // pred_region
    _
  $region13: #{lstm_model_forward.1} parent=0 // pred_fallthru
    _
  // Predicated region
  $region14: #{lstm_model_forward.1} parent=0 // pred_check
    _
  $region15: #{lstm_model_forward.1} parent=0 // pred_check_branch
    %21 = sbr.rel (0) target = $region17
  $region16: #{lstm_model_forward.1} parent=0 // pred_region
    _
  $region17: #{lstm_model_forward.1} parent=0 // pred_fallthru
    _
  // Predicated region
  $region18: #{lstm_model_forward.1} parent=0 // pred_check
    _
  $region19: #{lstm_model_forward.1} parent=0 // pred_check_branch
    %23 = sbr.rel (0) target = $region21
  $region20: #{lstm_model_forward.1} parent=0 // pred_region
    _
  $region21: #{lstm_model_forward.1} parent=0 // pred_fallthru
    _
  // Predicated region
  $region22: #{lstm_model_forward.1} parent=0 // pred_check
    _
  $region23: #{lstm_model_forward.1} parent=0 // pred_check_branch
    %25 = sbr.rel (0) target = $region25
  $region24: #{lstm_model_forward.1} parent=0 // pred_region
    _
  $region25: #{lstm_model_forward.1} parent=0 // pred_fallthru
    _
  // Predicated region
  $region26: #{lstm_model_forward.1} parent=0 // pred_check
    _
  $region27: #{lstm_model_forward.1} parent=0 // pred_check_branch
    %27 = sbr.rel (0) target = $region29
  $region28: #{lstm_model_forward.1} parent=0 // pred_region
    _
  $region29: #{lstm_model_forward.1} parent=0 // pred_fallthru
    _
  %v29 = vld [vmem:[%s3] sm:$0xff]
  %v30 = vld [vmem:[%s4] sm:$0xff]
  %v31 = vld [vmem:[%s0] sm:$0x1]
  %v32 = vld [vmem:[%s1] sm:$0xff]
  %v33 = vld [vmem:[%s1 + $0x8] sm:$0xff]
  %v34 = vld [vmem:[%s1 + $0x10] sm:$0xff]
  %v35 = vld [vmem:[%s1 + $0x18] sm:$0xff]
  %v36 = vld [vmem:[%s1 + $0x20] sm:$0xff]
  %v37 = vld [vmem:[%s1 + $0x28] sm:$0xff]
  %v38 = vld [vmem:[%s1 + $0x30] sm:$0xff]
  %v39 = vld [vmem:[%s1 + $0x38] sm:$0xff]
  %v40 = vld [vmem:[%s1 + $0x40] sm:$0xff]
  %v41 = vld [vmem:[%s1 + $0x48] sm:$0xff]
  %v42 = vld [vmem:[%s1 + $0x50] sm:$0xff]
  %v43 = vld [vmem:[%s1 + $0x58] sm:$0xff]
  %v44 = vld [vmem:[%s1 + $0x60] sm:$0xff]
  %v45 = vld [vmem:[%s1 + $0x68] sm:$0xff]
  %v46 = vld [vmem:[%s1 + $0x70] sm:$0xff]
  %v47 = vld [vmem:[%s1 + $0x78] sm:$0xff]
  %v48 = vld [vmem:[%s1 + $0x80] sm:$0xff]
  %v49 = vld [vmem:[%s1 + $0x88] sm:$0xff]
  %v50 = vld [vmem:[%s1 + $0x90] sm:$0xff]
  %v51 = vld [vmem:[%s1 + $0x98] sm:$0xff]
  %v52 = vld [vmem:[%s1 + $0xa0] sm:$0xff]
  %v53 = vld [vmem:[%s1 + $0xa8] sm:$0xff]
  %v54 = vld [vmem:[%s1 + $0xb0] sm:$0xff]
  %v55 = vld [vmem:[%s1 + $0xb8] sm:$0xff]
  %v56 = vld [vmem:[%s1 + $0xc0] sm:$0xff]
  %v57 = vld [vmem:[%s1 + $0xc8] sm:$0xff]
  %v58 = vld [vmem:[%s1 + $0xd0] sm:$0xff]
  %v59 = vld [vmem:[%s1 + $0xd8] sm:$0xff]
  %v60 = vld [vmem:[%s1 + $0xe0] sm:$0xff]
  %v61 = vld [vmem:[%s1 + $0xe8] sm:$0xff]
  %v62 = vld [vmem:[%s1 + $0xf0] sm:$0xff]
  %v63 = vld [vmem:[%s1 + $0xf8] sm:$0xff]
  %v64 = vld [vmem:[%s1 + $0x100] sm:$0xff]
  %v65 = vld [vmem:[%s1 + $0x108] sm:$0xff]
  %v66 = vld [vmem:[%s1 + $0x110] sm:$0xff]
  %v67 = vld [vmem:[%s1 + $0x118] sm:$0xff]
  %v68 = vld [vmem:[%s1 + $0x120] sm:$0xff]
  %v69 = vld [vmem:[%s1 + $0x128] sm:$0xff]
  %v70 = vld [vmem:[%s1 + $0x130] sm:$0xff]
  %v71 = vld [vmem:[%s1 + $0x138] sm:$0xff]
  %v72 = vld [vmem:[%s1 + $0x140] sm:$0xff]
  %v73 = vld [vmem:[%s1 + $0x148] sm:$0xff]
  %v74 = vld [vmem:[%s1 + $0x150] sm:$0xff]
  %v75 = vld [vmem:[%s1 + $0x158] sm:$0xff]
  %v76 = vld [vmem:[%s1 + $0x160] sm:$0xff]
  %v77 = vld [vmem:[%s1 + $0x168] sm:$0xff]
  %v78 = vld [vmem:[%s1 + $0x170] sm:$0xff]
  %v79 = vld [vmem:[%s1 + $0x178] sm:$0xff]
  %v80 = vld [vmem:[%s1 + $0x180] sm:$0xff]
  %v81 = vld [vmem:[%s1 + $0x188] sm:$0xff]
  %v82 = vld [vmem:[%s1 + $0x190] sm:$0xff]
  %v83 = vld [vmem:[%s1 + $0x198] sm:$0xff]
  %v84 = vld [vmem:[%s1 + $0x1a0] sm:$0xff]
  %v85 = vld [vmem:[%s1 + $0x1a8] sm:$0xff]
  %v86 = vld [vmem:[%s1 + $0x1b0] sm:$0xff]
  %v87 = vld [vmem:[%s1 + $0x1b8] sm:$0xff]
  %v88 = vld [vmem:[%s1 + $0x1c0] sm:$0xff]
  %v89 = vld [vmem:[%s1 + $0x1c8] sm:$0xff]
  %v90 = vld [vmem:[%s1 + $0x1d0] sm:$0xff]
  %v91 = vld [vmem:[%s1 + $0x1d8] sm:$0xff]
  %v92 = vld [vmem:[%s1 + $0x1e0] sm:$0xff]
  %v93 = vld [vmem:[%s1 + $0x1e8] sm:$0xff]
  %v94 = vld [vmem:[%s1 + $0x1f0] sm:$0xff]
  %v95 = vld [vmem:[%s1 + $0x1f8] sm:$0xff]
  %v96 = vld [vmem:[%s1 + $0x200] sm:$0xff]
  %v97 = vld [vmem:[%s1 + $0x208] sm:$0xff]
  %v98 = vld [vmem:[%s1 + $0x210] sm:$0xff]
  %v99 = vld [vmem:[%s1 + $0x218] sm:$0xff]
  %v100 = vld [vmem:[%s1 + $0x220] sm:$0xff]
  %v101 = vld [vmem:[%s1 + $0x228] sm:$0xff]
  %v102 = vld [vmem:[%s1 + $0x230] sm:$0xff]
  %v103 = vld [vmem:[%s1 + $0x238] sm:$0xff]
  %v104 = vld [vmem:[%s1 + $0x240] sm:$0xff]
  %v105 = vld [vmem:[%s1 + $0x248] sm:$0xff]
  %v106 = vld [vmem:[%s1 + $0x250] sm:$0xff]
  %v107 = vld [vmem:[%s1 + $0x258] sm:$0xff]
  %v108 = vld [vmem:[%s1 + $0x260] sm:$0xff]
  %v109 = vld [vmem:[%s1 + $0x268] sm:$0xff]
  %v110 = vld [vmem:[%s1 + $0x270] sm:$0xff]
  %v111 = vld [vmem:[%s1 + $0x278] sm:$0xff]
  %v112 = vld [vmem:[%s1 + $0x280] sm:$0xff]
  %v113 = vld [vmem:[%s1 + $0x288] sm:$0xff]
  %v114 = vld [vmem:[%s1 + $0x290] sm:$0xff]
  %v115 = vld [vmem:[%s1 + $0x298] sm:$0xff]
  %v116 = vld [vmem:[%s1 + $0x2a0] sm:$0xff]
  %v117 = vld [vmem:[%s1 + $0x2a8] sm:$0xff]
  %v118 = vld [vmem:[%s1 + $0x2b0] sm:$0xff]
  %v119 = vld [vmem:[%s1 + $0x2b8] sm:$0xff]
  %v120 = vld [vmem:[%s1 + $0x2c0] sm:$0xff]
  %v121 = vld [vmem:[%s1 + $0x2c8] sm:$0xff]
  %v122 = vld [vmem:[%s1 + $0x2d0] sm:$0xff]
  %v123 = vld [vmem:[%s1 + $0x2d8] sm:$0xff]
  %v124 = vld [vmem:[%s1 + $0x2e0] sm:$0xff]
  %v125 = vld [vmem:[%s1 + $0x2e8] sm:$0xff]
  %v126 = vld [vmem:[%s1 + $0x2f0] sm:$0xff]
  %v127 = vld [vmem:[%s1 + $0x2f8] sm:$0xff]
  %v128 = vld [vmem:[%s1 + $0x300] sm:$0xff]
  %v129 = vld [vmem:[%s1 + $0x308] sm:$0xff]
  %v130 = vld [vmem:[%s1 + $0x310] sm:$0xff]
  %v131 = vld [vmem:[%s1 + $0x318] sm:$0xff]
  %v132 = vld [vmem:[%s1 + $0x320] sm:$0xff]
  %v133 = vld [vmem:[%s1 + $0x328] sm:$0xff]
  %v134 = vld [vmem:[%s1 + $0x330] sm:$0xff]
  %v135 = vld [vmem:[%s1 + $0x338] sm:$0xff]
  %v136 = vld [vmem:[%s1 + $0x340] sm:$0xff]
  %v137 = vld [vmem:[%s1 + $0x348] sm:$0xff]
  %v138 = vld [vmem:[%s1 + $0x350] sm:$0xff]
  %v139 = vld [vmem:[%s1 + $0x358] sm:$0xff]
  %v140 = vld [vmem:[%s1 + $0x360] sm:$0xff]
  %v141 = vld [vmem:[%s1 + $0x368] sm:$0xff]
  %v142 = vld [vmem:[%s1 + $0x370] sm:$0xff]
  %v143 = vld [vmem:[%s1 + $0x378] sm:$0xff]
  %v144 = vld [vmem:[%s1 + $0x380] sm:$0xff]
  %v145 = vld [vmem:[%s1 + $0x388] sm:$0xff]
  %v146 = vld [vmem:[%s1 + $0x390] sm:$0xff]
  %v147 = vld [vmem:[%s1 + $0x398] sm:$0xff]
  %v148 = vld [vmem:[%s1 + $0x3a0] sm:$0xff]
  %v149 = vld [vmem:[%s1 + $0x3a8] sm:$0xff]
  %v150 = vld [vmem:[%s1 + $0x3b0] sm:$0xff]
  %v151 = vld [vmem:[%s1 + $0x3b8] sm:$0xff]
  %v152 = vld [vmem:[%s1 + $0x3c0] sm:$0xff]
  %v153 = vld [vmem:[%s1 + $0x3c8] sm:$0xff]
  %v154 = vld [vmem:[%s1 + $0x3d0] sm:$0xff]
  %v155 = vld [vmem:[%s1 + $0x3d8] sm:$0xff]
  %v156 = vld [vmem:[%s1 + $0x3e0] sm:$0xff]
  %v157 = vld [vmem:[%s1 + $0x3e8] sm:$0xff]
  %v158 = vld [vmem:[%s1 + $0x3f0] sm:$0xff]
  %v159 = vld [vmem:[%s1 + $0x3f8] sm:$0xff]
  %v160 = vld [vmem:[%s1 + $0x400] sm:$0xff]
  %v161 = vld [vmem:[%s1 + $0x408] sm:$0xff]
  %v162 = vld [vmem:[%s1 + $0x410] sm:$0xff]
  %v163 = vld [vmem:[%s1 + $0x418] sm:$0xff]
  %v164 = vld [vmem:[%s1 + $0x420] sm:$0xff]
  %v165 = vld [vmem:[%s1 + $0x428] sm:$0xff]
  %v166 = vld [vmem:[%s1 + $0x430] sm:$0xff]
  %v167 = vld [vmem:[%s1 + $0x438] sm:$0xff]
  %v168 = vld [vmem:[%s1 + $0x440] sm:$0xff]
  %v169 = vld [vmem:[%s1 + $0x448] sm:$0xff]
  %v170 = vld [vmem:[%s1 + $0x450] sm:$0xff]
  %v171 = vld [vmem:[%s1 + $0x458] sm:$0xff]
  %v172 = vld [vmem:[%s1 + $0x460] sm:$0xff]
  %v173 = vld [vmem:[%s1 + $0x468] sm:$0xff]
  %v174 = vld [vmem:[%s1 + $0x470] sm:$0xff]
  %v175 = vld [vmem:[%s1 + $0x478] sm:$0xff]
  %v176 = vld [vmem:[%s1 + $0x480] sm:$0xff]
  %v177 = vld [vmem:[%s1 + $0x488] sm:$0xff]
  %v178 = vld [vmem:[%s1 + $0x490] sm:$0xff]
  %v179 = vld [vmem:[%s1 + $0x498] sm:$0xff]
  %v180 = vld [vmem:[%s1 + $0x4a0] sm:$0xff]
  %v181 = vld [vmem:[%s1 + $0x4a8] sm:$0xff]
  %v182 = vld [vmem:[%s1 + $0x4b0] sm:$0xff]
  %v183 = vld [vmem:[%s1 + $0x4b8] sm:$0xff]
  %v184 = vld [vmem:[%s1 + $0x4c0] sm:$0xff]
  %v185 = vld [vmem:[%s1 + $0x4c8] sm:$0xff]
  %v186 = vld [vmem:[%s1 + $0x4d0] sm:$0xff]
  %v187 = vld [vmem:[%s1 + $0x4d8] sm:$0xff]
  %v188 = vld [vmem:[%s1 + $0x4e0] sm:$0xff]
  %v189 = vld [vmem:[%s1 + $0x4e8] sm:$0xff]
  %v190 = vld [vmem:[%s1 + $0x4f0] sm:$0xff]
  %v191 = vld [vmem:[%s1 + $0x4f8] sm:$0xff]
  %v192 = vld [vmem:[%s1 + $0x500] sm:$0xff]
  %v193 = vld [vmem:[%s1 + $0x508] sm:$0xff]
  %v194 = vld [vmem:[%s1 + $0x510] sm:$0xff]
  %v195 = vld [vmem:[%s1 + $0x518] sm:$0xff]
  %v196 = vld [vmem:[%s1 + $0x520] sm:$0xff]
  %v197 = vld [vmem:[%s1 + $0x528] sm:$0xff]
  %v198 = vld [vmem:[%s1 + $0x530] sm:$0xff]
  %v199 = vld [vmem:[%s1 + $0x538] sm:$0xff]
  %v200 = vld [vmem:[%s1 + $0x540] sm:$0xff]
  %v201 = vld [vmem:[%s1 + $0x548] sm:$0xff]
  %v202 = vld [vmem:[%s1 + $0x550] sm:$0xff]
  %v203 = vld [vmem:[%s1 + $0x558] sm:$0xff]
  %v204 = vld [vmem:[%s1 + $0x560] sm:$0xff]
  %v205 = vld [vmem:[%s1 + $0x568] sm:$0xff]
  %v206 = vld [vmem:[%s1 + $0x570] sm:$0xff]
  %v207 = vld [vmem:[%s1 + $0x578] sm:$0xff]
  %v208 = vld [vmem:[%s1 + $0x580] sm:$0xff]
  %v209 = vld [vmem:[%s1 + $0x588] sm:$0xff]
  %v210 = vld [vmem:[%s1 + $0x590] sm:$0xff]
  %v211 = vld [vmem:[%s1 + $0x598] sm:$0xff]
  %v212 = vld [vmem:[%s1 + $0x5a0] sm:$0xff]
  %v213 = vld [vmem:[%s1 + $0x5a8] sm:$0xff]
  %v214 = vld [vmem:[%s1 + $0x5b0] sm:$0xff]
  %v215 = vld [vmem:[%s1 + $0x5b8] sm:$0xff]
  %v216 = vld [vmem:[%s1 + $0x5c0] sm:$0xff]
  %v217 = vld [vmem:[%s1 + $0x5c8] sm:$0xff]
  %v218 = vld [vmem:[%s1 + $0x5d0] sm:$0xff]
  %v219 = vld [vmem:[%s1 + $0x5d8] sm:$0xff]
  %v220 = vld [vmem:[%s1 + $0x5e0] sm:$0xff]
  %v221 = vld [vmem:[%s1 + $0x5e8] sm:$0xff]
  %v222 = vld [vmem:[%s1 + $0x5f0] sm:$0xff]
  %v223 = vld [vmem:[%s1 + $0x5f8] sm:$0xff]
  %v225 = vlaneseq
  %v226 = vshrl.u32 %v225, 7
  %v227 = vsub.s32 0, %v226
  %v228 = vrot.slane %v29, %v227
  %v229 = vlaneseq
  %v230 = vshrl.u32 %v229, 7
  %v231 = vsub.s32 1, %v230
  %v232 = vrot.slane %v29, %v231
  %v233 = vlaneseq
  %v234 = vshrl.u32 %v233, 7
  %v235 = vsub.s32 2, %v234
  %v236 = vrot.slane %v29, %v235
  %v237 = vlaneseq
  %v238 = vshrl.u32 %v237, 7
  %v239 = vsub.s32 3, %v238
  %v240 = vrot.slane %v29, %v239
  %v241 = vlaneseq
  %v242 = vshrl.u32 %v241, 7
  %v243 = vsub.s32 4, %v242
  %v244 = vrot.slane %v29, %v243
  %v245 = vlaneseq
  %v246 = vshrl.u32 %v245, 7
  %v247 = vsub.s32 5, %v246
  %v248 = vrot.slane %v29, %v247
  %v249 = vlaneseq
  %v250 = vshrl.u32 %v249, 7
  %v251 = vsub.s32 6, %v250
  %v252 = vrot.slane %v29, %v251
  %v253 = vlaneseq
  %v254 = vshrl.u32 %v253, 7
  %v255 = vsub.s32 7, %v254
  %v256 = vrot.slane %v29, %v255
  %v457 = vunpack.c.l.b16 %v32
  %v458 = vunpack.c.h.b16 %v32
  %v459 = vunpack.c.l.b16 %v33
  %v460 = vunpack.c.h.b16 %v33
  %v461 = vunpack.c.l.b16 %v34
  %v462 = vunpack.c.h.b16 %v34
  %v463 = vunpack.c.l.b16 %v35
  %v464 = vunpack.c.h.b16 %v35
  %v465 = vunpack.c.l.b16 %v36
  %v466 = vunpack.c.h.b16 %v36
  %v467 = vunpack.c.l.b16 %v37
  %v468 = vunpack.c.h.b16 %v37
  %v469 = vunpack.c.l.b16 %v38
  %v470 = vunpack.c.h.b16 %v38
  %v471 = vunpack.c.l.b16 %v39
  %v472 = vunpack.c.h.b16 %v39
  %v473 = vunpack.c.l.b16 %v40
  %v474 = vunpack.c.h.b16 %v40
  %v475 = vunpack.c.l.b16 %v41
  %v476 = vunpack.c.h.b16 %v41
  %v477 = vunpack.c.l.b16 %v42
  %v478 = vunpack.c.h.b16 %v42
  %v479 = vunpack.c.l.b16 %v43
  %v480 = vunpack.c.h.b16 %v43
  %v481 = vunpack.c.l.b16 %v44
  %v482 = vunpack.c.h.b16 %v44
  %v483 = vunpack.c.l.b16 %v45
  %v484 = vunpack.c.h.b16 %v45
  %v485 = vunpack.c.l.b16 %v46
  %v486 = vunpack.c.h.b16 %v46
  %v487 = vunpack.c.l.b16 %v47
  %v488 = vunpack.c.h.b16 %v47
  %v489 = vunpack.c.l.b16 %v48
  %v490 = vunpack.c.h.b16 %v48
  %v491 = vunpack.c.l.b16 %v49
  %v492 = vunpack.c.h.b16 %v49
  %v493 = vunpack.c.l.b16 %v50
  %v494 = vunpack.c.h.b16 %v50
  %v495 = vunpack.c.l.b16 %v51
  %v496 = vunpack.c.h.b16 %v51
  %v497 = vunpack.c.l.b16 %v52
  %v498 = vunpack.c.h.b16 %v52
  %v499 = vunpack.c.l.b16 %v53
  %v500 = vunpack.c.h.b16 %v53
  %v501 = vunpack.c.l.b16 %v54
  %v502 = vunpack.c.h.b16 %v54
  %v503 = vunpack.c.l.b16 %v55
  %v504 = vunpack.c.h.b16 %v55
  %v505 = vunpack.c.l.b16 %v56
  %v506 = vunpack.c.h.b16 %v56
  %v507 = vunpack.c.l.b16 %v57
  %v508 = vunpack.c.h.b16 %v57
  %v509 = vunpack.c.l.b16 %v58
  %v510 = vunpack.c.h.b16 %v58
  %v511 = vunpack.c.l.b16 %v59
  %v512 = vunpack.c.h.b16 %v59
  %v513 = vunpack.c.l.b16 %v60
  %v514 = vunpack.c.h.b16 %v60
  %v515 = vunpack.c.l.b16 %v61
  %v516 = vunpack.c.h.b16 %v61
  %v517 = vunpack.c.l.b16 %v62
  %v518 = vunpack.c.h.b16 %v62
  %v519 = vunpack.c.l.b16 %v63
  %v520 = vunpack.c.h.b16 %v63
  %v521 = vunpack.c.l.b16 %v64
  %v522 = vunpack.c.h.b16 %v64
  %v523 = vunpack.c.l.b16 %v65
  %v524 = vunpack.c.h.b16 %v65
  %v525 = vunpack.c.l.b16 %v66
  %v526 = vunpack.c.h.b16 %v66
  %v527 = vunpack.c.l.b16 %v67
  %v528 = vunpack.c.h.b16 %v67
  %v529 = vunpack.c.l.b16 %v68
  %v530 = vunpack.c.h.b16 %v68
  %v531 = vunpack.c.l.b16 %v69
  %v532 = vunpack.c.h.b16 %v69
  %v533 = vunpack.c.l.b16 %v70
  %v534 = vunpack.c.h.b16 %v70
  %v535 = vunpack.c.l.b16 %v71
  %v536 = vunpack.c.h.b16 %v71
  %v537 = vunpack.c.l.b16 %v72
  %v538 = vunpack.c.h.b16 %v72
  %v539 = vunpack.c.l.b16 %v73
  %v540 = vunpack.c.h.b16 %v73
  %v541 = vunpack.c.l.b16 %v74
  %v542 = vunpack.c.h.b16 %v74
  %v543 = vunpack.c.l.b16 %v75
  %v544 = vunpack.c.h.b16 %v75
  %v545 = vunpack.c.l.b16 %v76
  %v546 = vunpack.c.h.b16 %v76
  %v547 = vunpack.c.l.b16 %v77
  %v548 = vunpack.c.h.b16 %v77
  %v549 = vunpack.c.l.b16 %v78
  %v550 = vunpack.c.h.b16 %v78
  %v551 = vunpack.c.l.b16 %v79
  %v552 = vunpack.c.h.b16 %v79
  %v553 = vunpack.c.l.b16 %v80
  %v554 = vunpack.c.h.b16 %v80
  %v555 = vunpack.c.l.b16 %v81
  %v556 = vunpack.c.h.b16 %v81
  %v557 = vunpack.c.l.b16 %v82
  %v558 = vunpack.c.h.b16 %v82
  %v559 = vunpack.c.l.b16 %v83
  %v560 = vunpack.c.h.b16 %v83
  %v561 = vunpack.c.l.b16 %v84
  %v562 = vunpack.c.h.b16 %v84
  %v563 = vunpack.c.l.b16 %v85
  %v564 = vunpack.c.h.b16 %v85
  %v565 = vunpack.c.l.b16 %v86
  %v566 = vunpack.c.h.b16 %v86
  %v567 = vunpack.c.l.b16 %v87
  %v568 = vunpack.c.h.b16 %v87
  %v569 = vunpack.c.l.b16 %v88
  %v570 = vunpack.c.h.b16 %v88
  %v571 = vunpack.c.l.b16 %v89
  %v572 = vunpack.c.h.b16 %v89
  %v573 = vunpack.c.l.b16 %v90
  %v574 = vunpack.c.h.b16 %v90
  %v575 = vunpack.c.l.b16 %v91
  %v576 = vunpack.c.h.b16 %v91
  %v577 = vunpack.c.l.b16 %v92
  %v578 = vunpack.c.h.b16 %v92
  %v579 = vunpack.c.l.b16 %v93
  %v580 = vunpack.c.h.b16 %v93
  %v581 = vunpack.c.l.b16 %v94
  %v582 = vunpack.c.h.b16 %v94
  %v583 = vunpack.c.l.b16 %v95
  %v584 = vunpack.c.h.b16 %v95
  %v585 = vunpack.c.l.b16 %v96
  %v586 = vunpack.c.h.b16 %v96
  %v587 = vunpack.c.l.b16 %v97
  %v588 = vunpack.c.h.b16 %v97
  %v589 = vunpack.c.l.b16 %v98
  %v590 = vunpack.c.h.b16 %v98
  %v591 = vunpack.c.l.b16 %v99
  %v592 = vunpack.c.h.b16 %v99
  %v593 = vunpack.c.l.b16 %v100
  %v594 = vunpack.c.h.b16 %v100
  %v595 = vunpack.c.l.b16 %v101
  %v596 = vunpack.c.h.b16 %v101
  %v597 = vunpack.c.l.b16 %v102
  %v598 = vunpack.c.h.b16 %v102
  %v599 = vunpack.c.l.b16 %v103
  %v600 = vunpack.c.h.b16 %v103
  %v601 = vunpack.c.l.b16 %v104
  %v602 = vunpack.c.h.b16 %v104
  %v603 = vunpack.c.l.b16 %v105
  %v604 = vunpack.c.h.b16 %v105
  %v605 = vunpack.c.l.b16 %v106
  %v606 = vunpack.c.h.b16 %v106
  %v607 = vunpack.c.l.b16 %v107
  %v608 = vunpack.c.h.b16 %v107
  %v609 = vunpack.c.l.b16 %v108
  %v610 = vunpack.c.h.b16 %v108
  %v611 = vunpack.c.l.b16 %v109
  %v612 = vunpack.c.h.b16 %v109
  %v613 = vunpack.c.l.b16 %v110
  %v614 = vunpack.c.h.b16 %v110
  %v615 = vunpack.c.l.b16 %v111
  %v616 = vunpack.c.h.b16 %v111
  %v617 = vunpack.c.l.b16 %v112
  %v618 = vunpack.c.h.b16 %v112
  %v619 = vunpack.c.l.b16 %v113
  %v620 = vunpack.c.h.b16 %v113
  %v621 = vunpack.c.l.b16 %v114
  %v622 = vunpack.c.h.b16 %v114
  %v623 = vunpack.c.l.b16 %v115
  %v624 = vunpack.c.h.b16 %v115
  %v625 = vunpack.c.l.b16 %v116
  %v626 = vunpack.c.h.b16 %v116
  %v627 = vunpack.c.l.b16 %v117
  %v628 = vunpack.c.h.b16 %v117
  %v629 = vunpack.c.l.b16 %v118
  %v630 = vunpack.c.h.b16 %v118
  %v631 = vunpack.c.l.b16 %v119
  %v632 = vunpack.c.h.b16 %v119
  %v633 = vunpack.c.l.b16 %v120
  %v634 = vunpack.c.h.b16 %v120
  %v635 = vunpack.c.l.b16 %v121
  %v636 = vunpack.c.h.b16 %v121
  %v637 = vunpack.c.l.b16 %v122
  %v638 = vunpack.c.h.b16 %v122
  %v639 = vunpack.c.l.b16 %v123
  %v640 = vunpack.c.h.b16 %v123
  %v641 = vunpack.c.l.b16 %v124
  %v642 = vunpack.c.h.b16 %v124
  %v643 = vunpack.c.l.b16 %v125
  %v644 = vunpack.c.h.b16 %v125
  %v645 = vunpack.c.l.b16 %v126
  %v646 = vunpack.c.h.b16 %v126
  %v647 = vunpack.c.l.b16 %v127
  %v648 = vunpack.c.h.b16 %v127
  %v649 = vunpack.c.l.b16 %v128
  %v650 = vunpack.c.h.b16 %v128
  %v651 = vunpack.c.l.b16 %v129
  %v652 = vunpack.c.h.b16 %v129
  %v653 = vunpack.c.l.b16 %v130
  %v654 = vunpack.c.h.b16 %v130
  %v655 = vunpack.c.l.b16 %v131
  %v656 = vunpack.c.h.b16 %v131
  %v657 = vunpack.c.l.b16 %v132
  %v658 = vunpack.c.h.b16 %v132
  %v659 = vunpack.c.l.b16 %v133
  %v660 = vunpack.c.h.b16 %v133
  %v661 = vunpack.c.l.b16 %v134
  %v662 = vunpack.c.h.b16 %v134
  %v663 = vunpack.c.l.b16 %v135
  %v664 = vunpack.c.h.b16 %v135
  %v665 = vunpack.c.l.b16 %v136
  %v666 = vunpack.c.h.b16 %v136
  %v667 = vunpack.c.l.b16 %v137
  %v668 = vunpack.c.h.b16 %v137
  %v669 = vunpack.c.l.b16 %v138
  %v670 = vunpack.c.h.b16 %v138
  %v671 = vunpack.c.l.b16 %v139
  %v672 = vunpack.c.h.b16 %v139
  %v673 = vunpack.c.l.b16 %v140
  %v674 = vunpack.c.h.b16 %v140
  %v675 = vunpack.c.l.b16 %v141
  %v676 = vunpack.c.h.b16 %v141
  %v677 = vunpack.c.l.b16 %v142
  %v678 = vunpack.c.h.b16 %v142
  %v679 = vunpack.c.l.b16 %v143
  %v680 = vunpack.c.h.b16 %v143
  %v681 = vunpack.c.l.b16 %v144
  %v682 = vunpack.c.h.b16 %v144
  %v683 = vunpack.c.l.b16 %v145
  %v684 = vunpack.c.h.b16 %v145
  %v685 = vunpack.c.l.b16 %v146
  %v686 = vunpack.c.h.b16 %v146
  %v687 = vunpack.c.l.b16 %v147
  %v688 = vunpack.c.h.b16 %v147
  %v689 = vunpack.c.l.b16 %v148
  %v690 = vunpack.c.h.b16 %v148
  %v691 = vunpack.c.l.b16 %v149
  %v692 = vunpack.c.h.b16 %v149
  %v693 = vunpack.c.l.b16 %v150
  %v694 = vunpack.c.h.b16 %v150
  %v695 = vunpack.c.l.b16 %v151
  %v696 = vunpack.c.h.b16 %v151
  %v697 = vunpack.c.l.b16 %v152
  %v698 = vunpack.c.h.b16 %v152
  %v699 = vunpack.c.l.b16 %v153
  %v700 = vunpack.c.h.b16 %v153
  %v701 = vunpack.c.l.b16 %v154
  %v702 = vunpack.c.h.b16 %v154
  %v703 = vunpack.c.l.b16 %v155
  %v704 = vunpack.c.h.b16 %v155
  %v705 = vunpack.c.l.b16 %v156
  %v706 = vunpack.c.h.b16 %v156
  %v707 = vunpack.c.l.b16 %v157
  %v708 = vunpack.c.h.b16 %v157
  %v709 = vunpack.c.l.b16 %v158
  %v710 = vunpack.c.h.b16 %v158
  %v711 = vunpack.c.l.b16 %v159
  %v712 = vunpack.c.h.b16 %v159
  %v713 = vunpack.c.l.b16 %v160
  %v714 = vunpack.c.h.b16 %v160
  %v715 = vunpack.c.l.b16 %v161
  %v716 = vunpack.c.h.b16 %v161
  %v717 = vunpack.c.l.b16 %v162
  %v718 = vunpack.c.h.b16 %v162
  %v719 = vunpack.c.l.b16 %v163
  %v720 = vunpack.c.h.b16 %v163
  %v721 = vunpack.c.l.b16 %v164
  %v722 = vunpack.c.h.b16 %v164
  %v723 = vunpack.c.l.b16 %v165
  %v724 = vunpack.c.h.b16 %v165
  %v725 = vunpack.c.l.b16 %v166
  %v726 = vunpack.c.h.b16 %v166
  %v727 = vunpack.c.l.b16 %v167
  %v728 = vunpack.c.h.b16 %v167
  %v729 = vunpack.c.l.b16 %v168
  %v730 = vunpack.c.h.b16 %v168
  %v731 = vunpack.c.l.b16 %v169
  %v732 = vunpack.c.h.b16 %v169
  %v733 = vunpack.c.l.b16 %v170
  %v734 = vunpack.c.h.b16 %v170
  %v735 = vunpack.c.l.b16 %v171
  %v736 = vunpack.c.h.b16 %v171
  %v737 = vunpack.c.l.b16 %v172
  %v738 = vunpack.c.h.b16 %v172
  %v739 = vunpack.c.l.b16 %v173
  %v740 = vunpack.c.h.b16 %v173
  %v741 = vunpack.c.l.b16 %v174
  %v742 = vunpack.c.h.b16 %v174
  %v743 = vunpack.c.l.b16 %v175
  %v744 = vunpack.c.h.b16 %v175
  %v745 = vunpack.c.l.b16 %v176
  %v746 = vunpack.c.h.b16 %v176
  %v747 = vunpack.c.l.b16 %v177
  %v748 = vunpack.c.h.b16 %v177
  %v749 = vunpack.c.l.b16 %v178
  %v750 = vunpack.c.h.b16 %v178
  %v751 = vunpack.c.l.b16 %v179
  %v752 = vunpack.c.h.b16 %v179
  %v753 = vunpack.c.l.b16 %v180
  %v754 = vunpack.c.h.b16 %v180
  %v755 = vunpack.c.l.b16 %v181
  %v756 = vunpack.c.h.b16 %v181
  %v757 = vunpack.c.l.b16 %v182
  %v758 = vunpack.c.h.b16 %v182
  %v759 = vunpack.c.l.b16 %v183
  %v760 = vunpack.c.h.b16 %v183
  %v761 = vunpack.c.l.b16 %v184
  %v762 = vunpack.c.h.b16 %v184
  %v763 = vunpack.c.l.b16 %v185
  %v764 = vunpack.c.h.b16 %v185
  %v765 = vunpack.c.l.b16 %v186
  %v766 = vunpack.c.h.b16 %v186
  %v767 = vunpack.c.l.b16 %v187
  %v768 = vunpack.c.h.b16 %v187
  %v769 = vunpack.c.l.b16 %v188
  %v770 = vunpack.c.h.b16 %v188
  %v771 = vunpack.c.l.b16 %v189
  %v772 = vunpack.c.h.b16 %v189
  %v773 = vunpack.c.l.b16 %v190
  %v774 = vunpack.c.h.b16 %v190
  %v775 = vunpack.c.l.b16 %v191
  %v776 = vunpack.c.h.b16 %v191
  %v777 = vunpack.c.l.b16 %v192
  %v778 = vunpack.c.h.b16 %v192
  %v779 = vunpack.c.l.b16 %v193
  %v780 = vunpack.c.h.b16 %v193
  %v781 = vunpack.c.l.b16 %v194
  %v782 = vunpack.c.h.b16 %v194
  %v783 = vunpack.c.l.b16 %v195
  %v784 = vunpack.c.h.b16 %v195
  %v785 = vunpack.c.l.b16 %v196
  %v786 = vunpack.c.h.b16 %v196
  %v787 = vunpack.c.l.b16 %v197
  %v788 = vunpack.c.h.b16 %v197
  %v789 = vunpack.c.l.b16 %v198
  %v790 = vunpack.c.h.b16 %v198
  %v791 = vunpack.c.l.b16 %v199
  %v792 = vunpack.c.h.b16 %v199
  %v793 = vunpack.c.l.b16 %v200
  %v794 = vunpack.c.h.b16 %v200
  %v795 = vunpack.c.l.b16 %v201
  %v796 = vunpack.c.h.b16 %v201
  %v797 = vunpack.c.l.b16 %v202
  %v798 = vunpack.c.h.b16 %v202
  %v799 = vunpack.c.l.b16 %v203
  %v800 = vunpack.c.h.b16 %v203
  %v801 = vunpack.c.l.b16 %v204
  %v802 = vunpack.c.h.b16 %v204
  %v803 = vunpack.c.l.b16 %v205
  %v804 = vunpack.c.h.b16 %v205
  %v805 = vunpack.c.l.b16 %v206
  %v806 = vunpack.c.h.b16 %v206
  %v807 = vunpack.c.l.b16 %v207
  %v808 = vunpack.c.h.b16 %v207
  %v809 = vunpack.c.l.b16 %v208
  %v810 = vunpack.c.h.b16 %v208
  %v811 = vunpack.c.l.b16 %v209
  %v812 = vunpack.c.h.b16 %v209
  %v813 = vunpack.c.l.b16 %v210
  %v814 = vunpack.c.h.b16 %v210
  %v815 = vunpack.c.l.b16 %v211
  %v816 = vunpack.c.h.b16 %v211
  %v817 = vunpack.c.l.b16 %v212
  %v818 = vunpack.c.h.b16 %v212
  %v819 = vunpack.c.l.b16 %v213
  %v820 = vunpack.c.h.b16 %v213
  %v821 = vunpack.c.l.b16 %v214
  %v822 = vunpack.c.h.b16 %v214
  %v823 = vunpack.c.l.b16 %v215
  %v824 = vunpack.c.h.b16 %v215
  %v825 = vunpack.c.l.b16 %v216
  %v826 = vunpack.c.h.b16 %v216
  %v827 = vunpack.c.l.b16 %v217
  %v828 = vunpack.c.h.b16 %v217
  %v829 = vunpack.c.l.b16 %v218
  %v830 = vunpack.c.h.b16 %v218
  %v831 = vunpack.c.l.b16 %v219
  %v832 = vunpack.c.h.b16 %v219
  %v833 = vunpack.c.l.b16 %v220
  %v834 = vunpack.c.h.b16 %v220
  %v835 = vunpack.c.l.b16 %v221
  %v836 = vunpack.c.h.b16 %v221
  %v837 = vunpack.c.l.b16 %v222
  %v838 = vunpack.c.h.b16 %v222
  %v839 = vunpack.c.l.b16 %v223
  %v840 = vunpack.c.h.b16 %v223
  %v841 = vpack.c.b16 %v465, %v457
  %v842 = vpack.c.b16 %v466, %v458
  %v843 = vpack.c.b16 %v467, %v459
  %v844 = vpack.c.b16 %v468, %v460
  %v845 = vpack.c.b16 %v469, %v461
  %v846 = vpack.c.b16 %v470, %v462
  %v847 = vpack.c.b16 %v471, %v463
  %v848 = vpack.c.b16 %v472, %v464
  %v849 = vpack.c.b16 %v481, %v473
  %v850 = vpack.c.b16 %v482, %v474
  %v851 = vpack.c.b16 %v483, %v475
  %v852 = vpack.c.b16 %v484, %v476
  %v853 = vpack.c.b16 %v485, %v477
  %v854 = vpack.c.b16 %v486, %v478
  %v855 = vpack.c.b16 %v487, %v479
  %v856 = vpack.c.b16 %v488, %v480
  %v857 = vpack.c.b16 %v497, %v489
  %v858 = vpack.c.b16 %v498, %v490
  %v859 = vpack.c.b16 %v499, %v491
  %v860 = vpack.c.b16 %v500, %v492
  %v861 = vpack.c.b16 %v501, %v493
  %v862 = vpack.c.b16 %v502, %v494
  %v863 = vpack.c.b16 %v503, %v495
  %v864 = vpack.c.b16 %v504, %v496
  %v865 = vpack.c.b16 %v513, %v505
  %v866 = vpack.c.b16 %v514, %v506
  %v867 = vpack.c.b16 %v515, %v507
  %v868 = vpack.c.b16 %v516, %v508
  %v869 = vpack.c.b16 %v517, %v509
  %v870 = vpack.c.b16 %v518, %v510
  %v871 = vpack.c.b16 %v519, %v511
  %v872 = vpack.c.b16 %v520, %v512
  %v873 = vpack.c.b16 %v529, %v521
  %v874 = vpack.c.b16 %v530, %v522
  %v875 = vpack.c.b16 %v531, %v523
  %v876 = vpack.c.b16 %v532, %v524
  %v877 = vpack.c.b16 %v533, %v525
  %v878 = vpack.c.b16 %v534, %v526
  %v879 = vpack.c.b16 %v535, %v527
  %v880 = vpack.c.b16 %v536, %v528
  %v881 = vpack.c.b16 %v545, %v537
  %v882 = vpack.c.b16 %v546, %v538
  %v883 = vpack.c.b16 %v547, %v539
  %v884 = vpack.c.b16 %v548, %v540
  %v885 = vpack.c.b16 %v549, %v541
  %v886 = vpack.c.b16 %v550, %v542
  %v887 = vpack.c.b16 %v551, %v543
  %v888 = vpack.c.b16 %v552, %v544
  %v889 = vpack.c.b16 %v561, %v553
  %v890 = vpack.c.b16 %v562, %v554
  %v891 = vpack.c.b16 %v563, %v555
  %v892 = vpack.c.b16 %v564, %v556
  %v893 = vpack.c.b16 %v565, %v557
  %v894 = vpack.c.b16 %v566, %v558
  %v895 = vpack.c.b16 %v567, %v559
  %v896 = vpack.c.b16 %v568, %v560
  %v897 = vpack.c.b16 %v577, %v569
  %v898 = vpack.c.b16 %v578, %v570
  %v899 = vpack.c.b16 %v579, %v571
  %v900 = vpack.c.b16 %v580, %v572
  %v901 = vpack.c.b16 %v581, %v573
  %v902 = vpack.c.b16 %v582, %v574
  %v903 = vpack.c.b16 %v583, %v575
  %v904 = vpack.c.b16 %v584, %v576
  %v905 = vpack.c.b16 %v593, %v585
  %v906 = vpack.c.b16 %v594, %v586
  %v907 = vpack.c.b16 %v595, %v587
  %v908 = vpack.c.b16 %v596, %v588
  %v909 = vpack.c.b16 %v597, %v589
  %v910 = vpack.c.b16 %v598, %v590
  %v911 = vpack.c.b16 %v599, %v591
  %v912 = vpack.c.b16 %v600, %v592
  %v913 = vpack.c.b16 %v609, %v601
  %v914 = vpack.c.b16 %v610, %v602
  %v915 = vpack.c.b16 %v611, %v603
  %v916 = vpack.c.b16 %v612, %v604
  %v917 = vpack.c.b16 %v613, %v605
  %v918 = vpack.c.b16 %v614, %v606
  %v919 = vpack.c.b16 %v615, %v607
  %v920 = vpack.c.b16 %v616, %v608
  %v921 = vpack.c.b16 %v625, %v617
  %v922 = vpack.c.b16 %v626, %v618
  %v923 = vpack.c.b16 %v627, %v619
  %v924 = vpack.c.b16 %v628, %v620
  %v925 = vpack.c.b16 %v629, %v621
  %v926 = vpack.c.b16 %v630, %v622
  %v927 = vpack.c.b16 %v631, %v623
  %v928 = vpack.c.b16 %v632, %v624
  %v929 = vpack.c.b16 %v641, %v633
  %v930 = vpack.c.b16 %v642, %v634
  %v931 = vpack.c.b16 %v643, %v635
  %v932 = vpack.c.b16 %v644, %v636
  %v933 = vpack.c.b16 %v645, %v637
  %v934 = vpack.c.b16 %v646, %v638
  %v935 = vpack.c.b16 %v647, %v639
  %v936 = vpack.c.b16 %v648, %v640
  %v937 = vpack.c.b16 %v657, %v649
  %v938 = vpack.c.b16 %v658, %v650
  %v939 = vpack.c.b16 %v659, %v651
  %v940 = vpack.c.b16 %v660, %v652
  %v941 = vpack.c.b16 %v661, %v653
  %v942 = vpack.c.b16 %v662, %v654
  %v943 = vpack.c.b16 %v663, %v655
  %v944 = vpack.c.b16 %v664, %v656
  %v945 = vpack.c.b16 %v673, %v665
  %v946 = vpack.c.b16 %v674, %v666
  %v947 = vpack.c.b16 %v675, %v667
  %v948 = vpack.c.b16 %v676, %v668
  %v949 = vpack.c.b16 %v677, %v669
  %v950 = vpack.c.b16 %v678, %v670
  %v951 = vpack.c.b16 %v679, %v671
  %v952 = vpack.c.b16 %v680, %v672
  %v953 = vpack.c.b16 %v689, %v681
  %v954 = vpack.c.b16 %v690, %v682
  %v955 = vpack.c.b16 %v691, %v683
  %v956 = vpack.c.b16 %v692, %v684
  %v957 = vpack.c.b16 %v693, %v685
  %v958 = vpack.c.b16 %v694, %v686
  %v959 = vpack.c.b16 %v695, %v687
  %v960 = vpack.c.b16 %v696, %v688
  %v961 = vpack.c.b16 %v705, %v697
  %v962 = vpack.c.b16 %v706, %v698
  %v963 = vpack.c.b16 %v707, %v699
  %v964 = vpack.c.b16 %v708, %v700
  %v965 = vpack.c.b16 %v709, %v701
  %v966 = vpack.c.b16 %v710, %v702
  %v967 = vpack.c.b16 %v711, %v703
  %v968 = vpack.c.b16 %v712, %v704
  %v969 = vpack.c.b16 %v721, %v713
  %v970 = vpack.c.b16 %v722, %v714
  %v971 = vpack.c.b16 %v723, %v715
  %v972 = vpack.c.b16 %v724, %v716
  %v973 = vpack.c.b16 %v725, %v717
  %v974 = vpack.c.b16 %v726, %v718
  %v975 = vpack.c.b16 %v727, %v719
  %v976 = vpack.c.b16 %v728, %v720
  %v977 = vpack.c.b16 %v737, %v729
  %v978 = vpack.c.b16 %v738, %v730
  %v979 = vpack.c.b16 %v739, %v731
  %v980 = vpack.c.b16 %v740, %v732
  %v981 = vpack.c.b16 %v741, %v733
  %v982 = vpack.c.b16 %v742, %v734
  %v983 = vpack.c.b16 %v743, %v735
  %v984 = vpack.c.b16 %v744, %v736
  %v985 = vpack.c.b16 %v753, %v745
  %v986 = vpack.c.b16 %v754, %v746
  %v987 = vpack.c.b16 %v755, %v747
  %v988 = vpack.c.b16 %v756, %v748
  %v989 = vpack.c.b16 %v757, %v749
  %v990 = vpack.c.b16 %v758, %v750
  %v991 = vpack.c.b16 %v759, %v751
  %v992 = vpack.c.b16 %v760, %v752
  %v993 = vpack.c.b16 %v769, %v761
  %v994 = vpack.c.b16 %v770, %v762
  %v995 = vpack.c.b16 %v771, %v763
  %v996 = vpack.c.b16 %v772, %v764
  %v997 = vpack.c.b16 %v773, %v765
  %v998 = vpack.c.b16 %v774, %v766
  %v999 = vpack.c.b16 %v775, %v767
  %v1000 = vpack.c.b16 %v776, %v768
  %v1001 = vpack.c.b16 %v785, %v777
  %v1002 = vpack.c.b16 %v786, %v778
  %v1003 = vpack.c.b16 %v787, %v779
  %v1004 = vpack.c.b16 %v788, %v780
  %v1005 = vpack.c.b16 %v789, %v781
  %v1006 = vpack.c.b16 %v790, %v782
  %v1007 = vpack.c.b16 %v791, %v783
  %v1008 = vpack.c.b16 %v792, %v784
  %v1009 = vpack.c.b16 %v801, %v793
  %v1010 = vpack.c.b16 %v802, %v794
  %v1011 = vpack.c.b16 %v803, %v795
  %v1012 = vpack.c.b16 %v804, %v796
  %v1013 = vpack.c.b16 %v805, %v797
  %v1014 = vpack.c.b16 %v806, %v798
  %v1015 = vpack.c.b16 %v807, %v799
  %v1016 = vpack.c.b16 %v808, %v800
  %v1017 = vpack.c.b16 %v817, %v809
  %v1018 = vpack.c.b16 %v818, %v810
  %v1019 = vpack.c.b16 %v819, %v811
  %v1020 = vpack.c.b16 %v820, %v812
  %v1021 = vpack.c.b16 %v821, %v813
  %v1022 = vpack.c.b16 %v822, %v814
  %v1023 = vpack.c.b16 %v823, %v815
  %v1024 = vpack.c.b16 %v824, %v816
  %v1025 = vpack.c.b16 %v833, %v825
  %v1026 = vpack.c.b16 %v834, %v826
  %v1027 = vpack.c.b16 %v835, %v827
  %v1028 = vpack.c.b16 %v836, %v828
  %v1029 = vpack.c.b16 %v837, %v829
  %v1030 = vpack.c.b16 %v838, %v830
  %v1031 = vpack.c.b16 %v839, %v831
  %v1032 = vpack.c.b16 %v840, %v832
  %1225 = vmatprep.subr.bf16.mxu0 %v898
  %1226 = vmatpush1.bf16.msra.mxu0 %v897
  %1227 = vmatprep.subr.bf16.mxu0 %v890
  %1228 = vmatpush1.bf16.msra.mxu0 %v889
  %1229 = vmatprep.subr.bf16.mxu0 %v882
  %1230 = vmatpush1.bf16.msra.mxu0 %v881
  %1231 = vmatprep.subr.bf16.mxu0 %v874
  %1232 = vmatpush1.bf16.msra.mxu0 %v873
  %1233 = vmatprep.subr.bf16.mxu0 %v866
  %1234 = vmatpush1.bf16.msra.mxu0 %v865
  %1235 = vmatprep.subr.bf16.mxu0 %v858
  %1236 = vmatpush1.bf16.msra.mxu0 %v857
  %1237 = vmatprep.subr.bf16.mxu0 %v850
  %1238 = vmatpush1.bf16.msra.mxu0 %v849
  %1239 = vmatprep.subr.bf16.mxu0 %v842
  %1240 = vmatpush1.bf16.msra.mxu0 %v841
  %1241 = vmatprep.subr.bf16.mxu0 %v962
  %1242 = vmatpush2.bf16.msra.mxu0 %v961
  %1243 = vmatprep.subr.bf16.mxu0 %v954
  %1244 = vmatpush2.bf16.msra.mxu0 %v953
  %1245 = vmatprep.subr.bf16.mxu0 %v946
  %1246 = vmatpush2.bf16.msra.mxu0 %v945
  %1247 = vmatprep.subr.bf16.mxu0 %v938
  %1248 = vmatpush2.bf16.msra.mxu0 %v937
  %1249 = vmatprep.subr.bf16.mxu0 %v930
  %1250 = vmatpush2.bf16.msra.mxu0 %v929
  %1251 = vmatprep.subr.bf16.mxu0 %v922
  %1252 = vmatpush2.bf16.msra.mxu0 %v921
  %1253 = vmatprep.subr.bf16.mxu0 %v914
  %1254 = vmatpush2.bf16.msra.mxu0 %v913
  %1255 = vmatprep.subr.bf16.mxu0 %v906
  %1256 = vmatpush2.bf16.msra.mxu0 %v905
  %1257 = vmatprep.mubr.bf16.mxu0 0
  %1258 = vmatmul.mubr.bf16.gmra.mxu0 %v31
  %v1259 = vpop.f32.mrf.mxu0
  %v1260 = vadd.f32 %v228, %v1259
  %v1261 = vpop.f32.mrf.mxu0
  %v1262 = vadd.f32 %v232, %v1261
  %v1263 = vpop.f32.mrf.mxu0
  %v1264 = vpop.f32.mrf.mxu0
  %1265 = vdwg.mxu0
  %1266 = vmatprep.subr.bf16.mxu0 %v1026
  %1267 = vmatpush1.bf16.msra.mxu0 %v1025
  %1268 = vmatprep.subr.bf16.mxu0 %v1018
  %1269 = vmatpush1.bf16.msra.mxu0 %v1017
  %1270 = vmatprep.subr.bf16.mxu0 %v1010
  %1271 = vmatpush1.bf16.msra.mxu0 %v1009
  %1272 = vmatprep.subr.bf16.mxu0 %v1002
  %1273 = vmatpush1.bf16.msra.mxu0 %v1001
  %1274 = vmatprep.subr.bf16.mxu0 %v994
  %1275 = vmatpush1.bf16.msra.mxu0 %v993
  %1276 = vmatprep.subr.bf16.mxu0 %v986
  %1277 = vmatpush1.bf16.msra.mxu0 %v985
  %1278 = vmatprep.subr.bf16.mxu0 %v978
  %1279 = vmatpush1.bf16.msra.mxu0 %v977
  %1280 = vmatprep.subr.bf16.mxu0 %v970
  %1281 = vmatpush1.bf16.msra.mxu0 %v969
  %1282 = vmatprep.subr.bf16.mxu0 0
  %1283 = vmatpush2.bf16.msra.mxu0 0
  %1284 = vmatprep.subr.bf16.mxu0 0
  %1285 = vmatpush2.bf16.msra.mxu0 0
  %1286 = vmatprep.subr.bf16.mxu0 0
  %1287 = vmatpush2.bf16.msra.mxu0 0
  %1288 = vmatprep.subr.bf16.mxu0 0
  %1289 = vmatpush2.bf16.msra.mxu0 0
  %1290 = vmatprep.subr.bf16.mxu0 0
  %1291 = vmatpush2.bf16.msra.mxu0 0
  %1292 = vmatprep.subr.bf16.mxu0 0
  %1293 = vmatpush2.bf16.msra.mxu0 0
  %1294 = vmatprep.subr.bf16.mxu0 0
  %1295 = vmatpush2.bf16.msra.mxu0 0
  %1296 = vmatprep.subr.bf16.mxu0 0
  %1297 = vmatpush2.bf16.msra.mxu0 0
  %1298 = vmatprep.mubr.bf16.mxu0 0
  %1299 = vmatmul.mubr.bf16.gmra.mxu0 0
  %v1300 = vpop.f32.mrf.mxu0
  %v1301 = vadd.f32 %v1260, %v1300
  %v1302 = vpop.f32.mrf.mxu0
  %v1303 = vadd.f32 %v1262, %v1302
  %v1304 = vpop.f32.mrf.mxu0
  %v1305 = vpop.f32.mrf.mxu0
  %1306 = vdwg.mxu0
  %1307 = vmatprep.subr.bf16.mxu0 %v900
  %1308 = vmatpush1.bf16.msra.mxu0 %v899
  %1309 = vmatprep.subr.bf16.mxu0 %v892
  %1310 = vmatpush1.bf16.msra.mxu0 %v891
  %1311 = vmatprep.subr.bf16.mxu0 %v884
  %1312 = vmatpush1.bf16.msra.mxu0 %v883
  %1313 = vmatprep.subr.bf16.mxu0 %v876
  %1314 = vmatpush1.bf16.msra.mxu0 %v875
  %1315 = vmatprep.subr.bf16.mxu0 %v868
  %1316 = vmatpush1.bf16.msra.mxu0 %v867
  %1317 = vmatprep.subr.bf16.mxu0 %v860
  %1318 = vmatpush1.bf16.msra.mxu0 %v859
  %1319 = vmatprep.subr.bf16.mxu0 %v852
  %1320 = vmatpush1.bf16.msra.mxu0 %v851
  %1321 = vmatprep.subr.bf16.mxu0 %v844
  %1322 = vmatpush1.bf16.msra.mxu0 %v843
  %1323 = vmatprep.subr.bf16.mxu0 %v964
  %1324 = vmatpush2.bf16.msra.mxu0 %v963
  %1325 = vmatprep.subr.bf16.mxu0 %v956
  %1326 = vmatpush2.bf16.msra.mxu0 %v955
  %1327 = vmatprep.subr.bf16.mxu0 %v948
  %1328 = vmatpush2.bf16.msra.mxu0 %v947
  %1329 = vmatprep.subr.bf16.mxu0 %v940
  %1330 = vmatpush2.bf16.msra.mxu0 %v939
  %1331 = vmatprep.subr.bf16.mxu0 %v932
  %1332 = vmatpush2.bf16.msra.mxu0 %v931
  %1333 = vmatprep.subr.bf16.mxu0 %v924
  %1334 = vmatpush2.bf16.msra.mxu0 %v923
  %1335 = vmatprep.subr.bf16.mxu0 %v916
  %1336 = vmatpush2.bf16.msra.mxu0 %v915
  %1337 = vmatprep.subr.bf16.mxu0 %v908
  %1338 = vmatpush2.bf16.msra.mxu0 %v907
  %1339 = vmatprep.mubr.bf16.mxu0 0
  %1340 = vmatmul.mubr.bf16.gmra.mxu0 %v31
  %v1341 = vpop.f32.mrf.mxu0
  %v1342 = vadd.f32 %v236, %v1341
  %v1343 = vpop.f32.mrf.mxu0
  %v1344 = vadd.f32 %v240, %v1343
  %v1345 = vpop.f32.mrf.mxu0
  %v1346 = vpop.f32.mrf.mxu0
  %1347 = vdwg.mxu0
  %1348 = vmatprep.subr.bf16.mxu0 %v1028
  %1349 = vmatpush1.bf16.msra.mxu0 %v1027
  %1350 = vmatprep.subr.bf16.mxu0 %v1020
  %1351 = vmatpush1.bf16.msra.mxu0 %v1019
  %1352 = vmatprep.subr.bf16.mxu0 %v1012
  %1353 = vmatpush1.bf16.msra.mxu0 %v1011
  %1354 = vmatprep.subr.bf16.mxu0 %v1004
  %1355 = vmatpush1.bf16.msra.mxu0 %v1003
  %1356 = vmatprep.subr.bf16.mxu0 %v996
  %1357 = vmatpush1.bf16.msra.mxu0 %v995
  %1358 = vmatprep.subr.bf16.mxu0 %v988
  %1359 = vmatpush1.bf16.msra.mxu0 %v987
  %1360 = vmatprep.subr.bf16.mxu0 %v980
  %1361 = vmatpush1.bf16.msra.mxu0 %v979
  %1362 = vmatprep.subr.bf16.mxu0 %v972
  %1363 = vmatpush1.bf16.msra.mxu0 %v971
  %1364 = vmatprep.subr.bf16.mxu0 0
  %1365 = vmatpush2.bf16.msra.mxu0 0
  %1366 = vmatprep.subr.bf16.mxu0 0
  %1367 = vmatpush2.bf16.msra.mxu0 0
  %1368 = vmatprep.subr.bf16.mxu0 0
  %1369 = vmatpush2.bf16.msra.mxu0 0
  %1370 = vmatprep.subr.bf16.mxu0 0
  %1371 = vmatpush2.bf16.msra.mxu0 0
  %1372 = vmatprep.subr.bf16.mxu0 0
  %1373 = vmatpush2.bf16.msra.mxu0 0
  %1374 = vmatprep.subr.bf16.mxu0 0
  %1375 = vmatpush2.bf16.msra.mxu0 0
  %1376 = vmatprep.subr.bf16.mxu0 0
  %1377 = vmatpush2.bf16.msra.mxu0 0
  %1378 = vmatprep.subr.bf16.mxu0 0
  %1379 = vmatpush2.bf16.msra.mxu0 0
  %1380 = vmatprep.mubr.bf16.mxu0 0
  %1381 = vmatmul.mubr.bf16.gmra.mxu0 0
  %v1382 = vpop.f32.mrf.mxu0
  %v1383 = vadd.f32 %v1342, %v1382
  %v1384 = vpop.f32.mrf.mxu0
  %v1385 = vadd.f32 %v1344, %v1384
  %v1386 = vpop.f32.mrf.mxu0
  %v1387 = vpop.f32.mrf.mxu0
  %1388 = vdwg.mxu0
  %1389 = vmatprep.subr.bf16.mxu0 %v902
  %1390 = vmatpush1.bf16.msra.mxu0 %v901
  %1391 = vmatprep.subr.bf16.mxu0 %v894
  %1392 = vmatpush1.bf16.msra.mxu0 %v893
  %1393 = vmatprep.subr.bf16.mxu0 %v886
  %1394 = vmatpush1.bf16.msra.mxu0 %v885
  %1395 = vmatprep.subr.bf16.mxu0 %v878
  %1396 = vmatpush1.bf16.msra.mxu0 %v877
  %1397 = vmatprep.subr.bf16.mxu0 %v870
  %1398 = vmatpush1.bf16.msra.mxu0 %v869
  %1399 = vmatprep.subr.bf16.mxu0 %v862
  %1400 = vmatpush1.bf16.msra.mxu0 %v861
  %1401 = vmatprep.subr.bf16.mxu0 %v854
  %1402 = vmatpush1.bf16.msra.mxu0 %v853
  %1403 = vmatprep.subr.bf16.mxu0 %v846
  %1404 = vmatpush1.bf16.msra.mxu0 %v845
  %1405 = vmatprep.subr.bf16.mxu0 %v966
  %1406 = vmatpush2.bf16.msra.mxu0 %v965
  %1407 = vmatprep.subr.bf16.mxu0 %v958
  %1408 = vmatpush2.bf16.msra.mxu0 %v957
  %1409 = vmatprep.subr.bf16.mxu0 %v950
  %1410 = vmatpush2.bf16.msra.mxu0 %v949
  %1411 = vmatprep.subr.bf16.mxu0 %v942
  %1412 = vmatpush2.bf16.msra.mxu0 %v941
  %1413 = vmatprep.subr.bf16.mxu0 %v934
  %1414 = vmatpush2.bf16.msra.mxu0 %v933
  %1415 = vmatprep.subr.bf16.mxu0 %v926
  %1416 = vmatpush2.bf16.msra.mxu0 %v925
  %1417 = vmatprep.subr.bf16.mxu0 %v918
  %1418 = vmatpush2.bf16.msra.mxu0 %v917
  %1419 = vmatprep.subr.bf16.mxu0 %v910
  %1420 = vmatpush2.bf16.msra.mxu0 %v909
  %1421 = vmatprep.mubr.bf16.mxu0 0
  %1422 = vmatmul.mubr.bf16.gmra.mxu0 %v31
  %v1423 = vpop.f32.mrf.mxu0
  %v1424 = vadd.f32 %v244, %v1423
  %v1425 = vpop.f32.mrf.mxu0
  %v1426 = vadd.f32 %v248, %v1425
  %v1427 = vpop.f32.mrf.mxu0
  %v1428 = vpop.f32.mrf.mxu0
  %1429 = vdwg.mxu0
  %1430 = vmatprep.subr.bf16.mxu0 %v1030
  %1431 = vmatpush1.bf16.msra.mxu0 %v1029
  %1432 = vmatprep.subr.bf16.mxu0 %v1022
  %1433 = vmatpush1.bf16.msra.mxu0 %v1021
  %1434 = vmatprep.subr.bf16.mxu0 %v1014
  %1435 = vmatpush1.bf16.msra.mxu0 %v1013
  %1436 = vmatprep.subr.bf16.mxu0 %v1006
  %1437 = vmatpush1.bf16.msra.mxu0 %v1005
  %1438 = vmatprep.subr.bf16.mxu0 %v998
  %1439 = vmatpush1.bf16.msra.mxu0 %v997
  %1440 = vmatprep.subr.bf16.mxu0 %v990
  %1441 = vmatpush1.bf16.msra.mxu0 %v989
  %1442 = vmatprep.subr.bf16.mxu0 %v982
  %1443 = vmatpush1.bf16.msra.mxu0 %v981
  %1444 = vmatprep.subr.bf16.mxu0 %v974
  %1445 = vmatpush1.bf16.msra.mxu0 %v973
  %1446 = vmatprep.subr.bf16.mxu0 0
  %1447 = vmatpush2.bf16.msra.mxu0 0
  %1448 = vmatprep.subr.bf16.mxu0 0
  %1449 = vmatpush2.bf16.msra.mxu0 0
  %1450 = vmatprep.subr.bf16.mxu0 0
  %1451 = vmatpush2.bf16.msra.mxu0 0
  %1452 = vmatprep.subr.bf16.mxu0 0
  %1453 = vmatpush2.bf16.msra.mxu0 0
  %1454 = vmatprep.subr.bf16.mxu0 0
  %1455 = vmatpush2.bf16.msra.mxu0 0
  %1456 = vmatprep.subr.bf16.mxu0 0
  %1457 = vmatpush2.bf16.msra.mxu0 0
  %1458 = vmatprep.subr.bf16.mxu0 0
  %1459 = vmatpush2.bf16.msra.mxu0 0
  %1460 = vmatprep.subr.bf16.mxu0 0
  %1461 = vmatpush2.bf16.msra.mxu0 0
  %1462 = vmatprep.mubr.bf16.mxu0 0
  %1463 = vmatmul.mubr.bf16.gmra.mxu0 0
  %v1464 = vpop.f32.mrf.mxu0
  %v1465 = vadd.f32 %v1424, %v1464
  %v1466 = vpop.f32.mrf.mxu0
  %v1467 = vadd.f32 %v1426, %v1466
  %v1468 = vpop.f32.mrf.mxu0
  %v1469 = vpop.f32.mrf.mxu0
  %1470 = vdwg.mxu0
  %1471 = vmatprep.subr.bf16.mxu0 %v904
  %1472 = vmatpush1.bf16.msra.mxu0 %v903
  %1473 = vmatprep.subr.bf16.mxu0 %v896
  %1474 = vmatpush1.bf16.msra.mxu0 %v895
  %1475 = vmatprep.subr.bf16.mxu0 %v888
  %1476 = vmatpush1.bf16.msra.mxu0 %v887
  %1477 = vmatprep.subr.bf16.mxu0 %v880
  %1478 = vmatpush1.bf16.msra.mxu0 %v879
  %1479 = vmatprep.subr.bf16.mxu0 %v872
  %1480 = vmatpush1.bf16.msra.mxu0 %v871
  %1481 = vmatprep.subr.bf16.mxu0 %v864
  %1482 = vmatpush1.bf16.msra.mxu0 %v863
  %1483 = vmatprep.subr.bf16.mxu0 %v856
  %1484 = vmatpush1.bf16.msra.mxu0 %v855
  %1485 = vmatprep.subr.bf16.mxu0 %v848
  %1486 = vmatpush1.bf16.msra.mxu0 %v847
  %1487 = vmatprep.subr.bf16.mxu0 %v968
  %1488 = vmatpush2.bf16.msra.mxu0 %v967
  %1489 = vmatprep.subr.bf16.mxu0 %v960
  %1490 = vmatpush2.bf16.msra.mxu0 %v959
  %1491 = vmatprep.subr.bf16.mxu0 %v952
  %1492 = vmatpush2.bf16.msra.mxu0 %v951
  %1493 = vmatprep.subr.bf16.mxu0 %v944
  %1494 = vmatpush2.bf16.msra.mxu0 %v943
  %1495 = vmatprep.subr.bf16.mxu0 %v936
  %1496 = vmatpush2.bf16.msra.mxu0 %v935
  %1497 = vmatprep.subr.bf16.mxu0 %v928
  %1498 = vmatpush2.bf16.msra.mxu0 %v927
  %1499 = vmatprep.subr.bf16.mxu0 %v920
  %1500 = vmatpush2.bf16.msra.mxu0 %v919
  %1501 = vmatprep.subr.bf16.mxu0 %v912
  %1502 = vmatpush2.bf16.msra.mxu0 %v911
  %1503 = vmatprep.mubr.bf16.mxu0 0
  %1504 = vmatmul.mubr.bf16.gmra.mxu0 %v31
  %v1505 = vpop.f32.mrf.mxu0
  %v1506 = vadd.f32 %v252, %v1505
  %v1507 = vpop.f32.mrf.mxu0
  %v1508 = vadd.f32 %v256, %v1507
  %v1509 = vpop.f32.mrf.mxu0
  %v1510 = vpop.f32.mrf.mxu0
  %1511 = vdwg.mxu0
  %1512 = vmatprep.subr.bf16.mxu0 %v1032
  %1513 = vmatpush1.bf16.msra.mxu0 %v1031
  %1514 = vmatprep.subr.bf16.mxu0 %v1024
  %1515 = vmatpush1.bf16.msra.mxu0 %v1023
  %1516 = vmatprep.subr.bf16.mxu0 %v1016
  %1517 = vmatpush1.bf16.msra.mxu0 %v1015
  %1518 = vmatprep.subr.bf16.mxu0 %v1008
  %1519 = vmatpush1.bf16.msra.mxu0 %v1007
  %1520 = vmatprep.subr.bf16.mxu0 %v1000
  %1521 = vmatpush1.bf16.msra.mxu0 %v999
  %1522 = vmatprep.subr.bf16.mxu0 %v992
  %1523 = vmatpush1.bf16.msra.mxu0 %v991
  %1524 = vmatprep.subr.bf16.mxu0 %v984
  %1525 = vmatpush1.bf16.msra.mxu0 %v983
  %1526 = vmatprep.subr.bf16.mxu0 %v976
  %1527 = vmatpush1.bf16.msra.mxu0 %v975
  %1528 = vmatprep.subr.bf16.mxu0 0
  %1529 = vmatpush2.bf16.msra.mxu0 0
  %1530 = vmatprep.subr.bf16.mxu0 0
  %1531 = vmatpush2.bf16.msra.mxu0 0
  %1532 = vmatprep.subr.bf16.mxu0 0
  %1533 = vmatpush2.bf16.msra.mxu0 0
  %1534 = vmatprep.subr.bf16.mxu0 0
  %1535 = vmatpush2.bf16.msra.mxu0 0
  %1536 = vmatprep.subr.bf16.mxu0 0
  %1537 = vmatpush2.bf16.msra.mxu0 0
  %1538 = vmatprep.subr.bf16.mxu0 0
  %1539 = vmatpush2.bf16.msra.mxu0 0
  %1540 = vmatprep.subr.bf16.mxu0 0
  %1541 = vmatpush2.bf16.msra.mxu0 0
  %1542 = vmatprep.subr.bf16.mxu0 0
  %1543 = vmatpush2.bf16.msra.mxu0 0
  %1544 = vmatprep.mubr.bf16.mxu0 0
  %1545 = vmatmul.mubr.bf16.gmra.mxu0 0
  %v1546 = vpop.f32.mrf.mxu0
  %v1547 = vadd.f32 %v1506, %v1546
  %v1548 = vpop.f32.mrf.mxu0
  %v1549 = vadd.f32 %v1508, %v1548
  %v1550 = vpop.f32.mrf.mxu0
  %v1551 = vpop.f32.mrf.mxu0
  %1552 = vdwg.mxu0
  %v1553 = vmul.f32 %v1301, 0.5
  %v1554 = vmul.f32 %v1303, 0.5
  %v1555 = vtanh.pop %v1553
  %v1556 = vtanh.pop %v1554
  %v1557 = vadd.f32 %v1555, 1.0
  %v1558 = vadd.f32 %v1556, 1.0
  %v1559 = vmul.f32 %v1557, 0.5
  %v1560 = vmul.f32 %v1558, 0.5
  %v1561 = vmul.f32 %v1383, 0.5
  %v1562 = vmul.f32 %v1385, 0.5
  %v1563 = vtanh.pop %v1561
  %v1564 = vtanh.pop %v1562
  %v1565 = vadd.f32 %v1563, 1.0
  %v1566 = vadd.f32 %v1564, 1.0
  %v1567 = vmul.f32 %v1565, 0.5
  %v1568 = vmul.f32 %v1566, 0.5
  %v1569 = vtanh.pop %v1465
  %v1570 = vtanh.pop %v1467
  %v1571 = vmul.f32 %v1547, 0.5
  %v1572 = vmul.f32 %v1549, 0.5
  %v1573 = vtanh.pop %v1571
  %v1574 = vtanh.pop %v1572
  %v1575 = vadd.f32 %v1573, 1.0
  %v1576 = vadd.f32 %v1574, 1.0
  %v1577 = vmul.f32 %v1575, 0.5
  %v1578 = vmul.f32 %v1576, 0.5
  %v1579 = vmul.f32 %v1567, 0.0
  %v1580 = vmul.f32 %v1568, 0.0
  %v1581 = vmul.f32 %v1559, %v1569
  %v1582 = vmul.f32 %v1560, %v1570
  %v1583 = vadd.f32 %v1579, %v1581
  %v1584 = vadd.f32 %v1580, %v1582
  %v1585 = vtanh.pop %v1583
  %v1586 = vtanh.pop %v1584
  %v1587 = vmul.f32 %v1577, %v1585
  %v1588 = vmul.f32 %v1578, %v1586
  %v1589 = vpack.c.bf16 %v1587, %v1587
  %v1590 = vpack.c.bf16 %v1588, %v1588
  %s1591 = scalar_lea.vmem %s0, 1
  %v1592 = vld [vmem:[%s1591] sm:$0x1]
  %1593 = vmatprep.subr.bf16.mxu0 %v898
  %1594 = vmatpush1.bf16.msra.mxu0 %v897
  %1595 = vmatprep.subr.bf16.mxu0 %v890
  %1596 = vmatpush1.bf16.msra.mxu0 %v889
  %1597 = vmatprep.subr.bf16.mxu0 %v882
  %1598 = vmatpush1.bf16.msra.mxu0 %v881
  %1599 = vmatprep.subr.bf16.mxu0 %v874
  %1600 = vmatpush1.bf16.msra.mxu0 %v873
  %1601 = vmatprep.subr.bf16.mxu0 %v866
  %1602 = vmatpush1.bf16.msra.mxu0 %v865
  %1603 = vmatprep.subr.bf16.mxu0 %v858
  %1604 = vmatpush1.bf16.msra.mxu0 %v857
  %1605 = vmatprep.subr.bf16.mxu0 %v850
  %1606 = vmatpush1.bf16.msra.mxu0 %v849
  %1607 = vmatprep.subr.bf16.mxu0 %v842
  %1608 = vmatpush1.bf16.msra.mxu0 %v841
  %1609 = vmatprep.subr.bf16.mxu0 %v962
  %1610 = vmatpush2.bf16.msra.mxu0 %v961
  %1611 = vmatprep.subr.bf16.mxu0 %v954
  %1612 = vmatpush2.bf16.msra.mxu0 %v953
  %1613 = vmatprep.subr.bf16.mxu0 %v946
  %1614 = vmatpush2.bf16.msra.mxu0 %v945
  %1615 = vmatprep.subr.bf16.mxu0 %v938
  %1616 = vmatpush2.bf16.msra.mxu0 %v937
  %1617 = vmatprep.subr.bf16.mxu0 %v930
  %1618 = vmatpush2.bf16.msra.mxu0 %v929
  %1619 = vmatprep.subr.bf16.mxu0 %v922
  %1620 = vmatpush2.bf16.msra.mxu0 %v921
  %1621 = vmatprep.subr.bf16.mxu0 %v914
  %1622 = vmatpush2.bf16.msra.mxu0 %v913
  %1623 = vmatprep.subr.bf16.mxu0 %v906
  %1624 = vmatpush2.bf16.msra.mxu0 %v905
  %1625 = vmatprep.mubr.bf16.mxu0 %v1589
  %1626 = vmatmul.mubr.bf16.gmra.mxu0 %v1592
  %v1627 = vpop.f32.mrf.mxu0
  %v1628 = vadd.f32 %v228, %v1627
  %v1629 = vpop.f32.mrf.mxu0
  %v1630 = vadd.f32 %v232, %v1629
  %v1631 = vpop.f32.mrf.mxu0
  %v1632 = vpop.f32.mrf.mxu0
  %1633 = vdwg.mxu0
  %1634 = vmatprep.subr.bf16.mxu0 %v1026
  %1635 = vmatpush1.bf16.msra.mxu0 %v1025
  %1636 = vmatprep.subr.bf16.mxu0 %v1018
  %1637 = vmatpush1.bf16.msra.mxu0 %v1017
  %1638 = vmatprep.subr.bf16.mxu0 %v1010
  %1639 = vmatpush1.bf16.msra.mxu0 %v1009
  %1640 = vmatprep.subr.bf16.mxu0 %v1002
  %1641 = vmatpush1.bf16.msra.mxu0 %v1001
  %1642 = vmatprep.subr.bf16.mxu0 %v994
  %1643 = vmatpush1.bf16.msra.mxu0 %v993
  %1644 = vmatprep.subr.bf16.mxu0 %v986
  %1645 = vmatpush1.bf16.msra.mxu0 %v985
  %1646 = vmatprep.subr.bf16.mxu0 %v978
  %1647 = vmatpush1.bf16.msra.mxu0 %v977
  %1648 = vmatprep.subr.bf16.mxu0 %v970
  %1649 = vmatpush1.bf16.msra.mxu0 %v969
  %1650 = vmatprep.subr.bf16.mxu0 0
  %1651 = vmatpush2.bf16.msra.mxu0 0
  %1652 = vmatprep.subr.bf16.mxu0 0
  %1653 = vmatpush2.bf16.msra.mxu0 0
  %1654 = vmatprep.subr.bf16.mxu0 0
  %1655 = vmatpush2.bf16.msra.mxu0 0
  %1656 = vmatprep.subr.bf16.mxu0 0
  %1657 = vmatpush2.bf16.msra.mxu0 0
  %1658 = vmatprep.subr.bf16.mxu0 0
  %1659 = vmatpush2.bf16.msra.mxu0 0
  %1660 = vmatprep.subr.bf16.mxu0 0
  %1661 = vmatpush2.bf16.msra.mxu0 0
  %1662 = vmatprep.subr.bf16.mxu0 0
  %1663 = vmatpush2.bf16.msra.mxu0 0
  %1664 = vmatprep.subr.bf16.mxu0 0
  %1665 = vmatpush2.bf16.msra.mxu0 0
  %1666 = vmatprep.mubr.bf16.mxu0 0
  %1667 = vmatmul.mubr.bf16.gmra.mxu0 %v1590
  %v1668 = vpop.f32.mrf.mxu0
  %v1669 = vadd.f32 %v1628, %v1668
  %v1670 = vpop.f32.mrf.mxu0
  %v1671 = vadd.f32 %v1630, %v1670
  %v1672 = vpop.f32.mrf.mxu0
  %v1673 = vpop.f32.mrf.mxu0
  %1674 = vdwg.mxu0
  %1675 = vmatprep.subr.bf16.mxu0 %v900
  %1676 = vmatpush1.bf16.msra.mxu0 %v899
  %1677 = vmatprep.subr.bf16.mxu0 %v892
  %1678 = vmatpush1.bf16.msra.mxu0 %v891
  %1679 = vmatprep.subr.bf16.mxu0 %v884
  %1680 = vmatpush1.bf16.msra.mxu0 %v883
  %1681 = vmatprep.subr.bf16.mxu0 %v876
  %1682 = vmatpush1.bf16.msra.mxu0 %v875
  %1683 = vmatprep.subr.bf16.mxu0 %v868
  %1684 = vmatpush1.bf16.msra.mxu0 %v867
  %1685 = vmatprep.subr.bf16.mxu0 %v860
  %1686 = vmatpush1.bf16.msra.mxu0 %v859
  %1687 = vmatprep.subr.bf16.mxu0 %v852
  %1688 = vmatpush1.bf16.msra.mxu0 %v851
  %1689 = vmatprep.subr.bf16.mxu0 %v844
  %1690 = vmatpush1.bf16.msra.mxu0 %v843
  %1691 = vmatprep.subr.bf16.mxu0 %v964
  %1692 = vmatpush2.bf16.msra.mxu0 %v963
  %1693 = vmatprep.subr.bf16.mxu0 %v956
  %1694 = vmatpush2.bf16.msra.mxu0 %v955
  %1695 = vmatprep.subr.bf16.mxu0 %v948
  %1696 = vmatpush2.bf16.msra.mxu0 %v947
  %1697 = vmatprep.subr.bf16.mxu0 %v940
  %1698 = vmatpush2.bf16.msra.mxu0 %v939
  %1699 = vmatprep.subr.bf16.mxu0 %v932
  %1700 = vmatpush2.bf16.msra.mxu0 %v931
  %1701 = vmatprep.subr.bf16.mxu0 %v924
  %1702 = vmatpush2.bf16.msra.mxu0 %v923
  %1703 = vmatprep.subr.bf16.mxu0 %v916
  %1704 = vmatpush2.bf16.msra.mxu0 %v915
  %1705 = vmatprep.subr.bf16.mxu0 %v908
  %1706 = vmatpush2.bf16.msra.mxu0 %v907
  %1707 = vmatprep.mubr.bf16.mxu0 %v1589
  %1708 = vmatmul.mubr.bf16.gmra.mxu0 %v1592
  %v1709 = vpop.f32.mrf.mxu0
  %v1710 = vadd.f32 %v236, %v1709
  %v1711 = vpop.f32.mrf.mxu0
  %v1712 = vadd.f32 %v240, %v1711
  %v1713 = vpop.f32.mrf.mxu0
  %v1714 = vpop.f32.mrf.mxu0
  %1715 = vdwg.mxu0
  %1716 = vmatprep.subr.bf16.mxu0 %v1028
  %1717 = vmatpush1.bf16.msra.mxu0 %v1027
  %1718 = vmatprep.subr.bf16.mxu0 %v1020
  %1719 = vmatpush1.bf16.msra.mxu0 %v1019
  %1720 = vmatprep.subr.bf16.mxu0 %v1012
  %1721 = vmatpush1.bf16.msra.mxu0 %v1011
  %1722 = vmatprep.subr.bf16.mxu0 %v1004
  %1723 = vmatpush1.bf16.msra.mxu0 %v1003
  %1724 = vmatprep.subr.bf16.mxu0 %v996
  %1725 = vmatpush1.bf16.msra.mxu0 %v995
  %1726 = vmatprep.subr.bf16.mxu0 %v988
  %1727 = vmatpush1.bf16.msra.mxu0 %v987
  %1728 = vmatprep.subr.bf16.mxu0 %v980
  %1729 = vmatpush1.bf16.msra.mxu0 %v979
  %1730 = vmatprep.subr.bf16.mxu0 %v972
  %1731 = vmatpush1.bf16.msra.mxu0 %v971
  %1732 = vmatprep.subr.bf16.mxu0 0
  %1733 = vmatpush2.bf16.msra.mxu0 0
  %1734 = vmatprep.subr.bf16.mxu0 0
  %1735 = vmatpush2.bf16.msra.mxu0 0
  %1736 = vmatprep.subr.bf16.mxu0 0
  %1737 = vmatpush2.bf16.msra.mxu0 0
  %1738 = vmatprep.subr.bf16.mxu0 0
  %1739 = vmatpush2.bf16.msra.mxu0 0
  %1740 = vmatprep.subr.bf16.mxu0 0
  %1741 = vmatpush2.bf16.msra.mxu0 0
  %1742 = vmatprep.subr.bf16.mxu0 0
  %1743 = vmatpush2.bf16.msra.mxu0 0
  %1744 = vmatprep.subr.bf16.mxu0 0
  %1745 = vmatpush2.bf16.msra.mxu0 0
  %1746 = vmatprep.subr.bf16.mxu0 0
  %1747 = vmatpush2.bf16.msra.mxu0 0
  %1748 = vmatprep.mubr.bf16.mxu0 0
  %1749 = vmatmul.mubr.bf16.gmra.mxu0 %v1590
  %v1750 = vpop.f32.mrf.mxu0
  %v1751 = vadd.f32 %v1710, %v1750
  %v1752 = vpop.f32.mrf.mxu0
  %v1753 = vadd.f32 %v1712, %v1752
  %v1754 = vpop.f32.mrf.mxu0
  %v1755 = vpop.f32.mrf.mxu0
  %1756 = vdwg.mxu0
  %1757 = vmatprep.subr.bf16.mxu0 %v902
  %1758 = vmatpush1.bf16.msra.mxu0 %v901
  %1759 = vmatprep.subr.bf16.mxu0 %v894
  %1760 = vmatpush1.bf16.msra.mxu0 %v893
  %1761 = vmatprep.subr.bf16.mxu0 %v886
  %1762 = vmatpush1.bf16.msra.mxu0 %v885
  %1763 = vmatprep.subr.bf16.mxu0 %v878
  %1764 = vmatpush1.bf16.msra.mxu0 %v877
  %1765 = vmatprep.subr.bf16.mxu0 %v870
  %1766 = vmatpush1.bf16.msra.mxu0 %v869
  %1767 = vmatprep.subr.bf16.mxu0 %v862
  %1768 = vmatpush1.bf16.msra.mxu0 %v861
  %1769 = vmatprep.subr.bf16.mxu0 %v854
  %1770 = vmatpush1.bf16.msra.mxu0 %v853
  %1771 = vmatprep.subr.bf16.mxu0 %v846
  %1772 = vmatpush1.bf16.msra.mxu0 %v845
  %1773 = vmatprep.subr.bf16.mxu0 %v966
  %1774 = vmatpush2.bf16.msra.mxu0 %v965
  %1775 = vmatprep.subr.bf16.mxu0 %v958
  %1776 = vmatpush2.bf16.msra.mxu0 %v957
  %1777 = vmatprep.subr.bf16.mxu0 %v950
  %1778 = vmatpush2.bf16.msra.mxu0 %v949
  %1779 = vmatprep.subr.bf16.mxu0 %v942
  %1780 = vmatpush2.bf16.msra.mxu0 %v941
  %1781 = vmatprep.subr.bf16.mxu0 %v934
  %1782 = vmatpush2.bf16.msra.mxu0 %v933
  %1783 = vmatprep.subr.bf16.mxu0 %v926
  %1784 = vmatpush2.bf16.msra.mxu0 %v925
  %1785 = vmatprep.subr.bf16.mxu0 %v918
  %1786 = vmatpush2.bf16.msra.mxu0 %v917
  %1787 = vmatprep.subr.bf16.mxu0 %v910
  %1788 = vmatpush2.bf16.msra.mxu0 %v909
  %1789 = vmatprep.mubr.bf16.mxu0 %v1589
  %1790 = vmatmul.mubr.bf16.gmra.mxu0 %v1592
  %v1791 = vpop.f32.mrf.mxu0
  %v1792 = vadd.f32 %v244, %v1791
  %v1793 = vpop.f32.mrf.mxu0
  %v1794 = vadd.f32 %v248, %v1793
  %v1795 = vpop.f32.mrf.mxu0
  %v1796 = vpop.f32.mrf.mxu0
  %1797 = vdwg.mxu0
  %1798 = vmatprep.subr.bf16.mxu0 %v1030
  %1799 = vmatpush1.bf16.msra.mxu0 %v1029
  %1800 = vmatprep.subr.bf16.mxu0 %v1022
  %1801 = vmatpush1.bf16.msra.mxu0 %v1021
  %1802 = vmatprep.subr.bf16.mxu0 %v1014
  %1803 = vmatpush1.bf16.msra.mxu0 %v1013
  %1804 = vmatprep.subr.bf16.mxu0 %v1006
  %1805 = vmatpush1.bf16.msra.mxu0 %v1005
  %1806 = vmatprep.subr.bf16.mxu0 %v998
  %1807 = vmatpush1.bf16.msra.mxu0 %v997
  %1808 = vmatprep.subr.bf16.mxu0 %v990
  %1809 = vmatpush1.bf16.msra.mxu0 %v989
  %1810 = vmatprep.subr.bf16.mxu0 %v982
  %1811 = vmatpush1.bf16.msra.mxu0 %v981
  %1812 = vmatprep.subr.bf16.mxu0 %v974
  %1813 = vmatpush1.bf16.msra.mxu0 %v973
  %1814 = vmatprep.subr.bf16.mxu0 0
  %1815 = vmatpush2.bf16.msra.mxu0 0
  %1816 = vmatprep.subr.bf16.mxu0 0
  %1817 = vmatpush2.bf16.msra.mxu0 0
  %1818 = vmatprep.subr.bf16.mxu0 0
  %1819 = vmatpush2.bf16.msra.mxu0 0
  %1820 = vmatprep.subr.bf16.mxu0 0
  %1821 = vmatpush2.bf16.msra.mxu0 0
  %1822 = vmatprep.subr.bf16.mxu0 0
  %1823 = vmatpush2.bf16.msra.mxu0 0
  %1824 = vmatprep.subr.bf16.mxu0 0
  %1825 = vmatpush2.bf16.msra.mxu0 0
  %1826 = vmatprep.subr.bf16.mxu0 0
  %1827 = vmatpush2.bf16.msra.mxu0 0
  %1828 = vmatprep.subr.bf16.mxu0 0
  %1829 = vmatpush2.bf16.msra.mxu0 0
  %1830 = vmatprep.mubr.bf16.mxu0 0
  %1831 = vmatmul.mubr.bf16.gmra.mxu0 %v1590
  %v1832 = vpop.f32.mrf.mxu0
  %v1833 = vadd.f32 %v1792, %v1832
  %v1834 = vpop.f32.mrf.mxu0
  %v1835 = vadd.f32 %v1794, %v1834
  %v1836 = vpop.f32.mrf.mxu0
  %v1837 = vpop.f32.mrf.mxu0
  %1838 = vdwg.mxu0
  %1839 = vmatprep.subr.bf16.mxu0 %v904
  %1840 = vmatpush1.bf16.msra.mxu0 %v903
  %1841 = vmatprep.subr.bf16.mxu0 %v896
  %1842 = vmatpush1.bf16.msra.mxu0 %v895
  %1843 = vmatprep.subr.bf16.mxu0 %v888
  %1844 = vmatpush1.bf16.msra.mxu0 %v887
  %1845 = vmatprep.subr.bf16.mxu0 %v880
  %1846 = vmatpush1.bf16.msra.mxu0 %v879
  %1847 = vmatprep.subr.bf16.mxu0 %v872
  %1848 = vmatpush1.bf16.msra.mxu0 %v871
  %1849 = vmatprep.subr.bf16.mxu0 %v864
  %1850 = vmatpush1.bf16.msra.mxu0 %v863
  %1851 = vmatprep.subr.bf16.mxu0 %v856
  %1852 = vmatpush1.bf16.msra.mxu0 %v855
  %1853 = vmatprep.subr.bf16.mxu0 %v848
  %1854 = vmatpush1.bf16.msra.mxu0 %v847
  %1855 = vmatprep.subr.bf16.mxu0 %v968
  %1856 = vmatpush2.bf16.msra.mxu0 %v967
  %1857 = vmatprep.subr.bf16.mxu0 %v960
  %1858 = vmatpush2.bf16.msra.mxu0 %v959
  %1859 = vmatprep.subr.bf16.mxu0 %v952
  %1860 = vmatpush2.bf16.msra.mxu0 %v951
  %1861 = vmatprep.subr.bf16.mxu0 %v944
  %1862 = vmatpush2.bf16.msra.mxu0 %v943
  %1863 = vmatprep.subr.bf16.mxu0 %v936
  %1864 = vmatpush2.bf16.msra.mxu0 %v935
  %1865 = vmatprep.subr.bf16.mxu0 %v928
  %1866 = vmatpush2.bf16.msra.mxu0 %v927
  %1867 = vmatprep.subr.bf16.mxu0 %v920
  %1868 = vmatpush2.bf16.msra.mxu0 %v919
  %1869 = vmatprep.subr.bf16.mxu0 %v912
  %1870 = vmatpush2.bf16.msra.mxu0 %v911
  %1871 = vmatprep.mubr.bf16.mxu0 %v1589
  %1872 = vmatmul.mubr.bf16.gmra.mxu0 %v1592
  %v1873 = vpop.f32.mrf.mxu0
  %v1874 = vadd.f32 %v252, %v1873
  %v1875 = vpop.f32.mrf.mxu0
  %v1876 = vadd.f32 %v256, %v1875
  %v1877 = vpop.f32.mrf.mxu0
  %v1878 = vpop.f32.mrf.mxu0
  %1879 = vdwg.mxu0
  %1880 = vmatprep.subr.bf16.mxu0 %v1032
  %1881 = vmatpush1.bf16.msra.mxu0 %v1031
  %1882 = vmatprep.subr.bf16.mxu0 %v1024
  %1883 = vmatpush1.bf16.msra.mxu0 %v1023
  %1884 = vmatprep.subr.bf16.mxu0 %v1016
  %1885 = vmatpush1.bf16.msra.mxu0 %v1015
  %1886 = vmatprep.subr.bf16.mxu0 %v1008
  %1887 = vmatpush1.bf16.msra.mxu0 %v1007
  %1888 = vmatprep.subr.bf16.mxu0 %v1000
  %1889 = vmatpush1.bf16.msra.mxu0 %v999
  %1890 = vmatprep.subr.bf16.mxu0 %v992
  %1891 = vmatpush1.bf16.msra.mxu0 %v991
  %1892 = vmatprep.subr.bf16.mxu0 %v984
  %1893 = vmatpush1.bf16.msra.mxu0 %v983
  %1894 = vmatprep.subr.bf16.mxu0 %v976
  %1895 = vmatpush1.bf16.msra.mxu0 %v975
  %1896 = vmatprep.subr.bf16.mxu0 0
  %1897 = vmatpush2.bf16.msra.mxu0 0
  %1898 = vmatprep.subr.bf16.mxu0 0
  %1899 = vmatpush2.bf16.msra.mxu0 0
  %1900 = vmatprep.subr.bf16.mxu0 0
  %1901 = vmatpush2.bf16.msra.mxu0 0
  %1902 = vmatprep.subr.bf16.mxu0 0
  %1903 = vmatpush2.bf16.msra.mxu0 0
  %1904 = vmatprep.subr.bf16.mxu0 0
  %1905 = vmatpush2.bf16.msra.mxu0 0
  %1906 = vmatprep.subr.bf16.mxu0 0
  %1907 = vmatpush2.bf16.msra.mxu0 0
  %1908 = vmatprep.subr.bf16.mxu0 0
  %1909 = vmatpush2.bf16.msra.mxu0 0
  %1910 = vmatprep.subr.bf16.mxu0 0
  %1911 = vmatpush2.bf16.msra.mxu0 0
  %1912 = vmatprep.mubr.bf16.mxu0 0
  %1913 = vmatmul.mubr.bf16.gmra.mxu0 %v1590
  %v1914 = vpop.f32.mrf.mxu0
  %v1915 = vadd.f32 %v1874, %v1914
  %v1916 = vpop.f32.mrf.mxu0
  %v1917 = vadd.f32 %v1876, %v1916
  %v1918 = vpop.f32.mrf.mxu0
  %v1919 = vpop.f32.mrf.mxu0
  %1920 = vdwg.mxu0
  %v1921 = vld [vmem:[%s2] sm:$0xff]
  %v1922 = vld [vmem:[%s2 + $0x8] sm:$0xff]
  %v1923 = vld [vmem:[%s2 + $0x10] sm:$0xff]
  %v1924 = vld [vmem:[%s2 + $0x18] sm:$0xff]
  %v1925 = vld [vmem:[%s2 + $0x20] sm:$0xff]
  %v1926 = vld [vmem:[%s2 + $0x28] sm:$0xff]
  %v1927 = vld [vmem:[%s2 + $0x30] sm:$0xff]
  %v1928 = vld [vmem:[%s2 + $0x38] sm:$0xff]
  %v1929 = vld [vmem:[%s2 + $0x40] sm:$0xff]
  %v1930 = vld [vmem:[%s2 + $0x48] sm:$0xff]
  %v1931 = vld [vmem:[%s2 + $0x50] sm:$0xff]
  %v1932 = vld [vmem:[%s2 + $0x58] sm:$0xff]
  %v1933 = vld [vmem:[%s2 + $0x60] sm:$0xff]
  %v1934 = vld [vmem:[%s2 + $0x68] sm:$0xff]
  %v1935 = vld [vmem:[%s2 + $0x70] sm:$0xff]
  %v1936 = vld [vmem:[%s2 + $0x78] sm:$0xff]
  %v1937 = vld [vmem:[%s2 + $0x80] sm:$0xff]
  %v1938 = vld [vmem:[%s2 + $0x88] sm:$0xff]
  %v1939 = vld [vmem:[%s2 + $0x90] sm:$0xff]
  %v1940 = vld [vmem:[%s2 + $0x98] sm:$0xff]
  %v1941 = vld [vmem:[%s2 + $0xa0] sm:$0xff]
  %v1942 = vld [vmem:[%s2 + $0xa8] sm:$0xff]
  %v1943 = vld [vmem:[%s2 + $0xb0] sm:$0xff]
  %v1944 = vld [vmem:[%s2 + $0xb8] sm:$0xff]
  %v1945 = vld [vmem:[%s2 + $0xc0] sm:$0xff]
  %v1946 = vld [vmem:[%s2 + $0xc8] sm:$0xff]
  %v1947 = vld [vmem:[%s2 + $0xd0] sm:$0xff]
  %v1948 = vld [vmem:[%s2 + $0xd8] sm:$0xff]
  %v1949 = vld [vmem:[%s2 + $0xe0] sm:$0xff]
  %v1950 = vld [vmem:[%s2 + $0xe8] sm:$0xff]
  %v1951 = vld [vmem:[%s2 + $0xf0] sm:$0xff]
  %v1952 = vld [vmem:[%s2 + $0xf8] sm:$0xff]
  %v1953 = vld [vmem:[%s2 + $0x100] sm:$0xff]
  %v1954 = vld [vmem:[%s2 + $0x108] sm:$0xff]
  %v1955 = vld [vmem:[%s2 + $0x110] sm:$0xff]
  %v1956 = vld [vmem:[%s2 + $0x118] sm:$0xff]
  %v1957 = vld [vmem:[%s2 + $0x120] sm:$0xff]
  %v1958 = vld [vmem:[%s2 + $0x128] sm:$0xff]
  %v1959 = vld [vmem:[%s2 + $0x130] sm:$0xff]
  %v1960 = vld [vmem:[%s2 + $0x138] sm:$0xff]
  %v1961 = vld [vmem:[%s2 + $0x140] sm:$0xff]
  %v1962 = vld [vmem:[%s2 + $0x148] sm:$0xff]
  %v1963 = vld [vmem:[%s2 + $0x150] sm:$0xff]
  %v1964 = vld [vmem:[%s2 + $0x158] sm:$0xff]
  %v1965 = vld [vmem:[%s2 + $0x160] sm:$0xff]
  %v1966 = vld [vmem:[%s2 + $0x168] sm:$0xff]
  %v1967 = vld [vmem:[%s2 + $0x170] sm:$0xff]
  %v1968 = vld [vmem:[%s2 + $0x178] sm:$0xff]
  %v1969 = vld [vmem:[%s2 + $0x180] sm:$0xff]
  %v1970 = vld [vmem:[%s2 + $0x188] sm:$0xff]
  %v1971 = vld [vmem:[%s2 + $0x190] sm:$0xff]
  %v1972 = vld [vmem:[%s2 + $0x198] sm:$0xff]
  %v1973 = vld [vmem:[%s2 + $0x1a0] sm:$0xff]
  %v1974 = vld [vmem:[%s2 + $0x1a8] sm:$0xff]
  %v1975 = vld [vmem:[%s2 + $0x1b0] sm:$0xff]
  %v1976 = vld [vmem:[%s2 + $0x1b8] sm:$0xff]
  %v1977 = vld [vmem:[%s2 + $0x1c0] sm:$0xff]
  %v1978 = vld [vmem:[%s2 + $0x1c8] sm:$0xff]
  %v1979 = vld [vmem:[%s2 + $0x1d0] sm:$0xff]
  %v1980 = vld [vmem:[%s2 + $0x1d8] sm:$0xff]
  %v1981 = vld [vmem:[%s2 + $0x1e0] sm:$0xff]
  %v1982 = vld [vmem:[%s2 + $0x1e8] sm:$0xff]
  %v1983 = vld [vmem:[%s2 + $0x1f0] sm:$0xff]
  %v1984 = vld [vmem:[%s2 + $0x1f8] sm:$0xff]
  %v1985 = vld [vmem:[%s2 + $0x200] sm:$0xff]
  %v1986 = vld [vmem:[%s2 + $0x208] sm:$0xff]
  %v1987 = vld [vmem:[%s2 + $0x210] sm:$0xff]
  %v1988 = vld [vmem:[%s2 + $0x218] sm:$0xff]
  %v1989 = vld [vmem:[%s2 + $0x220] sm:$0xff]
  %v1990 = vld [vmem:[%s2 + $0x228] sm:$0xff]
  %v1991 = vld [vmem:[%s2 + $0x230] sm:$0xff]
  %v1992 = vld [vmem:[%s2 + $0x238] sm:$0xff]
  %v1993 = vld [vmem:[%s2 + $0x240] sm:$0xff]
  %v1994 = vld [vmem:[%s2 + $0x248] sm:$0xff]
  %v1995 = vld [vmem:[%s2 + $0x250] sm:$0xff]
  %v1996 = vld [vmem:[%s2 + $0x258] sm:$0xff]
  %v1997 = vld [vmem:[%s2 + $0x260] sm:$0xff]
  %v1998 = vld [vmem:[%s2 + $0x268] sm:$0xff]
  %v1999 = vld [vmem:[%s2 + $0x270] sm:$0xff]
  %v2000 = vld [vmem:[%s2 + $0x278] sm:$0xff]
  %v2001 = vld [vmem:[%s2 + $0x280] sm:$0xff]
  %v2002 = vld [vmem:[%s2 + $0x288] sm:$0xff]
  %v2003 = vld [vmem:[%s2 + $0x290] sm:$0xff]
  %v2004 = vld [vmem:[%s2 + $0x298] sm:$0xff]
  %v2005 = vld [vmem:[%s2 + $0x2a0] sm:$0xff]
  %v2006 = vld [vmem:[%s2 + $0x2a8] sm:$0xff]
  %v2007 = vld [vmem:[%s2 + $0x2b0] sm:$0xff]
  %v2008 = vld [vmem:[%s2 + $0x2b8] sm:$0xff]
  %v2009 = vld [vmem:[%s2 + $0x2c0] sm:$0xff]
  %v2010 = vld [vmem:[%s2 + $0x2c8] sm:$0xff]
  %v2011 = vld [vmem:[%s2 + $0x2d0] sm:$0xff]
  %v2012 = vld [vmem:[%s2 + $0x2d8] sm:$0xff]
  %v2013 = vld [vmem:[%s2 + $0x2e0] sm:$0xff]
  %v2014 = vld [vmem:[%s2 + $0x2e8] sm:$0xff]
  %v2015 = vld [vmem:[%s2 + $0x2f0] sm:$0xff]
  %v2016 = vld [vmem:[%s2 + $0x2f8] sm:$0xff]
  %v2017 = vld [vmem:[%s2 + $0x300] sm:$0xff]
  %v2018 = vld [vmem:[%s2 + $0x308] sm:$0xff]
  %v2019 = vld [vmem:[%s2 + $0x310] sm:$0xff]
  %v2020 = vld [vmem:[%s2 + $0x318] sm:$0xff]
  %v2021 = vld [vmem:[%s2 + $0x320] sm:$0xff]
  %v2022 = vld [vmem:[%s2 + $0x328] sm:$0xff]
  %v2023 = vld [vmem:[%s2 + $0x330] sm:$0xff]
  %v2024 = vld [vmem:[%s2 + $0x338] sm:$0xff]
  %v2025 = vld [vmem:[%s2 + $0x340] sm:$0xff]
  %v2026 = vld [vmem:[%s2 + $0x348] sm:$0xff]
  %v2027 = vld [vmem:[%s2 + $0x350] sm:$0xff]
  %v2028 = vld [vmem:[%s2 + $0x358] sm:$0xff]
  %v2029 = vld [vmem:[%s2 + $0x360] sm:$0xff]
  %v2030 = vld [vmem:[%s2 + $0x368] sm:$0xff]
  %v2031 = vld [vmem:[%s2 + $0x370] sm:$0xff]
  %v2032 = vld [vmem:[%s2 + $0x378] sm:$0xff]
  %v2033 = vld [vmem:[%s2 + $0x380] sm:$0xff]
  %v2034 = vld [vmem:[%s2 + $0x388] sm:$0xff]
  %v2035 = vld [vmem:[%s2 + $0x390] sm:$0xff]
  %v2036 = vld [vmem:[%s2 + $0x398] sm:$0xff]
  %v2037 = vld [vmem:[%s2 + $0x3a0] sm:$0xff]
  %v2038 = vld [vmem:[%s2 + $0x3a8] sm:$0xff]
  %v2039 = vld [vmem:[%s2 + $0x3b0] sm:$0xff]
  %v2040 = vld [vmem:[%s2 + $0x3b8] sm:$0xff]
  %v2041 = vld [vmem:[%s2 + $0x3c0] sm:$0xff]
  %v2042 = vld [vmem:[%s2 + $0x3c8] sm:$0xff]
  %v2043 = vld [vmem:[%s2 + $0x3d0] sm:$0xff]
  %v2044 = vld [vmem:[%s2 + $0x3d8] sm:$0xff]
  %v2045 = vld [vmem:[%s2 + $0x3e0] sm:$0xff]
  %v2046 = vld [vmem:[%s2 + $0x3e8] sm:$0xff]
  %v2047 = vld [vmem:[%s2 + $0x3f0] sm:$0xff]
  %v2048 = vld [vmem:[%s2 + $0x3f8] sm:$0xff]
  %v2049 = vld [vmem:[%s2 + $0x400] sm:$0xff]
  %v2050 = vld [vmem:[%s2 + $0x408] sm:$0xff]
  %v2051 = vld [vmem:[%s2 + $0x410] sm:$0xff]
  %v2052 = vld [vmem:[%s2 + $0x418] sm:$0xff]
  %v2053 = vld [vmem:[%s2 + $0x420] sm:$0xff]
  %v2054 = vld [vmem:[%s2 + $0x428] sm:$0xff]
  %v2055 = vld [vmem:[%s2 + $0x430] sm:$0xff]
  %v2056 = vld [vmem:[%s2 + $0x438] sm:$0xff]
  %v2057 = vld [vmem:[%s2 + $0x440] sm:$0xff]
  %v2058 = vld [vmem:[%s2 + $0x448] sm:$0xff]
  %v2059 = vld [vmem:[%s2 + $0x450] sm:$0xff]
  %v2060 = vld [vmem:[%s2 + $0x458] sm:$0xff]
  %v2061 = vld [vmem:[%s2 + $0x460] sm:$0xff]
  %v2062 = vld [vmem:[%s2 + $0x468] sm:$0xff]
  %v2063 = vld [vmem:[%s2 + $0x470] sm:$0xff]
  %v2064 = vld [vmem:[%s2 + $0x478] sm:$0xff]
  %v2065 = vld [vmem:[%s2 + $0x480] sm:$0xff]
  %v2066 = vld [vmem:[%s2 + $0x488] sm:$0xff]
  %v2067 = vld [vmem:[%s2 + $0x490] sm:$0xff]
  %v2068 = vld [vmem:[%s2 + $0x498] sm:$0xff]
  %v2069 = vld [vmem:[%s2 + $0x4a0] sm:$0xff]
  %v2070 = vld [vmem:[%s2 + $0x4a8] sm:$0xff]
  %v2071 = vld [vmem:[%s2 + $0x4b0] sm:$0xff]
  %v2072 = vld [vmem:[%s2 + $0x4b8] sm:$0xff]
  %v2073 = vld [vmem:[%s2 + $0x4c0] sm:$0xff]
  %v2074 = vld [vmem:[%s2 + $0x4c8] sm:$0xff]
  %v2075 = vld [vmem:[%s2 + $0x4d0] sm:$0xff]
  %v2076 = vld [vmem:[%s2 + $0x4d8] sm:$0xff]
  %v2077 = vld [vmem:[%s2 + $0x4e0] sm:$0xff]
  %v2078 = vld [vmem:[%s2 + $0x4e8] sm:$0xff]
  %v2079 = vld [vmem:[%s2 + $0x4f0] sm:$0xff]
  %v2080 = vld [vmem:[%s2 + $0x4f8] sm:$0xff]
  %v2081 = vld [vmem:[%s2 + $0x500] sm:$0xff]
  %v2082 = vld [vmem:[%s2 + $0x508] sm:$0xff]
  %v2083 = vld [vmem:[%s2 + $0x510] sm:$0xff]
  %v2084 = vld [vmem:[%s2 + $0x518] sm:$0xff]
  %v2085 = vld [vmem:[%s2 + $0x520] sm:$0xff]
  %v2086 = vld [vmem:[%s2 + $0x528] sm:$0xff]
  %v2087 = vld [vmem:[%s2 + $0x530] sm:$0xff]
  %v2088 = vld [vmem:[%s2 + $0x538] sm:$0xff]
  %v2089 = vld [vmem:[%s2 + $0x540] sm:$0xff]
  %v2090 = vld [vmem:[%s2 + $0x548] sm:$0xff]
  %v2091 = vld [vmem:[%s2 + $0x550] sm:$0xff]
  %v2092 = vld [vmem:[%s2 + $0x558] sm:$0xff]
  %v2093 = vld [vmem:[%s2 + $0x560] sm:$0xff]
  %v2094 = vld [vmem:[%s2 + $0x568] sm:$0xff]
  %v2095 = vld [vmem:[%s2 + $0x570] sm:$0xff]
  %v2096 = vld [vmem:[%s2 + $0x578] sm:$0xff]
  %v2097 = vld [vmem:[%s2 + $0x580] sm:$0xff]
  %v2098 = vld [vmem:[%s2 + $0x588] sm:$0xff]
  %v2099 = vld [vmem:[%s2 + $0x590] sm:$0xff]
  %v2100 = vld [vmem:[%s2 + $0x598] sm:$0xff]
  %v2101 = vld [vmem:[%s2 + $0x5a0] sm:$0xff]
  %v2102 = vld [vmem:[%s2 + $0x5a8] sm:$0xff]
  %v2103 = vld [vmem:[%s2 + $0x5b0] sm:$0xff]
  %v2104 = vld [vmem:[%s2 + $0x5b8] sm:$0xff]
  %v2105 = vld [vmem:[%s2 + $0x5c0] sm:$0xff]
  %v2106 = vld [vmem:[%s2 + $0x5c8] sm:$0xff]
  %v2107 = vld [vmem:[%s2 + $0x5d0] sm:$0xff]
  %v2108 = vld [vmem:[%s2 + $0x5d8] sm:$0xff]
  %v2109 = vld [vmem:[%s2 + $0x5e0] sm:$0xff]
  %v2110 = vld [vmem:[%s2 + $0x5e8] sm:$0xff]
  %v2111 = vld [vmem:[%s2 + $0x5f0] sm:$0xff]
  %v2112 = vld [vmem:[%s2 + $0x5f8] sm:$0xff]
  %v2113 = vld [vmem:[%s2 + $0x600] sm:$0xff]
  %v2114 = vld [vmem:[%s2 + $0x608] sm:$0xff]
  %v2115 = vld [vmem:[%s2 + $0x610] sm:$0xff]
  %v2116 = vld [vmem:[%s2 + $0x618] sm:$0xff]
  %v2117 = vld [vmem:[%s2 + $0x620] sm:$0xff]
  %v2118 = vld [vmem:[%s2 + $0x628] sm:$0xff]
  %v2119 = vld [vmem:[%s2 + $0x630] sm:$0xff]
  %v2120 = vld [vmem:[%s2 + $0x638] sm:$0xff]
  %v2121 = vld [vmem:[%s2 + $0x640] sm:$0xff]
  %v2122 = vld [vmem:[%s2 + $0x648] sm:$0xff]
  %v2123 = vld [vmem:[%s2 + $0x650] sm:$0xff]
  %v2124 = vld [vmem:[%s2 + $0x658] sm:$0xff]
  %v2125 = vld [vmem:[%s2 + $0x660] sm:$0xff]
  %v2126 = vld [vmem:[%s2 + $0x668] sm:$0xff]
  %v2127 = vld [vmem:[%s2 + $0x670] sm:$0xff]
  %v2128 = vld [vmem:[%s2 + $0x678] sm:$0xff]
  %v2129 = vld [vmem:[%s2 + $0x680] sm:$0xff]
  %v2130 = vld [vmem:[%s2 + $0x688] sm:$0xff]
  %v2131 = vld [vmem:[%s2 + $0x690] sm:$0xff]
  %v2132 = vld [vmem:[%s2 + $0x698] sm:$0xff]
  %v2133 = vld [vmem:[%s2 + $0x6a0] sm:$0xff]
  %v2134 = vld [vmem:[%s2 + $0x6a8] sm:$0xff]
  %v2135 = vld [vmem:[%s2 + $0x6b0] sm:$0xff]
  %v2136 = vld [vmem:[%s2 + $0x6b8] sm:$0xff]
  %v2137 = vld [vmem:[%s2 + $0x6c0] sm:$0xff]
  %v2138 = vld [vmem:[%s2 + $0x6c8] sm:$0xff]
  %v2139 = vld [vmem:[%s2 + $0x6d0] sm:$0xff]
  %v2140 = vld [vmem:[%s2 + $0x6d8] sm:$0xff]
  %v2141 = vld [vmem:[%s2 + $0x6e0] sm:$0xff]
  %v2142 = vld [vmem:[%s2 + $0x6e8] sm:$0xff]
  %v2143 = vld [vmem:[%s2 + $0x6f0] sm:$0xff]
  %v2144 = vld [vmem:[%s2 + $0x6f8] sm:$0xff]
  %v2145 = vld [vmem:[%s2 + $0x700] sm:$0xff]
  %v2146 = vld [vmem:[%s2 + $0x708] sm:$0xff]
  %v2147 = vld [vmem:[%s2 + $0x710] sm:$0xff]
  %v2148 = vld [vmem:[%s2 + $0x718] sm:$0xff]
  %v2149 = vld [vmem:[%s2 + $0x720] sm:$0xff]
  %v2150 = vld [vmem:[%s2 + $0x728] sm:$0xff]
  %v2151 = vld [vmem:[%s2 + $0x730] sm:$0xff]
  %v2152 = vld [vmem:[%s2 + $0x738] sm:$0xff]
  %v2153 = vld [vmem:[%s2 + $0x740] sm:$0xff]
  %v2154 = vld [vmem:[%s2 + $0x748] sm:$0xff]
  %v2155 = vld [vmem:[%s2 + $0x750] sm:$0xff]
  %v2156 = vld [vmem:[%s2 + $0x758] sm:$0xff]
  %v2157 = vld [vmem:[%s2 + $0x760] sm:$0xff]
  %v2158 = vld [vmem:[%s2 + $0x768] sm:$0xff]
  %v2159 = vld [vmem:[%s2 + $0x770] sm:$0xff]
  %v2160 = vld [vmem:[%s2 + $0x778] sm:$0xff]
  %v2161 = vld [vmem:[%s2 + $0x780] sm:$0xff]
  %v2162 = vld [vmem:[%s2 + $0x788] sm:$0xff]
  %v2163 = vld [vmem:[%s2 + $0x790] sm:$0xff]
  %v2164 = vld [vmem:[%s2 + $0x798] sm:$0xff]
  %v2165 = vld [vmem:[%s2 + $0x7a0] sm:$0xff]
  %v2166 = vld [vmem:[%s2 + $0x7a8] sm:$0xff]
  %v2167 = vld [vmem:[%s2 + $0x7b0] sm:$0xff]
  %v2168 = vld [vmem:[%s2 + $0x7b8] sm:$0xff]
  %v2169 = vld [vmem:[%s2 + $0x7c0] sm:$0xff]
  %v2170 = vld [vmem:[%s2 + $0x7c8] sm:$0xff]
  %v2171 = vld [vmem:[%s2 + $0x7d0] sm:$0xff]
  %v2172 = vld [vmem:[%s2 + $0x7d8] sm:$0xff]
  %v2173 = vld [vmem:[%s2 + $0x7e0] sm:$0xff]
  %v2174 = vld [vmem:[%s2 + $0x7e8] sm:$0xff]
  %v2175 = vld [vmem:[%s2 + $0x7f0] sm:$0xff]
  %v2176 = vld [vmem:[%s2 + $0x7f8] sm:$0xff]
  %v2178 = vlaneseq
  %v2179 = vshrl.u32 %v2178, 7
  %v2180 = vsub.s32 0, %v2179
  %v2181 = vrot.slane %v30, %v2180
  %v2182 = vlaneseq
  %v2183 = vshrl.u32 %v2182, 7
  %v2184 = vsub.s32 1, %v2183
  %v2185 = vrot.slane %v30, %v2184
  %v2186 = vlaneseq
  %v2187 = vshrl.u32 %v2186, 7
  %v2188 = vsub.s32 2, %v2187
  %v2189 = vrot.slane %v30, %v2188
  %v2190 = vlaneseq
  %v2191 = vshrl.u32 %v2190, 7
  %v2192 = vsub.s32 3, %v2191
  %v2193 = vrot.slane %v30, %v2192
  %v2194 = vlaneseq
  %v2195 = vshrl.u32 %v2194, 7
  %v2196 = vsub.s32 4, %v2195
  %v2197 = vrot.slane %v30, %v2196
  %v2198 = vlaneseq
  %v2199 = vshrl.u32 %v2198, 7
  %v2200 = vsub.s32 5, %v2199
  %v2201 = vrot.slane %v30, %v2200
  %v2202 = vlaneseq
  %v2203 = vshrl.u32 %v2202, 7
  %v2204 = vsub.s32 6, %v2203
  %v2205 = vrot.slane %v30, %v2204
  %v2206 = vlaneseq
  %v2207 = vshrl.u32 %v2206, 7
  %v2208 = vsub.s32 7, %v2207
  %v2209 = vrot.slane %v30, %v2208
  %v2474 = vunpack.c.l.b16 %v1921
  %v2475 = vunpack.c.h.b16 %v1921
  %v2476 = vunpack.c.l.b16 %v1922
  %v2477 = vunpack.c.h.b16 %v1922
  %v2478 = vunpack.c.l.b16 %v1923
  %v2479 = vunpack.c.h.b16 %v1923
  %v2480 = vunpack.c.l.b16 %v1924
  %v2481 = vunpack.c.h.b16 %v1924
  %v2482 = vunpack.c.l.b16 %v1925
  %v2483 = vunpack.c.h.b16 %v1925
  %v2484 = vunpack.c.l.b16 %v1926
  %v2485 = vunpack.c.h.b16 %v1926
  %v2486 = vunpack.c.l.b16 %v1927
  %v2487 = vunpack.c.h.b16 %v1927
  %v2488 = vunpack.c.l.b16 %v1928
  %v2489 = vunpack.c.h.b16 %v1928
  %v2490 = vunpack.c.l.b16 %v1929
  %v2491 = vunpack.c.h.b16 %v1929
  %v2492 = vunpack.c.l.b16 %v1930
  %v2493 = vunpack.c.h.b16 %v1930
  %v2494 = vunpack.c.l.b16 %v1931
  %v2495 = vunpack.c.h.b16 %v1931
  %v2496 = vunpack.c.l.b16 %v1932
  %v2497 = vunpack.c.h.b16 %v1932
  %v2498 = vunpack.c.l.b16 %v1933
  %v2499 = vunpack.c.h.b16 %v1933
  %v2500 = vunpack.c.l.b16 %v1934
  %v2501 = vunpack.c.h.b16 %v1934
  %v2502 = vunpack.c.l.b16 %v1935
  %v2503 = vunpack.c.h.b16 %v1935
  %v2504 = vunpack.c.l.b16 %v1936
  %v2505 = vunpack.c.h.b16 %v1936
  %v2506 = vunpack.c.l.b16 %v1937
  %v2507 = vunpack.c.h.b16 %v1937
  %v2508 = vunpack.c.l.b16 %v1938
  %v2509 = vunpack.c.h.b16 %v1938
  %v2510 = vunpack.c.l.b16 %v1939
  %v2511 = vunpack.c.h.b16 %v1939
  %v2512 = vunpack.c.l.b16 %v1940
  %v2513 = vunpack.c.h.b16 %v1940
  %v2514 = vunpack.c.l.b16 %v1941
  %v2515 = vunpack.c.h.b16 %v1941
  %v2516 = vunpack.c.l.b16 %v1942
  %v2517 = vunpack.c.h.b16 %v1942
  %v2518 = vunpack.c.l.b16 %v1943
  %v2519 = vunpack.c.h.b16 %v1943
  %v2520 = vunpack.c.l.b16 %v1944
  %v2521 = vunpack.c.h.b16 %v1944
  %v2522 = vunpack.c.l.b16 %v1945
  %v2523 = vunpack.c.h.b16 %v1945
  %v2524 = vunpack.c.l.b16 %v1946
  %v2525 = vunpack.c.h.b16 %v1946
  %v2526 = vunpack.c.l.b16 %v1947
  %v2527 = vunpack.c.h.b16 %v1947
  %v2528 = vunpack.c.l.b16 %v1948
  %v2529 = vunpack.c.h.b16 %v1948
  %v2530 = vunpack.c.l.b16 %v1949
  %v2531 = vunpack.c.h.b16 %v1949
  %v2532 = vunpack.c.l.b16 %v1950
  %v2533 = vunpack.c.h.b16 %v1950
  %v2534 = vunpack.c.l.b16 %v1951
  %v2535 = vunpack.c.h.b16 %v1951
  %v2536 = vunpack.c.l.b16 %v1952
  %v2537 = vunpack.c.h.b16 %v1952
  %v2538 = vunpack.c.l.b16 %v1953
  %v2539 = vunpack.c.h.b16 %v1953
  %v2540 = vunpack.c.l.b16 %v1954
  %v2541 = vunpack.c.h.b16 %v1954
  %v2542 = vunpack.c.l.b16 %v1955
  %v2543 = vunpack.c.h.b16 %v1955
  %v2544 = vunpack.c.l.b16 %v1956
  %v2545 = vunpack.c.h.b16 %v1956
  %v2546 = vunpack.c.l.b16 %v1957
  %v2547 = vunpack.c.h.b16 %v1957
  %v2548 = vunpack.c.l.b16 %v1958
  %v2549 = vunpack.c.h.b16 %v1958
  %v2550 = vunpack.c.l.b16 %v1959
  %v2551 = vunpack.c.h.b16 %v1959
  %v2552 = vunpack.c.l.b16 %v1960
  %v2553 = vunpack.c.h.b16 %v1960
  %v2554 = vunpack.c.l.b16 %v1961
  %v2555 = vunpack.c.h.b16 %v1961
  %v2556 = vunpack.c.l.b16 %v1962
  %v2557 = vunpack.c.h.b16 %v1962
  %v2558 = vunpack.c.l.b16 %v1963
  %v2559 = vunpack.c.h.b16 %v1963
  %v2560 = vunpack.c.l.b16 %v1964
  %v2561 = vunpack.c.h.b16 %v1964
  %v2562 = vunpack.c.l.b16 %v1965
  %v2563 = vunpack.c.h.b16 %v1965
  %v2564 = vunpack.c.l.b16 %v1966
  %v2565 = vunpack.c.h.b16 %v1966
  %v2566 = vunpack.c.l.b16 %v1967
  %v2567 = vunpack.c.h.b16 %v1967
  %v2568 = vunpack.c.l.b16 %v1968
  %v2569 = vunpack.c.h.b16 %v1968
  %v2570 = vunpack.c.l.b16 %v1969
  %v2571 = vunpack.c.h.b16 %v1969
  %v2572 = vunpack.c.l.b16 %v1970
  %v2573 = vunpack.c.h.b16 %v1970
  %v2574 = vunpack.c.l.b16 %v1971
  %v2575 = vunpack.c.h.b16 %v1971
  %v2576 = vunpack.c.l.b16 %v1972
  %v2577 = vunpack.c.h.b16 %v1972
  %v2578 = vunpack.c.l.b16 %v1973
  %v2579 = vunpack.c.h.b16 %v1973
  %v2580 = vunpack.c.l.b16 %v1974
  %v2581 = vunpack.c.h.b16 %v1974
  %v2582 = vunpack.c.l.b16 %v1975
  %v2583 = vunpack.c.h.b16 %v1975
  %v2584 = vunpack.c.l.b16 %v1976
  %v2585 = vunpack.c.h.b16 %v1976
  %v2586 = vunpack.c.l.b16 %v1977
  %v2587 = vunpack.c.h.b16 %v1977
  %v2588 = vunpack.c.l.b16 %v1978
  %v2589 = vunpack.c.h.b16 %v1978
  %v2590 = vunpack.c.l.b16 %v1979
  %v2591 = vunpack.c.h.b16 %v1979
  %v2592 = vunpack.c.l.b16 %v1980
  %v2593 = vunpack.c.h.b16 %v1980
  %v2594 = vunpack.c.l.b16 %v1981
  %v2595 = vunpack.c.h.b16 %v1981
  %v2596 = vunpack.c.l.b16 %v1982
  %v2597 = vunpack.c.h.b16 %v1982
  %v2598 = vunpack.c.l.b16 %v1983
  %v2599 = vunpack.c.h.b16 %v1983
  %v2600 = vunpack.c.l.b16 %v1984
  %v2601 = vunpack.c.h.b16 %v1984
  %v2602 = vunpack.c.l.b16 %v1985
  %v2603 = vunpack.c.h.b16 %v1985
  %v2604 = vunpack.c.l.b16 %v1986
  %v2605 = vunpack.c.h.b16 %v1986
  %v2606 = vunpack.c.l.b16 %v1987
  %v2607 = vunpack.c.h.b16 %v1987
  %v2608 = vunpack.c.l.b16 %v1988
  %v2609 = vunpack.c.h.b16 %v1988
  %v2610 = vunpack.c.l.b16 %v1989
  %v2611 = vunpack.c.h.b16 %v1989
  %v2612 = vunpack.c.l.b16 %v1990
  %v2613 = vunpack.c.h.b16 %v1990
  %v2614 = vunpack.c.l.b16 %v1991
  %v2615 = vunpack.c.h.b16 %v1991
  %v2616 = vunpack.c.l.b16 %v1992
  %v2617 = vunpack.c.h.b16 %v1992
  %v2618 = vunpack.c.l.b16 %v1993
  %v2619 = vunpack.c.h.b16 %v1993
  %v2620 = vunpack.c.l.b16 %v1994
  %v2621 = vunpack.c.h.b16 %v1994
  %v2622 = vunpack.c.l.b16 %v1995
  %v2623 = vunpack.c.h.b16 %v1995
  %v2624 = vunpack.c.l.b16 %v1996
  %v2625 = vunpack.c.h.b16 %v1996
  %v2626 = vunpack.c.l.b16 %v1997
  %v2627 = vunpack.c.h.b16 %v1997
  %v2628 = vunpack.c.l.b16 %v1998
  %v2629 = vunpack.c.h.b16 %v1998
  %v2630 = vunpack.c.l.b16 %v1999
  %v2631 = vunpack.c.h.b16 %v1999
  %v2632 = vunpack.c.l.b16 %v2000
  %v2633 = vunpack.c.h.b16 %v2000
  %v2634 = vunpack.c.l.b16 %v2001
  %v2635 = vunpack.c.h.b16 %v2001
  %v2636 = vunpack.c.l.b16 %v2002
  %v2637 = vunpack.c.h.b16 %v2002
  %v2638 = vunpack.c.l.b16 %v2003
  %v2639 = vunpack.c.h.b16 %v2003
  %v2640 = vunpack.c.l.b16 %v2004
  %v2641 = vunpack.c.h.b16 %v2004
  %v2642 = vunpack.c.l.b16 %v2005
  %v2643 = vunpack.c.h.b16 %v2005
  %v2644 = vunpack.c.l.b16 %v2006
  %v2645 = vunpack.c.h.b16 %v2006
  %v2646 = vunpack.c.l.b16 %v2007
  %v2647 = vunpack.c.h.b16 %v2007
  %v2648 = vunpack.c.l.b16 %v2008
  %v2649 = vunpack.c.h.b16 %v2008
  %v2650 = vunpack.c.l.b16 %v2009
  %v2651 = vunpack.c.h.b16 %v2009
  %v2652 = vunpack.c.l.b16 %v2010
  %v2653 = vunpack.c.h.b16 %v2010
  %v2654 = vunpack.c.l.b16 %v2011
  %v2655 = vunpack.c.h.b16 %v2011
  %v2656 = vunpack.c.l.b16 %v2012
  %v2657 = vunpack.c.h.b16 %v2012
  %v2658 = vunpack.c.l.b16 %v2013
  %v2659 = vunpack.c.h.b16 %v2013
  %v2660 = vunpack.c.l.b16 %v2014
  %v2661 = vunpack.c.h.b16 %v2014
  %v2662 = vunpack.c.l.b16 %v2015
  %v2663 = vunpack.c.h.b16 %v2015
  %v2664 = vunpack.c.l.b16 %v2016
  %v2665 = vunpack.c.h.b16 %v2016
  %v2666 = vunpack.c.l.b16 %v2017
  %v2667 = vunpack.c.h.b16 %v2017
  %v2668 = vunpack.c.l.b16 %v2018
  %v2669 = vunpack.c.h.b16 %v2018
  %v2670 = vunpack.c.l.b16 %v2019
  %v2671 = vunpack.c.h.b16 %v2019
  %v2672 = vunpack.c.l.b16 %v2020
  %v2673 = vunpack.c.h.b16 %v2020
  %v2674 = vunpack.c.l.b16 %v2021
  %v2675 = vunpack.c.h.b16 %v2021
  %v2676 = vunpack.c.l.b16 %v2022
  %v2677 = vunpack.c.h.b16 %v2022
  %v2678 = vunpack.c.l.b16 %v2023
  %v2679 = vunpack.c.h.b16 %v2023
  %v2680 = vunpack.c.l.b16 %v2024
  %v2681 = vunpack.c.h.b16 %v2024
  %v2682 = vunpack.c.l.b16 %v2025
  %v2683 = vunpack.c.h.b16 %v2025
  %v2684 = vunpack.c.l.b16 %v2026
  %v2685 = vunpack.c.h.b16 %v2026
  %v2686 = vunpack.c.l.b16 %v2027
  %v2687 = vunpack.c.h.b16 %v2027
  %v2688 = vunpack.c.l.b16 %v2028
  %v2689 = vunpack.c.h.b16 %v2028
  %v2690 = vunpack.c.l.b16 %v2029
  %v2691 = vunpack.c.h.b16 %v2029
  %v2692 = vunpack.c.l.b16 %v2030
  %v2693 = vunpack.c.h.b16 %v2030
  %v2694 = vunpack.c.l.b16 %v2031
  %v2695 = vunpack.c.h.b16 %v2031
  %v2696 = vunpack.c.l.b16 %v2032
  %v2697 = vunpack.c.h.b16 %v2032
  %v2698 = vunpack.c.l.b16 %v2033
  %v2699 = vunpack.c.h.b16 %v2033
  %v2700 = vunpack.c.l.b16 %v2034
  %v2701 = vunpack.c.h.b16 %v2034
  %v2702 = vunpack.c.l.b16 %v2035
  %v2703 = vunpack.c.h.b16 %v2035
  %v2704 = vunpack.c.l.b16 %v2036
  %v2705 = vunpack.c.h.b16 %v2036
  %v2706 = vunpack.c.l.b16 %v2037
  %v2707 = vunpack.c.h.b16 %v2037
  %v2708 = vunpack.c.l.b16 %v2038
  %v2709 = vunpack.c.h.b16 %v2038
  %v2710 = vunpack.c.l.b16 %v2039
  %v2711 = vunpack.c.h.b16 %v2039
  %v2712 = vunpack.c.l.b16 %v2040
  %v2713 = vunpack.c.h.b16 %v2040
  %v2714 = vunpack.c.l.b16 %v2041
  %v2715 = vunpack.c.h.b16 %v2041
  %v2716 = vunpack.c.l.b16 %v2042
  %v2717 = vunpack.c.h.b16 %v2042
  %v2718 = vunpack.c.l.b16 %v2043
  %v2719 = vunpack.c.h.b16 %v2043
  %v2720 = vunpack.c.l.b16 %v2044
  %v2721 = vunpack.c.h.b16 %v2044
  %v2722 = vunpack.c.l.b16 %v2045
  %v2723 = vunpack.c.h.b16 %v2045
  %v2724 = vunpack.c.l.b16 %v2046
  %v2725 = vunpack.c.h.b16 %v2046
  %v2726 = vunpack.c.l.b16 %v2047
  %v2727 = vunpack.c.h.b16 %v2047
  %v2728 = vunpack.c.l.b16 %v2048
  %v2729 = vunpack.c.h.b16 %v2048
  %v2730 = vunpack.c.l.b16 %v2049
  %v2731 = vunpack.c.h.b16 %v2049
  %v2732 = vunpack.c.l.b16 %v2050
  %v2733 = vunpack.c.h.b16 %v2050
  %v2734 = vunpack.c.l.b16 %v2051
  %v2735 = vunpack.c.h.b16 %v2051
  %v2736 = vunpack.c.l.b16 %v2052
  %v2737 = vunpack.c.h.b16 %v2052
  %v2738 = vunpack.c.l.b16 %v2053
  %v2739 = vunpack.c.h.b16 %v2053
  %v2740 = vunpack.c.l.b16 %v2054
  %v2741 = vunpack.c.h.b16 %v2054
  %v2742 = vunpack.c.l.b16 %v2055
  %v2743 = vunpack.c.h.b16 %v2055
  %v2744 = vunpack.c.l.b16 %v2056
  %v2745 = vunpack.c.h.b16 %v2056
  %v2746 = vunpack.c.l.b16 %v2057
  %v2747 = vunpack.c.h.b16 %v2057
  %v2748 = vunpack.c.l.b16 %v2058
  %v2749 = vunpack.c.h.b16 %v2058
  %v2750 = vunpack.c.l.b16 %v2059
  %v2751 = vunpack.c.h.b16 %v2059
  %v2752 = vunpack.c.l.b16 %v2060
  %v2753 = vunpack.c.h.b16 %v2060
  %v2754 = vunpack.c.l.b16 %v2061
  %v2755 = vunpack.c.h.b16 %v2061
  %v2756 = vunpack.c.l.b16 %v2062
  %v2757 = vunpack.c.h.b16 %v2062
  %v2758 = vunpack.c.l.b16 %v2063
  %v2759 = vunpack.c.h.b16 %v2063
  %v2760 = vunpack.c.l.b16 %v2064
  %v2761 = vunpack.c.h.b16 %v2064
  %v2762 = vunpack.c.l.b16 %v2065
  %v2763 = vunpack.c.h.b16 %v2065
  %v2764 = vunpack.c.l.b16 %v2066
  %v2765 = vunpack.c.h.b16 %v2066
  %v2766 = vunpack.c.l.b16 %v2067
  %v2767 = vunpack.c.h.b16 %v2067
  %v2768 = vunpack.c.l.b16 %v2068
  %v2769 = vunpack.c.h.b16 %v2068
  %v2770 = vunpack.c.l.b16 %v2069
  %v2771 = vunpack.c.h.b16 %v2069
  %v2772 = vunpack.c.l.b16 %v2070
  %v2773 = vunpack.c.h.b16 %v2070
  %v2774 = vunpack.c.l.b16 %v2071
  %v2775 = vunpack.c.h.b16 %v2071
  %v2776 = vunpack.c.l.b16 %v2072
  %v2777 = vunpack.c.h.b16 %v2072
  %v2778 = vunpack.c.l.b16 %v2073
  %v2779 = vunpack.c.h.b16 %v2073
  %v2780 = vunpack.c.l.b16 %v2074
  %v2781 = vunpack.c.h.b16 %v2074
  %v2782 = vunpack.c.l.b16 %v2075
  %v2783 = vunpack.c.h.b16 %v2075
  %v2784 = vunpack.c.l.b16 %v2076
  %v2785 = vunpack.c.h.b16 %v2076
  %v2786 = vunpack.c.l.b16 %v2077
  %v2787 = vunpack.c.h.b16 %v2077
  %v2788 = vunpack.c.l.b16 %v2078
  %v2789 = vunpack.c.h.b16 %v2078
  %v2790 = vunpack.c.l.b16 %v2079
  %v2791 = vunpack.c.h.b16 %v2079
  %v2792 = vunpack.c.l.b16 %v2080
  %v2793 = vunpack.c.h.b16 %v2080
  %v2794 = vunpack.c.l.b16 %v2081
  %v2795 = vunpack.c.h.b16 %v2081
  %v2796 = vunpack.c.l.b16 %v2082
  %v2797 = vunpack.c.h.b16 %v2082
  %v2798 = vunpack.c.l.b16 %v2083
  %v2799 = vunpack.c.h.b16 %v2083
  %v2800 = vunpack.c.l.b16 %v2084
  %v2801 = vunpack.c.h.b16 %v2084
  %v2802 = vunpack.c.l.b16 %v2085
  %v2803 = vunpack.c.h.b16 %v2085
  %v2804 = vunpack.c.l.b16 %v2086
  %v2805 = vunpack.c.h.b16 %v2086
  %v2806 = vunpack.c.l.b16 %v2087
  %v2807 = vunpack.c.h.b16 %v2087
  %v2808 = vunpack.c.l.b16 %v2088
  %v2809 = vunpack.c.h.b16 %v2088
  %v2810 = vunpack.c.l.b16 %v2089
  %v2811 = vunpack.c.h.b16 %v2089
  %v2812 = vunpack.c.l.b16 %v2090
  %v2813 = vunpack.c.h.b16 %v2090
  %v2814 = vunpack.c.l.b16 %v2091
  %v2815 = vunpack.c.h.b16 %v2091
  %v2816 = vunpack.c.l.b16 %v2092
  %v2817 = vunpack.c.h.b16 %v2092
  %v2818 = vunpack.c.l.b16 %v2093
  %v2819 = vunpack.c.h.b16 %v2093
  %v2820 = vunpack.c.l.b16 %v2094
  %v2821 = vunpack.c.h.b16 %v2094
  %v2822 = vunpack.c.l.b16 %v2095
  %v2823 = vunpack.c.h.b16 %v2095
  %v2824 = vunpack.c.l.b16 %v2096
  %v2825 = vunpack.c.h.b16 %v2096
  %v2826 = vunpack.c.l.b16 %v2097
  %v2827 = vunpack.c.h.b16 %v2097
  %v2828 = vunpack.c.l.b16 %v2098
  %v2829 = vunpack.c.h.b16 %v2098
  %v2830 = vunpack.c.l.b16 %v2099
  %v2831 = vunpack.c.h.b16 %v2099
  %v2832 = vunpack.c.l.b16 %v2100
  %v2833 = vunpack.c.h.b16 %v2100
  %v2834 = vunpack.c.l.b16 %v2101
  %v2835 = vunpack.c.h.b16 %v2101
  %v2836 = vunpack.c.l.b16 %v2102
  %v2837 = vunpack.c.h.b16 %v2102
  %v2838 = vunpack.c.l.b16 %v2103
  %v2839 = vunpack.c.h.b16 %v2103
  %v2840 = vunpack.c.l.b16 %v2104
  %v2841 = vunpack.c.h.b16 %v2104
  %v2842 = vunpack.c.l.b16 %v2105
  %v2843 = vunpack.c.h.b16 %v2105
  %v2844 = vunpack.c.l.b16 %v2106
  %v2845 = vunpack.c.h.b16 %v2106
  %v2846 = vunpack.c.l.b16 %v2107
  %v2847 = vunpack.c.h.b16 %v2107
  %v2848 = vunpack.c.l.b16 %v2108
  %v2849 = vunpack.c.h.b16 %v2108
  %v2850 = vunpack.c.l.b16 %v2109
  %v2851 = vunpack.c.h.b16 %v2109
  %v2852 = vunpack.c.l.b16 %v2110
  %v2853 = vunpack.c.h.b16 %v2110
  %v2854 = vunpack.c.l.b16 %v2111
  %v2855 = vunpack.c.h.b16 %v2111
  %v2856 = vunpack.c.l.b16 %v2112
  %v2857 = vunpack.c.h.b16 %v2112
  %v2858 = vunpack.c.l.b16 %v2113
  %v2859 = vunpack.c.h.b16 %v2113
  %v2860 = vunpack.c.l.b16 %v2114
  %v2861 = vunpack.c.h.b16 %v2114
  %v2862 = vunpack.c.l.b16 %v2115
  %v2863 = vunpack.c.h.b16 %v2115
  %v2864 = vunpack.c.l.b16 %v2116
  %v2865 = vunpack.c.h.b16 %v2116
  %v2866 = vunpack.c.l.b16 %v2117
  %v2867 = vunpack.c.h.b16 %v2117
  %v2868 = vunpack.c.l.b16 %v2118
  %v2869 = vunpack.c.h.b16 %v2118
  %v2870 = vunpack.c.l.b16 %v2119
  %v2871 = vunpack.c.h.b16 %v2119
  %v2872 = vunpack.c.l.b16 %v2120
  %v2873 = vunpack.c.h.b16 %v2120
  %v2874 = vunpack.c.l.b16 %v2121
  %v2875 = vunpack.c.h.b16 %v2121
  %v2876 = vunpack.c.l.b16 %v2122
  %v2877 = vunpack.c.h.b16 %v2122
  %v2878 = vunpack.c.l.b16 %v2123
  %v2879 = vunpack.c.h.b16 %v2123
  %v2880 = vunpack.c.l.b16 %v2124
  %v2881 = vunpack.c.h.b16 %v2124
  %v2882 = vunpack.c.l.b16 %v2125
  %v2883 = vunpack.c.h.b16 %v2125
  %v2884 = vunpack.c.l.b16 %v2126
  %v2885 = vunpack.c.h.b16 %v2126
  %v2886 = vunpack.c.l.b16 %v2127
  %v2887 = vunpack.c.h.b16 %v2127
  %v2888 = vunpack.c.l.b16 %v2128
  %v2889 = vunpack.c.h.b16 %v2128
  %v2890 = vunpack.c.l.b16 %v2129
  %v2891 = vunpack.c.h.b16 %v2129
  %v2892 = vunpack.c.l.b16 %v2130
  %v2893 = vunpack.c.h.b16 %v2130
  %v2894 = vunpack.c.l.b16 %v2131
  %v2895 = vunpack.c.h.b16 %v2131
  %v2896 = vunpack.c.l.b16 %v2132
  %v2897 = vunpack.c.h.b16 %v2132
  %v2898 = vunpack.c.l.b16 %v2133
  %v2899 = vunpack.c.h.b16 %v2133
  %v2900 = vunpack.c.l.b16 %v2134
  %v2901 = vunpack.c.h.b16 %v2134
  %v2902 = vunpack.c.l.b16 %v2135
  %v2903 = vunpack.c.h.b16 %v2135
  %v2904 = vunpack.c.l.b16 %v2136
  %v2905 = vunpack.c.h.b16 %v2136
  %v2906 = vunpack.c.l.b16 %v2137
  %v2907 = vunpack.c.h.b16 %v2137
  %v2908 = vunpack.c.l.b16 %v2138
  %v2909 = vunpack.c.h.b16 %v2138
  %v2910 = vunpack.c.l.b16 %v2139
  %v2911 = vunpack.c.h.b16 %v2139
  %v2912 = vunpack.c.l.b16 %v2140
  %v2913 = vunpack.c.h.b16 %v2140
  %v2914 = vunpack.c.l.b16 %v2141
  %v2915 = vunpack.c.h.b16 %v2141
  %v2916 = vunpack.c.l.b16 %v2142
  %v2917 = vunpack.c.h.b16 %v2142
  %v2918 = vunpack.c.l.b16 %v2143
  %v2919 = vunpack.c.h.b16 %v2143
  %v2920 = vunpack.c.l.b16 %v2144
  %v2921 = vunpack.c.h.b16 %v2144
  %v2922 = vunpack.c.l.b16 %v2145
  %v2923 = vunpack.c.h.b16 %v2145
  %v2924 = vunpack.c.l.b16 %v2146
  %v2925 = vunpack.c.h.b16 %v2146
  %v2926 = vunpack.c.l.b16 %v2147
  %v2927 = vunpack.c.h.b16 %v2147
  %v2928 = vunpack.c.l.b16 %v2148
  %v2929 = vunpack.c.h.b16 %v2148
  %v2930 = vunpack.c.l.b16 %v2149
  %v2931 = vunpack.c.h.b16 %v2149
  %v2932 = vunpack.c.l.b16 %v2150
  %v2933 = vunpack.c.h.b16 %v2150
  %v2934 = vunpack.c.l.b16 %v2151
  %v2935 = vunpack.c.h.b16 %v2151
  %v2936 = vunpack.c.l.b16 %v2152
  %v2937 = vunpack.c.h.b16 %v2152
  %v2938 = vunpack.c.l.b16 %v2153
  %v2939 = vunpack.c.h.b16 %v2153
  %v2940 = vunpack.c.l.b16 %v2154
  %v2941 = vunpack.c.h.b16 %v2154
  %v2942 = vunpack.c.l.b16 %v2155
  %v2943 = vunpack.c.h.b16 %v2155
  %v2944 = vunpack.c.l.b16 %v2156
  %v2945 = vunpack.c.h.b16 %v2156
  %v2946 = vunpack.c.l.b16 %v2157
  %v2947 = vunpack.c.h.b16 %v2157
  %v2948 = vunpack.c.l.b16 %v2158
  %v2949 = vunpack.c.h.b16 %v2158
  %v2950 = vunpack.c.l.b16 %v2159
  %v2951 = vunpack.c.h.b16 %v2159
  %v2952 = vunpack.c.l.b16 %v2160
  %v2953 = vunpack.c.h.b16 %v2160
  %v2954 = vunpack.c.l.b16 %v2161
  %v2955 = vunpack.c.h.b16 %v2161
  %v2956 = vunpack.c.l.b16 %v2162
  %v2957 = vunpack.c.h.b16 %v2162
  %v2958 = vunpack.c.l.b16 %v2163
  %v2959 = vunpack.c.h.b16 %v2163
  %v2960 = vunpack.c.l.b16 %v2164
  %v2961 = vunpack.c.h.b16 %v2164
  %v2962 = vunpack.c.l.b16 %v2165
  %v2963 = vunpack.c.h.b16 %v2165
  %v2964 = vunpack.c.l.b16 %v2166
  %v2965 = vunpack.c.h.b16 %v2166
  %v2966 = vunpack.c.l.b16 %v2167
  %v2967 = vunpack.c.h.b16 %v2167
  %v2968 = vunpack.c.l.b16 %v2168
  %v2969 = vunpack.c.h.b16 %v2168
  %v2970 = vunpack.c.l.b16 %v2169
  %v2971 = vunpack.c.h.b16 %v2169
  %v2972 = vunpack.c.l.b16 %v2170
  %v2973 = vunpack.c.h.b16 %v2170
  %v2974 = vunpack.c.l.b16 %v2171
  %v2975 = vunpack.c.h.b16 %v2171
  %v2976 = vunpack.c.l.b16 %v2172
  %v2977 = vunpack.c.h.b16 %v2172
  %v2978 = vunpack.c.l.b16 %v2173
  %v2979 = vunpack.c.h.b16 %v2173
  %v2980 = vunpack.c.l.b16 %v2174
  %v2981 = vunpack.c.h.b16 %v2174
  %v2982 = vunpack.c.l.b16 %v2175
  %v2983 = vunpack.c.h.b16 %v2175
  %v2984 = vunpack.c.l.b16 %v2176
  %v2985 = vunpack.c.h.b16 %v2176
  %v2986 = vpack.c.b16 %v2482, %v2474
  %v2987 = vpack.c.b16 %v2483, %v2475
  %v2988 = vpack.c.b16 %v2484, %v2476
  %v2989 = vpack.c.b16 %v2485, %v2477
  %v2990 = vpack.c.b16 %v2486, %v2478
  %v2991 = vpack.c.b16 %v2487, %v2479
  %v2992 = vpack.c.b16 %v2488, %v2480
  %v2993 = vpack.c.b16 %v2489, %v2481
  %v2994 = vpack.c.b16 %v2498, %v2490
  %v2995 = vpack.c.b16 %v2499, %v2491
  %v2996 = vpack.c.b16 %v2500, %v2492
  %v2997 = vpack.c.b16 %v2501, %v2493
  %v2998 = vpack.c.b16 %v2502, %v2494
  %v2999 = vpack.c.b16 %v2503, %v2495
  %v3000 = vpack.c.b16 %v2504, %v2496
  %v3001 = vpack.c.b16 %v2505, %v2497
  %v3002 = vpack.c.b16 %v2514, %v2506
  %v3003 = vpack.c.b16 %v2515, %v2507
  %v3004 = vpack.c.b16 %v2516, %v2508
  %v3005 = vpack.c.b16 %v2517, %v2509
  %v3006 = vpack.c.b16 %v2518, %v2510
  %v3007 = vpack.c.b16 %v2519, %v2511
  %v3008 = vpack.c.b16 %v2520, %v2512
  %v3009 = vpack.c.b16 %v2521, %v2513
  %v3010 = vpack.c.b16 %v2530, %v2522
  %v3011 = vpack.c.b16 %v2531, %v2523
  %v3012 = vpack.c.b16 %v2532, %v2524
  %v3013 = vpack.c.b16 %v2533, %v2525
  %v3014 = vpack.c.b16 %v2534, %v2526
  %v3015 = vpack.c.b16 %v2535, %v2527
  %v3016 = vpack.c.b16 %v2536, %v2528
  %v3017 = vpack.c.b16 %v2537, %v2529
  %v3018 = vpack.c.b16 %v2546, %v2538
  %v3019 = vpack.c.b16 %v2547, %v2539
  %v3020 = vpack.c.b16 %v2548, %v2540
  %v3021 = vpack.c.b16 %v2549, %v2541
  %v3022 = vpack.c.b16 %v2550, %v2542
  %v3023 = vpack.c.b16 %v2551, %v2543
  %v3024 = vpack.c.b16 %v2552, %v2544
  %v3025 = vpack.c.b16 %v2553, %v2545
  %v3026 = vpack.c.b16 %v2562, %v2554
  %v3027 = vpack.c.b16 %v2563, %v2555
  %v3028 = vpack.c.b16 %v2564, %v2556
  %v3029 = vpack.c.b16 %v2565, %v2557
  %v3030 = vpack.c.b16 %v2566, %v2558
  %v3031 = vpack.c.b16 %v2567, %v2559
  %v3032 = vpack.c.b16 %v2568, %v2560
  %v3033 = vpack.c.b16 %v2569, %v2561
  %v3034 = vpack.c.b16 %v2578, %v2570
  %v3035 = vpack.c.b16 %v2579, %v2571
  %v3036 = vpack.c.b16 %v2580, %v2572
  %v3037 = vpack.c.b16 %v2581, %v2573
  %v3038 = vpack.c.b16 %v2582, %v2574
  %v3039 = vpack.c.b16 %v2583, %v2575
  %v3040 = vpack.c.b16 %v2584, %v2576
  %v3041 = vpack.c.b16 %v2585, %v2577
  %v3042 = vpack.c.b16 %v2594, %v2586
  %v3043 = vpack.c.b16 %v2595, %v2587
  %v3044 = vpack.c.b16 %v2596, %v2588
  %v3045 = vpack.c.b16 %v2597, %v2589
  %v3046 = vpack.c.b16 %v2598, %v2590
  %v3047 = vpack.c.b16 %v2599, %v2591
  %v3048 = vpack.c.b16 %v2600, %v2592
  %v3049 = vpack.c.b16 %v2601, %v2593
  %v3050 = vpack.c.b16 %v2610, %v2602
  %v3051 = vpack.c.b16 %v2611, %v2603
  %v3052 = vpack.c.b16 %v2612, %v2604
  %v3053 = vpack.c.b16 %v2613, %v2605
  %v3054 = vpack.c.b16 %v2614, %v2606
  %v3055 = vpack.c.b16 %v2615, %v2607
  %v3056 = vpack.c.b16 %v2616, %v2608
  %v3057 = vpack.c.b16 %v2617, %v2609
  %v3058 = vpack.c.b16 %v2626, %v2618
  %v3059 = vpack.c.b16 %v2627, %v2619
  %v3060 = vpack.c.b16 %v2628, %v2620
  %v3061 = vpack.c.b16 %v2629, %v2621
  %v3062 = vpack.c.b16 %v2630, %v2622
  %v3063 = vpack.c.b16 %v2631, %v2623
  %v3064 = vpack.c.b16 %v2632, %v2624
  %v3065 = vpack.c.b16 %v2633, %v2625
  %v3066 = vpack.c.b16 %v2642, %v2634
  %v3067 = vpack.c.b16 %v2643, %v2635
  %v3068 = vpack.c.b16 %v2644, %v2636
  %v3069 = vpack.c.b16 %v2645, %v2637
  %v3070 = vpack.c.b16 %v2646, %v2638
  %v3071 = vpack.c.b16 %v2647, %v2639
  %v3072 = vpack.c.b16 %v2648, %v2640
  %v3073 = vpack.c.b16 %v2649, %v2641
  %v3074 = vpack.c.b16 %v2658, %v2650
  %v3075 = vpack.c.b16 %v2659, %v2651
  %v3076 = vpack.c.b16 %v2660, %v2652
  %v3077 = vpack.c.b16 %v2661, %v2653
  %v3078 = vpack.c.b16 %v2662, %v2654
  %v3079 = vpack.c.b16 %v2663, %v2655
  %v3080 = vpack.c.b16 %v2664, %v2656
  %v3081 = vpack.c.b16 %v2665, %v2657
  %v3082 = vpack.c.b16 %v2674, %v2666
  %v3083 = vpack.c.b16 %v2675, %v2667
  %v3084 = vpack.c.b16 %v2676, %v2668
  %v3085 = vpack.c.b16 %v2677, %v2669
  %v3086 = vpack.c.b16 %v2678, %v2670
  %v3087 = vpack.c.b16 %v2679, %v2671
  %v3088 = vpack.c.b16 %v2680, %v2672
  %v3089 = vpack.c.b16 %v2681, %v2673
  %v3090 = vpack.c.b16 %v2690, %v2682
  %v3091 = vpack.c.b16 %v2691, %v2683
  %v3092 = vpack.c.b16 %v2692, %v2684
  %v3093 = vpack.c.b16 %v2693, %v2685
  %v3094 = vpack.c.b16 %v2694, %v2686
  %v3095 = vpack.c.b16 %v2695, %v2687
  %v3096 = vpack.c.b16 %v2696, %v2688
  %v3097 = vpack.c.b16 %v2697, %v2689
  %v3098 = vpack.c.b16 %v2706, %v2698
  %v3099 = vpack.c.b16 %v2707, %v2699
  %v3100 = vpack.c.b16 %v2708, %v2700
  %v3101 = vpack.c.b16 %v2709, %v2701
  %v3102 = vpack.c.b16 %v2710, %v2702
  %v3103 = vpack.c.b16 %v2711, %v2703
  %v3104 = vpack.c.b16 %v2712, %v2704
  %v3105 = vpack.c.b16 %v2713, %v2705
  %v3106 = vpack.c.b16 %v2722, %v2714
  %v3107 = vpack.c.b16 %v2723, %v2715
  %v3108 = vpack.c.b16 %v2724, %v2716
  %v3109 = vpack.c.b16 %v2725, %v2717
  %v3110 = vpack.c.b16 %v2726, %v2718
  %v3111 = vpack.c.b16 %v2727, %v2719
  %v3112 = vpack.c.b16 %v2728, %v2720
  %v3113 = vpack.c.b16 %v2729, %v2721
  %v3114 = vpack.c.b16 %v2738, %v2730
  %v3115 = vpack.c.b16 %v2739, %v2731
  %v3116 = vpack.c.b16 %v2740, %v2732
  %v3117 = vpack.c.b16 %v2741, %v2733
  %v3118 = vpack.c.b16 %v2742, %v2734
  %v3119 = vpack.c.b16 %v2743, %v2735
  %v3120 = vpack.c.b16 %v2744, %v2736
  %v3121 = vpack.c.b16 %v2745, %v2737
  %v3122 = vpack.c.b16 %v2754, %v2746
  %v3123 = vpack.c.b16 %v2755, %v2747
  %v3124 = vpack.c.b16 %v2756, %v2748
  %v3125 = vpack.c.b16 %v2757, %v2749
  %v3126 = vpack.c.b16 %v2758, %v2750
  %v3127 = vpack.c.b16 %v2759, %v2751
  %v3128 = vpack.c.b16 %v2760, %v2752
  %v3129 = vpack.c.b16 %v2761, %v2753
  %v3130 = vpack.c.b16 %v2770, %v2762
  %v3131 = vpack.c.b16 %v2771, %v2763
  %v3132 = vpack.c.b16 %v2772, %v2764
  %v3133 = vpack.c.b16 %v2773, %v2765
  %v3134 = vpack.c.b16 %v2774, %v2766
  %v3135 = vpack.c.b16 %v2775, %v2767
  %v3136 = vpack.c.b16 %v2776, %v2768
  %v3137 = vpack.c.b16 %v2777, %v2769
  %v3138 = vpack.c.b16 %v2786, %v2778
  %v3139 = vpack.c.b16 %v2787, %v2779
  %v3140 = vpack.c.b16 %v2788, %v2780
  %v3141 = vpack.c.b16 %v2789, %v2781
  %v3142 = vpack.c.b16 %v2790, %v2782
  %v3143 = vpack.c.b16 %v2791, %v2783
  %v3144 = vpack.c.b16 %v2792, %v2784
  %v3145 = vpack.c.b16 %v2793, %v2785
  %v3146 = vpack.c.b16 %v2802, %v2794
  %v3147 = vpack.c.b16 %v2803, %v2795
  %v3148 = vpack.c.b16 %v2804, %v2796
  %v3149 = vpack.c.b16 %v2805, %v2797
  %v3150 = vpack.c.b16 %v2806, %v2798
  %v3151 = vpack.c.b16 %v2807, %v2799
  %v3152 = vpack.c.b16 %v2808, %v2800
  %v3153 = vpack.c.b16 %v2809, %v2801
  %v3154 = vpack.c.b16 %v2818, %v2810
  %v3155 = vpack.c.b16 %v2819, %v2811
  %v3156 = vpack.c.b16 %v2820, %v2812
  %v3157 = vpack.c.b16 %v2821, %v2813
  %v3158 = vpack.c.b16 %v2822, %v2814
  %v3159 = vpack.c.b16 %v2823, %v2815
  %v3160 = vpack.c.b16 %v2824, %v2816
  %v3161 = vpack.c.b16 %v2825, %v2817
  %v3162 = vpack.c.b16 %v2834, %v2826
  %v3163 = vpack.c.b16 %v2835, %v2827
  %v3164 = vpack.c.b16 %v2836, %v2828
  %v3165 = vpack.c.b16 %v2837, %v2829
  %v3166 = vpack.c.b16 %v2838, %v2830
  %v3167 = vpack.c.b16 %v2839, %v2831
  %v3168 = vpack.c.b16 %v2840, %v2832
  %v3169 = vpack.c.b16 %v2841, %v2833
  %v3170 = vpack.c.b16 %v2850, %v2842
  %v3171 = vpack.c.b16 %v2851, %v2843
  %v3172 = vpack.c.b16 %v2852, %v2844
  %v3173 = vpack.c.b16 %v2853, %v2845
  %v3174 = vpack.c.b16 %v2854, %v2846
  %v3175 = vpack.c.b16 %v2855, %v2847
  %v3176 = vpack.c.b16 %v2856, %v2848
  %v3177 = vpack.c.b16 %v2857, %v2849
  %v3178 = vpack.c.b16 %v2866, %v2858
  %v3179 = vpack.c.b16 %v2867, %v2859
  %v3180 = vpack.c.b16 %v2868, %v2860
  %v3181 = vpack.c.b16 %v2869, %v2861
  %v3182 = vpack.c.b16 %v2870, %v2862
  %v3183 = vpack.c.b16 %v2871, %v2863
  %v3184 = vpack.c.b16 %v2872, %v2864
  %v3185 = vpack.c.b16 %v2873, %v2865
  %v3186 = vpack.c.b16 %v2882, %v2874
  %v3187 = vpack.c.b16 %v2883, %v2875
  %v3188 = vpack.c.b16 %v2884, %v2876
  %v3189 = vpack.c.b16 %v2885, %v2877
  %v3190 = vpack.c.b16 %v2886, %v2878
  %v3191 = vpack.c.b16 %v2887, %v2879
  %v3192 = vpack.c.b16 %v2888, %v2880
  %v3193 = vpack.c.b16 %v2889, %v2881
  %v3194 = vpack.c.b16 %v2898, %v2890
  %v3195 = vpack.c.b16 %v2899, %v2891
  %v3196 = vpack.c.b16 %v2900, %v2892
  %v3197 = vpack.c.b16 %v2901, %v2893
  %v3198 = vpack.c.b16 %v2902, %v2894
  %v3199 = vpack.c.b16 %v2903, %v2895
  %v3200 = vpack.c.b16 %v2904, %v2896
  %v3201 = vpack.c.b16 %v2905, %v2897
  %v3202 = vpack.c.b16 %v2914, %v2906
  %v3203 = vpack.c.b16 %v2915, %v2907
  %v3204 = vpack.c.b16 %v2916, %v2908
  %v3205 = vpack.c.b16 %v2917, %v2909
  %v3206 = vpack.c.b16 %v2918, %v2910
  %v3207 = vpack.c.b16 %v2919, %v2911
  %v3208 = vpack.c.b16 %v2920, %v2912
  %v3209 = vpack.c.b16 %v2921, %v2913
  %v3210 = vpack.c.b16 %v2930, %v2922
  %v3211 = vpack.c.b16 %v2931, %v2923
  %v3212 = vpack.c.b16 %v2932, %v2924
  %v3213 = vpack.c.b16 %v2933, %v2925
  %v3214 = vpack.c.b16 %v2934, %v2926
  %v3215 = vpack.c.b16 %v2935, %v2927
  %v3216 = vpack.c.b16 %v2936, %v2928
  %v3217 = vpack.c.b16 %v2937, %v2929
  %v3218 = vpack.c.b16 %v2946, %v2938
  %v3219 = vpack.c.b16 %v2947, %v2939
  %v3220 = vpack.c.b16 %v2948, %v2940
  %v3221 = vpack.c.b16 %v2949, %v2941
  %v3222 = vpack.c.b16 %v2950, %v2942
  %v3223 = vpack.c.b16 %v2951, %v2943
  %v3224 = vpack.c.b16 %v2952, %v2944
  %v3225 = vpack.c.b16 %v2953, %v2945
  %v3226 = vpack.c.b16 %v2962, %v2954
  %v3227 = vpack.c.b16 %v2963, %v2955
  %v3228 = vpack.c.b16 %v2964, %v2956
  %v3229 = vpack.c.b16 %v2965, %v2957
  %v3230 = vpack.c.b16 %v2966, %v2958
  %v3231 = vpack.c.b16 %v2967, %v2959
  %v3232 = vpack.c.b16 %v2968, %v2960
  %v3233 = vpack.c.b16 %v2969, %v2961
  %v3234 = vpack.c.b16 %v2978, %v2970
  %v3235 = vpack.c.b16 %v2979, %v2971
  %v3236 = vpack.c.b16 %v2980, %v2972
  %v3237 = vpack.c.b16 %v2981, %v2973
  %v3238 = vpack.c.b16 %v2982, %v2974
  %v3239 = vpack.c.b16 %v2983, %v2975
  %v3240 = vpack.c.b16 %v2984, %v2976
  %v3241 = vpack.c.b16 %v2985, %v2977
  %3498 = vmatprep.subr.bf16.mxu0 %v3043
  %3499 = vmatpush1.bf16.msra.mxu0 %v3042
  %3500 = vmatprep.subr.bf16.mxu0 %v3035
  %3501 = vmatpush1.bf16.msra.mxu0 %v3034
  %3502 = vmatprep.subr.bf16.mxu0 %v3027
  %3503 = vmatpush1.bf16.msra.mxu0 %v3026
  %3504 = vmatprep.subr.bf16.mxu0 %v3019
  %3505 = vmatpush1.bf16.msra.mxu0 %v3018
  %3506 = vmatprep.subr.bf16.mxu0 %v3011
  %3507 = vmatpush1.bf16.msra.mxu0 %v3010
  %3508 = vmatprep.subr.bf16.mxu0 %v3003
  %3509 = vmatpush1.bf16.msra.mxu0 %v3002
  %3510 = vmatprep.subr.bf16.mxu0 %v2995
  %3511 = vmatpush1.bf16.msra.mxu0 %v2994
  %3512 = vmatprep.subr.bf16.mxu0 %v2987
  %3513 = vmatpush1.bf16.msra.mxu0 %v2986
  %3514 = vmatprep.subr.bf16.mxu0 %v3107
  %3515 = vmatpush2.bf16.msra.mxu0 %v3106
  %3516 = vmatprep.subr.bf16.mxu0 %v3099
  %3517 = vmatpush2.bf16.msra.mxu0 %v3098
  %3518 = vmatprep.subr.bf16.mxu0 %v3091
  %3519 = vmatpush2.bf16.msra.mxu0 %v3090
  %3520 = vmatprep.subr.bf16.mxu0 %v3083
  %3521 = vmatpush2.bf16.msra.mxu0 %v3082
  %3522 = vmatprep.subr.bf16.mxu0 %v3075
  %3523 = vmatpush2.bf16.msra.mxu0 %v3074
  %3524 = vmatprep.subr.bf16.mxu0 %v3067
  %3525 = vmatpush2.bf16.msra.mxu0 %v3066
  %3526 = vmatprep.subr.bf16.mxu0 %v3059
  %3527 = vmatpush2.bf16.msra.mxu0 %v3058
  %3528 = vmatprep.subr.bf16.mxu0 %v3051
  %3529 = vmatpush2.bf16.msra.mxu0 %v3050
  %3530 = vmatprep.mubr.bf16.mxu0 %v1590
  %3531 = vmatmul.mubr.bf16.gmra.mxu0 %v1589
  %v3532 = vpop.f32.mrf.mxu0
  %v3533 = vadd.f32 %v2181, %v3532
  %v3534 = vpop.f32.mrf.mxu0
  %v3535 = vadd.f32 %v2185, %v3534
  %v3536 = vpop.f32.mrf.mxu0
  %v3537 = vpop.f32.mrf.mxu0
  %3538 = vdwg.mxu0
  %3539 = vmatprep.subr.bf16.mxu0 %v3171
  %3540 = vmatpush1.bf16.msra.mxu0 %v3170
  %3541 = vmatprep.subr.bf16.mxu0 %v3163
  %3542 = vmatpush1.bf16.msra.mxu0 %v3162
  %3543 = vmatprep.subr.bf16.mxu0 %v3155
  %3544 = vmatpush1.bf16.msra.mxu0 %v3154
  %3545 = vmatprep.subr.bf16.mxu0 %v3147
  %3546 = vmatpush1.bf16.msra.mxu0 %v3146
  %3547 = vmatprep.subr.bf16.mxu0 %v3139
  %3548 = vmatpush1.bf16.msra.mxu0 %v3138
  %3549 = vmatprep.subr.bf16.mxu0 %v3131
  %3550 = vmatpush1.bf16.msra.mxu0 %v3130
  %3551 = vmatprep.subr.bf16.mxu0 %v3123
  %3552 = vmatpush1.bf16.msra.mxu0 %v3122
  %3553 = vmatprep.subr.bf16.mxu0 %v3115
  %3554 = vmatpush1.bf16.msra.mxu0 %v3114
  %3555 = vmatprep.subr.bf16.mxu0 %v3235
  %3556 = vmatpush2.bf16.msra.mxu0 %v3234
  %3557 = vmatprep.subr.bf16.mxu0 %v3227
  %3558 = vmatpush2.bf16.msra.mxu0 %v3226
  %3559 = vmatprep.subr.bf16.mxu0 %v3219
  %3560 = vmatpush2.bf16.msra.mxu0 %v3218
  %3561 = vmatprep.subr.bf16.mxu0 %v3211
  %3562 = vmatpush2.bf16.msra.mxu0 %v3210
  %3563 = vmatprep.subr.bf16.mxu0 %v3203
  %3564 = vmatpush2.bf16.msra.mxu0 %v3202
  %3565 = vmatprep.subr.bf16.mxu0 %v3195
  %3566 = vmatpush2.bf16.msra.mxu0 %v3194
  %3567 = vmatprep.subr.bf16.mxu0 %v3187
  %3568 = vmatpush2.bf16.msra.mxu0 %v3186
  %3569 = vmatprep.subr.bf16.mxu0 %v3179
  %3570 = vmatpush2.bf16.msra.mxu0 %v3178
  %3571 = vmatprep.mubr.bf16.mxu0 0
  %3572 = vmatmul.mubr.bf16.gmra.mxu0 0
  %v3573 = vpop.f32.mrf.mxu0
  %v3574 = vadd.f32 %v3533, %v3573
  %v3575 = vpop.f32.mrf.mxu0
  %v3576 = vadd.f32 %v3535, %v3575
  %v3577 = vpop.f32.mrf.mxu0
  %v3578 = vpop.f32.mrf.mxu0
  %3579 = vdwg.mxu0
  %3580 = vmatprep.subr.bf16.mxu0 %v3045
  %3581 = vmatpush1.bf16.msra.mxu0 %v3044
  %3582 = vmatprep.subr.bf16.mxu0 %v3037
  %3583 = vmatpush1.bf16.msra.mxu0 %v3036
  %3584 = vmatprep.subr.bf16.mxu0 %v3029
  %3585 = vmatpush1.bf16.msra.mxu0 %v3028
  %3586 = vmatprep.subr.bf16.mxu0 %v3021
  %3587 = vmatpush1.bf16.msra.mxu0 %v3020
  %3588 = vmatprep.subr.bf16.mxu0 %v3013
  %3589 = vmatpush1.bf16.msra.mxu0 %v3012
  %3590 = vmatprep.subr.bf16.mxu0 %v3005
  %3591 = vmatpush1.bf16.msra.mxu0 %v3004
  %3592 = vmatprep.subr.bf16.mxu0 %v2997
  %3593 = vmatpush1.bf16.msra.mxu0 %v2996
  %3594 = vmatprep.subr.bf16.mxu0 %v2989
  %3595 = vmatpush1.bf16.msra.mxu0 %v2988
  %3596 = vmatprep.subr.bf16.mxu0 %v3109
  %3597 = vmatpush2.bf16.msra.mxu0 %v3108
  %3598 = vmatprep.subr.bf16.mxu0 %v3101
  %3599 = vmatpush2.bf16.msra.mxu0 %v3100
  %3600 = vmatprep.subr.bf16.mxu0 %v3093
  %3601 = vmatpush2.bf16.msra.mxu0 %v3092
  %3602 = vmatprep.subr.bf16.mxu0 %v3085
  %3603 = vmatpush2.bf16.msra.mxu0 %v3084
  %3604 = vmatprep.subr.bf16.mxu0 %v3077
  %3605 = vmatpush2.bf16.msra.mxu0 %v3076
  %3606 = vmatprep.subr.bf16.mxu0 %v3069
  %3607 = vmatpush2.bf16.msra.mxu0 %v3068
  %3608 = vmatprep.subr.bf16.mxu0 %v3061
  %3609 = vmatpush2.bf16.msra.mxu0 %v3060
  %3610 = vmatprep.subr.bf16.mxu0 %v3053
  %3611 = vmatpush2.bf16.msra.mxu0 %v3052
  %3612 = vmatprep.mubr.bf16.mxu0 %v1590
  %3613 = vmatmul.mubr.bf16.gmra.mxu0 %v1589
  %v3614 = vpop.f32.mrf.mxu0
  %v3615 = vadd.f32 %v2189, %v3614
  %v3616 = vpop.f32.mrf.mxu0
  %v3617 = vadd.f32 %v2193, %v3616
  %v3618 = vpop.f32.mrf.mxu0
  %v3619 = vpop.f32.mrf.mxu0
  %3620 = vdwg.mxu0
  %3621 = vmatprep.subr.bf16.mxu0 %v3173
  %3622 = vmatpush1.bf16.msra.mxu0 %v3172
  %3623 = vmatprep.subr.bf16.mxu0 %v3165
  %3624 = vmatpush1.bf16.msra.mxu0 %v3164
  %3625 = vmatprep.subr.bf16.mxu0 %v3157
  %3626 = vmatpush1.bf16.msra.mxu0 %v3156
  %3627 = vmatprep.subr.bf16.mxu0 %v3149
  %3628 = vmatpush1.bf16.msra.mxu0 %v3148
  %3629 = vmatprep.subr.bf16.mxu0 %v3141
  %3630 = vmatpush1.bf16.msra.mxu0 %v3140
  %3631 = vmatprep.subr.bf16.mxu0 %v3133
  %3632 = vmatpush1.bf16.msra.mxu0 %v3132
  %3633 = vmatprep.subr.bf16.mxu0 %v3125
  %3634 = vmatpush1.bf16.msra.mxu0 %v3124
  %3635 = vmatprep.subr.bf16.mxu0 %v3117
  %3636 = vmatpush1.bf16.msra.mxu0 %v3116
  %3637 = vmatprep.subr.bf16.mxu0 %v3237
  %3638 = vmatpush2.bf16.msra.mxu0 %v3236
  %3639 = vmatprep.subr.bf16.mxu0 %v3229
  %3640 = vmatpush2.bf16.msra.mxu0 %v3228
  %3641 = vmatprep.subr.bf16.mxu0 %v3221
  %3642 = vmatpush2.bf16.msra.mxu0 %v3220
  %3643 = vmatprep.subr.bf16.mxu0 %v3213
  %3644 = vmatpush2.bf16.msra.mxu0 %v3212
  %3645 = vmatprep.subr.bf16.mxu0 %v3205
  %3646 = vmatpush2.bf16.msra.mxu0 %v3204
  %3647 = vmatprep.subr.bf16.mxu0 %v3197
  %3648 = vmatpush2.bf16.msra.mxu0 %v3196
  %3649 = vmatprep.subr.bf16.mxu0 %v3189
  %3650 = vmatpush2.bf16.msra.mxu0 %v3188
  %3651 = vmatprep.subr.bf16.mxu0 %v3181
  %3652 = vmatpush2.bf16.msra.mxu0 %v3180
  %3653 = vmatprep.mubr.bf16.mxu0 0
  %3654 = vmatmul.mubr.bf16.gmra.mxu0 0
  %v3655 = vpop.f32.mrf.mxu0
  %v3656 = vadd.f32 %v3615, %v3655
  %v3657 = vpop.f32.mrf.mxu0
  %v3658 = vadd.f32 %v3617, %v3657
  %v3659 = vpop.f32.mrf.mxu0
  %v3660 = vpop.f32.mrf.mxu0
  %3661 = vdwg.mxu0
  %3662 = vmatprep.subr.bf16.mxu0 %v3047
  %3663 = vmatpush1.bf16.msra.mxu0 %v3046
  %3664 = vmatprep.subr.bf16.mxu0 %v3039
  %3665 = vmatpush1.bf16.msra.mxu0 %v3038
  %3666 = vmatprep.subr.bf16.mxu0 %v3031
  %3667 = vmatpush1.bf16.msra.mxu0 %v3030
  %3668 = vmatprep.subr.bf16.mxu0 %v3023
  %3669 = vmatpush1.bf16.msra.mxu0 %v3022
  %3670 = vmatprep.subr.bf16.mxu0 %v3015
  %3671 = vmatpush1.bf16.msra.mxu0 %v3014
  %3672 = vmatprep.subr.bf16.mxu0 %v3007
  %3673 = vmatpush1.bf16.msra.mxu0 %v3006
  %3674 = vmatprep.subr.bf16.mxu0 %v2999
  %3675 = vmatpush1.bf16.msra.mxu0 %v2998
  %3676 = vmatprep.subr.bf16.mxu0 %v2991
  %3677 = vmatpush1.bf16.msra.mxu0 %v2990
  %3678 = vmatprep.subr.bf16.mxu0 %v3111
  %3679 = vmatpush2.bf16.msra.mxu0 %v3110
  %3680 = vmatprep.subr.bf16.mxu0 %v3103
  %3681 = vmatpush2.bf16.msra.mxu0 %v3102
  %3682 = vmatprep.subr.bf16.mxu0 %v3095
  %3683 = vmatpush2.bf16.msra.mxu0 %v3094
  %3684 = vmatprep.subr.bf16.mxu0 %v3087
  %3685 = vmatpush2.bf16.msra.mxu0 %v3086
  %3686 = vmatprep.subr.bf16.mxu0 %v3079
  %3687 = vmatpush2.bf16.msra.mxu0 %v3078
  %3688 = vmatprep.subr.bf16.mxu0 %v3071
  %3689 = vmatpush2.bf16.msra.mxu0 %v3070
  %3690 = vmatprep.subr.bf16.mxu0 %v3063
  %3691 = vmatpush2.bf16.msra.mxu0 %v3062
  %3692 = vmatprep.subr.bf16.mxu0 %v3055
  %3693 = vmatpush2.bf16.msra.mxu0 %v3054
  %3694 = vmatprep.mubr.bf16.mxu0 %v1590
  %3695 = vmatmul.mubr.bf16.gmra.mxu0 %v1589
  %v3696 = vpop.f32.mrf.mxu0
  %v3697 = vadd.f32 %v2197, %v3696
  %v3698 = vpop.f32.mrf.mxu0
  %v3699 = vadd.f32 %v2201, %v3698
  %v3700 = vpop.f32.mrf.mxu0
  %v3701 = vpop.f32.mrf.mxu0
  %3702 = vdwg.mxu0
  %3703 = vmatprep.subr.bf16.mxu0 %v3175
  %3704 = vmatpush1.bf16.msra.mxu0 %v3174
  %3705 = vmatprep.subr.bf16.mxu0 %v3167
  %3706 = vmatpush1.bf16.msra.mxu0 %v3166
  %3707 = vmatprep.subr.bf16.mxu0 %v3159
  %3708 = vmatpush1.bf16.msra.mxu0 %v3158
  %3709 = vmatprep.subr.bf16.mxu0 %v3151
  %3710 = vmatpush1.bf16.msra.mxu0 %v3150
  %3711 = vmatprep.subr.bf16.mxu0 %v3143
  %3712 = vmatpush1.bf16.msra.mxu0 %v3142
  %3713 = vmatprep.subr.bf16.mxu0 %v3135
  %3714 = vmatpush1.bf16.msra.mxu0 %v3134
  %3715 = vmatprep.subr.bf16.mxu0 %v3127
  %3716 = vmatpush1.bf16.msra.mxu0 %v3126
  %3717 = vmatprep.subr.bf16.mxu0 %v3119
  %3718 = vmatpush1.bf16.msra.mxu0 %v3118
  %3719 = vmatprep.subr.bf16.mxu0 %v3239
  %3720 = vmatpush2.bf16.msra.mxu0 %v3238
  %3721 = vmatprep.subr.bf16.mxu0 %v3231
  %3722 = vmatpush2.bf16.msra.mxu0 %v3230
  %3723 = vmatprep.subr.bf16.mxu0 %v3223
  %3724 = vmatpush2.bf16.msra.mxu0 %v3222
  %3725 = vmatprep.subr.bf16.mxu0 %v3215
  %3726 = vmatpush2.bf16.msra.mxu0 %v3214
  %3727 = vmatprep.subr.bf16.mxu0 %v3207
  %3728 = vmatpush2.bf16.msra.mxu0 %v3206
  %3729 = vmatprep.subr.bf16.mxu0 %v3199
  %3730 = vmatpush2.bf16.msra.mxu0 %v3198
  %3731 = vmatprep.subr.bf16.mxu0 %v3191
  %3732 = vmatpush2.bf16.msra.mxu0 %v3190
  %3733 = vmatprep.subr.bf16.mxu0 %v3183
  %3734 = vmatpush2.bf16.msra.mxu0 %v3182
  %3735 = vmatprep.mubr.bf16.mxu0 0
  %3736 = vmatmul.mubr.bf16.gmra.mxu0 0
  %v3737 = vpop.f32.mrf.mxu0
  %v3738 = vadd.f32 %v3697, %v3737
  %v3739 = vpop.f32.mrf.mxu0
  %v3740 = vadd.f32 %v3699, %v3739
  %v3741 = vpop.f32.mrf.mxu0
  %v3742 = vpop.f32.mrf.mxu0
  %3743 = vdwg.mxu0
  %3744 = vmatprep.subr.bf16.mxu0 %v3049
  %3745 = vmatpush1.bf16.msra.mxu0 %v3048
  %3746 = vmatprep.subr.bf16.mxu0 %v3041
  %3747 = vmatpush1.bf16.msra.mxu0 %v3040
  %3748 = vmatprep.subr.bf16.mxu0 %v3033
  %3749 = vmatpush1.bf16.msra.mxu0 %v3032
  %3750 = vmatprep.subr.bf16.mxu0 %v3025
  %3751 = vmatpush1.bf16.msra.mxu0 %v3024
  %3752 = vmatprep.subr.bf16.mxu0 %v3017
  %3753 = vmatpush1.bf16.msra.mxu0 %v3016
  %3754 = vmatprep.subr.bf16.mxu0 %v3009
  %3755 = vmatpush1.bf16.msra.mxu0 %v3008
  %3756 = vmatprep.subr.bf16.mxu0 %v3001
  %3757 = vmatpush1.bf16.msra.mxu0 %v3000
  %3758 = vmatprep.subr.bf16.mxu0 %v2993
  %3759 = vmatpush1.bf16.msra.mxu0 %v2992
  %3760 = vmatprep.subr.bf16.mxu0 %v3113
  %3761 = vmatpush2.bf16.msra.mxu0 %v3112
  %3762 = vmatprep.subr.bf16.mxu0 %v3105
  %3763 = vmatpush2.bf16.msra.mxu0 %v3104
  %3764 = vmatprep.subr.bf16.mxu0 %v3097
  %3765 = vmatpush2.bf16.msra.mxu0 %v3096
  %3766 = vmatprep.subr.bf16.mxu0 %v3089
  %3767 = vmatpush2.bf16.msra.mxu0 %v3088
  %3768 = vmatprep.subr.bf16.mxu0 %v3081
  %3769 = vmatpush2.bf16.msra.mxu0 %v3080
  %3770 = vmatprep.subr.bf16.mxu0 %v3073
  %3771 = vmatpush2.bf16.msra.mxu0 %v3072
  %3772 = vmatprep.subr.bf16.mxu0 %v3065
  %3773 = vmatpush2.bf16.msra.mxu0 %v3064
  %3774 = vmatprep.subr.bf16.mxu0 %v3057
  %3775 = vmatpush2.bf16.msra.mxu0 %v3056
  %3776 = vmatprep.mubr.bf16.mxu0 %v1590
  %3777 = vmatmul.mubr.bf16.gmra.mxu0 %v1589
  %v3778 = vpop.f32.mrf.mxu0
  %v3779 = vadd.f32 %v2205, %v3778
  %v3780 = vpop.f32.mrf.mxu0
  %v3781 = vadd.f32 %v2209, %v3780
  %v3782 = vpop.f32.mrf.mxu0
  %v3783 = vpop.f32.mrf.mxu0
  %3784 = vdwg.mxu0
  %3785 = vmatprep.subr.bf16.mxu0 %v3177
  %3786 = vmatpush1.bf16.msra.mxu0 %v3176
  %3787 = vmatprep.subr.bf16.mxu0 %v3169
  %3788 = vmatpush1.bf16.msra.mxu0 %v3168
  %3789 = vmatprep.subr.bf16.mxu0 %v3161
  %3790 = vmatpush1.bf16.msra.mxu0 %v3160
  %3791 = vmatprep.subr.bf16.mxu0 %v3153
  %3792 = vmatpush1.bf16.msra.mxu0 %v3152
  %3793 = vmatprep.subr.bf16.mxu0 %v3145
  %3794 = vmatpush1.bf16.msra.mxu0 %v3144
  %3795 = vmatprep.subr.bf16.mxu0 %v3137
  %3796 = vmatpush1.bf16.msra.mxu0 %v3136
  %3797 = vmatprep.subr.bf16.mxu0 %v3129
  %3798 = vmatpush1.bf16.msra.mxu0 %v3128
  %3799 = vmatprep.subr.bf16.mxu0 %v3121
  %3800 = vmatpush1.bf16.msra.mxu0 %v3120
  %3801 = vmatprep.subr.bf16.mxu0 %v3241
  %3802 = vmatpush2.bf16.msra.mxu0 %v3240
  %3803 = vmatprep.subr.bf16.mxu0 %v3233
  %3804 = vmatpush2.bf16.msra.mxu0 %v3232
  %3805 = vmatprep.subr.bf16.mxu0 %v3225
  %3806 = vmatpush2.bf16.msra.mxu0 %v3224
  %3807 = vmatprep.subr.bf16.mxu0 %v3217
  %3808 = vmatpush2.bf16.msra.mxu0 %v3216
  %3809 = vmatprep.subr.bf16.mxu0 %v3209
  %3810 = vmatpush2.bf16.msra.mxu0 %v3208
  %3811 = vmatprep.subr.bf16.mxu0 %v3201
  %3812 = vmatpush2.bf16.msra.mxu0 %v3200
  %3813 = vmatprep.subr.bf16.mxu0 %v3193
  %3814 = vmatpush2.bf16.msra.mxu0 %v3192
  %3815 = vmatprep.subr.bf16.mxu0 %v3185
  %3816 = vmatpush2.bf16.msra.mxu0 %v3184
  %3817 = vmatprep.mubr.bf16.mxu0 0
  %3818 = vmatmul.mubr.bf16.gmra.mxu0 0
  %v3819 = vpop.f32.mrf.mxu0
  %v3820 = vadd.f32 %v3779, %v3819
  %v3821 = vpop.f32.mrf.mxu0
  %v3822 = vadd.f32 %v3781, %v3821
  %v3823 = vpop.f32.mrf.mxu0
  %v3824 = vpop.f32.mrf.mxu0
  %3825 = vdwg.mxu0
  %v3826 = vmul.f32 %v1669, 0.5
  %v3827 = vmul.f32 %v1671, 0.5
  %v3828 = vtanh.pop %v3826
  %v3829 = vtanh.pop %v3827
  %v3830 = vadd.f32 %v3828, 1.0
  %v3831 = vadd.f32 %v3829, 1.0
  %v3832 = vmul.f32 %v3830, 0.5
  %v3833 = vmul.f32 %v3831, 0.5
  %v3834 = vmul.f32 %v1751, 0.5
  %v3835 = vmul.f32 %v1753, 0.5
  %v3836 = vtanh.pop %v3834
  %v3837 = vtanh.pop %v3835
  %v3838 = vadd.f32 %v3836, 1.0
  %v3839 = vadd.f32 %v3837, 1.0
  %v3840 = vmul.f32 %v3838, 0.5
  %v3841 = vmul.f32 %v3839, 0.5
  %v3842 = vtanh.pop %v1833
  %v3843 = vtanh.pop %v1835
  %v3844 = vmul.f32 %v1915, 0.5
  %v3845 = vmul.f32 %v1917, 0.5
  %v3846 = vtanh.pop %v3844
  %v3847 = vtanh.pop %v3845
  %v3848 = vadd.f32 %v3846, 1.0
  %v3849 = vadd.f32 %v3847, 1.0
  %v3850 = vmul.f32 %v3848, 0.5
  %v3851 = vmul.f32 %v3849, 0.5
  %v3852 = vmul.f32 %v3840, %v1583
  %v3853 = vmul.f32 %v3841, %v1584
  %v3854 = vmul.f32 %v3832, %v3842
  %v3855 = vmul.f32 %v3833, %v3843
  %v3856 = vadd.f32 %v3852, %v3854
  %v3857 = vadd.f32 %v3853, %v3855
  %v3858 = vtanh.pop %v3856
  %v3859 = vtanh.pop %v3857
  %v3860 = vmul.f32 %v3850, %v3858
  %v3861 = vmul.f32 %v3851, %v3859
  %v3862 = vmul.f32 %v3574, 0.5
  %v3863 = vmul.f32 %v3576, 0.5
  %v3864 = vtanh.pop %v3862
  %v3865 = vtanh.pop %v3863
  %v3866 = vadd.f32 %v3864, 1.0
  %v3867 = vadd.f32 %v3865, 1.0
  %v3868 = vmul.f32 %v3866, 0.5
  %v3869 = vmul.f32 %v3867, 0.5
  %v3870 = vmul.f32 %v3656, 0.5
  %v3871 = vmul.f32 %v3658, 0.5
  %v3872 = vtanh.pop %v3870
  %v3873 = vtanh.pop %v3871
  %v3874 = vadd.f32 %v3872, 1.0
  %v3875 = vadd.f32 %v3873, 1.0
  %v3876 = vmul.f32 %v3874, 0.5
  %v3877 = vmul.f32 %v3875, 0.5
  %v3878 = vtanh.pop %v3738
  %v3879 = vtanh.pop %v3740
  %v3880 = vmul.f32 %v3820, 0.5
  %v3881 = vmul.f32 %v3822, 0.5
  %v3882 = vtanh.pop %v3880
  %v3883 = vtanh.pop %v3881
  %v3884 = vadd.f32 %v3882, 1.0
  %v3885 = vadd.f32 %v3883, 1.0
  %v3886 = vmul.f32 %v3884, 0.5
  %v3887 = vmul.f32 %v3885, 0.5
  %v3888 = vmul.f32 %v3876, 0.0
  %v3889 = vmul.f32 %v3877, 0.0
  %v3890 = vmul.f32 %v3868, %v3878
  %v3891 = vmul.f32 %v3869, %v3879
  %v3892 = vadd.f32 %v3888, %v3890
  %v3893 = vadd.f32 %v3889, %v3891
  %v3894 = vtanh.pop %v3892
  %v3895 = vtanh.pop %v3893
  %v3896 = vmul.f32 %v3886, %v3894
  %v3897 = vmul.f32 %v3887, %v3895
  %v3898 = vpack.c.bf16 %v3860, %v3860
  %v3899 = vpack.c.bf16 %v3861, %v3861
  %v3900 = vpack.c.bf16 %v3896, %v3896
  %v3901 = vpack.c.bf16 %v3897, %v3897
  %s3902 = scalar_lea.vmem %s0, 2
  %v3903 = vld [vmem:[%s3902] sm:$0x1]
  %3904 = vmatprep.subr.bf16.mxu0 %v898
  %3905 = vmatpush1.bf16.msra.mxu0 %v897
  %3906 = vmatprep.subr.bf16.mxu0 %v890
  %3907 = vmatpush1.bf16.msra.mxu0 %v889
  %3908 = vmatprep.subr.bf16.mxu0 %v882
  %3909 = vmatpush1.bf16.msra.mxu0 %v881
  %3910 = vmatprep.subr.bf16.mxu0 %v874
  %3911 = vmatpush1.bf16.msra.mxu0 %v873
  %3912 = vmatprep.subr.bf16.mxu0 %v866
  %3913 = vmatpush1.bf16.msra.mxu0 %v865
  %3914 = vmatprep.subr.bf16.mxu0 %v858
  %3915 = vmatpush1.bf16.msra.mxu0 %v857
  %3916 = vmatprep.subr.bf16.mxu0 %v850
  %3917 = vmatpush1.bf16.msra.mxu0 %v849
  %3918 = vmatprep.subr.bf16.mxu0 %v842
  %3919 = vmatpush1.bf16.msra.mxu0 %v841
  %3920 = vmatprep.subr.bf16.mxu0 %v962
  %3921 = vmatpush2.bf16.msra.mxu0 %v961
  %3922 = vmatprep.subr.bf16.mxu0 %v954
  %3923 = vmatpush2.bf16.msra.mxu0 %v953
  %3924 = vmatprep.subr.bf16.mxu0 %v946
  %3925 = vmatpush2.bf16.msra.mxu0 %v945
  %3926 = vmatprep.subr.bf16.mxu0 %v938
  %3927 = vmatpush2.bf16.msra.mxu0 %v937
  %3928 = vmatprep.subr.bf16.mxu0 %v930
  %3929 = vmatpush2.bf16.msra.mxu0 %v929
  %3930 = vmatprep.subr.bf16.mxu0 %v922
  %3931 = vmatpush2.bf16.msra.mxu0 %v921
  %3932 = vmatprep.subr.bf16.mxu0 %v914
  %3933 = vmatpush2.bf16.msra.mxu0 %v913
  %3934 = vmatprep.subr.bf16.mxu0 %v906
  %3935 = vmatpush2.bf16.msra.mxu0 %v905
  %3936 = vmatprep.mubr.bf16.mxu0 %v3898
  %3937 = vmatmul.mubr.bf16.gmra.mxu0 %v3903
  %v3938 = vpop.f32.mrf.mxu0
  %v3939 = vadd.f32 %v228, %v3938
  %v3940 = vpop.f32.mrf.mxu0
  %v3941 = vadd.f32 %v232, %v3940
  %v3942 = vpop.f32.mrf.mxu0
  %v3943 = vpop.f32.mrf.mxu0
  %3944 = vdwg.mxu0
  %3945 = vmatprep.subr.bf16.mxu0 %v1026
  %3946 = vmatpush1.bf16.msra.mxu0 %v1025
  %3947 = vmatprep.subr.bf16.mxu0 %v1018
  %3948 = vmatpush1.bf16.msra.mxu0 %v1017
  %3949 = vmatprep.subr.bf16.mxu0 %v1010
  %3950 = vmatpush1.bf16.msra.mxu0 %v1009
  %3951 = vmatprep.subr.bf16.mxu0 %v1002
  %3952 = vmatpush1.bf16.msra.mxu0 %v1001
  %3953 = vmatprep.subr.bf16.mxu0 %v994
  %3954 = vmatpush1.bf16.msra.mxu0 %v993
  %3955 = vmatprep.subr.bf16.mxu0 %v986
  %3956 = vmatpush1.bf16.msra.mxu0 %v985
  %3957 = vmatprep.subr.bf16.mxu0 %v978
  %3958 = vmatpush1.bf16.msra.mxu0 %v977
  %3959 = vmatprep.subr.bf16.mxu0 %v970
  %3960 = vmatpush1.bf16.msra.mxu0 %v969
  %3961 = vmatprep.subr.bf16.mxu0 0
  %3962 = vmatpush2.bf16.msra.mxu0 0
  %3963 = vmatprep.subr.bf16.mxu0 0
  %3964 = vmatpush2.bf16.msra.mxu0 0
  %3965 = vmatprep.subr.bf16.mxu0 0
  %3966 = vmatpush2.bf16.msra.mxu0 0
  %3967 = vmatprep.subr.bf16.mxu0 0
  %3968 = vmatpush2.bf16.msra.mxu0 0
  %3969 = vmatprep.subr.bf16.mxu0 0
  %3970 = vmatpush2.bf16.msra.mxu0 0
  %3971 = vmatprep.subr.bf16.mxu0 0
  %3972 = vmatpush2.bf16.msra.mxu0 0
  %3973 = vmatprep.subr.bf16.mxu0 0
  %3974 = vmatpush2.bf16.msra.mxu0 0
  %3975 = vmatprep.subr.bf16.mxu0 0
  %3976 = vmatpush2.bf16.msra.mxu0 0
  %3977 = vmatprep.mubr.bf16.mxu0 0
  %3978 = vmatmul.mubr.bf16.gmra.mxu0 %v3899
  %v3979 = vpop.f32.mrf.mxu0
  %v3980 = vadd.f32 %v3939, %v3979
  %v3981 = vpop.f32.mrf.mxu0
  %v3982 = vadd.f32 %v3941, %v3981
  %v3983 = vpop.f32.mrf.mxu0
  %v3984 = vpop.f32.mrf.mxu0
  %3985 = vdwg.mxu0
  %3986 = vmatprep.subr.bf16.mxu0 %v900
  %3987 = vmatpush1.bf16.msra.mxu0 %v899
  %3988 = vmatprep.subr.bf16.mxu0 %v892
  %3989 = vmatpush1.bf16.msra.mxu0 %v891
  %3990 = vmatprep.subr.bf16.mxu0 %v884
  %3991 = vmatpush1.bf16.msra.mxu0 %v883
  %3992 = vmatprep.subr.bf16.mxu0 %v876
  %3993 = vmatpush1.bf16.msra.mxu0 %v875
  %3994 = vmatprep.subr.bf16.mxu0 %v868
  %3995 = vmatpush1.bf16.msra.mxu0 %v867
  %3996 = vmatprep.subr.bf16.mxu0 %v860
  %3997 = vmatpush1.bf16.msra.mxu0 %v859
  %3998 = vmatprep.subr.bf16.mxu0 %v852
  %3999 = vmatpush1.bf16.msra.mxu0 %v851
  %4000 = vmatprep.subr.bf16.mxu0 %v844
  %4001 = vmatpush1.bf16.msra.mxu0 %v843
  %4002 = vmatprep.subr.bf16.mxu0 %v964
  %4003 = vmatpush2.bf16.msra.mxu0 %v963
  %4004 = vmatprep.subr.bf16.mxu0 %v956
  %4005 = vmatpush2.bf16.msra.mxu0 %v955
  %4006 = vmatprep.subr.bf16.mxu0 %v948
  %4007 = vmatpush2.bf16.msra.mxu0 %v947
  %4008 = vmatprep.subr.bf16.mxu0 %v940
  %4009 = vmatpush2.bf16.msra.mxu0 %v939
  %4010 = vmatprep.subr.bf16.mxu0 %v932
  %4011 = vmatpush2.bf16.msra.mxu0 %v931
  %4012 = vmatprep.subr.bf16.mxu0 %v924
  %4013 = vmatpush2.bf16.msra.mxu0 %v923
  %4014 = vmatprep.subr.bf16.mxu0 %v916
  %4015 = vmatpush2.bf16.msra.mxu0 %v915
  %4016 = vmatprep.subr.bf16.mxu0 %v908
  %4017 = vmatpush2.bf16.msra.mxu0 %v907
  %4018 = vmatprep.mubr.bf16.mxu0 %v3898
  %4019 = vmatmul.mubr.bf16.gmra.mxu0 %v3903
  %v4020 = vpop.f32.mrf.mxu0
  %v4021 = vadd.f32 %v236, %v4020
  %v4022 = vpop.f32.mrf.mxu0
  %v4023 = vadd.f32 %v240, %v4022
  %v4024 = vpop.f32.mrf.mxu0
  %v4025 = vpop.f32.mrf.mxu0
  %4026 = vdwg.mxu0
  %4027 = vmatprep.subr.bf16.mxu0 %v1028
  %4028 = vmatpush1.bf16.msra.mxu0 %v1027
  %4029 = vmatprep.subr.bf16.mxu0 %v1020
  %4030 = vmatpush1.bf16.msra.mxu0 %v1019
  %4031 = vmatprep.subr.bf16.mxu0 %v1012
  %4032 = vmatpush1.bf16.msra.mxu0 %v1011
  %4033 = vmatprep.subr.bf16.mxu0 %v1004
  %4034 = vmatpush1.bf16.msra.mxu0 %v1003
  %4035 = vmatprep.subr.bf16.mxu0 %v996
  %4036 = vmatpush1.bf16.msra.mxu0 %v995
  %4037 = vmatprep.subr.bf16.mxu0 %v988
  %4038 = vmatpush1.bf16.msra.mxu0 %v987
  %4039 = vmatprep.subr.bf16.mxu0 %v980
  %4040 = vmatpush1.bf16.msra.mxu0 %v979
  %4041 = vmatprep.subr.bf16.mxu0 %v972
  %4042 = vmatpush1.bf16.msra.mxu0 %v971
  %4043 = vmatprep.subr.bf16.mxu0 0
  %4044 = vmatpush2.bf16.msra.mxu0 0
  %4045 = vmatprep.subr.bf16.mxu0 0
  %4046 = vmatpush2.bf16.msra.mxu0 0
  %4047 = vmatprep.subr.bf16.mxu0 0
  %4048 = vmatpush2.bf16.msra.mxu0 0
  %4049 = vmatprep.subr.bf16.mxu0 0
  %4050 = vmatpush2.bf16.msra.mxu0 0
  %4051 = vmatprep.subr.bf16.mxu0 0
  %4052 = vmatpush2.bf16.msra.mxu0 0
  %4053 = vmatprep.subr.bf16.mxu0 0
  %4054 = vmatpush2.bf16.msra.mxu0 0
  %4055 = vmatprep.subr.bf16.mxu0 0
  %4056 = vmatpush2.bf16.msra.mxu0 0
  %4057 = vmatprep.subr.bf16.mxu0 0
  %4058 = vmatpush2.bf16.msra.mxu0 0
  %4059 = vmatprep.mubr.bf16.mxu0 0
  %4060 = vmatmul.mubr.bf16.gmra.mxu0 %v3899
  %v4061 = vpop.f32.mrf.mxu0
  %v4062 = vadd.f32 %v4021, %v4061
  %v4063 = vpop.f32.mrf.mxu0
  %v4064 = vadd.f32 %v4023, %v4063
  %v4065 = vpop.f32.mrf.mxu0
  %v4066 = vpop.f32.mrf.mxu0
  %4067 = vdwg.mxu0
  %4068 = vmatprep.subr.bf16.mxu0 %v902
  %4069 = vmatpush1.bf16.msra.mxu0 %v901
  %4070 = vmatprep.subr.bf16.mxu0 %v894
  %4071 = vmatpush1.bf16.msra.mxu0 %v893
  %4072 = vmatprep.subr.bf16.mxu0 %v886
  %4073 = vmatpush1.bf16.msra.mxu0 %v885
  %4074 = vmatprep.subr.bf16.mxu0 %v878
  %4075 = vmatpush1.bf16.msra.mxu0 %v877
  %4076 = vmatprep.subr.bf16.mxu0 %v870
  %4077 = vmatpush1.bf16.msra.mxu0 %v869
  %4078 = vmatprep.subr.bf16.mxu0 %v862
  %4079 = vmatpush1.bf16.msra.mxu0 %v861
  %4080 = vmatprep.subr.bf16.mxu0 %v854
  %4081 = vmatpush1.bf16.msra.mxu0 %v853
  %4082 = vmatprep.subr.bf16.mxu0 %v846
  %4083 = vmatpush1.bf16.msra.mxu0 %v845
  %4084 = vmatprep.subr.bf16.mxu0 %v966
  %4085 = vmatpush2.bf16.msra.mxu0 %v965
  %4086 = vmatprep.subr.bf16.mxu0 %v958
  %4087 = vmatpush2.bf16.msra.mxu0 %v957
  %4088 = vmatprep.subr.bf16.mxu0 %v950
  %4089 = vmatpush2.bf16.msra.mxu0 %v949
  %4090 = vmatprep.subr.bf16.mxu0 %v942
  %4091 = vmatpush2.bf16.msra.mxu0 %v941
  %4092 = vmatprep.subr.bf16.mxu0 %v934
  %4093 = vmatpush2.bf16.msra.mxu0 %v933
  %4094 = vmatprep.subr.bf16.mxu0 %v926
  %4095 = vmatpush2.bf16.msra.mxu0 %v925
  %4096 = vmatprep.subr.bf16.mxu0 %v918
  %4097 = vmatpush2.bf16.msra.mxu0 %v917
  %4098 = vmatprep.subr.bf16.mxu0 %v910
  %4099 = vmatpush2.bf16.msra.mxu0 %v909
  %4100 = vmatprep.mubr.bf16.mxu0 %v3898
  %4101 = vmatmul.mubr.bf16.gmra.mxu0 %v3903
  %v4102 = vpop.f32.mrf.mxu0
  %v4103 = vadd.f32 %v244, %v4102
  %v4104 = vpop.f32.mrf.mxu0
  %v4105 = vadd.f32 %v248, %v4104
  %v4106 = vpop.f32.mrf.mxu0
  %v4107 = vpop.f32.mrf.mxu0
  %4108 = vdwg.mxu0
  %4109 = vmatprep.subr.bf16.mxu0 %v1030
  %4110 = vmatpush1.bf16.msra.mxu0 %v1029
  %4111 = vmatprep.subr.bf16.mxu0 %v1022
  %4112 = vmatpush1.bf16.msra.mxu0 %v1021
  %4113 = vmatprep.subr.bf16.mxu0 %v1014
  %4114 = vmatpush1.bf16.msra.mxu0 %v1013
  %4115 = vmatprep.subr.bf16.mxu0 %v1006
  %4116 = vmatpush1.bf16.msra.mxu0 %v1005
  %4117 = vmatprep.subr.bf16.mxu0 %v998
  %4118 = vmatpush1.bf16.msra.mxu0 %v997
  %4119 = vmatprep.subr.bf16.mxu0 %v990
  %4120 = vmatpush1.bf16.msra.mxu0 %v989
  %4121 = vmatprep.subr.bf16.mxu0 %v982
  %4122 = vmatpush1.bf16.msra.mxu0 %v981
  %4123 = vmatprep.subr.bf16.mxu0 %v974
  %4124 = vmatpush1.bf16.msra.mxu0 %v973
  %4125 = vmatprep.subr.bf16.mxu0 0
  %4126 = vmatpush2.bf16.msra.mxu0 0
  %4127 = vmatprep.subr.bf16.mxu0 0
  %4128 = vmatpush2.bf16.msra.mxu0 0
  %4129 = vmatprep.subr.bf16.mxu0 0
  %4130 = vmatpush2.bf16.msra.mxu0 0
  %4131 = vmatprep.subr.bf16.mxu0 0
  %4132 = vmatpush2.bf16.msra.mxu0 0
  %4133 = vmatprep.subr.bf16.mxu0 0
  %4134 = vmatpush2.bf16.msra.mxu0 0
  %4135 = vmatprep.subr.bf16.mxu0 0
  %4136 = vmatpush2.bf16.msra.mxu0 0
  %4137 = vmatprep.subr.bf16.mxu0 0
  %4138 = vmatpush2.bf16.msra.mxu0 0
  %4139 = vmatprep.subr.bf16.mxu0 0
  %4140 = vmatpush2.bf16.msra.mxu0 0
  %4141 = vmatprep.mubr.bf16.mxu0 0
  %4142 = vmatmul.mubr.bf16.gmra.mxu0 %v3899
  %v4143 = vpop.f32.mrf.mxu0
  %v4144 = vadd.f32 %v4103, %v4143
  %v4145 = vpop.f32.mrf.mxu0
  %v4146 = vadd.f32 %v4105, %v4145
  %v4147 = vpop.f32.mrf.mxu0
  %v4148 = vpop.f32.mrf.mxu0
  %4149 = vdwg.mxu0
  %4150 = vmatprep.subr.bf16.mxu0 %v904
  %4151 = vmatpush1.bf16.msra.mxu0 %v903
  %4152 = vmatprep.subr.bf16.mxu0 %v896
  %4153 = vmatpush1.bf16.msra.mxu0 %v895
  %4154 = vmatprep.subr.bf16.mxu0 %v888
  %4155 = vmatpush1.bf16.msra.mxu0 %v887
  %4156 = vmatprep.subr.bf16.mxu0 %v880
  %4157 = vmatpush1.bf16.msra.mxu0 %v879
  %4158 = vmatprep.subr.bf16.mxu0 %v872
  %4159 = vmatpush1.bf16.msra.mxu0 %v871
  %4160 = vmatprep.subr.bf16.mxu0 %v864
  %4161 = vmatpush1.bf16.msra.mxu0 %v863
  %4162 = vmatprep.subr.bf16.mxu0 %v856
  %4163 = vmatpush1.bf16.msra.mxu0 %v855
  %4164 = vmatprep.subr.bf16.mxu0 %v848
  %4165 = vmatpush1.bf16.msra.mxu0 %v847
  %4166 = vmatprep.subr.bf16.mxu0 %v968
  %4167 = vmatpush2.bf16.msra.mxu0 %v967
  %4168 = vmatprep.subr.bf16.mxu0 %v960
  %4169 = vmatpush2.bf16.msra.mxu0 %v959
  %4170 = vmatprep.subr.bf16.mxu0 %v952
  %4171 = vmatpush2.bf16.msra.mxu0 %v951
  %4172 = vmatprep.subr.bf16.mxu0 %v944
  %4173 = vmatpush2.bf16.msra.mxu0 %v943
  %4174 = vmatprep.subr.bf16.mxu0 %v936
  %4175 = vmatpush2.bf16.msra.mxu0 %v935
  %4176 = vmatprep.subr.bf16.mxu0 %v928
  %4177 = vmatpush2.bf16.msra.mxu0 %v927
  %4178 = vmatprep.subr.bf16.mxu0 %v920
  %4179 = vmatpush2.bf16.msra.mxu0 %v919
  %4180 = vmatprep.subr.bf16.mxu0 %v912
  %4181 = vmatpush2.bf16.msra.mxu0 %v911
  %4182 = vmatprep.mubr.bf16.mxu0 %v3898
  %4183 = vmatmul.mubr.bf16.gmra.mxu0 %v3903
  %v4184 = vpop.f32.mrf.mxu0
  %v4185 = vadd.f32 %v252, %v4184
  %v4186 = vpop.f32.mrf.mxu0
  %v4187 = vadd.f32 %v256, %v4186
  %v4188 = vpop.f32.mrf.mxu0
  %v4189 = vpop.f32.mrf.mxu0
  %4190 = vdwg.mxu0
  %4191 = vmatprep.subr.bf16.mxu0 %v1032
  %4192 = vmatpush1.bf16.msra.mxu0 %v1031
  %4193 = vmatprep.subr.bf16.mxu0 %v1024
  %4194 = vmatpush1.bf16.msra.mxu0 %v1023
  %4195 = vmatprep.subr.bf16.mxu0 %v1016
  %4196 = vmatpush1.bf16.msra.mxu0 %v1015
  %4197 = vmatprep.subr.bf16.mxu0 %v1008
  %4198 = vmatpush1.bf16.msra.mxu0 %v1007
  %4199 = vmatprep.subr.bf16.mxu0 %v1000
  %4200 = vmatpush1.bf16.msra.mxu0 %v999
  %4201 = vmatprep.subr.bf16.mxu0 %v992
  %4202 = vmatpush1.bf16.msra.mxu0 %v991
  %4203 = vmatprep.subr.bf16.mxu0 %v984
  %4204 = vmatpush1.bf16.msra.mxu0 %v983
  %4205 = vmatprep.subr.bf16.mxu0 %v976
  %4206 = vmatpush1.bf16.msra.mxu0 %v975
  %4207 = vmatprep.subr.bf16.mxu0 0
  %4208 = vmatpush2.bf16.msra.mxu0 0
  %4209 = vmatprep.subr.bf16.mxu0 0
  %4210 = vmatpush2.bf16.msra.mxu0 0
  %4211 = vmatprep.subr.bf16.mxu0 0
  %4212 = vmatpush2.bf16.msra.mxu0 0
  %4213 = vmatprep.subr.bf16.mxu0 0
  %4214 = vmatpush2.bf16.msra.mxu0 0
  %4215 = vmatprep.subr.bf16.mxu0 0
  %4216 = vmatpush2.bf16.msra.mxu0 0
  %4217 = vmatprep.subr.bf16.mxu0 0
  %4218 = vmatpush2.bf16.msra.mxu0 0
  %4219 = vmatprep.subr.bf16.mxu0 0
  %4220 = vmatpush2.bf16.msra.mxu0 0
  %4221 = vmatprep.subr.bf16.mxu0 0
  %4222 = vmatpush2.bf16.msra.mxu0 0
  %4223 = vmatprep.mubr.bf16.mxu0 0
  %4224 = vmatmul.mubr.bf16.gmra.mxu0 %v3899
  %v4225 = vpop.f32.mrf.mxu0
  %v4226 = vadd.f32 %v4185, %v4225
  %v4227 = vpop.f32.mrf.mxu0
  %v4228 = vadd.f32 %v4187, %v4227
  %v4229 = vpop.f32.mrf.mxu0
  %v4230 = vpop.f32.mrf.mxu0
  %4231 = vdwg.mxu0
  %4232 = vmatprep.subr.bf16.mxu0 %v3043
  %4233 = vmatpush1.bf16.msra.mxu0 %v3042
  %4234 = vmatprep.subr.bf16.mxu0 %v3035
  %4235 = vmatpush1.bf16.msra.mxu0 %v3034
  %4236 = vmatprep.subr.bf16.mxu0 %v3027
  %4237 = vmatpush1.bf16.msra.mxu0 %v3026
  %4238 = vmatprep.subr.bf16.mxu0 %v3019
  %4239 = vmatpush1.bf16.msra.mxu0 %v3018
  %4240 = vmatprep.subr.bf16.mxu0 %v3011
  %4241 = vmatpush1.bf16.msra.mxu0 %v3010
  %4242 = vmatprep.subr.bf16.mxu0 %v3003
  %4243 = vmatpush1.bf16.msra.mxu0 %v3002
  %4244 = vmatprep.subr.bf16.mxu0 %v2995
  %4245 = vmatpush1.bf16.msra.mxu0 %v2994
  %4246 = vmatprep.subr.bf16.mxu0 %v2987
  %4247 = vmatpush1.bf16.msra.mxu0 %v2986
  %4248 = vmatprep.subr.bf16.mxu0 %v3107
  %4249 = vmatpush2.bf16.msra.mxu0 %v3106
  %4250 = vmatprep.subr.bf16.mxu0 %v3099
  %4251 = vmatpush2.bf16.msra.mxu0 %v3098
  %4252 = vmatprep.subr.bf16.mxu0 %v3091
  %4253 = vmatpush2.bf16.msra.mxu0 %v3090
  %4254 = vmatprep.subr.bf16.mxu0 %v3083
  %4255 = vmatpush2.bf16.msra.mxu0 %v3082
  %4256 = vmatprep.subr.bf16.mxu0 %v3075
  %4257 = vmatpush2.bf16.msra.mxu0 %v3074
  %4258 = vmatprep.subr.bf16.mxu0 %v3067
  %4259 = vmatpush2.bf16.msra.mxu0 %v3066
  %4260 = vmatprep.subr.bf16.mxu0 %v3059
  %4261 = vmatpush2.bf16.msra.mxu0 %v3058
  %4262 = vmatprep.subr.bf16.mxu0 %v3051
  %4263 = vmatpush2.bf16.msra.mxu0 %v3050
  %4264 = vmatprep.mubr.bf16.mxu0 %v3899
  %4265 = vmatmul.mubr.bf16.gmra.mxu0 %v3898
  %v4266 = vpop.f32.mrf.mxu0
  %v4267 = vadd.f32 %v2181, %v4266
  %v4268 = vpop.f32.mrf.mxu0
  %v4269 = vadd.f32 %v2185, %v4268
  %v4270 = vpop.f32.mrf.mxu0
  %v4271 = vpop.f32.mrf.mxu0
  %4272 = vdwg.mxu0
  %4273 = vmatprep.subr.bf16.mxu0 %v3171
  %4274 = vmatpush1.bf16.msra.mxu0 %v3170
  %4275 = vmatprep.subr.bf16.mxu0 %v3163
  %4276 = vmatpush1.bf16.msra.mxu0 %v3162
  %4277 = vmatprep.subr.bf16.mxu0 %v3155
  %4278 = vmatpush1.bf16.msra.mxu0 %v3154
  %4279 = vmatprep.subr.bf16.mxu0 %v3147
  %4280 = vmatpush1.bf16.msra.mxu0 %v3146
  %4281 = vmatprep.subr.bf16.mxu0 %v3139
  %4282 = vmatpush1.bf16.msra.mxu0 %v3138
  %4283 = vmatprep.subr.bf16.mxu0 %v3131
  %4284 = vmatpush1.bf16.msra.mxu0 %v3130
  %4285 = vmatprep.subr.bf16.mxu0 %v3123
  %4286 = vmatpush1.bf16.msra.mxu0 %v3122
  %4287 = vmatprep.subr.bf16.mxu0 %v3115
  %4288 = vmatpush1.bf16.msra.mxu0 %v3114
  %4289 = vmatprep.subr.bf16.mxu0 %v3235
  %4290 = vmatpush2.bf16.msra.mxu0 %v3234
  %4291 = vmatprep.subr.bf16.mxu0 %v3227
  %4292 = vmatpush2.bf16.msra.mxu0 %v3226
  %4293 = vmatprep.subr.bf16.mxu0 %v3219
  %4294 = vmatpush2.bf16.msra.mxu0 %v3218
  %4295 = vmatprep.subr.bf16.mxu0 %v3211
  %4296 = vmatpush2.bf16.msra.mxu0 %v3210
  %4297 = vmatprep.subr.bf16.mxu0 %v3203
  %4298 = vmatpush2.bf16.msra.mxu0 %v3202
  %4299 = vmatprep.subr.bf16.mxu0 %v3195
  %4300 = vmatpush2.bf16.msra.mxu0 %v3194
  %4301 = vmatprep.subr.bf16.mxu0 %v3187
  %4302 = vmatpush2.bf16.msra.mxu0 %v3186
  %4303 = vmatprep.subr.bf16.mxu0 %v3179
  %4304 = vmatpush2.bf16.msra.mxu0 %v3178
  %4305 = vmatprep.mubr.bf16.mxu0 %v3901
  %4306 = vmatmul.mubr.bf16.gmra.mxu0 %v3900
  %v4307 = vpop.f32.mrf.mxu0
  %v4308 = vadd.f32 %v4267, %v4307
  %v4309 = vpop.f32.mrf.mxu0
  %v4310 = vadd.f32 %v4269, %v4309
  %v4311 = vpop.f32.mrf.mxu0
  %v4312 = vpop.f32.mrf.mxu0
  %4313 = vdwg.mxu0
  %4314 = vmatprep.subr.bf16.mxu0 %v3045
  %4315 = vmatpush1.bf16.msra.mxu0 %v3044
  %4316 = vmatprep.subr.bf16.mxu0 %v3037
  %4317 = vmatpush1.bf16.msra.mxu0 %v3036
  %4318 = vmatprep.subr.bf16.mxu0 %v3029
  %4319 = vmatpush1.bf16.msra.mxu0 %v3028
  %4320 = vmatprep.subr.bf16.mxu0 %v3021
  %4321 = vmatpush1.bf16.msra.mxu0 %v3020
  %4322 = vmatprep.subr.bf16.mxu0 %v3013
  %4323 = vmatpush1.bf16.msra.mxu0 %v3012
  %4324 = vmatprep.subr.bf16.mxu0 %v3005
  %4325 = vmatpush1.bf16.msra.mxu0 %v3004
  %4326 = vmatprep.subr.bf16.mxu0 %v2997
  %4327 = vmatpush1.bf16.msra.mxu0 %v2996
  %4328 = vmatprep.subr.bf16.mxu0 %v2989
  %4329 = vmatpush1.bf16.msra.mxu0 %v2988
  %4330 = vmatprep.subr.bf16.mxu0 %v3109
  %4331 = vmatpush2.bf16.msra.mxu0 %v3108
  %4332 = vmatprep.subr.bf16.mxu0 %v3101
  %4333 = vmatpush2.bf16.msra.mxu0 %v3100
  %4334 = vmatprep.subr.bf16.mxu0 %v3093
  %4335 = vmatpush2.bf16.msra.mxu0 %v3092
  %4336 = vmatprep.subr.bf16.mxu0 %v3085
  %4337 = vmatpush2.bf16.msra.mxu0 %v3084
  %4338 = vmatprep.subr.bf16.mxu0 %v3077
  %4339 = vmatpush2.bf16.msra.mxu0 %v3076
  %4340 = vmatprep.subr.bf16.mxu0 %v3069
  %4341 = vmatpush2.bf16.msra.mxu0 %v3068
  %4342 = vmatprep.subr.bf16.mxu0 %v3061
  %4343 = vmatpush2.bf16.msra.mxu0 %v3060
  %4344 = vmatprep.subr.bf16.mxu0 %v3053
  %4345 = vmatpush2.bf16.msra.mxu0 %v3052
  %4346 = vmatprep.mubr.bf16.mxu0 %v3899
  %4347 = vmatmul.mubr.bf16.gmra.mxu0 %v3898
  %v4348 = vpop.f32.mrf.mxu0
  %v4349 = vadd.f32 %v2189, %v4348
  %v4350 = vpop.f32.mrf.mxu0
  %v4351 = vadd.f32 %v2193, %v4350
  %v4352 = vpop.f32.mrf.mxu0
  %v4353 = vpop.f32.mrf.mxu0
  %4354 = vdwg.mxu0
  %4355 = vmatprep.subr.bf16.mxu0 %v3173
  %4356 = vmatpush1.bf16.msra.mxu0 %v3172
  %4357 = vmatprep.subr.bf16.mxu0 %v3165
  %4358 = vmatpush1.bf16.msra.mxu0 %v3164
  %4359 = vmatprep.subr.bf16.mxu0 %v3157
  %4360 = vmatpush1.bf16.msra.mxu0 %v3156
  %4361 = vmatprep.subr.bf16.mxu0 %v3149
  %4362 = vmatpush1.bf16.msra.mxu0 %v3148
  %4363 = vmatprep.subr.bf16.mxu0 %v3141
  %4364 = vmatpush1.bf16.msra.mxu0 %v3140
  %4365 = vmatprep.subr.bf16.mxu0 %v3133
  %4366 = vmatpush1.bf16.msra.mxu0 %v3132
  %4367 = vmatprep.subr.bf16.mxu0 %v3125
  %4368 = vmatpush1.bf16.msra.mxu0 %v3124
  %4369 = vmatprep.subr.bf16.mxu0 %v3117
  %4370 = vmatpush1.bf16.msra.mxu0 %v3116
  %4371 = vmatprep.subr.bf16.mxu0 %v3237
  %4372 = vmatpush2.bf16.msra.mxu0 %v3236
  %4373 = vmatprep.subr.bf16.mxu0 %v3229
  %4374 = vmatpush2.bf16.msra.mxu0 %v3228
  %4375 = vmatprep.subr.bf16.mxu0 %v3221
  %4376 = vmatpush2.bf16.msra.mxu0 %v3220
  %4377 = vmatprep.subr.bf16.mxu0 %v3213
  %4378 = vmatpush2.bf16.msra.mxu0 %v3212
  %4379 = vmatprep.subr.bf16.mxu0 %v3205
  %4380 = vmatpush2.bf16.msra.mxu0 %v3204
  %4381 = vmatprep.subr.bf16.mxu0 %v3197
  %4382 = vmatpush2.bf16.msra.mxu0 %v3196
  %4383 = vmatprep.subr.bf16.mxu0 %v3189
  %4384 = vmatpush2.bf16.msra.mxu0 %v3188
  %4385 = vmatprep.subr.bf16.mxu0 %v3181
  %4386 = vmatpush2.bf16.msra.mxu0 %v3180
  %4387 = vmatprep.mubr.bf16.mxu0 %v3901
  %4388 = vmatmul.mubr.bf16.gmra.mxu0 %v3900
  %v4389 = vpop.f32.mrf.mxu0
  %v4390 = vadd.f32 %v4349, %v4389
  %v4391 = vpop.f32.mrf.mxu0
  %v4392 = vadd.f32 %v4351, %v4391
  %v4393 = vpop.f32.mrf.mxu0
  %v4394 = vpop.f32.mrf.mxu0
  %4395 = vdwg.mxu0
  %4396 = vmatprep.subr.bf16.mxu0 %v3047
  %4397 = vmatpush1.bf16.msra.mxu0 %v3046
  %4398 = vmatprep.subr.bf16.mxu0 %v3039
  %4399 = vmatpush1.bf16.msra.mxu0 %v3038
  %4400 = vmatprep.subr.bf16.mxu0 %v3031
  %4401 = vmatpush1.bf16.msra.mxu0 %v3030
  %4402 = vmatprep.subr.bf16.mxu0 %v3023
  %4403 = vmatpush1.bf16.msra.mxu0 %v3022
  %4404 = vmatprep.subr.bf16.mxu0 %v3015
  %4405 = vmatpush1.bf16.msra.mxu0 %v3014
  %4406 = vmatprep.subr.bf16.mxu0 %v3007
  %4407 = vmatpush1.bf16.msra.mxu0 %v3006
  %4408 = vmatprep.subr.bf16.mxu0 %v2999
  %4409 = vmatpush1.bf16.msra.mxu0 %v2998
  %4410 = vmatprep.subr.bf16.mxu0 %v2991
  %4411 = vmatpush1.bf16.msra.mxu0 %v2990
  %4412 = vmatprep.subr.bf16.mxu0 %v3111
  %4413 = vmatpush2.bf16.msra.mxu0 %v3110
  %4414 = vmatprep.subr.bf16.mxu0 %v3103
  %4415 = vmatpush2.bf16.msra.mxu0 %v3102
  %4416 = vmatprep.subr.bf16.mxu0 %v3095
  %4417 = vmatpush2.bf16.msra.mxu0 %v3094
  %4418 = vmatprep.subr.bf16.mxu0 %v3087
  %4419 = vmatpush2.bf16.msra.mxu0 %v3086
  %4420 = vmatprep.subr.bf16.mxu0 %v3079
  %4421 = vmatpush2.bf16.msra.mxu0 %v3078
  %4422 = vmatprep.subr.bf16.mxu0 %v3071
  %4423 = vmatpush2.bf16.msra.mxu0 %v3070
  %4424 = vmatprep.subr.bf16.mxu0 %v3063
  %4425 = vmatpush2.bf16.msra.mxu0 %v3062
  %4426 = vmatprep.subr.bf16.mxu0 %v3055
  %4427 = vmatpush2.bf16.msra.mxu0 %v3054
  %4428 = vmatprep.mubr.bf16.mxu0 %v3899
  %4429 = vmatmul.mubr.bf16.gmra.mxu0 %v3898
  %v4430 = vpop.f32.mrf.mxu0
  %v4431 = vadd.f32 %v2197, %v4430
  %v4432 = vpop.f32.mrf.mxu0
  %v4433 = vadd.f32 %v2201, %v4432
  %v4434 = vpop.f32.mrf.mxu0
  %v4435 = vpop.f32.mrf.mxu0
  %4436 = vdwg.mxu0
  %4437 = vmatprep.subr.bf16.mxu0 %v3175
  %4438 = vmatpush1.bf16.msra.mxu0 %v3174
  %4439 = vmatprep.subr.bf16.mxu0 %v3167
  %4440 = vmatpush1.bf16.msra.mxu0 %v3166
  %4441 = vmatprep.subr.bf16.mxu0 %v3159
  %4442 = vmatpush1.bf16.msra.mxu0 %v3158
  %4443 = vmatprep.subr.bf16.mxu0 %v3151
  %4444 = vmatpush1.bf16.msra.mxu0 %v3150
  %4445 = vmatprep.subr.bf16.mxu0 %v3143
  %4446 = vmatpush1.bf16.msra.mxu0 %v3142
  %4447 = vmatprep.subr.bf16.mxu0 %v3135
  %4448 = vmatpush1.bf16.msra.mxu0 %v3134
  %4449 = vmatprep.subr.bf16.mxu0 %v3127
  %4450 = vmatpush1.bf16.msra.mxu0 %v3126
  %4451 = vmatprep.subr.bf16.mxu0 %v3119
  %4452 = vmatpush1.bf16.msra.mxu0 %v3118
  %4453 = vmatprep.subr.bf16.mxu0 %v3239
  %4454 = vmatpush2.bf16.msra.mxu0 %v3238
  %4455 = vmatprep.subr.bf16.mxu0 %v3231
  %4456 = vmatpush2.bf16.msra.mxu0 %v3230
  %4457 = vmatprep.subr.bf16.mxu0 %v3223
  %4458 = vmatpush2.bf16.msra.mxu0 %v3222
  %4459 = vmatprep.subr.bf16.mxu0 %v3215
  %4460 = vmatpush2.bf16.msra.mxu0 %v3214
  %4461 = vmatprep.subr.bf16.mxu0 %v3207
  %4462 = vmatpush2.bf16.msra.mxu0 %v3206
  %4463 = vmatprep.subr.bf16.mxu0 %v3199
  %4464 = vmatpush2.bf16.msra.mxu0 %v3198
  %4465 = vmatprep.subr.bf16.mxu0 %v3191
  %4466 = vmatpush2.bf16.msra.mxu0 %v3190
  %4467 = vmatprep.subr.bf16.mxu0 %v3183
  %4468 = vmatpush2.bf16.msra.mxu0 %v3182
  %4469 = vmatprep.mubr.bf16.mxu0 %v3901
  %4470 = vmatmul.mubr.bf16.gmra.mxu0 %v3900
  %v4471 = vpop.f32.mrf.mxu0
  %v4472 = vadd.f32 %v4431, %v4471
  %v4473 = vpop.f32.mrf.mxu0
  %v4474 = vadd.f32 %v4433, %v4473
  %v4475 = vpop.f32.mrf.mxu0
  %v4476 = vpop.f32.mrf.mxu0
  %4477 = vdwg.mxu0
  %4478 = vmatprep.subr.bf16.mxu0 %v3049
  %4479 = vmatpush1.bf16.msra.mxu0 %v3048
  %4480 = vmatprep.subr.bf16.mxu0 %v3041
  %4481 = vmatpush1.bf16.msra.mxu0 %v3040
  %4482 = vmatprep.subr.bf16.mxu0 %v3033
  %4483 = vmatpush1.bf16.msra.mxu0 %v3032
  %4484 = vmatprep.subr.bf16.mxu0 %v3025
  %4485 = vmatpush1.bf16.msra.mxu0 %v3024
  %4486 = vmatprep.subr.bf16.mxu0 %v3017
  %4487 = vmatpush1.bf16.msra.mxu0 %v3016
  %4488 = vmatprep.subr.bf16.mxu0 %v3009
  %4489 = vmatpush1.bf16.msra.mxu0 %v3008
  %4490 = vmatprep.subr.bf16.mxu0 %v3001
  %4491 = vmatpush1.bf16.msra.mxu0 %v3000
  %4492 = vmatprep.subr.bf16.mxu0 %v2993
  %4493 = vmatpush1.bf16.msra.mxu0 %v2992
  %4494 = vmatprep.subr.bf16.mxu0 %v3113
  %4495 = vmatpush2.bf16.msra.mxu0 %v3112
  %4496 = vmatprep.subr.bf16.mxu0 %v3105
  %4497 = vmatpush2.bf16.msra.mxu0 %v3104
  %4498 = vmatprep.subr.bf16.mxu0 %v3097
  %4499 = vmatpush2.bf16.msra.mxu0 %v3096
  %4500 = vmatprep.subr.bf16.mxu0 %v3089
  %4501 = vmatpush2.bf16.msra.mxu0 %v3088
  %4502 = vmatprep.subr.bf16.mxu0 %v3081
  %4503 = vmatpush2.bf16.msra.mxu0 %v3080
  %4504 = vmatprep.subr.bf16.mxu0 %v3073
  %4505 = vmatpush2.bf16.msra.mxu0 %v3072
  %4506 = vmatprep.subr.bf16.mxu0 %v3065
  %4507 = vmatpush2.bf16.msra.mxu0 %v3064
  %4508 = vmatprep.subr.bf16.mxu0 %v3057
  %4509 = vmatpush2.bf16.msra.mxu0 %v3056
  %4510 = vmatprep.mubr.bf16.mxu0 %v3899
  %4511 = vmatmul.mubr.bf16.gmra.mxu0 %v3898
  %v4512 = vpop.f32.mrf.mxu0
  %v4513 = vadd.f32 %v2205, %v4512
  %v4514 = vpop.f32.mrf.mxu0
  %v4515 = vadd.f32 %v2209, %v4514
  %v4516 = vpop.f32.mrf.mxu0
  %v4517 = vpop.f32.mrf.mxu0
  %4518 = vdwg.mxu0
  %4519 = vmatprep.subr.bf16.mxu0 %v3177
  %4520 = vmatpush1.bf16.msra.mxu0 %v3176
  %4521 = vmatprep.subr.bf16.mxu0 %v3169
  %4522 = vmatpush1.bf16.msra.mxu0 %v3168
  %4523 = vmatprep.subr.bf16.mxu0 %v3161
  %4524 = vmatpush1.bf16.msra.mxu0 %v3160
  %4525 = vmatprep.subr.bf16.mxu0 %v3153
  %4526 = vmatpush1.bf16.msra.mxu0 %v3152
  %4527 = vmatprep.subr.bf16.mxu0 %v3145
  %4528 = vmatpush1.bf16.msra.mxu0 %v3144
  %4529 = vmatprep.subr.bf16.mxu0 %v3137
  %4530 = vmatpush1.bf16.msra.mxu0 %v3136
  %4531 = vmatprep.subr.bf16.mxu0 %v3129
  %4532 = vmatpush1.bf16.msra.mxu0 %v3128
  %4533 = vmatprep.subr.bf16.mxu0 %v3121
  %4534 = vmatpush1.bf16.msra.mxu0 %v3120
  %4535 = vmatprep.subr.bf16.mxu0 %v3241
  %4536 = vmatpush2.bf16.msra.mxu0 %v3240
  %4537 = vmatprep.subr.bf16.mxu0 %v3233
  %4538 = vmatpush2.bf16.msra.mxu0 %v3232
  %4539 = vmatprep.subr.bf16.mxu0 %v3225
  %4540 = vmatpush2.bf16.msra.mxu0 %v3224
  %4541 = vmatprep.subr.bf16.mxu0 %v3217
  %4542 = vmatpush2.bf16.msra.mxu0 %v3216
  %4543 = vmatprep.subr.bf16.mxu0 %v3209
  %4544 = vmatpush2.bf16.msra.mxu0 %v3208
  %4545 = vmatprep.subr.bf16.mxu0 %v3201
  %4546 = vmatpush2.bf16.msra.mxu0 %v3200
  %4547 = vmatprep.subr.bf16.mxu0 %v3193
  %4548 = vmatpush2.bf16.msra.mxu0 %v3192
  %4549 = vmatprep.subr.bf16.mxu0 %v3185
  %4550 = vmatpush2.bf16.msra.mxu0 %v3184
  %4551 = vmatprep.mubr.bf16.mxu0 %v3901
  %4552 = vmatmul.mubr.bf16.gmra.mxu0 %v3900
  %v4553 = vpop.f32.mrf.mxu0
  %v4554 = vadd.f32 %v4513, %v4553
  %v4555 = vpop.f32.mrf.mxu0
  %v4556 = vadd.f32 %v4515, %v4555
  %v4557 = vpop.f32.mrf.mxu0
  %v4558 = vpop.f32.mrf.mxu0
  %4559 = vdwg.mxu0
  %v4560 = vmul.f32 %v3980, 0.5
  %v4561 = vmul.f32 %v3982, 0.5
  %v4562 = vtanh.pop %v4560
  %v4563 = vtanh.pop %v4561
  %v4564 = vadd.f32 %v4562, 1.0
  %v4565 = vadd.f32 %v4563, 1.0
  %v4566 = vmul.f32 %v4564, 0.5
  %v4567 = vmul.f32 %v4565, 0.5
  %v4568 = vmul.f32 %v4062, 0.5
  %v4569 = vmul.f32 %v4064, 0.5
  %v4570 = vtanh.pop %v4568
  %v4571 = vtanh.pop %v4569
  %v4572 = vadd.f32 %v4570, 1.0
  %v4573 = vadd.f32 %v4571, 1.0
  %v4574 = vmul.f32 %v4572, 0.5
  %v4575 = vmul.f32 %v4573, 0.5
  %v4576 = vtanh.pop %v4144
  %v4577 = vtanh.pop %v4146
  %v4578 = vmul.f32 %v4226, 0.5
  %v4579 = vmul.f32 %v4228, 0.5
  %v4580 = vtanh.pop %v4578
  %v4581 = vtanh.pop %v4579
  %v4582 = vadd.f32 %v4580, 1.0
  %v4583 = vadd.f32 %v4581, 1.0
  %v4584 = vmul.f32 %v4582, 0.5
  %v4585 = vmul.f32 %v4583, 0.5
  %v4586 = vmul.f32 %v4574, %v3856
  %v4587 = vmul.f32 %v4575, %v3857
  %v4588 = vmul.f32 %v4566, %v4576
  %v4589 = vmul.f32 %v4567, %v4577
  %v4590 = vadd.f32 %v4586, %v4588
  %v4591 = vadd.f32 %v4587, %v4589
  %v4592 = vtanh.pop %v4590
  %v4593 = vtanh.pop %v4591
  %v4594 = vmul.f32 %v4584, %v4592
  %v4595 = vmul.f32 %v4585, %v4593
  %v4596 = vmul.f32 %v4308, 0.5
  %v4597 = vmul.f32 %v4310, 0.5
  %v4598 = vtanh.pop %v4596
  %v4599 = vtanh.pop %v4597
  %v4600 = vadd.f32 %v4598, 1.0
  %v4601 = vadd.f32 %v4599, 1.0
  %v4602 = vmul.f32 %v4600, 0.5
  %v4603 = vmul.f32 %v4601, 0.5
  %v4604 = vmul.f32 %v4390, 0.5
  %v4605 = vmul.f32 %v4392, 0.5
  %v4606 = vtanh.pop %v4604
  %v4607 = vtanh.pop %v4605
  %v4608 = vadd.f32 %v4606, 1.0
  %v4609 = vadd.f32 %v4607, 1.0
  %v4610 = vmul.f32 %v4608, 0.5
  %v4611 = vmul.f32 %v4609, 0.5
  %v4612 = vtanh.pop %v4472
  %v4613 = vtanh.pop %v4474
  %v4614 = vmul.f32 %v4554, 0.5
  %v4615 = vmul.f32 %v4556, 0.5
  %v4616 = vtanh.pop %v4614
  %v4617 = vtanh.pop %v4615
  %v4618 = vadd.f32 %v4616, 1.0
  %v4619 = vadd.f32 %v4617, 1.0
  %v4620 = vmul.f32 %v4618, 0.5
  %v4621 = vmul.f32 %v4619, 0.5
  %v4622 = vmul.f32 %v4610, %v3892
  %v4623 = vmul.f32 %v4611, %v3893
  %v4624 = vmul.f32 %v4602, %v4612
  %v4625 = vmul.f32 %v4603, %v4613
  %v4626 = vadd.f32 %v4622, %v4624
  %v4627 = vadd.f32 %v4623, %v4625
  %v4628 = vtanh.pop %v4626
  %v4629 = vtanh.pop %v4627
  %v4630 = vmul.f32 %v4620, %v4628
  %v4631 = vmul.f32 %v4621, %v4629
  %v4632 = vpack.c.bf16 %v4594, %v4594
  %v4633 = vpack.c.bf16 %v4595, %v4595
  %v4634 = vpack.c.bf16 %v4630, %v4630
  %v4635 = vpack.c.bf16 %v4631, %v4631
  %s4636 = scalar_lea.vmem %s0, 3
  %v4637 = vld [vmem:[%s4636] sm:$0x1]
  %4638 = vmatprep.subr.bf16.mxu0 %v898
  %4639 = vmatpush1.bf16.msra.mxu0 %v897
  %4640 = vmatprep.subr.bf16.mxu0 %v890
  %4641 = vmatpush1.bf16.msra.mxu0 %v889
  %4642 = vmatprep.subr.bf16.mxu0 %v882
  %4643 = vmatpush1.bf16.msra.mxu0 %v881
  %4644 = vmatprep.subr.bf16.mxu0 %v874
  %4645 = vmatpush1.bf16.msra.mxu0 %v873
  %4646 = vmatprep.subr.bf16.mxu0 %v866
  %4647 = vmatpush1.bf16.msra.mxu0 %v865
  %4648 = vmatprep.subr.bf16.mxu0 %v858
  %4649 = vmatpush1.bf16.msra.mxu0 %v857
  %4650 = vmatprep.subr.bf16.mxu0 %v850
  %4651 = vmatpush1.bf16.msra.mxu0 %v849
  %4652 = vmatprep.subr.bf16.mxu0 %v842
  %4653 = vmatpush1.bf16.msra.mxu0 %v841
  %4654 = vmatprep.subr.bf16.mxu0 %v962
  %4655 = vmatpush2.bf16.msra.mxu0 %v961
  %4656 = vmatprep.subr.bf16.mxu0 %v954
  %4657 = vmatpush2.bf16.msra.mxu0 %v953
  %4658 = vmatprep.subr.bf16.mxu0 %v946
  %4659 = vmatpush2.bf16.msra.mxu0 %v945
  %4660 = vmatprep.subr.bf16.mxu0 %v938
  %4661 = vmatpush2.bf16.msra.mxu0 %v937
  %4662 = vmatprep.subr.bf16.mxu0 %v930
  %4663 = vmatpush2.bf16.msra.mxu0 %v929
  %4664 = vmatprep.subr.bf16.mxu0 %v922
  %4665 = vmatpush2.bf16.msra.mxu0 %v921
  %4666 = vmatprep.subr.bf16.mxu0 %v914
  %4667 = vmatpush2.bf16.msra.mxu0 %v913
  %4668 = vmatprep.subr.bf16.mxu0 %v906
  %4669 = vmatpush2.bf16.msra.mxu0 %v905
  %4670 = vmatprep.mubr.bf16.mxu0 %v4632
  %4671 = vmatmul.mubr.bf16.gmra.mxu0 %v4637
  %v4672 = vpop.f32.mrf.mxu0
  %v4673 = vadd.f32 %v228, %v4672
  %v4674 = vpop.f32.mrf.mxu0
  %v4675 = vadd.f32 %v232, %v4674
  %v4676 = vpop.f32.mrf.mxu0
  %v4677 = vpop.f32.mrf.mxu0
  %4678 = vdwg.mxu0
  %4679 = vmatprep.subr.bf16.mxu0 %v1026
  %4680 = vmatpush1.bf16.msra.mxu0 %v1025
  %4681 = vmatprep.subr.bf16.mxu0 %v1018
  %4682 = vmatpush1.bf16.msra.mxu0 %v1017
  %4683 = vmatprep.subr.bf16.mxu0 %v1010
  %4684 = vmatpush1.bf16.msra.mxu0 %v1009
  %4685 = vmatprep.subr.bf16.mxu0 %v1002
  %4686 = vmatpush1.bf16.msra.mxu0 %v1001
  %4687 = vmatprep.subr.bf16.mxu0 %v994
  %4688 = vmatpush1.bf16.msra.mxu0 %v993
  %4689 = vmatprep.subr.bf16.mxu0 %v986
  %4690 = vmatpush1.bf16.msra.mxu0 %v985
  %4691 = vmatprep.subr.bf16.mxu0 %v978
  %4692 = vmatpush1.bf16.msra.mxu0 %v977
  %4693 = vmatprep.subr.bf16.mxu0 %v970
  %4694 = vmatpush1.bf16.msra.mxu0 %v969
  %4695 = vmatprep.subr.bf16.mxu0 0
  %4696 = vmatpush2.bf16.msra.mxu0 0
  %4697 = vmatprep.subr.bf16.mxu0 0
  %4698 = vmatpush2.bf16.msra.mxu0 0
  %4699 = vmatprep.subr.bf16.mxu0 0
  %4700 = vmatpush2.bf16.msra.mxu0 0
  %4701 = vmatprep.subr.bf16.mxu0 0
  %4702 = vmatpush2.bf16.msra.mxu0 0
  %4703 = vmatprep.subr.bf16.mxu0 0
  %4704 = vmatpush2.bf16.msra.mxu0 0
  %4705 = vmatprep.subr.bf16.mxu0 0
  %4706 = vmatpush2.bf16.msra.mxu0 0
  %4707 = vmatprep.subr.bf16.mxu0 0
  %4708 = vmatpush2.bf16.msra.mxu0 0
  %4709 = vmatprep.subr.bf16.mxu0 0
  %4710 = vmatpush2.bf16.msra.mxu0 0
  %4711 = vmatprep.mubr.bf16.mxu0 0
  %4712 = vmatmul.mubr.bf16.gmra.mxu0 %v4633
  %v4713 = vpop.f32.mrf.mxu0
  %v4714 = vadd.f32 %v4673, %v4713
  %v4715 = vpop.f32.mrf.mxu0
  %v4716 = vadd.f32 %v4675, %v4715
  %v4717 = vpop.f32.mrf.mxu0
  %v4718 = vpop.f32.mrf.mxu0
  %4719 = vdwg.mxu0
  %4720 = vmatprep.subr.bf16.mxu0 %v900
  %4721 = vmatpush1.bf16.msra.mxu0 %v899
  %4722 = vmatprep.subr.bf16.mxu0 %v892
  %4723 = vmatpush1.bf16.msra.mxu0 %v891
  %4724 = vmatprep.subr.bf16.mxu0 %v884
  %4725 = vmatpush1.bf16.msra.mxu0 %v883
  %4726 = vmatprep.subr.bf16.mxu0 %v876
  %4727 = vmatpush1.bf16.msra.mxu0 %v875
  %4728 = vmatprep.subr.bf16.mxu0 %v868
  %4729 = vmatpush1.bf16.msra.mxu0 %v867
  %4730 = vmatprep.subr.bf16.mxu0 %v860
  %4731 = vmatpush1.bf16.msra.mxu0 %v859
  %4732 = vmatprep.subr.bf16.mxu0 %v852
  %4733 = vmatpush1.bf16.msra.mxu0 %v851
  %4734 = vmatprep.subr.bf16.mxu0 %v844
  %4735 = vmatpush1.bf16.msra.mxu0 %v843
  %4736 = vmatprep.subr.bf16.mxu0 %v964
  %4737 = vmatpush2.bf16.msra.mxu0 %v963
  %4738 = vmatprep.subr.bf16.mxu0 %v956
  %4739 = vmatpush2.bf16.msra.mxu0 %v955
  %4740 = vmatprep.subr.bf16.mxu0 %v948
  %4741 = vmatpush2.bf16.msra.mxu0 %v947
  %4742 = vmatprep.subr.bf16.mxu0 %v940
  %4743 = vmatpush2.bf16.msra.mxu0 %v939
  %4744 = vmatprep.subr.bf16.mxu0 %v932
  %4745 = vmatpush2.bf16.msra.mxu0 %v931
  %4746 = vmatprep.subr.bf16.mxu0 %v924
  %4747 = vmatpush2.bf16.msra.mxu0 %v923
  %4748 = vmatprep.subr.bf16.mxu0 %v916
  %4749 = vmatpush2.bf16.msra.mxu0 %v915
  %4750 = vmatprep.subr.bf16.mxu0 %v908
  %4751 = vmatpush2.bf16.msra.mxu0 %v907
  %4752 = vmatprep.mubr.bf16.mxu0 %v4632
  %4753 = vmatmul.mubr.bf16.gmra.mxu0 %v4637
  %v4754 = vpop.f32.mrf.mxu0
  %v4755 = vadd.f32 %v236, %v4754
  %v4756 = vpop.f32.mrf.mxu0
  %v4757 = vadd.f32 %v240, %v4756
  %v4758 = vpop.f32.mrf.mxu0
  %v4759 = vpop.f32.mrf.mxu0
  %4760 = vdwg.mxu0
  %4761 = vmatprep.subr.bf16.mxu0 %v1028
  %4762 = vmatpush1.bf16.msra.mxu0 %v1027
  %4763 = vmatprep.subr.bf16.mxu0 %v1020
  %4764 = vmatpush1.bf16.msra.mxu0 %v1019
  %4765 = vmatprep.subr.bf16.mxu0 %v1012
  %4766 = vmatpush1.bf16.msra.mxu0 %v1011
  %4767 = vmatprep.subr.bf16.mxu0 %v1004
  %4768 = vmatpush1.bf16.msra.mxu0 %v1003
  %4769 = vmatprep.subr.bf16.mxu0 %v996
  %4770 = vmatpush1.bf16.msra.mxu0 %v995
  %4771 = vmatprep.subr.bf16.mxu0 %v988
  %4772 = vmatpush1.bf16.msra.mxu0 %v987
  %4773 = vmatprep.subr.bf16.mxu0 %v980
  %4774 = vmatpush1.bf16.msra.mxu0 %v979
  %4775 = vmatprep.subr.bf16.mxu0 %v972
  %4776 = vmatpush1.bf16.msra.mxu0 %v971
  %4777 = vmatprep.subr.bf16.mxu0 0
  %4778 = vmatpush2.bf16.msra.mxu0 0
  %4779 = vmatprep.subr.bf16.mxu0 0
  %4780 = vmatpush2.bf16.msra.mxu0 0
  %4781 = vmatprep.subr.bf16.mxu0 0
  %4782 = vmatpush2.bf16.msra.mxu0 0
  %4783 = vmatprep.subr.bf16.mxu0 0
  %4784 = vmatpush2.bf16.msra.mxu0 0
  %4785 = vmatprep.subr.bf16.mxu0 0
  %4786 = vmatpush2.bf16.msra.mxu0 0
  %4787 = vmatprep.subr.bf16.mxu0 0
  %4788 = vmatpush2.bf16.msra.mxu0 0
  %4789 = vmatprep.subr.bf16.mxu0 0
  %4790 = vmatpush2.bf16.msra.mxu0 0
  %4791 = vmatprep.subr.bf16.mxu0 0
  %4792 = vmatpush2.bf16.msra.mxu0 0
  %4793 = vmatprep.mubr.bf16.mxu0 0
  %4794 = vmatmul.mubr.bf16.gmra.mxu0 %v4633
  %v4795 = vpop.f32.mrf.mxu0
  %v4796 = vadd.f32 %v4755, %v4795
  %v4797 = vpop.f32.mrf.mxu0
  %v4798 = vadd.f32 %v4757, %v4797
  %v4799 = vpop.f32.mrf.mxu0
  %v4800 = vpop.f32.mrf.mxu0
  %4801 = vdwg.mxu0
  %4802 = vmatprep.subr.bf16.mxu0 %v902
  %4803 = vmatpush1.bf16.msra.mxu0 %v901
  %4804 = vmatprep.subr.bf16.mxu0 %v894
  %4805 = vmatpush1.bf16.msra.mxu0 %v893
  %4806 = vmatprep.subr.bf16.mxu0 %v886
  %4807 = vmatpush1.bf16.msra.mxu0 %v885
  %4808 = vmatprep.subr.bf16.mxu0 %v878
  %4809 = vmatpush1.bf16.msra.mxu0 %v877
  %4810 = vmatprep.subr.bf16.mxu0 %v870
  %4811 = vmatpush1.bf16.msra.mxu0 %v869
  %4812 = vmatprep.subr.bf16.mxu0 %v862
  %4813 = vmatpush1.bf16.msra.mxu0 %v861
  %4814 = vmatprep.subr.bf16.mxu0 %v854
  %4815 = vmatpush1.bf16.msra.mxu0 %v853
  %4816 = vmatprep.subr.bf16.mxu0 %v846
  %4817 = vmatpush1.bf16.msra.mxu0 %v845
  %4818 = vmatprep.subr.bf16.mxu0 %v966
  %4819 = vmatpush2.bf16.msra.mxu0 %v965
  %4820 = vmatprep.subr.bf16.mxu0 %v958
  %4821 = vmatpush2.bf16.msra.mxu0 %v957
  %4822 = vmatprep.subr.bf16.mxu0 %v950
  %4823 = vmatpush2.bf16.msra.mxu0 %v949
  %4824 = vmatprep.subr.bf16.mxu0 %v942
  %4825 = vmatpush2.bf16.msra.mxu0 %v941
  %4826 = vmatprep.subr.bf16.mxu0 %v934
  %4827 = vmatpush2.bf16.msra.mxu0 %v933
  %4828 = vmatprep.subr.bf16.mxu0 %v926
  %4829 = vmatpush2.bf16.msra.mxu0 %v925
  %4830 = vmatprep.subr.bf16.mxu0 %v918
  %4831 = vmatpush2.bf16.msra.mxu0 %v917
  %4832 = vmatprep.subr.bf16.mxu0 %v910
  %4833 = vmatpush2.bf16.msra.mxu0 %v909
  %4834 = vmatprep.mubr.bf16.mxu0 %v4632
  %4835 = vmatmul.mubr.bf16.gmra.mxu0 %v4637
  %v4836 = vpop.f32.mrf.mxu0
  %v4837 = vadd.f32 %v244, %v4836
  %v4838 = vpop.f32.mrf.mxu0
  %v4839 = vadd.f32 %v248, %v4838
  %v4840 = vpop.f32.mrf.mxu0
  %v4841 = vpop.f32.mrf.mxu0
  %4842 = vdwg.mxu0
  %4843 = vmatprep.subr.bf16.mxu0 %v1030
  %4844 = vmatpush1.bf16.msra.mxu0 %v1029
  %4845 = vmatprep.subr.bf16.mxu0 %v1022
  %4846 = vmatpush1.bf16.msra.mxu0 %v1021
  %4847 = vmatprep.subr.bf16.mxu0 %v1014
  %4848 = vmatpush1.bf16.msra.mxu0 %v1013
  %4849 = vmatprep.subr.bf16.mxu0 %v1006
  %4850 = vmatpush1.bf16.msra.mxu0 %v1005
  %4851 = vmatprep.subr.bf16.mxu0 %v998
  %4852 = vmatpush1.bf16.msra.mxu0 %v997
  %4853 = vmatprep.subr.bf16.mxu0 %v990
  %4854 = vmatpush1.bf16.msra.mxu0 %v989
  %4855 = vmatprep.subr.bf16.mxu0 %v982
  %4856 = vmatpush1.bf16.msra.mxu0 %v981
  %4857 = vmatprep.subr.bf16.mxu0 %v974
  %4858 = vmatpush1.bf16.msra.mxu0 %v973
  %4859 = vmatprep.subr.bf16.mxu0 0
  %4860 = vmatpush2.bf16.msra.mxu0 0
  %4861 = vmatprep.subr.bf16.mxu0 0
  %4862 = vmatpush2.bf16.msra.mxu0 0
  %4863 = vmatprep.subr.bf16.mxu0 0
  %4864 = vmatpush2.bf16.msra.mxu0 0
  %4865 = vmatprep.subr.bf16.mxu0 0
  %4866 = vmatpush2.bf16.msra.mxu0 0
  %4867 = vmatprep.subr.bf16.mxu0 0
  %4868 = vmatpush2.bf16.msra.mxu0 0
  %4869 = vmatprep.subr.bf16.mxu0 0
  %4870 = vmatpush2.bf16.msra.mxu0 0
  %4871 = vmatprep.subr.bf16.mxu0 0
  %4872 = vmatpush2.bf16.msra.mxu0 0
  %4873 = vmatprep.subr.bf16.mxu0 0
  %4874 = vmatpush2.bf16.msra.mxu0 0
  %4875 = vmatprep.mubr.bf16.mxu0 0
  %4876 = vmatmul.mubr.bf16.gmra.mxu0 %v4633
  %v4877 = vpop.f32.mrf.mxu0
  %v4878 = vadd.f32 %v4837, %v4877
  %v4879 = vpop.f32.mrf.mxu0
  %v4880 = vadd.f32 %v4839, %v4879
  %v4881 = vpop.f32.mrf.mxu0
  %v4882 = vpop.f32.mrf.mxu0
  %4883 = vdwg.mxu0
  %4884 = vmatprep.subr.bf16.mxu0 %v904
  %4885 = vmatpush1.bf16.msra.mxu0 %v903
  %4886 = vmatprep.subr.bf16.mxu0 %v896
  %4887 = vmatpush1.bf16.msra.mxu0 %v895
  %4888 = vmatprep.subr.bf16.mxu0 %v888
  %4889 = vmatpush1.bf16.msra.mxu0 %v887
  %4890 = vmatprep.subr.bf16.mxu0 %v880
  %4891 = vmatpush1.bf16.msra.mxu0 %v879
  %4892 = vmatprep.subr.bf16.mxu0 %v872
  %4893 = vmatpush1.bf16.msra.mxu0 %v871
  %4894 = vmatprep.subr.bf16.mxu0 %v864
  %4895 = vmatpush1.bf16.msra.mxu0 %v863
  %4896 = vmatprep.subr.bf16.mxu0 %v856
  %4897 = vmatpush1.bf16.msra.mxu0 %v855
  %4898 = vmatprep.subr.bf16.mxu0 %v848
  %4899 = vmatpush1.bf16.msra.mxu0 %v847
  %4900 = vmatprep.subr.bf16.mxu0 %v968
  %4901 = vmatpush2.bf16.msra.mxu0 %v967
  %4902 = vmatprep.subr.bf16.mxu0 %v960
  %4903 = vmatpush2.bf16.msra.mxu0 %v959
  %4904 = vmatprep.subr.bf16.mxu0 %v952
  %4905 = vmatpush2.bf16.msra.mxu0 %v951
  %4906 = vmatprep.subr.bf16.mxu0 %v944
  %4907 = vmatpush2.bf16.msra.mxu0 %v943
  %4908 = vmatprep.subr.bf16.mxu0 %v936
  %4909 = vmatpush2.bf16.msra.mxu0 %v935
  %4910 = vmatprep.subr.bf16.mxu0 %v928
  %4911 = vmatpush2.bf16.msra.mxu0 %v927
  %4912 = vmatprep.subr.bf16.mxu0 %v920
  %4913 = vmatpush2.bf16.msra.mxu0 %v919
  %4914 = vmatprep.subr.bf16.mxu0 %v912
  %4915 = vmatpush2.bf16.msra.mxu0 %v911
  %4916 = vmatprep.mubr.bf16.mxu0 %v4632
  %4917 = vmatmul.mubr.bf16.gmra.mxu0 %v4637
  %v4918 = vpop.f32.mrf.mxu0
  %v4919 = vadd.f32 %v252, %v4918
  %v4920 = vpop.f32.mrf.mxu0
  %v4921 = vadd.f32 %v256, %v4920
  %v4922 = vpop.f32.mrf.mxu0
  %v4923 = vpop.f32.mrf.mxu0
  %4924 = vdwg.mxu0
  %4925 = vmatprep.subr.bf16.mxu0 %v1032
  %4926 = vmatpush1.bf16.msra.mxu0 %v1031
  %4927 = vmatprep.subr.bf16.mxu0 %v1024
  %4928 = vmatpush1.bf16.msra.mxu0 %v1023
  %4929 = vmatprep.subr.bf16.mxu0 %v1016
  %4930 = vmatpush1.bf16.msra.mxu0 %v1015
  %4931 = vmatprep.subr.bf16.mxu0 %v1008
  %4932 = vmatpush1.bf16.msra.mxu0 %v1007
  %4933 = vmatprep.subr.bf16.mxu0 %v1000
  %4934 = vmatpush1.bf16.msra.mxu0 %v999
  %4935 = vmatprep.subr.bf16.mxu0 %v992
  %4936 = vmatpush1.bf16.msra.mxu0 %v991
  %4937 = vmatprep.subr.bf16.mxu0 %v984
  %4938 = vmatpush1.bf16.msra.mxu0 %v983
  %4939 = vmatprep.subr.bf16.mxu0 %v976
  %4940 = vmatpush1.bf16.msra.mxu0 %v975
  %4941 = vmatprep.subr.bf16.mxu0 0
  %4942 = vmatpush2.bf16.msra.mxu0 0
  %4943 = vmatprep.subr.bf16.mxu0 0
  %4944 = vmatpush2.bf16.msra.mxu0 0
  %4945 = vmatprep.subr.bf16.mxu0 0
  %4946 = vmatpush2.bf16.msra.mxu0 0
  %4947 = vmatprep.subr.bf16.mxu0 0
  %4948 = vmatpush2.bf16.msra.mxu0 0
  %4949 = vmatprep.subr.bf16.mxu0 0
  %4950 = vmatpush2.bf16.msra.mxu0 0
  %4951 = vmatprep.subr.bf16.mxu0 0
  %4952 = vmatpush2.bf16.msra.mxu0 0
  %4953 = vmatprep.subr.bf16.mxu0 0
  %4954 = vmatpush2.bf16.msra.mxu0 0
  %4955 = vmatprep.subr.bf16.mxu0 0
  %4956 = vmatpush2.bf16.msra.mxu0 0
  %4957 = vmatprep.mubr.bf16.mxu0 0
  %4958 = vmatmul.mubr.bf16.gmra.mxu0 %v4633
  %v4959 = vpop.f32.mrf.mxu0
  %v4960 = vadd.f32 %v4919, %v4959
  %v4961 = vpop.f32.mrf.mxu0
  %v4962 = vadd.f32 %v4921, %v4961
  %v4963 = vpop.f32.mrf.mxu0
  %v4964 = vpop.f32.mrf.mxu0
  %4965 = vdwg.mxu0
  %4966 = vmatprep.subr.bf16.mxu0 %v3043
  %4967 = vmatpush1.bf16.msra.mxu0 %v3042
  %4968 = vmatprep.subr.bf16.mxu0 %v3035
  %4969 = vmatpush1.bf16.msra.mxu0 %v3034
  %4970 = vmatprep.subr.bf16.mxu0 %v3027
  %4971 = vmatpush1.bf16.msra.mxu0 %v3026
  %4972 = vmatprep.subr.bf16.mxu0 %v3019
  %4973 = vmatpush1.bf16.msra.mxu0 %v3018
  %4974 = vmatprep.subr.bf16.mxu0 %v3011
  %4975 = vmatpush1.bf16.msra.mxu0 %v3010
  %4976 = vmatprep.subr.bf16.mxu0 %v3003
  %4977 = vmatpush1.bf16.msra.mxu0 %v3002
  %4978 = vmatprep.subr.bf16.mxu0 %v2995
  %4979 = vmatpush1.bf16.msra.mxu0 %v2994
  %4980 = vmatprep.subr.bf16.mxu0 %v2987
  %4981 = vmatpush1.bf16.msra.mxu0 %v2986
  %4982 = vmatprep.subr.bf16.mxu0 %v3107
  %4983 = vmatpush2.bf16.msra.mxu0 %v3106
  %4984 = vmatprep.subr.bf16.mxu0 %v3099
  %4985 = vmatpush2.bf16.msra.mxu0 %v3098
  %4986 = vmatprep.subr.bf16.mxu0 %v3091
  %4987 = vmatpush2.bf16.msra.mxu0 %v3090
  %4988 = vmatprep.subr.bf16.mxu0 %v3083
  %4989 = vmatpush2.bf16.msra.mxu0 %v3082
  %4990 = vmatprep.subr.bf16.mxu0 %v3075
  %4991 = vmatpush2.bf16.msra.mxu0 %v3074
  %4992 = vmatprep.subr.bf16.mxu0 %v3067
  %4993 = vmatpush2.bf16.msra.mxu0 %v3066
  %4994 = vmatprep.subr.bf16.mxu0 %v3059
  %4995 = vmatpush2.bf16.msra.mxu0 %v3058
  %4996 = vmatprep.subr.bf16.mxu0 %v3051
  %4997 = vmatpush2.bf16.msra.mxu0 %v3050
  %4998 = vmatprep.mubr.bf16.mxu0 %v4633
  %4999 = vmatmul.mubr.bf16.gmra.mxu0 %v4632
  %v5000 = vpop.f32.mrf.mxu0
  %v5001 = vadd.f32 %v2181, %v5000
  %v5002 = vpop.f32.mrf.mxu0
  %v5003 = vadd.f32 %v2185, %v5002
  %v5004 = vpop.f32.mrf.mxu0
  %v5005 = vpop.f32.mrf.mxu0
  %5006 = vdwg.mxu0
  %5007 = vmatprep.subr.bf16.mxu0 %v3171
  %5008 = vmatpush1.bf16.msra.mxu0 %v3170
  %5009 = vmatprep.subr.bf16.mxu0 %v3163
  %5010 = vmatpush1.bf16.msra.mxu0 %v3162
  %5011 = vmatprep.subr.bf16.mxu0 %v3155
  %5012 = vmatpush1.bf16.msra.mxu0 %v3154
  %5013 = vmatprep.subr.bf16.mxu0 %v3147
  %5014 = vmatpush1.bf16.msra.mxu0 %v3146
  %5015 = vmatprep.subr.bf16.mxu0 %v3139
  %5016 = vmatpush1.bf16.msra.mxu0 %v3138
  %5017 = vmatprep.subr.bf16.mxu0 %v3131
  %5018 = vmatpush1.bf16.msra.mxu0 %v3130
  %5019 = vmatprep.subr.bf16.mxu0 %v3123
  %5020 = vmatpush1.bf16.msra.mxu0 %v3122
  %5021 = vmatprep.subr.bf16.mxu0 %v3115
  %5022 = vmatpush1.bf16.msra.mxu0 %v3114
  %5023 = vmatprep.subr.bf16.mxu0 %v3235
  %5024 = vmatpush2.bf16.msra.mxu0 %v3234
  %5025 = vmatprep.subr.bf16.mxu0 %v3227
  %5026 = vmatpush2.bf16.msra.mxu0 %v3226
  %5027 = vmatprep.subr.bf16.mxu0 %v3219
  %5028 = vmatpush2.bf16.msra.mxu0 %v3218
  %5029 = vmatprep.subr.bf16.mxu0 %v3211
  %5030 = vmatpush2.bf16.msra.mxu0 %v3210
  %5031 = vmatprep.subr.bf16.mxu0 %v3203
  %5032 = vmatpush2.bf16.msra.mxu0 %v3202
  %5033 = vmatprep.subr.bf16.mxu0 %v3195
  %5034 = vmatpush2.bf16.msra.mxu0 %v3194
  %5035 = vmatprep.subr.bf16.mxu0 %v3187
  %5036 = vmatpush2.bf16.msra.mxu0 %v3186
  %5037 = vmatprep.subr.bf16.mxu0 %v3179
  %5038 = vmatpush2.bf16.msra.mxu0 %v3178
  %5039 = vmatprep.mubr.bf16.mxu0 %v4635
  %5040 = vmatmul.mubr.bf16.gmra.mxu0 %v4634
  %v5041 = vpop.f32.mrf.mxu0
  %v5042 = vadd.f32 %v5001, %v5041
  %v5043 = vpop.f32.mrf.mxu0
  %v5044 = vadd.f32 %v5003, %v5043
  %v5045 = vpop.f32.mrf.mxu0
  %v5046 = vpop.f32.mrf.mxu0
  %5047 = vdwg.mxu0
  %5048 = vmatprep.subr.bf16.mxu0 %v3045
  %5049 = vmatpush1.bf16.msra.mxu0 %v3044
  %5050 = vmatprep.subr.bf16.mxu0 %v3037
  %5051 = vmatpush1.bf16.msra.mxu0 %v3036
  %5052 = vmatprep.subr.bf16.mxu0 %v3029
  %5053 = vmatpush1.bf16.msra.mxu0 %v3028
  %5054 = vmatprep.subr.bf16.mxu0 %v3021
  %5055 = vmatpush1.bf16.msra.mxu0 %v3020
  %5056 = vmatprep.subr.bf16.mxu0 %v3013
  %5057 = vmatpush1.bf16.msra.mxu0 %v3012
  %5058 = vmatprep.subr.bf16.mxu0 %v3005
  %5059 = vmatpush1.bf16.msra.mxu0 %v3004
  %5060 = vmatprep.subr.bf16.mxu0 %v2997
  %5061 = vmatpush1.bf16.msra.mxu0 %v2996
  %5062 = vmatprep.subr.bf16.mxu0 %v2989
  %5063 = vmatpush1.bf16.msra.mxu0 %v2988
  %5064 = vmatprep.subr.bf16.mxu0 %v3109
  %5065 = vmatpush2.bf16.msra.mxu0 %v3108
  %5066 = vmatprep.subr.bf16.mxu0 %v3101
  %5067 = vmatpush2.bf16.msra.mxu0 %v3100
  %5068 = vmatprep.subr.bf16.mxu0 %v3093
  %5069 = vmatpush2.bf16.msra.mxu0 %v3092
  %5070 = vmatprep.subr.bf16.mxu0 %v3085
  %5071 = vmatpush2.bf16.msra.mxu0 %v3084
  %5072 = vmatprep.subr.bf16.mxu0 %v3077
  %5073 = vmatpush2.bf16.msra.mxu0 %v3076
  %5074 = vmatprep.subr.bf16.mxu0 %v3069
  %5075 = vmatpush2.bf16.msra.mxu0 %v3068
  %5076 = vmatprep.subr.bf16.mxu0 %v3061
  %5077 = vmatpush2.bf16.msra.mxu0 %v3060
  %5078 = vmatprep.subr.bf16.mxu0 %v3053
  %5079 = vmatpush2.bf16.msra.mxu0 %v3052
  %5080 = vmatprep.mubr.bf16.mxu0 %v4633
  %5081 = vmatmul.mubr.bf16.gmra.mxu0 %v4632
  %v5082 = vpop.f32.mrf.mxu0
  %v5083 = vadd.f32 %v2189, %v5082
  %v5084 = vpop.f32.mrf.mxu0
  %v5085 = vadd.f32 %v2193, %v5084
  %v5086 = vpop.f32.mrf.mxu0
  %v5087 = vpop.f32.mrf.mxu0
  %5088 = vdwg.mxu0
  %5089 = vmatprep.subr.bf16.mxu0 %v3173
  %5090 = vmatpush1.bf16.msra.mxu0 %v3172
  %5091 = vmatprep.subr.bf16.mxu0 %v3165
  %5092 = vmatpush1.bf16.msra.mxu0 %v3164
  %5093 = vmatprep.subr.bf16.mxu0 %v3157
  %5094 = vmatpush1.bf16.msra.mxu0 %v3156
  %5095 = vmatprep.subr.bf16.mxu0 %v3149
  %5096 = vmatpush1.bf16.msra.mxu0 %v3148
  %5097 = vmatprep.subr.bf16.mxu0 %v3141
  %5098 = vmatpush1.bf16.msra.mxu0 %v3140
  %5099 = vmatprep.subr.bf16.mxu0 %v3133
  %5100 = vmatpush1.bf16.msra.mxu0 %v3132
  %5101 = vmatprep.subr.bf16.mxu0 %v3125
  %5102 = vmatpush1.bf16.msra.mxu0 %v3124
  %5103 = vmatprep.subr.bf16.mxu0 %v3117
  %5104 = vmatpush1.bf16.msra.mxu0 %v3116
  %5105 = vmatprep.subr.bf16.mxu0 %v3237
  %5106 = vmatpush2.bf16.msra.mxu0 %v3236
  %5107 = vmatprep.subr.bf16.mxu0 %v3229
  %5108 = vmatpush2.bf16.msra.mxu0 %v3228
  %5109 = vmatprep.subr.bf16.mxu0 %v3221
  %5110 = vmatpush2.bf16.msra.mxu0 %v3220
  %5111 = vmatprep.subr.bf16.mxu0 %v3213
  %5112 = vmatpush2.bf16.msra.mxu0 %v3212
  %5113 = vmatprep.subr.bf16.mxu0 %v3205
  %5114 = vmatpush2.bf16.msra.mxu0 %v3204
  %5115 = vmatprep.subr.bf16.mxu0 %v3197
  %5116 = vmatpush2.bf16.msra.mxu0 %v3196
  %5117 = vmatprep.subr.bf16.mxu0 %v3189
  %5118 = vmatpush2.bf16.msra.mxu0 %v3188
  %5119 = vmatprep.subr.bf16.mxu0 %v3181
  %5120 = vmatpush2.bf16.msra.mxu0 %v3180
  %5121 = vmatprep.mubr.bf16.mxu0 %v4635
  %5122 = vmatmul.mubr.bf16.gmra.mxu0 %v4634
  %v5123 = vpop.f32.mrf.mxu0
  %v5124 = vadd.f32 %v5083, %v5123
  %v5125 = vpop.f32.mrf.mxu0
  %v5126 = vadd.f32 %v5085, %v5125
  %v5127 = vpop.f32.mrf.mxu0
  %v5128 = vpop.f32.mrf.mxu0
  %5129 = vdwg.mxu0
  %5130 = vmatprep.subr.bf16.mxu0 %v3047
  %5131 = vmatpush1.bf16.msra.mxu0 %v3046
  %5132 = vmatprep.subr.bf16.mxu0 %v3039
  %5133 = vmatpush1.bf16.msra.mxu0 %v3038
  %5134 = vmatprep.subr.bf16.mxu0 %v3031
  %5135 = vmatpush1.bf16.msra.mxu0 %v3030
  %5136 = vmatprep.subr.bf16.mxu0 %v3023
  %5137 = vmatpush1.bf16.msra.mxu0 %v3022
  %5138 = vmatprep.subr.bf16.mxu0 %v3015
  %5139 = vmatpush1.bf16.msra.mxu0 %v3014
  %5140 = vmatprep.subr.bf16.mxu0 %v3007
  %5141 = vmatpush1.bf16.msra.mxu0 %v3006
  %5142 = vmatprep.subr.bf16.mxu0 %v2999
  %5143 = vmatpush1.bf16.msra.mxu0 %v2998
  %5144 = vmatprep.subr.bf16.mxu0 %v2991
  %5145 = vmatpush1.bf16.msra.mxu0 %v2990
  %5146 = vmatprep.subr.bf16.mxu0 %v3111
  %5147 = vmatpush2.bf16.msra.mxu0 %v3110
  %5148 = vmatprep.subr.bf16.mxu0 %v3103
  %5149 = vmatpush2.bf16.msra.mxu0 %v3102
  %5150 = vmatprep.subr.bf16.mxu0 %v3095
  %5151 = vmatpush2.bf16.msra.mxu0 %v3094
  %5152 = vmatprep.subr.bf16.mxu0 %v3087
  %5153 = vmatpush2.bf16.msra.mxu0 %v3086
  %5154 = vmatprep.subr.bf16.mxu0 %v3079
  %5155 = vmatpush2.bf16.msra.mxu0 %v3078
  %5156 = vmatprep.subr.bf16.mxu0 %v3071
  %5157 = vmatpush2.bf16.msra.mxu0 %v3070
  %5158 = vmatprep.subr.bf16.mxu0 %v3063
  %5159 = vmatpush2.bf16.msra.mxu0 %v3062
  %5160 = vmatprep.subr.bf16.mxu0 %v3055
  %5161 = vmatpush2.bf16.msra.mxu0 %v3054
  %5162 = vmatprep.mubr.bf16.mxu0 %v4633
  %5163 = vmatmul.mubr.bf16.gmra.mxu0 %v4632
  %v5164 = vpop.f32.mrf.mxu0
  %v5165 = vadd.f32 %v2197, %v5164
  %v5166 = vpop.f32.mrf.mxu0
  %v5167 = vadd.f32 %v2201, %v5166
  %v5168 = vpop.f32.mrf.mxu0
  %v5169 = vpop.f32.mrf.mxu0
  %5170 = vdwg.mxu0
  %5171 = vmatprep.subr.bf16.mxu0 %v3175
  %5172 = vmatpush1.bf16.msra.mxu0 %v3174
  %5173 = vmatprep.subr.bf16.mxu0 %v3167
  %5174 = vmatpush1.bf16.msra.mxu0 %v3166
  %5175 = vmatprep.subr.bf16.mxu0 %v3159
  %5176 = vmatpush1.bf16.msra.mxu0 %v3158
  %5177 = vmatprep.subr.bf16.mxu0 %v3151
  %5178 = vmatpush1.bf16.msra.mxu0 %v3150
  %5179 = vmatprep.subr.bf16.mxu0 %v3143
  %5180 = vmatpush1.bf16.msra.mxu0 %v3142
  %5181 = vmatprep.subr.bf16.mxu0 %v3135
  %5182 = vmatpush1.bf16.msra.mxu0 %v3134
  %5183 = vmatprep.subr.bf16.mxu0 %v3127
  %5184 = vmatpush1.bf16.msra.mxu0 %v3126
  %5185 = vmatprep.subr.bf16.mxu0 %v3119
  %5186 = vmatpush1.bf16.msra.mxu0 %v3118
  %5187 = vmatprep.subr.bf16.mxu0 %v3239
  %5188 = vmatpush2.bf16.msra.mxu0 %v3238
  %5189 = vmatprep.subr.bf16.mxu0 %v3231
  %5190 = vmatpush2.bf16.msra.mxu0 %v3230
  %5191 = vmatprep.subr.bf16.mxu0 %v3223
  %5192 = vmatpush2.bf16.msra.mxu0 %v3222
  %5193 = vmatprep.subr.bf16.mxu0 %v3215
  %5194 = vmatpush2.bf16.msra.mxu0 %v3214
  %5195 = vmatprep.subr.bf16.mxu0 %v3207
  %5196 = vmatpush2.bf16.msra.mxu0 %v3206
  %5197 = vmatprep.subr.bf16.mxu0 %v3199
  %5198 = vmatpush2.bf16.msra.mxu0 %v3198
  %5199 = vmatprep.subr.bf16.mxu0 %v3191
  %5200 = vmatpush2.bf16.msra.mxu0 %v3190
  %5201 = vmatprep.subr.bf16.mxu0 %v3183
  %5202 = vmatpush2.bf16.msra.mxu0 %v3182
  %5203 = vmatprep.mubr.bf16.mxu0 %v4635
  %5204 = vmatmul.mubr.bf16.gmra.mxu0 %v4634
  %v5205 = vpop.f32.mrf.mxu0
  %v5206 = vadd.f32 %v5165, %v5205
  %v5207 = vpop.f32.mrf.mxu0
  %v5208 = vadd.f32 %v5167, %v5207
  %v5209 = vpop.f32.mrf.mxu0
  %v5210 = vpop.f32.mrf.mxu0
  %5211 = vdwg.mxu0
  %5212 = vmatprep.subr.bf16.mxu0 %v3049
  %5213 = vmatpush1.bf16.msra.mxu0 %v3048
  %5214 = vmatprep.subr.bf16.mxu0 %v3041
  %5215 = vmatpush1.bf16.msra.mxu0 %v3040
  %5216 = vmatprep.subr.bf16.mxu0 %v3033
  %5217 = vmatpush1.bf16.msra.mxu0 %v3032
  %5218 = vmatprep.subr.bf16.mxu0 %v3025
  %5219 = vmatpush1.bf16.msra.mxu0 %v3024
  %5220 = vmatprep.subr.bf16.mxu0 %v3017
  %5221 = vmatpush1.bf16.msra.mxu0 %v3016
  %5222 = vmatprep.subr.bf16.mxu0 %v3009
  %5223 = vmatpush1.bf16.msra.mxu0 %v3008
  %5224 = vmatprep.subr.bf16.mxu0 %v3001
  %5225 = vmatpush1.bf16.msra.mxu0 %v3000
  %5226 = vmatprep.subr.bf16.mxu0 %v2993
  %5227 = vmatpush1.bf16.msra.mxu0 %v2992
  %5228 = vmatprep.subr.bf16.mxu0 %v3113
  %5229 = vmatpush2.bf16.msra.mxu0 %v3112
  %5230 = vmatprep.subr.bf16.mxu0 %v3105
  %5231 = vmatpush2.bf16.msra.mxu0 %v3104
  %5232 = vmatprep.subr.bf16.mxu0 %v3097
  %5233 = vmatpush2.bf16.msra.mxu0 %v3096
  %5234 = vmatprep.subr.bf16.mxu0 %v3089
  %5235 = vmatpush2.bf16.msra.mxu0 %v3088
  %5236 = vmatprep.subr.bf16.mxu0 %v3081
  %5237 = vmatpush2.bf16.msra.mxu0 %v3080
  %5238 = vmatprep.subr.bf16.mxu0 %v3073
  %5239 = vmatpush2.bf16.msra.mxu0 %v3072
  %5240 = vmatprep.subr.bf16.mxu0 %v3065
  %5241 = vmatpush2.bf16.msra.mxu0 %v3064
  %5242 = vmatprep.subr.bf16.mxu0 %v3057
  %5243 = vmatpush2.bf16.msra.mxu0 %v3056
  %5244 = vmatprep.mubr.bf16.mxu0 %v4633
  %5245 = vmatmul.mubr.bf16.gmra.mxu0 %v4632
  %v5246 = vpop.f32.mrf.mxu0
  %v5247 = vadd.f32 %v2205, %v5246
  %v5248 = vpop.f32.mrf.mxu0
  %v5249 = vadd.f32 %v2209, %v5248
  %v5250 = vpop.f32.mrf.mxu0
  %v5251 = vpop.f32.mrf.mxu0
  %5252 = vdwg.mxu0
  %5253 = vmatprep.subr.bf16.mxu0 %v3177
  %5254 = vmatpush1.bf16.msra.mxu0 %v3176
  %5255 = vmatprep.subr.bf16.mxu0 %v3169
  %5256 = vmatpush1.bf16.msra.mxu0 %v3168
  %5257 = vmatprep.subr.bf16.mxu0 %v3161
  %5258 = vmatpush1.bf16.msra.mxu0 %v3160
  %5259 = vmatprep.subr.bf16.mxu0 %v3153
  %5260 = vmatpush1.bf16.msra.mxu0 %v3152
  %5261 = vmatprep.subr.bf16.mxu0 %v3145
  %5262 = vmatpush1.bf16.msra.mxu0 %v3144
  %5263 = vmatprep.subr.bf16.mxu0 %v3137
  %5264 = vmatpush1.bf16.msra.mxu0 %v3136
  %5265 = vmatprep.subr.bf16.mxu0 %v3129
  %5266 = vmatpush1.bf16.msra.mxu0 %v3128
  %5267 = vmatprep.subr.bf16.mxu0 %v3121
  %5268 = vmatpush1.bf16.msra.mxu0 %v3120
  %5269 = vmatprep.subr.bf16.mxu0 %v3241
  %5270 = vmatpush2.bf16.msra.mxu0 %v3240
  %5271 = vmatprep.subr.bf16.mxu0 %v3233
  %5272 = vmatpush2.bf16.msra.mxu0 %v3232
  %5273 = vmatprep.subr.bf16.mxu0 %v3225
  %5274 = vmatpush2.bf16.msra.mxu0 %v3224
  %5275 = vmatprep.subr.bf16.mxu0 %v3217
  %5276 = vmatpush2.bf16.msra.mxu0 %v3216
  %5277 = vmatprep.subr.bf16.mxu0 %v3209
  %5278 = vmatpush2.bf16.msra.mxu0 %v3208
  %5279 = vmatprep.subr.bf16.mxu0 %v3201
  %5280 = vmatpush2.bf16.msra.mxu0 %v3200
  %5281 = vmatprep.subr.bf16.mxu0 %v3193
  %5282 = vmatpush2.bf16.msra.mxu0 %v3192
  %5283 = vmatprep.subr.bf16.mxu0 %v3185
  %5284 = vmatpush2.bf16.msra.mxu0 %v3184
  %5285 = vmatprep.mubr.bf16.mxu0 %v4635
  %5286 = vmatmul.mubr.bf16.gmra.mxu0 %v4634
  %v5287 = vpop.f32.mrf.mxu0
  %v5288 = vadd.f32 %v5247, %v5287
  %v5289 = vpop.f32.mrf.mxu0
  %v5290 = vadd.f32 %v5249, %v5289
  %v5291 = vpop.f32.mrf.mxu0
  %v5292 = vpop.f32.mrf.mxu0
  %5293 = vdwg.mxu0
  %v5294 = vmul.f32 %v4714, 0.5
  %v5295 = vmul.f32 %v4716, 0.5
  %v5296 = vtanh.pop %v5294
  %v5297 = vtanh.pop %v5295
  %v5298 = vadd.f32 %v5296, 1.0
  %v5299 = vadd.f32 %v5297, 1.0
  %v5300 = vmul.f32 %v5298, 0.5
  %v5301 = vmul.f32 %v5299, 0.5
  %v5302 = vmul.f32 %v4796, 0.5
  %v5303 = vmul.f32 %v4798, 0.5
  %v5304 = vtanh.pop %v5302
  %v5305 = vtanh.pop %v5303
  %v5306 = vadd.f32 %v5304, 1.0
  %v5307 = vadd.f32 %v5305, 1.0
  %v5308 = vmul.f32 %v5306, 0.5
  %v5309 = vmul.f32 %v5307, 0.5
  %v5310 = vtanh.pop %v4878
  %v5311 = vtanh.pop %v4880
  %v5312 = vmul.f32 %v4960, 0.5
  %v5313 = vmul.f32 %v4962, 0.5
  %v5314 = vtanh.pop %v5312
  %v5315 = vtanh.pop %v5313
  %v5316 = vadd.f32 %v5314, 1.0
  %v5317 = vadd.f32 %v5315, 1.0
  %v5318 = vmul.f32 %v5316, 0.5
  %v5319 = vmul.f32 %v5317, 0.5
  %v5320 = vmul.f32 %v5308, %v4590
  %v5321 = vmul.f32 %v5309, %v4591
  %v5322 = vmul.f32 %v5300, %v5310
  %v5323 = vmul.f32 %v5301, %v5311
  %v5324 = vadd.f32 %v5320, %v5322
  %v5325 = vadd.f32 %v5321, %v5323
  %v5326 = vtanh.pop %v5324
  %v5327 = vtanh.pop %v5325
  %v5328 = vmul.f32 %v5318, %v5326
  %v5329 = vmul.f32 %v5319, %v5327
  %v5330 = vmul.f32 %v5042, 0.5
  %v5331 = vmul.f32 %v5044, 0.5
  %v5332 = vtanh.pop %v5330
  %v5333 = vtanh.pop %v5331
  %v5334 = vadd.f32 %v5332, 1.0
  %v5335 = vadd.f32 %v5333, 1.0
  %v5336 = vmul.f32 %v5334, 0.5
  %v5337 = vmul.f32 %v5335, 0.5
  %v5338 = vmul.f32 %v5124, 0.5
  %v5339 = vmul.f32 %v5126, 0.5
  %v5340 = vtanh.pop %v5338
  %v5341 = vtanh.pop %v5339
  %v5342 = vadd.f32 %v5340, 1.0
  %v5343 = vadd.f32 %v5341, 1.0
  %v5344 = vmul.f32 %v5342, 0.5
  %v5345 = vmul.f32 %v5343, 0.5
  %v5346 = vtanh.pop %v5206
  %v5347 = vtanh.pop %v5208
  %v5348 = vmul.f32 %v5288, 0.5
  %v5349 = vmul.f32 %v5290, 0.5
  %v5350 = vtanh.pop %v5348
  %v5351 = vtanh.pop %v5349
  %v5352 = vadd.f32 %v5350, 1.0
  %v5353 = vadd.f32 %v5351, 1.0
  %v5354 = vmul.f32 %v5352, 0.5
  %v5355 = vmul.f32 %v5353, 0.5
  %v5356 = vmul.f32 %v5344, %v4626
  %v5357 = vmul.f32 %v5345, %v4627
  %v5358 = vmul.f32 %v5336, %v5346
  %v5359 = vmul.f32 %v5337, %v5347
  %v5360 = vadd.f32 %v5356, %v5358
  %v5361 = vadd.f32 %v5357, %v5359
  %v5362 = vtanh.pop %v5360
  %v5363 = vtanh.pop %v5361
  %v5364 = vmul.f32 %v5354, %v5362
  %v5365 = vmul.f32 %v5355, %v5363
  %v5366 = vpack.c.bf16 %v5328, %v5328
  %v5367 = vpack.c.bf16 %v5329, %v5329
  %v5368 = vpack.c.bf16 %v5364, %v5364
  %v5369 = vpack.c.bf16 %v5365, %v5365
  %s5370 = scalar_lea.vmem %s0, 4
  %v5371 = vld [vmem:[%s5370] sm:$0x1]
  %5372 = vmatprep.subr.bf16.mxu0 %v898
  %5373 = vmatpush1.bf16.msra.mxu0 %v897
  %5374 = vmatprep.subr.bf16.mxu0 %v890
  %5375 = vmatpush1.bf16.msra.mxu0 %v889
  %5376 = vmatprep.subr.bf16.mxu0 %v882
  %5377 = vmatpush1.bf16.msra.mxu0 %v881
  %5378 = vmatprep.subr.bf16.mxu0 %v874
  %5379 = vmatpush1.bf16.msra.mxu0 %v873
  %5380 = vmatprep.subr.bf16.mxu0 %v866
  %5381 = vmatpush1.bf16.msra.mxu0 %v865
  %5382 = vmatprep.subr.bf16.mxu0 %v858
  %5383 = vmatpush1.bf16.msra.mxu0 %v857
  %5384 = vmatprep.subr.bf16.mxu0 %v850
  %5385 = vmatpush1.bf16.msra.mxu0 %v849
  %5386 = vmatprep.subr.bf16.mxu0 %v842
  %5387 = vmatpush1.bf16.msra.mxu0 %v841
  %5388 = vmatprep.subr.bf16.mxu0 %v962
  %5389 = vmatpush2.bf16.msra.mxu0 %v961
  %5390 = vmatprep.subr.bf16.mxu0 %v954
  %5391 = vmatpush2.bf16.msra.mxu0 %v953
  %5392 = vmatprep.subr.bf16.mxu0 %v946
  %5393 = vmatpush2.bf16.msra.mxu0 %v945
  %5394 = vmatprep.subr.bf16.mxu0 %v938
  %5395 = vmatpush2.bf16.msra.mxu0 %v937
  %5396 = vmatprep.subr.bf16.mxu0 %v930
  %5397 = vmatpush2.bf16.msra.mxu0 %v929
  %5398 = vmatprep.subr.bf16.mxu0 %v922
  %5399 = vmatpush2.bf16.msra.mxu0 %v921
  %5400 = vmatprep.subr.bf16.mxu0 %v914
  %5401 = vmatpush2.bf16.msra.mxu0 %v913
  %5402 = vmatprep.subr.bf16.mxu0 %v906
  %5403 = vmatpush2.bf16.msra.mxu0 %v905
  %5404 = vmatprep.mubr.bf16.mxu0 %v5366
  %5405 = vmatmul.mubr.bf16.gmra.mxu0 %v5371
  %v5406 = vpop.f32.mrf.mxu0
  %v5407 = vadd.f32 %v228, %v5406
  %v5408 = vpop.f32.mrf.mxu0
  %v5409 = vadd.f32 %v232, %v5408
  %v5410 = vpop.f32.mrf.mxu0
  %v5411 = vpop.f32.mrf.mxu0
  %5412 = vdwg.mxu0
  %5413 = vmatprep.subr.bf16.mxu0 %v1026
  %5414 = vmatpush1.bf16.msra.mxu0 %v1025
  %5415 = vmatprep.subr.bf16.mxu0 %v1018
  %5416 = vmatpush1.bf16.msra.mxu0 %v1017
  %5417 = vmatprep.subr.bf16.mxu0 %v1010
  %5418 = vmatpush1.bf16.msra.mxu0 %v1009
  %5419 = vmatprep.subr.bf16.mxu0 %v1002
  %5420 = vmatpush1.bf16.msra.mxu0 %v1001
  %5421 = vmatprep.subr.bf16.mxu0 %v994
  %5422 = vmatpush1.bf16.msra.mxu0 %v993
  %5423 = vmatprep.subr.bf16.mxu0 %v986
  %5424 = vmatpush1.bf16.msra.mxu0 %v985
  %5425 = vmatprep.subr.bf16.mxu0 %v978
  %5426 = vmatpush1.bf16.msra.mxu0 %v977
  %5427 = vmatprep.subr.bf16.mxu0 %v970
  %5428 = vmatpush1.bf16.msra.mxu0 %v969
  %5429 = vmatprep.subr.bf16.mxu0 0
  %5430 = vmatpush2.bf16.msra.mxu0 0
  %5431 = vmatprep.subr.bf16.mxu0 0
  %5432 = vmatpush2.bf16.msra.mxu0 0
  %5433 = vmatprep.subr.bf16.mxu0 0
  %5434 = vmatpush2.bf16.msra.mxu0 0
  %5435 = vmatprep.subr.bf16.mxu0 0
  %5436 = vmatpush2.bf16.msra.mxu0 0
  %5437 = vmatprep.subr.bf16.mxu0 0
  %5438 = vmatpush2.bf16.msra.mxu0 0
  %5439 = vmatprep.subr.bf16.mxu0 0
  %5440 = vmatpush2.bf16.msra.mxu0 0
  %5441 = vmatprep.subr.bf16.mxu0 0
  %5442 = vmatpush2.bf16.msra.mxu0 0
  %5443 = vmatprep.subr.bf16.mxu0 0
  %5444 = vmatpush2.bf16.msra.mxu0 0
  %5445 = vmatprep.mubr.bf16.mxu0 0
  %5446 = vmatmul.mubr.bf16.gmra.mxu0 %v5367
  %v5447 = vpop.f32.mrf.mxu0
  %v5448 = vadd.f32 %v5407, %v5447
  %v5449 = vpop.f32.mrf.mxu0
  %v5450 = vadd.f32 %v5409, %v5449
  %v5451 = vpop.f32.mrf.mxu0
  %v5452 = vpop.f32.mrf.mxu0
  %5453 = vdwg.mxu0
  %5454 = vmatprep.subr.bf16.mxu0 %v900
  %5455 = vmatpush1.bf16.msra.mxu0 %v899
  %5456 = vmatprep.subr.bf16.mxu0 %v892
  %5457 = vmatpush1.bf16.msra.mxu0 %v891
  %5458 = vmatprep.subr.bf16.mxu0 %v884
  %5459 = vmatpush1.bf16.msra.mxu0 %v883
  %5460 = vmatprep.subr.bf16.mxu0 %v876
  %5461 = vmatpush1.bf16.msra.mxu0 %v875
  %5462 = vmatprep.subr.bf16.mxu0 %v868
  %5463 = vmatpush1.bf16.msra.mxu0 %v867
  %5464 = vmatprep.subr.bf16.mxu0 %v860
  %5465 = vmatpush1.bf16.msra.mxu0 %v859
  %5466 = vmatprep.subr.bf16.mxu0 %v852
  %5467 = vmatpush1.bf16.msra.mxu0 %v851
  %5468 = vmatprep.subr.bf16.mxu0 %v844
  %5469 = vmatpush1.bf16.msra.mxu0 %v843
  %5470 = vmatprep.subr.bf16.mxu0 %v964
  %5471 = vmatpush2.bf16.msra.mxu0 %v963
  %5472 = vmatprep.subr.bf16.mxu0 %v956
  %5473 = vmatpush2.bf16.msra.mxu0 %v955
  %5474 = vmatprep.subr.bf16.mxu0 %v948
  %5475 = vmatpush2.bf16.msra.mxu0 %v947
  %5476 = vmatprep.subr.bf16.mxu0 %v940
  %5477 = vmatpush2.bf16.msra.mxu0 %v939
  %5478 = vmatprep.subr.bf16.mxu0 %v932
  %5479 = vmatpush2.bf16.msra.mxu0 %v931
  %5480 = vmatprep.subr.bf16.mxu0 %v924
  %5481 = vmatpush2.bf16.msra.mxu0 %v923
  %5482 = vmatprep.subr.bf16.mxu0 %v916
  %5483 = vmatpush2.bf16.msra.mxu0 %v915
  %5484 = vmatprep.subr.bf16.mxu0 %v908
  %5485 = vmatpush2.bf16.msra.mxu0 %v907
  %5486 = vmatprep.mubr.bf16.mxu0 %v5366
  %5487 = vmatmul.mubr.bf16.gmra.mxu0 %v5371
  %v5488 = vpop.f32.mrf.mxu0
  %v5489 = vadd.f32 %v236, %v5488
  %v5490 = vpop.f32.mrf.mxu0
  %v5491 = vadd.f32 %v240, %v5490
  %v5492 = vpop.f32.mrf.mxu0
  %v5493 = vpop.f32.mrf.mxu0
  %5494 = vdwg.mxu0
  %5495 = vmatprep.subr.bf16.mxu0 %v1028
  %5496 = vmatpush1.bf16.msra.mxu0 %v1027
  %5497 = vmatprep.subr.bf16.mxu0 %v1020
  %5498 = vmatpush1.bf16.msra.mxu0 %v1019
  %5499 = vmatprep.subr.bf16.mxu0 %v1012
  %5500 = vmatpush1.bf16.msra.mxu0 %v1011
  %5501 = vmatprep.subr.bf16.mxu0 %v1004
  %5502 = vmatpush1.bf16.msra.mxu0 %v1003
  %5503 = vmatprep.subr.bf16.mxu0 %v996
  %5504 = vmatpush1.bf16.msra.mxu0 %v995
  %5505 = vmatprep.subr.bf16.mxu0 %v988
  %5506 = vmatpush1.bf16.msra.mxu0 %v987
  %5507 = vmatprep.subr.bf16.mxu0 %v980
  %5508 = vmatpush1.bf16.msra.mxu0 %v979
  %5509 = vmatprep.subr.bf16.mxu0 %v972
  %5510 = vmatpush1.bf16.msra.mxu0 %v971
  %5511 = vmatprep.subr.bf16.mxu0 0
  %5512 = vmatpush2.bf16.msra.mxu0 0
  %5513 = vmatprep.subr.bf16.mxu0 0
  %5514 = vmatpush2.bf16.msra.mxu0 0
  %5515 = vmatprep.subr.bf16.mxu0 0
  %5516 = vmatpush2.bf16.msra.mxu0 0
  %5517 = vmatprep.subr.bf16.mxu0 0
  %5518 = vmatpush2.bf16.msra.mxu0 0
  %5519 = vmatprep.subr.bf16.mxu0 0
  %5520 = vmatpush2.bf16.msra.mxu0 0
  %5521 = vmatprep.subr.bf16.mxu0 0
  %5522 = vmatpush2.bf16.msra.mxu0 0
  %5523 = vmatprep.subr.bf16.mxu0 0
  %5524 = vmatpush2.bf16.msra.mxu0 0
  %5525 = vmatprep.subr.bf16.mxu0 0
  %5526 = vmatpush2.bf16.msra.mxu0 0
  %5527 = vmatprep.mubr.bf16.mxu0 0
  %5528 = vmatmul.mubr.bf16.gmra.mxu0 %v5367
  %v5529 = vpop.f32.mrf.mxu0
  %v5530 = vadd.f32 %v5489, %v5529
  %v5531 = vpop.f32.mrf.mxu0
  %v5532 = vadd.f32 %v5491, %v5531
  %v5533 = vpop.f32.mrf.mxu0
  %v5534 = vpop.f32.mrf.mxu0
  %5535 = vdwg.mxu0
  %5536 = vmatprep.subr.bf16.mxu0 %v902
  %5537 = vmatpush1.bf16.msra.mxu0 %v901
  %5538 = vmatprep.subr.bf16.mxu0 %v894
  %5539 = vmatpush1.bf16.msra.mxu0 %v893
  %5540 = vmatprep.subr.bf16.mxu0 %v886
  %5541 = vmatpush1.bf16.msra.mxu0 %v885
  %5542 = vmatprep.subr.bf16.mxu0 %v878
  %5543 = vmatpush1.bf16.msra.mxu0 %v877
  %5544 = vmatprep.subr.bf16.mxu0 %v870
  %5545 = vmatpush1.bf16.msra.mxu0 %v869
  %5546 = vmatprep.subr.bf16.mxu0 %v862
  %5547 = vmatpush1.bf16.msra.mxu0 %v861
  %5548 = vmatprep.subr.bf16.mxu0 %v854
  %5549 = vmatpush1.bf16.msra.mxu0 %v853
  %5550 = vmatprep.subr.bf16.mxu0 %v846
  %5551 = vmatpush1.bf16.msra.mxu0 %v845
  %5552 = vmatprep.subr.bf16.mxu0 %v966
  %5553 = vmatpush2.bf16.msra.mxu0 %v965
  %5554 = vmatprep.subr.bf16.mxu0 %v958
  %5555 = vmatpush2.bf16.msra.mxu0 %v957
  %5556 = vmatprep.subr.bf16.mxu0 %v950
  %5557 = vmatpush2.bf16.msra.mxu0 %v949
  %5558 = vmatprep.subr.bf16.mxu0 %v942
  %5559 = vmatpush2.bf16.msra.mxu0 %v941
  %5560 = vmatprep.subr.bf16.mxu0 %v934
  %5561 = vmatpush2.bf16.msra.mxu0 %v933
  %5562 = vmatprep.subr.bf16.mxu0 %v926
  %5563 = vmatpush2.bf16.msra.mxu0 %v925
  %5564 = vmatprep.subr.bf16.mxu0 %v918
  %5565 = vmatpush2.bf16.msra.mxu0 %v917
  %5566 = vmatprep.subr.bf16.mxu0 %v910
  %5567 = vmatpush2.bf16.msra.mxu0 %v909
  %5568 = vmatprep.mubr.bf16.mxu0 %v5366
  %5569 = vmatmul.mubr.bf16.gmra.mxu0 %v5371
  %v5570 = vpop.f32.mrf.mxu0
  %v5571 = vadd.f32 %v244, %v5570
  %v5572 = vpop.f32.mrf.mxu0
  %v5573 = vadd.f32 %v248, %v5572
  %v5574 = vpop.f32.mrf.mxu0
  %v5575 = vpop.f32.mrf.mxu0
  %5576 = vdwg.mxu0
  %5577 = vmatprep.subr.bf16.mxu0 %v1030
  %5578 = vmatpush1.bf16.msra.mxu0 %v1029
  %5579 = vmatprep.subr.bf16.mxu0 %v1022
  %5580 = vmatpush1.bf16.msra.mxu0 %v1021
  %5581 = vmatprep.subr.bf16.mxu0 %v1014
  %5582 = vmatpush1.bf16.msra.mxu0 %v1013
  %5583 = vmatprep.subr.bf16.mxu0 %v1006
  %5584 = vmatpush1.bf16.msra.mxu0 %v1005
  %5585 = vmatprep.subr.bf16.mxu0 %v998
  %5586 = vmatpush1.bf16.msra.mxu0 %v997
  %5587 = vmatprep.subr.bf16.mxu0 %v990
  %5588 = vmatpush1.bf16.msra.mxu0 %v989
  %5589 = vmatprep.subr.bf16.mxu0 %v982
  %5590 = vmatpush1.bf16.msra.mxu0 %v981
  %5591 = vmatprep.subr.bf16.mxu0 %v974
  %5592 = vmatpush1.bf16.msra.mxu0 %v973
  %5593 = vmatprep.subr.bf16.mxu0 0
  %5594 = vmatpush2.bf16.msra.mxu0 0
  %5595 = vmatprep.subr.bf16.mxu0 0
  %5596 = vmatpush2.bf16.msra.mxu0 0
  %5597 = vmatprep.subr.bf16.mxu0 0
  %5598 = vmatpush2.bf16.msra.mxu0 0
  %5599 = vmatprep.subr.bf16.mxu0 0
  %5600 = vmatpush2.bf16.msra.mxu0 0
  %5601 = vmatprep.subr.bf16.mxu0 0
  %5602 = vmatpush2.bf16.msra.mxu0 0
  %5603 = vmatprep.subr.bf16.mxu0 0
  %5604 = vmatpush2.bf16.msra.mxu0 0
  %5605 = vmatprep.subr.bf16.mxu0 0
  %5606 = vmatpush2.bf16.msra.mxu0 0
  %5607 = vmatprep.subr.bf16.mxu0 0
  %5608 = vmatpush2.bf16.msra.mxu0 0
  %5609 = vmatprep.mubr.bf16.mxu0 0
  %5610 = vmatmul.mubr.bf16.gmra.mxu0 %v5367
  %v5611 = vpop.f32.mrf.mxu0
  %v5612 = vadd.f32 %v5571, %v5611
  %v5613 = vpop.f32.mrf.mxu0
  %v5614 = vadd.f32 %v5573, %v5613
  %v5615 = vpop.f32.mrf.mxu0
  %v5616 = vpop.f32.mrf.mxu0
  %5617 = vdwg.mxu0
  %5618 = vmatprep.subr.bf16.mxu0 %v904
  %5619 = vmatpush1.bf16.msra.mxu0 %v903
  %5620 = vmatprep.subr.bf16.mxu0 %v896
  %5621 = vmatpush1.bf16.msra.mxu0 %v895
  %5622 = vmatprep.subr.bf16.mxu0 %v888
  %5623 = vmatpush1.bf16.msra.mxu0 %v887
  %5624 = vmatprep.subr.bf16.mxu0 %v880
  %5625 = vmatpush1.bf16.msra.mxu0 %v879
  %5626 = vmatprep.subr.bf16.mxu0 %v872
  %5627 = vmatpush1.bf16.msra.mxu0 %v871
  %5628 = vmatprep.subr.bf16.mxu0 %v864
  %5629 = vmatpush1.bf16.msra.mxu0 %v863
  %5630 = vmatprep.subr.bf16.mxu0 %v856
  %5631 = vmatpush1.bf16.msra.mxu0 %v855
  %5632 = vmatprep.subr.bf16.mxu0 %v848
  %5633 = vmatpush1.bf16.msra.mxu0 %v847
  %5634 = vmatprep.subr.bf16.mxu0 %v968
  %5635 = vmatpush2.bf16.msra.mxu0 %v967
  %5636 = vmatprep.subr.bf16.mxu0 %v960
  %5637 = vmatpush2.bf16.msra.mxu0 %v959
  %5638 = vmatprep.subr.bf16.mxu0 %v952
  %5639 = vmatpush2.bf16.msra.mxu0 %v951
  %5640 = vmatprep.subr.bf16.mxu0 %v944
  %5641 = vmatpush2.bf16.msra.mxu0 %v943
  %5642 = vmatprep.subr.bf16.mxu0 %v936
  %5643 = vmatpush2.bf16.msra.mxu0 %v935
  %5644 = vmatprep.subr.bf16.mxu0 %v928
  %5645 = vmatpush2.bf16.msra.mxu0 %v927
  %5646 = vmatprep.subr.bf16.mxu0 %v920
  %5647 = vmatpush2.bf16.msra.mxu0 %v919
  %5648 = vmatprep.subr.bf16.mxu0 %v912
  %5649 = vmatpush2.bf16.msra.mxu0 %v911
  %5650 = vmatprep.mubr.bf16.mxu0 %v5366
  %5651 = vmatmul.mubr.bf16.gmra.mxu0 %v5371
  %v5652 = vpop.f32.mrf.mxu0
  %v5653 = vadd.f32 %v252, %v5652
  %v5654 = vpop.f32.mrf.mxu0
  %v5655 = vadd.f32 %v256, %v5654
  %v5656 = vpop.f32.mrf.mxu0
  %v5657 = vpop.f32.mrf.mxu0
  %5658 = vdwg.mxu0
  %5659 = vmatprep.subr.bf16.mxu0 %v1032
  %5660 = vmatpush1.bf16.msra.mxu0 %v1031
  %5661 = vmatprep.subr.bf16.mxu0 %v1024
  %5662 = vmatpush1.bf16.msra.mxu0 %v1023
  %5663 = vmatprep.subr.bf16.mxu0 %v1016
  %5664 = vmatpush1.bf16.msra.mxu0 %v1015
  %5665 = vmatprep.subr.bf16.mxu0 %v1008
  %5666 = vmatpush1.bf16.msra.mxu0 %v1007
  %5667 = vmatprep.subr.bf16.mxu0 %v1000
  %5668 = vmatpush1.bf16.msra.mxu0 %v999
  %5669 = vmatprep.subr.bf16.mxu0 %v992
  %5670 = vmatpush1.bf16.msra.mxu0 %v991
  %5671 = vmatprep.subr.bf16.mxu0 %v984
  %5672 = vmatpush1.bf16.msra.mxu0 %v983
  %5673 = vmatprep.subr.bf16.mxu0 %v976
  %5674 = vmatpush1.bf16.msra.mxu0 %v975
  %5675 = vmatprep.subr.bf16.mxu0 0
  %5676 = vmatpush2.bf16.msra.mxu0 0
  %5677 = vmatprep.subr.bf16.mxu0 0
  %5678 = vmatpush2.bf16.msra.mxu0 0
  %5679 = vmatprep.subr.bf16.mxu0 0
  %5680 = vmatpush2.bf16.msra.mxu0 0
  %5681 = vmatprep.subr.bf16.mxu0 0
  %5682 = vmatpush2.bf16.msra.mxu0 0
  %5683 = vmatprep.subr.bf16.mxu0 0
  %5684 = vmatpush2.bf16.msra.mxu0 0
  %5685 = vmatprep.subr.bf16.mxu0 0
  %5686 = vmatpush2.bf16.msra.mxu0 0
  %5687 = vmatprep.subr.bf16.mxu0 0
  %5688 = vmatpush2.bf16.msra.mxu0 0
  %5689 = vmatprep.subr.bf16.mxu0 0
  %5690 = vmatpush2.bf16.msra.mxu0 0
  %5691 = vmatprep.mubr.bf16.mxu0 0
  %5692 = vmatmul.mubr.bf16.gmra.mxu0 %v5367
  %v5693 = vpop.f32.mrf.mxu0
  %v5694 = vadd.f32 %v5653, %v5693
  %v5695 = vpop.f32.mrf.mxu0
  %v5696 = vadd.f32 %v5655, %v5695
  %v5697 = vpop.f32.mrf.mxu0
  %v5698 = vpop.f32.mrf.mxu0
  %5699 = vdwg.mxu0
  %5700 = vmatprep.subr.bf16.mxu0 %v3043
  %5701 = vmatpush1.bf16.msra.mxu0 %v3042
  %5702 = vmatprep.subr.bf16.mxu0 %v3035
  %5703 = vmatpush1.bf16.msra.mxu0 %v3034
  %5704 = vmatprep.subr.bf16.mxu0 %v3027
  %5705 = vmatpush1.bf16.msra.mxu0 %v3026
  %5706 = vmatprep.subr.bf16.mxu0 %v3019
  %5707 = vmatpush1.bf16.msra.mxu0 %v3018
  %5708 = vmatprep.subr.bf16.mxu0 %v3011
  %5709 = vmatpush1.bf16.msra.mxu0 %v3010
  %5710 = vmatprep.subr.bf16.mxu0 %v3003
  %5711 = vmatpush1.bf16.msra.mxu0 %v3002
  %5712 = vmatprep.subr.bf16.mxu0 %v2995
  %5713 = vmatpush1.bf16.msra.mxu0 %v2994
  %5714 = vmatprep.subr.bf16.mxu0 %v2987
  %5715 = vmatpush1.bf16.msra.mxu0 %v2986
  %5716 = vmatprep.subr.bf16.mxu0 %v3107
  %5717 = vmatpush2.bf16.msra.mxu0 %v3106
  %5718 = vmatprep.subr.bf16.mxu0 %v3099
  %5719 = vmatpush2.bf16.msra.mxu0 %v3098
  %5720 = vmatprep.subr.bf16.mxu0 %v3091
  %5721 = vmatpush2.bf16.msra.mxu0 %v3090
  %5722 = vmatprep.subr.bf16.mxu0 %v3083
  %5723 = vmatpush2.bf16.msra.mxu0 %v3082
  %5724 = vmatprep.subr.bf16.mxu0 %v3075
  %5725 = vmatpush2.bf16.msra.mxu0 %v3074
  %5726 = vmatprep.subr.bf16.mxu0 %v3067
  %5727 = vmatpush2.bf16.msra.mxu0 %v3066
  %5728 = vmatprep.subr.bf16.mxu0 %v3059
  %5729 = vmatpush2.bf16.msra.mxu0 %v3058
  %5730 = vmatprep.subr.bf16.mxu0 %v3051
  %5731 = vmatpush2.bf16.msra.mxu0 %v3050
  %5732 = vmatprep.mubr.bf16.mxu0 %v5367
  %5733 = vmatmul.mubr.bf16.gmra.mxu0 %v5366
  %v5734 = vpop.f32.mrf.mxu0
  %v5735 = vadd.f32 %v2181, %v5734
  %v5736 = vpop.f32.mrf.mxu0
  %v5737 = vadd.f32 %v2185, %v5736
  %v5738 = vpop.f32.mrf.mxu0
  %v5739 = vpop.f32.mrf.mxu0
  %5740 = vdwg.mxu0
  %5741 = vmatprep.subr.bf16.mxu0 %v3171
  %5742 = vmatpush1.bf16.msra.mxu0 %v3170
  %5743 = vmatprep.subr.bf16.mxu0 %v3163
  %5744 = vmatpush1.bf16.msra.mxu0 %v3162
  %5745 = vmatprep.subr.bf16.mxu0 %v3155
  %5746 = vmatpush1.bf16.msra.mxu0 %v3154
  %5747 = vmatprep.subr.bf16.mxu0 %v3147
  %5748 = vmatpush1.bf16.msra.mxu0 %v3146
  %5749 = vmatprep.subr.bf16.mxu0 %v3139
  %5750 = vmatpush1.bf16.msra.mxu0 %v3138
  %5751 = vmatprep.subr.bf16.mxu0 %v3131
  %5752 = vmatpush1.bf16.msra.mxu0 %v3130
  %5753 = vmatprep.subr.bf16.mxu0 %v3123
  %5754 = vmatpush1.bf16.msra.mxu0 %v3122
  %5755 = vmatprep.subr.bf16.mxu0 %v3115
  %5756 = vmatpush1.bf16.msra.mxu0 %v3114
  %5757 = vmatprep.subr.bf16.mxu0 %v3235
  %5758 = vmatpush2.bf16.msra.mxu0 %v3234
  %5759 = vmatprep.subr.bf16.mxu0 %v3227
  %5760 = vmatpush2.bf16.msra.mxu0 %v3226
  %5761 = vmatprep.subr.bf16.mxu0 %v3219
  %5762 = vmatpush2.bf16.msra.mxu0 %v3218
  %5763 = vmatprep.subr.bf16.mxu0 %v3211
  %5764 = vmatpush2.bf16.msra.mxu0 %v3210
  %5765 = vmatprep.subr.bf16.mxu0 %v3203
  %5766 = vmatpush2.bf16.msra.mxu0 %v3202
  %5767 = vmatprep.subr.bf16.mxu0 %v3195
  %5768 = vmatpush2.bf16.msra.mxu0 %v3194
  %5769 = vmatprep.subr.bf16.mxu0 %v3187
  %5770 = vmatpush2.bf16.msra.mxu0 %v3186
  %5771 = vmatprep.subr.bf16.mxu0 %v3179
  %5772 = vmatpush2.bf16.msra.mxu0 %v3178
  %5773 = vmatprep.mubr.bf16.mxu0 %v5369
  %5774 = vmatmul.mubr.bf16.gmra.mxu0 %v5368
  %v5775 = vpop.f32.mrf.mxu0
  %v5776 = vadd.f32 %v5735, %v5775
  %v5777 = vpop.f32.mrf.mxu0
  %v5778 = vadd.f32 %v5737, %v5777
  %v5779 = vpop.f32.mrf.mxu0
  %v5780 = vpop.f32.mrf.mxu0
  %5781 = vdwg.mxu0
  %5782 = vmatprep.subr.bf16.mxu0 %v3045
  %5783 = vmatpush1.bf16.msra.mxu0 %v3044
  %5784 = vmatprep.subr.bf16.mxu0 %v3037
  %5785 = vmatpush1.bf16.msra.mxu0 %v3036
  %5786 = vmatprep.subr.bf16.mxu0 %v3029
  %5787 = vmatpush1.bf16.msra.mxu0 %v3028
  %5788 = vmatprep.subr.bf16.mxu0 %v3021
  %5789 = vmatpush1.bf16.msra.mxu0 %v3020
  %5790 = vmatprep.subr.bf16.mxu0 %v3013
  %5791 = vmatpush1.bf16.msra.mxu0 %v3012
  %5792 = vmatprep.subr.bf16.mxu0 %v3005
  %5793 = vmatpush1.bf16.msra.mxu0 %v3004
  %5794 = vmatprep.subr.bf16.mxu0 %v2997
  %5795 = vmatpush1.bf16.msra.mxu0 %v2996
  %5796 = vmatprep.subr.bf16.mxu0 %v2989
  %5797 = vmatpush1.bf16.msra.mxu0 %v2988
  %5798 = vmatprep.subr.bf16.mxu0 %v3109
  %5799 = vmatpush2.bf16.msra.mxu0 %v3108
  %5800 = vmatprep.subr.bf16.mxu0 %v3101
  %5801 = vmatpush2.bf16.msra.mxu0 %v3100
  %5802 = vmatprep.subr.bf16.mxu0 %v3093
  %5803 = vmatpush2.bf16.msra.mxu0 %v3092
  %5804 = vmatprep.subr.bf16.mxu0 %v3085
  %5805 = vmatpush2.bf16.msra.mxu0 %v3084
  %5806 = vmatprep.subr.bf16.mxu0 %v3077
  %5807 = vmatpush2.bf16.msra.mxu0 %v3076
  %5808 = vmatprep.subr.bf16.mxu0 %v3069
  %5809 = vmatpush2.bf16.msra.mxu0 %v3068
  %5810 = vmatprep.subr.bf16.mxu0 %v3061
  %5811 = vmatpush2.bf16.msra.mxu0 %v3060
  %5812 = vmatprep.subr.bf16.mxu0 %v3053
  %5813 = vmatpush2.bf16.msra.mxu0 %v3052
  %5814 = vmatprep.mubr.bf16.mxu0 %v5367
  %5815 = vmatmul.mubr.bf16.gmra.mxu0 %v5366
  %v5816 = vpop.f32.mrf.mxu0
  %v5817 = vadd.f32 %v2189, %v5816
  %v5818 = vpop.f32.mrf.mxu0
  %v5819 = vadd.f32 %v2193, %v5818
  %v5820 = vpop.f32.mrf.mxu0
  %v5821 = vpop.f32.mrf.mxu0
  %5822 = vdwg.mxu0
  %5823 = vmatprep.subr.bf16.mxu0 %v3173
  %5824 = vmatpush1.bf16.msra.mxu0 %v3172
  %5825 = vmatprep.subr.bf16.mxu0 %v3165
  %5826 = vmatpush1.bf16.msra.mxu0 %v3164
  %5827 = vmatprep.subr.bf16.mxu0 %v3157
  %5828 = vmatpush1.bf16.msra.mxu0 %v3156
  %5829 = vmatprep.subr.bf16.mxu0 %v3149
  %5830 = vmatpush1.bf16.msra.mxu0 %v3148
  %5831 = vmatprep.subr.bf16.mxu0 %v3141
  %5832 = vmatpush1.bf16.msra.mxu0 %v3140
  %5833 = vmatprep.subr.bf16.mxu0 %v3133
  %5834 = vmatpush1.bf16.msra.mxu0 %v3132
  %5835 = vmatprep.subr.bf16.mxu0 %v3125
  %5836 = vmatpush1.bf16.msra.mxu0 %v3124
  %5837 = vmatprep.subr.bf16.mxu0 %v3117
  %5838 = vmatpush1.bf16.msra.mxu0 %v3116
  %5839 = vmatprep.subr.bf16.mxu0 %v3237
  %5840 = vmatpush2.bf16.msra.mxu0 %v3236
  %5841 = vmatprep.subr.bf16.mxu0 %v3229
  %5842 = vmatpush2.bf16.msra.mxu0 %v3228
  %5843 = vmatprep.subr.bf16.mxu0 %v3221
  %5844 = vmatpush2.bf16.msra.mxu0 %v3220
  %5845 = vmatprep.subr.bf16.mxu0 %v3213
  %5846 = vmatpush2.bf16.msra.mxu0 %v3212
  %5847 = vmatprep.subr.bf16.mxu0 %v3205
  %5848 = vmatpush2.bf16.msra.mxu0 %v3204
  %5849 = vmatprep.subr.bf16.mxu0 %v3197
  %5850 = vmatpush2.bf16.msra.mxu0 %v3196
  %5851 = vmatprep.subr.bf16.mxu0 %v3189
  %5852 = vmatpush2.bf16.msra.mxu0 %v3188
  %5853 = vmatprep.subr.bf16.mxu0 %v3181
  %5854 = vmatpush2.bf16.msra.mxu0 %v3180
  %5855 = vmatprep.mubr.bf16.mxu0 %v5369
  %5856 = vmatmul.mubr.bf16.gmra.mxu0 %v5368
  %v5857 = vpop.f32.mrf.mxu0
  %v5858 = vadd.f32 %v5817, %v5857
  %v5859 = vpop.f32.mrf.mxu0
  %v5860 = vadd.f32 %v5819, %v5859
  %v5861 = vpop.f32.mrf.mxu0
  %v5862 = vpop.f32.mrf.mxu0
  %5863 = vdwg.mxu0
  %5864 = vmatprep.subr.bf16.mxu0 %v3047
  %5865 = vmatpush1.bf16.msra.mxu0 %v3046
  %5866 = vmatprep.subr.bf16.mxu0 %v3039
  %5867 = vmatpush1.bf16.msra.mxu0 %v3038
  %5868 = vmatprep.subr.bf16.mxu0 %v3031
  %5869 = vmatpush1.bf16.msra.mxu0 %v3030
  %5870 = vmatprep.subr.bf16.mxu0 %v3023
  %5871 = vmatpush1.bf16.msra.mxu0 %v3022
  %5872 = vmatprep.subr.bf16.mxu0 %v3015
  %5873 = vmatpush1.bf16.msra.mxu0 %v3014
  %5874 = vmatprep.subr.bf16.mxu0 %v3007
  %5875 = vmatpush1.bf16.msra.mxu0 %v3006
  %5876 = vmatprep.subr.bf16.mxu0 %v2999
  %5877 = vmatpush1.bf16.msra.mxu0 %v2998
  %5878 = vmatprep.subr.bf16.mxu0 %v2991
  %5879 = vmatpush1.bf16.msra.mxu0 %v2990
  %5880 = vmatprep.subr.bf16.mxu0 %v3111
  %5881 = vmatpush2.bf16.msra.mxu0 %v3110
  %5882 = vmatprep.subr.bf16.mxu0 %v3103
  %5883 = vmatpush2.bf16.msra.mxu0 %v3102
  %5884 = vmatprep.subr.bf16.mxu0 %v3095
  %5885 = vmatpush2.bf16.msra.mxu0 %v3094
  %5886 = vmatprep.subr.bf16.mxu0 %v3087
  %5887 = vmatpush2.bf16.msra.mxu0 %v3086
  %5888 = vmatprep.subr.bf16.mxu0 %v3079
  %5889 = vmatpush2.bf16.msra.mxu0 %v3078
  %5890 = vmatprep.subr.bf16.mxu0 %v3071
  %5891 = vmatpush2.bf16.msra.mxu0 %v3070
  %5892 = vmatprep.subr.bf16.mxu0 %v3063
  %5893 = vmatpush2.bf16.msra.mxu0 %v3062
  %5894 = vmatprep.subr.bf16.mxu0 %v3055
  %5895 = vmatpush2.bf16.msra.mxu0 %v3054
  %5896 = vmatprep.mubr.bf16.mxu0 %v5367
  %5897 = vmatmul.mubr.bf16.gmra.mxu0 %v5366
  %v5898 = vpop.f32.mrf.mxu0
  %v5899 = vadd.f32 %v2197, %v5898
  %v5900 = vpop.f32.mrf.mxu0
  %v5901 = vadd.f32 %v2201, %v5900
  %v5902 = vpop.f32.mrf.mxu0
  %v5903 = vpop.f32.mrf.mxu0
  %5904 = vdwg.mxu0
  %5905 = vmatprep.subr.bf16.mxu0 %v3175
  %5906 = vmatpush1.bf16.msra.mxu0 %v3174
  %5907 = vmatprep.subr.bf16.mxu0 %v3167
  %5908 = vmatpush1.bf16.msra.mxu0 %v3166
  %5909 = vmatprep.subr.bf16.mxu0 %v3159
  %5910 = vmatpush1.bf16.msra.mxu0 %v3158
  %5911 = vmatprep.subr.bf16.mxu0 %v3151
  %5912 = vmatpush1.bf16.msra.mxu0 %v3150
  %5913 = vmatprep.subr.bf16.mxu0 %v3143
  %5914 = vmatpush1.bf16.msra.mxu0 %v3142
  %5915 = vmatprep.subr.bf16.mxu0 %v3135
  %5916 = vmatpush1.bf16.msra.mxu0 %v3134
  %5917 = vmatprep.subr.bf16.mxu0 %v3127
  %5918 = vmatpush1.bf16.msra.mxu0 %v3126
  %5919 = vmatprep.subr.bf16.mxu0 %v3119
  %5920 = vmatpush1.bf16.msra.mxu0 %v3118
  %5921 = vmatprep.subr.bf16.mxu0 %v3239
  %5922 = vmatpush2.bf16.msra.mxu0 %v3238
  %5923 = vmatprep.subr.bf16.mxu0 %v3231
  %5924 = vmatpush2.bf16.msra.mxu0 %v3230
  %5925 = vmatprep.subr.bf16.mxu0 %v3223
  %5926 = vmatpush2.bf16.msra.mxu0 %v3222
  %5927 = vmatprep.subr.bf16.mxu0 %v3215
  %5928 = vmatpush2.bf16.msra.mxu0 %v3214
  %5929 = vmatprep.subr.bf16.mxu0 %v3207
  %5930 = vmatpush2.bf16.msra.mxu0 %v3206
  %5931 = vmatprep.subr.bf16.mxu0 %v3199
  %5932 = vmatpush2.bf16.msra.mxu0 %v3198
  %5933 = vmatprep.subr.bf16.mxu0 %v3191
  %5934 = vmatpush2.bf16.msra.mxu0 %v3190
  %5935 = vmatprep.subr.bf16.mxu0 %v3183
  %5936 = vmatpush2.bf16.msra.mxu0 %v3182
  %5937 = vmatprep.mubr.bf16.mxu0 %v5369
  %5938 = vmatmul.mubr.bf16.gmra.mxu0 %v5368
  %v5939 = vpop.f32.mrf.mxu0
  %v5940 = vadd.f32 %v5899, %v5939
  %v5941 = vpop.f32.mrf.mxu0
  %v5942 = vadd.f32 %v5901, %v5941
  %v5943 = vpop.f32.mrf.mxu0
  %v5944 = vpop.f32.mrf.mxu0
  %5945 = vdwg.mxu0
  %5946 = vmatprep.subr.bf16.mxu0 %v3049
  %5947 = vmatpush1.bf16.msra.mxu0 %v3048
  %5948 = vmatprep.subr.bf16.mxu0 %v3041
  %5949 = vmatpush1.bf16.msra.mxu0 %v3040
  %5950 = vmatprep.subr.bf16.mxu0 %v3033
  %5951 = vmatpush1.bf16.msra.mxu0 %v3032
  %5952 = vmatprep.subr.bf16.mxu0 %v3025
  %5953 = vmatpush1.bf16.msra.mxu0 %v3024
  %5954 = vmatprep.subr.bf16.mxu0 %v3017
  %5955 = vmatpush1.bf16.msra.mxu0 %v3016
  %5956 = vmatprep.subr.bf16.mxu0 %v3009
  %5957 = vmatpush1.bf16.msra.mxu0 %v3008
  %5958 = vmatprep.subr.bf16.mxu0 %v3001
  %5959 = vmatpush1.bf16.msra.mxu0 %v3000
  %5960 = vmatprep.subr.bf16.mxu0 %v2993
  %5961 = vmatpush1.bf16.msra.mxu0 %v2992
  %5962 = vmatprep.subr.bf16.mxu0 %v3113
  %5963 = vmatpush2.bf16.msra.mxu0 %v3112
  %5964 = vmatprep.subr.bf16.mxu0 %v3105
  %5965 = vmatpush2.bf16.msra.mxu0 %v3104
  %5966 = vmatprep.subr.bf16.mxu0 %v3097
  %5967 = vmatpush2.bf16.msra.mxu0 %v3096
  %5968 = vmatprep.subr.bf16.mxu0 %v3089
  %5969 = vmatpush2.bf16.msra.mxu0 %v3088
  %5970 = vmatprep.subr.bf16.mxu0 %v3081
  %5971 = vmatpush2.bf16.msra.mxu0 %v3080
  %5972 = vmatprep.subr.bf16.mxu0 %v3073
  %5973 = vmatpush2.bf16.msra.mxu0 %v3072
  %5974 = vmatprep.subr.bf16.mxu0 %v3065
  %5975 = vmatpush2.bf16.msra.mxu0 %v3064
  %5976 = vmatprep.subr.bf16.mxu0 %v3057
  %5977 = vmatpush2.bf16.msra.mxu0 %v3056
  %5978 = vmatprep.mubr.bf16.mxu0 %v5367
  %5979 = vmatmul.mubr.bf16.gmra.mxu0 %v5366
  %v5980 = vpop.f32.mrf.mxu0
  %v5981 = vadd.f32 %v2205, %v5980
  %v5982 = vpop.f32.mrf.mxu0
  %v5983 = vadd.f32 %v2209, %v5982
  %v5984 = vpop.f32.mrf.mxu0
  %v5985 = vpop.f32.mrf.mxu0
  %5986 = vdwg.mxu0
  %5987 = vmatprep.subr.bf16.mxu0 %v3177
  %5988 = vmatpush1.bf16.msra.mxu0 %v3176
  %5989 = vmatprep.subr.bf16.mxu0 %v3169
  %5990 = vmatpush1.bf16.msra.mxu0 %v3168
  %5991 = vmatprep.subr.bf16.mxu0 %v3161
  %5992 = vmatpush1.bf16.msra.mxu0 %v3160
  %5993 = vmatprep.subr.bf16.mxu0 %v3153
  %5994 = vmatpush1.bf16.msra.mxu0 %v3152
  %5995 = vmatprep.subr.bf16.mxu0 %v3145
  %5996 = vmatpush1.bf16.msra.mxu0 %v3144
  %5997 = vmatprep.subr.bf16.mxu0 %v3137
  %5998 = vmatpush1.bf16.msra.mxu0 %v3136
  %5999 = vmatprep.subr.bf16.mxu0 %v3129
  %6000 = vmatpush1.bf16.msra.mxu0 %v3128
  %6001 = vmatprep.subr.bf16.mxu0 %v3121
  %6002 = vmatpush1.bf16.msra.mxu0 %v3120
  %6003 = vmatprep.subr.bf16.mxu0 %v3241
  %6004 = vmatpush2.bf16.msra.mxu0 %v3240
  %6005 = vmatprep.subr.bf16.mxu0 %v3233
  %6006 = vmatpush2.bf16.msra.mxu0 %v3232
  %6007 = vmatprep.subr.bf16.mxu0 %v3225
  %6008 = vmatpush2.bf16.msra.mxu0 %v3224
  %6009 = vmatprep.subr.bf16.mxu0 %v3217
  %6010 = vmatpush2.bf16.msra.mxu0 %v3216
  %6011 = vmatprep.subr.bf16.mxu0 %v3209
  %6012 = vmatpush2.bf16.msra.mxu0 %v3208
  %6013 = vmatprep.subr.bf16.mxu0 %v3201
  %6014 = vmatpush2.bf16.msra.mxu0 %v3200
  %6015 = vmatprep.subr.bf16.mxu0 %v3193
  %6016 = vmatpush2.bf16.msra.mxu0 %v3192
  %6017 = vmatprep.subr.bf16.mxu0 %v3185
  %6018 = vmatpush2.bf16.msra.mxu0 %v3184
  %6019 = vmatprep.mubr.bf16.mxu0 %v5369
  %6020 = vmatmul.mubr.bf16.gmra.mxu0 %v5368
  %v6021 = vpop.f32.mrf.mxu0
  %v6022 = vadd.f32 %v5981, %v6021
  %v6023 = vpop.f32.mrf.mxu0
  %v6024 = vadd.f32 %v5983, %v6023
  %v6025 = vpop.f32.mrf.mxu0
  %v6026 = vpop.f32.mrf.mxu0
  %6027 = vdwg.mxu0
  %v6028 = vmul.f32 %v5448, 0.5
  %v6029 = vmul.f32 %v5450, 0.5
  %v6030 = vtanh.pop %v6028
  %v6031 = vtanh.pop %v6029
  %v6032 = vadd.f32 %v6030, 1.0
  %v6033 = vadd.f32 %v6031, 1.0
  %v6034 = vmul.f32 %v6032, 0.5
  %v6035 = vmul.f32 %v6033, 0.5
  %v6036 = vmul.f32 %v5530, 0.5
  %v6037 = vmul.f32 %v5532, 0.5
  %v6038 = vtanh.pop %v6036
  %v6039 = vtanh.pop %v6037
  %v6040 = vadd.f32 %v6038, 1.0
  %v6041 = vadd.f32 %v6039, 1.0
  %v6042 = vmul.f32 %v6040, 0.5
  %v6043 = vmul.f32 %v6041, 0.5
  %v6044 = vtanh.pop %v5612
  %v6045 = vtanh.pop %v5614
  %v6046 = vmul.f32 %v5694, 0.5
  %v6047 = vmul.f32 %v5696, 0.5
  %v6048 = vtanh.pop %v6046
  %v6049 = vtanh.pop %v6047
  %v6050 = vadd.f32 %v6048, 1.0
  %v6051 = vadd.f32 %v6049, 1.0
  %v6052 = vmul.f32 %v6050, 0.5
  %v6053 = vmul.f32 %v6051, 0.5
  %v6054 = vmul.f32 %v6042, %v5324
  %v6055 = vmul.f32 %v6043, %v5325
  %v6056 = vmul.f32 %v6034, %v6044
  %v6057 = vmul.f32 %v6035, %v6045
  %v6058 = vadd.f32 %v6054, %v6056
  %v6059 = vadd.f32 %v6055, %v6057
  %v6060 = vtanh.pop %v6058
  %v6061 = vtanh.pop %v6059
  %v6062 = vmul.f32 %v6052, %v6060
  %v6063 = vmul.f32 %v6053, %v6061
  %v6064 = vmul.f32 %v5776, 0.5
  %v6065 = vmul.f32 %v5778, 0.5
  %v6066 = vtanh.pop %v6064
  %v6067 = vtanh.pop %v6065
  %v6068 = vadd.f32 %v6066, 1.0
  %v6069 = vadd.f32 %v6067, 1.0
  %v6070 = vmul.f32 %v6068, 0.5
  %v6071 = vmul.f32 %v6069, 0.5
  %v6072 = vmul.f32 %v5858, 0.5
  %v6073 = vmul.f32 %v5860, 0.5
  %v6074 = vtanh.pop %v6072
  %v6075 = vtanh.pop %v6073
  %v6076 = vadd.f32 %v6074, 1.0
  %v6077 = vadd.f32 %v6075, 1.0
  %v6078 = vmul.f32 %v6076, 0.5
  %v6079 = vmul.f32 %v6077, 0.5
  %v6080 = vtanh.pop %v5940
  %v6081 = vtanh.pop %v5942
  %v6082 = vmul.f32 %v6022, 0.5
  %v6083 = vmul.f32 %v6024, 0.5
  %v6084 = vtanh.pop %v6082
  %v6085 = vtanh.pop %v6083
  %v6086 = vadd.f32 %v6084, 1.0
  %v6087 = vadd.f32 %v6085, 1.0
  %v6088 = vmul.f32 %v6086, 0.5
  %v6089 = vmul.f32 %v6087, 0.5
  %v6090 = vmul.f32 %v6078, %v5360
  %v6091 = vmul.f32 %v6079, %v5361
  %v6092 = vmul.f32 %v6070, %v6080
  %v6093 = vmul.f32 %v6071, %v6081
  %v6094 = vadd.f32 %v6090, %v6092
  %v6095 = vadd.f32 %v6091, %v6093
  %v6096 = vtanh.pop %v6094
  %v6097 = vtanh.pop %v6095
  %v6098 = vmul.f32 %v6088, %v6096
  %v6099 = vmul.f32 %v6089, %v6097
  %v6100 = vpack.c.bf16 %v6062, %v6062
  %v6101 = vpack.c.bf16 %v6063, %v6063
  %v6102 = vpack.c.bf16 %v6098, %v6098
  %v6103 = vpack.c.bf16 %v6099, %v6099
  %s6104 = scalar_lea.vmem %s0, 5
  %v6105 = vld [vmem:[%s6104] sm:$0x1]
  %6106 = vmatprep.subr.bf16.mxu0 %v898
  %6107 = vmatpush1.bf16.msra.mxu0 %v897
  %6108 = vmatprep.subr.bf16.mxu0 %v890
  %6109 = vmatpush1.bf16.msra.mxu0 %v889
  %6110 = vmatprep.subr.bf16.mxu0 %v882
  %6111 = vmatpush1.bf16.msra.mxu0 %v881
  %6112 = vmatprep.subr.bf16.mxu0 %v874
  %6113 = vmatpush1.bf16.msra.mxu0 %v873
  %6114 = vmatprep.subr.bf16.mxu0 %v866
  %6115 = vmatpush1.bf16.msra.mxu0 %v865
  %6116 = vmatprep.subr.bf16.mxu0 %v858
  %6117 = vmatpush1.bf16.msra.mxu0 %v857
  %6118 = vmatprep.subr.bf16.mxu0 %v850
  %6119 = vmatpush1.bf16.msra.mxu0 %v849
  %6120 = vmatprep.subr.bf16.mxu0 %v842
  %6121 = vmatpush1.bf16.msra.mxu0 %v841
  %6122 = vmatprep.subr.bf16.mxu0 %v962
  %6123 = vmatpush2.bf16.msra.mxu0 %v961
  %6124 = vmatprep.subr.bf16.mxu0 %v954
  %6125 = vmatpush2.bf16.msra.mxu0 %v953
  %6126 = vmatprep.subr.bf16.mxu0 %v946
  %6127 = vmatpush2.bf16.msra.mxu0 %v945
  %6128 = vmatprep.subr.bf16.mxu0 %v938
  %6129 = vmatpush2.bf16.msra.mxu0 %v937
  %6130 = vmatprep.subr.bf16.mxu0 %v930
  %6131 = vmatpush2.bf16.msra.mxu0 %v929
  %6132 = vmatprep.subr.bf16.mxu0 %v922
  %6133 = vmatpush2.bf16.msra.mxu0 %v921
  %6134 = vmatprep.subr.bf16.mxu0 %v914
  %6135 = vmatpush2.bf16.msra.mxu0 %v913
  %6136 = vmatprep.subr.bf16.mxu0 %v906
  %6137 = vmatpush2.bf16.msra.mxu0 %v905
  %6138 = vmatprep.mubr.bf16.mxu0 %v6100
  %6139 = vmatmul.mubr.bf16.gmra.mxu0 %v6105
  %v6140 = vpop.f32.mrf.mxu0
  %v6141 = vadd.f32 %v228, %v6140
  %v6142 = vpop.f32.mrf.mxu0
  %v6143 = vadd.f32 %v232, %v6142
  %v6144 = vpop.f32.mrf.mxu0
  %v6145 = vpop.f32.mrf.mxu0
  %6146 = vdwg.mxu0
  %6147 = vmatprep.subr.bf16.mxu0 %v1026
  %6148 = vmatpush1.bf16.msra.mxu0 %v1025
  %6149 = vmatprep.subr.bf16.mxu0 %v1018
  %6150 = vmatpush1.bf16.msra.mxu0 %v1017
  %6151 = vmatprep.subr.bf16.mxu0 %v1010
  %6152 = vmatpush1.bf16.msra.mxu0 %v1009
  %6153 = vmatprep.subr.bf16.mxu0 %v1002
  %6154 = vmatpush1.bf16.msra.mxu0 %v1001
  %6155 = vmatprep.subr.bf16.mxu0 %v994
  %6156 = vmatpush1.bf16.msra.mxu0 %v993
  %6157 = vmatprep.subr.bf16.mxu0 %v986
  %6158 = vmatpush1.bf16.msra.mxu0 %v985
  %6159 = vmatprep.subr.bf16.mxu0 %v978
  %6160 = vmatpush1.bf16.msra.mxu0 %v977
  %6161 = vmatprep.subr.bf16.mxu0 %v970
  %6162 = vmatpush1.bf16.msra.mxu0 %v969
  %6163 = vmatprep.subr.bf16.mxu0 0
  %6164 = vmatpush2.bf16.msra.mxu0 0
  %6165 = vmatprep.subr.bf16.mxu0 0
  %6166 = vmatpush2.bf16.msra.mxu0 0
  %6167 = vmatprep.subr.bf16.mxu0 0
  %6168 = vmatpush2.bf16.msra.mxu0 0
  %6169 = vmatprep.subr.bf16.mxu0 0
  %6170 = vmatpush2.bf16.msra.mxu0 0
  %6171 = vmatprep.subr.bf16.mxu0 0
  %6172 = vmatpush2.bf16.msra.mxu0 0
  %6173 = vmatprep.subr.bf16.mxu0 0
  %6174 = vmatpush2.bf16.msra.mxu0 0
  %6175 = vmatprep.subr.bf16.mxu0 0
  %6176 = vmatpush2.bf16.msra.mxu0 0
  %6177 = vmatprep.subr.bf16.mxu0 0
  %6178 = vmatpush2.bf16.msra.mxu0 0
  %6179 = vmatprep.mubr.bf16.mxu0 0
  %6180 = vmatmul.mubr.bf16.gmra.mxu0 %v6101
  %v6181 = vpop.f32.mrf.mxu0
  %v6182 = vadd.f32 %v6141, %v6181
  %v6183 = vpop.f32.mrf.mxu0
  %v6184 = vadd.f32 %v6143, %v6183
  %v6185 = vpop.f32.mrf.mxu0
  %v6186 = vpop.f32.mrf.mxu0
  %6187 = vdwg.mxu0
  %6188 = vmatprep.subr.bf16.mxu0 %v900
  %6189 = vmatpush1.bf16.msra.mxu0 %v899
  %6190 = vmatprep.subr.bf16.mxu0 %v892
  %6191 = vmatpush1.bf16.msra.mxu0 %v891
  %6192 = vmatprep.subr.bf16.mxu0 %v884
  %6193 = vmatpush1.bf16.msra.mxu0 %v883
  %6194 = vmatprep.subr.bf16.mxu0 %v876
  %6195 = vmatpush1.bf16.msra.mxu0 %v875
  %6196 = vmatprep.subr.bf16.mxu0 %v868
  %6197 = vmatpush1.bf16.msra.mxu0 %v867
  %6198 = vmatprep.subr.bf16.mxu0 %v860
  %6199 = vmatpush1.bf16.msra.mxu0 %v859
  %6200 = vmatprep.subr.bf16.mxu0 %v852
  %6201 = vmatpush1.bf16.msra.mxu0 %v851
  %6202 = vmatprep.subr.bf16.mxu0 %v844
  %6203 = vmatpush1.bf16.msra.mxu0 %v843
  %6204 = vmatprep.subr.bf16.mxu0 %v964
  %6205 = vmatpush2.bf16.msra.mxu0 %v963
  %6206 = vmatprep.subr.bf16.mxu0 %v956
  %6207 = vmatpush2.bf16.msra.mxu0 %v955
  %6208 = vmatprep.subr.bf16.mxu0 %v948
  %6209 = vmatpush2.bf16.msra.mxu0 %v947
  %6210 = vmatprep.subr.bf16.mxu0 %v940
  %6211 = vmatpush2.bf16.msra.mxu0 %v939
  %6212 = vmatprep.subr.bf16.mxu0 %v932
  %6213 = vmatpush2.bf16.msra.mxu0 %v931
  %6214 = vmatprep.subr.bf16.mxu0 %v924
  %6215 = vmatpush2.bf16.msra.mxu0 %v923
  %6216 = vmatprep.subr.bf16.mxu0 %v916
  %6217 = vmatpush2.bf16.msra.mxu0 %v915
  %6218 = vmatprep.subr.bf16.mxu0 %v908
  %6219 = vmatpush2.bf16.msra.mxu0 %v907
  %6220 = vmatprep.mubr.bf16.mxu0 %v6100
  %6221 = vmatmul.mubr.bf16.gmra.mxu0 %v6105
  %v6222 = vpop.f32.mrf.mxu0
  %v6223 = vadd.f32 %v236, %v6222
  %v6224 = vpop.f32.mrf.mxu0
  %v6225 = vadd.f32 %v240, %v6224
  %v6226 = vpop.f32.mrf.mxu0
  %v6227 = vpop.f32.mrf.mxu0
  %6228 = vdwg.mxu0
  %6229 = vmatprep.subr.bf16.mxu0 %v1028
  %6230 = vmatpush1.bf16.msra.mxu0 %v1027
  %6231 = vmatprep.subr.bf16.mxu0 %v1020
  %6232 = vmatpush1.bf16.msra.mxu0 %v1019
  %6233 = vmatprep.subr.bf16.mxu0 %v1012
  %6234 = vmatpush1.bf16.msra.mxu0 %v1011
  %6235 = vmatprep.subr.bf16.mxu0 %v1004
  %6236 = vmatpush1.bf16.msra.mxu0 %v1003
  %6237 = vmatprep.subr.bf16.mxu0 %v996
  %6238 = vmatpush1.bf16.msra.mxu0 %v995
  %6239 = vmatprep.subr.bf16.mxu0 %v988
  %6240 = vmatpush1.bf16.msra.mxu0 %v987
  %6241 = vmatprep.subr.bf16.mxu0 %v980
  %6242 = vmatpush1.bf16.msra.mxu0 %v979
  %6243 = vmatprep.subr.bf16.mxu0 %v972
  %6244 = vmatpush1.bf16.msra.mxu0 %v971
  %6245 = vmatprep.subr.bf16.mxu0 0
  %6246 = vmatpush2.bf16.msra.mxu0 0
  %6247 = vmatprep.subr.bf16.mxu0 0
  %6248 = vmatpush2.bf16.msra.mxu0 0
  %6249 = vmatprep.subr.bf16.mxu0 0
  %6250 = vmatpush2.bf16.msra.mxu0 0
  %6251 = vmatprep.subr.bf16.mxu0 0
  %6252 = vmatpush2.bf16.msra.mxu0 0
  %6253 = vmatprep.subr.bf16.mxu0 0
  %6254 = vmatpush2.bf16.msra.mxu0 0
  %6255 = vmatprep.subr.bf16.mxu0 0
  %6256 = vmatpush2.bf16.msra.mxu0 0
  %6257 = vmatprep.subr.bf16.mxu0 0
  %6258 = vmatpush2.bf16.msra.mxu0 0
  %6259 = vmatprep.subr.bf16.mxu0 0
  %6260 = vmatpush2.bf16.msra.mxu0 0
  %6261 = vmatprep.mubr.bf16.mxu0 0
  %6262 = vmatmul.mubr.bf16.gmra.mxu0 %v6101
  %v6263 = vpop.f32.mrf.mxu0
  %v6264 = vadd.f32 %v6223, %v6263
  %v6265 = vpop.f32.mrf.mxu0
  %v6266 = vadd.f32 %v6225, %v6265
  %v6267 = vpop.f32.mrf.mxu0
  %v6268 = vpop.f32.mrf.mxu0
  %6269 = vdwg.mxu0
  %6270 = vmatprep.subr.bf16.mxu0 %v902
  %6271 = vmatpush1.bf16.msra.mxu0 %v901
  %6272 = vmatprep.subr.bf16.mxu0 %v894
  %6273 = vmatpush1.bf16.msra.mxu0 %v893
  %6274 = vmatprep.subr.bf16.mxu0 %v886
  %6275 = vmatpush1.bf16.msra.mxu0 %v885
  %6276 = vmatprep.subr.bf16.mxu0 %v878
  %6277 = vmatpush1.bf16.msra.mxu0 %v877
  %6278 = vmatprep.subr.bf16.mxu0 %v870
  %6279 = vmatpush1.bf16.msra.mxu0 %v869
  %6280 = vmatprep.subr.bf16.mxu0 %v862
  %6281 = vmatpush1.bf16.msra.mxu0 %v861
  %6282 = vmatprep.subr.bf16.mxu0 %v854
  %6283 = vmatpush1.bf16.msra.mxu0 %v853
  %6284 = vmatprep.subr.bf16.mxu0 %v846
  %6285 = vmatpush1.bf16.msra.mxu0 %v845
  %6286 = vmatprep.subr.bf16.mxu0 %v966
  %6287 = vmatpush2.bf16.msra.mxu0 %v965
  %6288 = vmatprep.subr.bf16.mxu0 %v958
  %6289 = vmatpush2.bf16.msra.mxu0 %v957
  %6290 = vmatprep.subr.bf16.mxu0 %v950
  %6291 = vmatpush2.bf16.msra.mxu0 %v949
  %6292 = vmatprep.subr.bf16.mxu0 %v942
  %6293 = vmatpush2.bf16.msra.mxu0 %v941
  %6294 = vmatprep.subr.bf16.mxu0 %v934
  %6295 = vmatpush2.bf16.msra.mxu0 %v933
  %6296 = vmatprep.subr.bf16.mxu0 %v926
  %6297 = vmatpush2.bf16.msra.mxu0 %v925
  %6298 = vmatprep.subr.bf16.mxu0 %v918
  %6299 = vmatpush2.bf16.msra.mxu0 %v917
  %6300 = vmatprep.subr.bf16.mxu0 %v910
  %6301 = vmatpush2.bf16.msra.mxu0 %v909
  %6302 = vmatprep.mubr.bf16.mxu0 %v6100
  %6303 = vmatmul.mubr.bf16.gmra.mxu0 %v6105
  %v6304 = vpop.f32.mrf.mxu0
  %v6305 = vadd.f32 %v244, %v6304
  %v6306 = vpop.f32.mrf.mxu0
  %v6307 = vadd.f32 %v248, %v6306
  %v6308 = vpop.f32.mrf.mxu0
  %v6309 = vpop.f32.mrf.mxu0
  %6310 = vdwg.mxu0
  %6311 = vmatprep.subr.bf16.mxu0 %v1030
  %6312 = vmatpush1.bf16.msra.mxu0 %v1029
  %6313 = vmatprep.subr.bf16.mxu0 %v1022
  %6314 = vmatpush1.bf16.msra.mxu0 %v1021
  %6315 = vmatprep.subr.bf16.mxu0 %v1014
  %6316 = vmatpush1.bf16.msra.mxu0 %v1013
  %6317 = vmatprep.subr.bf16.mxu0 %v1006
  %6318 = vmatpush1.bf16.msra.mxu0 %v1005
  %6319 = vmatprep.subr.bf16.mxu0 %v998
  %6320 = vmatpush1.bf16.msra.mxu0 %v997
  %6321 = vmatprep.subr.bf16.mxu0 %v990
  %6322 = vmatpush1.bf16.msra.mxu0 %v989
  %6323 = vmatprep.subr.bf16.mxu0 %v982
  %6324 = vmatpush1.bf16.msra.mxu0 %v981
  %6325 = vmatprep.subr.bf16.mxu0 %v974
  %6326 = vmatpush1.bf16.msra.mxu0 %v973
  %6327 = vmatprep.subr.bf16.mxu0 0
  %6328 = vmatpush2.bf16.msra.mxu0 0
  %6329 = vmatprep.subr.bf16.mxu0 0
  %6330 = vmatpush2.bf16.msra.mxu0 0
  %6331 = vmatprep.subr.bf16.mxu0 0
  %6332 = vmatpush2.bf16.msra.mxu0 0
  %6333 = vmatprep.subr.bf16.mxu0 0
  %6334 = vmatpush2.bf16.msra.mxu0 0
  %6335 = vmatprep.subr.bf16.mxu0 0
  %6336 = vmatpush2.bf16.msra.mxu0 0
  %6337 = vmatprep.subr.bf16.mxu0 0
  %6338 = vmatpush2.bf16.msra.mxu0 0
  %6339 = vmatprep.subr.bf16.mxu0 0
  %6340 = vmatpush2.bf16.msra.mxu0 0
  %6341 = vmatprep.subr.bf16.mxu0 0
  %6342 = vmatpush2.bf16.msra.mxu0 0
  %6343 = vmatprep.mubr.bf16.mxu0 0
  %6344 = vmatmul.mubr.bf16.gmra.mxu0 %v6101
  %v6345 = vpop.f32.mrf.mxu0
  %v6346 = vadd.f32 %v6305, %v6345
  %v6347 = vpop.f32.mrf.mxu0
  %v6348 = vadd.f32 %v6307, %v6347
  %v6349 = vpop.f32.mrf.mxu0
  %v6350 = vpop.f32.mrf.mxu0
  %6351 = vdwg.mxu0
  %6352 = vmatprep.subr.bf16.mxu0 %v904
  %6353 = vmatpush1.bf16.msra.mxu0 %v903
  %6354 = vmatprep.subr.bf16.mxu0 %v896
  %6355 = vmatpush1.bf16.msra.mxu0 %v895
  %6356 = vmatprep.subr.bf16.mxu0 %v888
  %6357 = vmatpush1.bf16.msra.mxu0 %v887
  %6358 = vmatprep.subr.bf16.mxu0 %v880
  %6359 = vmatpush1.bf16.msra.mxu0 %v879
  %6360 = vmatprep.subr.bf16.mxu0 %v872
  %6361 = vmatpush1.bf16.msra.mxu0 %v871
  %6362 = vmatprep.subr.bf16.mxu0 %v864
  %6363 = vmatpush1.bf16.msra.mxu0 %v863
  %6364 = vmatprep.subr.bf16.mxu0 %v856
  %6365 = vmatpush1.bf16.msra.mxu0 %v855
  %6366 = vmatprep.subr.bf16.mxu0 %v848
  %6367 = vmatpush1.bf16.msra.mxu0 %v847
  %6368 = vmatprep.subr.bf16.mxu0 %v968
  %6369 = vmatpush2.bf16.msra.mxu0 %v967
  %6370 = vmatprep.subr.bf16.mxu0 %v960
  %6371 = vmatpush2.bf16.msra.mxu0 %v959
  %6372 = vmatprep.subr.bf16.mxu0 %v952
  %6373 = vmatpush2.bf16.msra.mxu0 %v951
  %6374 = vmatprep.subr.bf16.mxu0 %v944
  %6375 = vmatpush2.bf16.msra.mxu0 %v943
  %6376 = vmatprep.subr.bf16.mxu0 %v936
  %6377 = vmatpush2.bf16.msra.mxu0 %v935
  %6378 = vmatprep.subr.bf16.mxu0 %v928
  %6379 = vmatpush2.bf16.msra.mxu0 %v927
  %6380 = vmatprep.subr.bf16.mxu0 %v920
  %6381 = vmatpush2.bf16.msra.mxu0 %v919
  %6382 = vmatprep.subr.bf16.mxu0 %v912
  %6383 = vmatpush2.bf16.msra.mxu0 %v911
  %6384 = vmatprep.mubr.bf16.mxu0 %v6100
  %6385 = vmatmul.mubr.bf16.gmra.mxu0 %v6105
  %v6386 = vpop.f32.mrf.mxu0
  %v6387 = vadd.f32 %v252, %v6386
  %v6388 = vpop.f32.mrf.mxu0
  %v6389 = vadd.f32 %v256, %v6388
  %v6390 = vpop.f32.mrf.mxu0
  %v6391 = vpop.f32.mrf.mxu0
  %6392 = vdwg.mxu0
  %6393 = vmatprep.subr.bf16.mxu0 %v1032
  %6394 = vmatpush1.bf16.msra.mxu0 %v1031
  %6395 = vmatprep.subr.bf16.mxu0 %v1024
  %6396 = vmatpush1.bf16.msra.mxu0 %v1023
  %6397 = vmatprep.subr.bf16.mxu0 %v1016
  %6398 = vmatpush1.bf16.msra.mxu0 %v1015
  %6399 = vmatprep.subr.bf16.mxu0 %v1008
  %6400 = vmatpush1.bf16.msra.mxu0 %v1007
  %6401 = vmatprep.subr.bf16.mxu0 %v1000
  %6402 = vmatpush1.bf16.msra.mxu0 %v999
  %6403 = vmatprep.subr.bf16.mxu0 %v992
  %6404 = vmatpush1.bf16.msra.mxu0 %v991
  %6405 = vmatprep.subr.bf16.mxu0 %v984
  %6406 = vmatpush1.bf16.msra.mxu0 %v983
  %6407 = vmatprep.subr.bf16.mxu0 %v976
  %6408 = vmatpush1.bf16.msra.mxu0 %v975
  %6409 = vmatprep.subr.bf16.mxu0 0
  %6410 = vmatpush2.bf16.msra.mxu0 0
  %6411 = vmatprep.subr.bf16.mxu0 0
  %6412 = vmatpush2.bf16.msra.mxu0 0
  %6413 = vmatprep.subr.bf16.mxu0 0
  %6414 = vmatpush2.bf16.msra.mxu0 0
  %6415 = vmatprep.subr.bf16.mxu0 0
  %6416 = vmatpush2.bf16.msra.mxu0 0
  %6417 = vmatprep.subr.bf16.mxu0 0
  %6418 = vmatpush2.bf16.msra.mxu0 0
  %6419 = vmatprep.subr.bf16.mxu0 0
  %6420 = vmatpush2.bf16.msra.mxu0 0
  %6421 = vmatprep.subr.bf16.mxu0 0
  %6422 = vmatpush2.bf16.msra.mxu0 0
  %6423 = vmatprep.subr.bf16.mxu0 0
  %6424 = vmatpush2.bf16.msra.mxu0 0
  %6425 = vmatprep.mubr.bf16.mxu0 0
  %6426 = vmatmul.mubr.bf16.gmra.mxu0 %v6101
  %v6427 = vpop.f32.mrf.mxu0
  %v6428 = vadd.f32 %v6387, %v6427
  %v6429 = vpop.f32.mrf.mxu0
  %v6430 = vadd.f32 %v6389, %v6429
  %v6431 = vpop.f32.mrf.mxu0
  %v6432 = vpop.f32.mrf.mxu0
  %6433 = vdwg.mxu0
  %6434 = vmatprep.subr.bf16.mxu0 %v3043
  %6435 = vmatpush1.bf16.msra.mxu0 %v3042
  %6436 = vmatprep.subr.bf16.mxu0 %v3035
  %6437 = vmatpush1.bf16.msra.mxu0 %v3034
  %6438 = vmatprep.subr.bf16.mxu0 %v3027
  %6439 = vmatpush1.bf16.msra.mxu0 %v3026
  %6440 = vmatprep.subr.bf16.mxu0 %v3019
  %6441 = vmatpush1.bf16.msra.mxu0 %v3018
  %6442 = vmatprep.subr.bf16.mxu0 %v3011
  %6443 = vmatpush1.bf16.msra.mxu0 %v3010
  %6444 = vmatprep.subr.bf16.mxu0 %v3003
  %6445 = vmatpush1.bf16.msra.mxu0 %v3002
  %6446 = vmatprep.subr.bf16.mxu0 %v2995
  %6447 = vmatpush1.bf16.msra.mxu0 %v2994
  %6448 = vmatprep.subr.bf16.mxu0 %v2987
  %6449 = vmatpush1.bf16.msra.mxu0 %v2986
  %6450 = vmatprep.subr.bf16.mxu0 %v3107
  %6451 = vmatpush2.bf16.msra.mxu0 %v3106
  %6452 = vmatprep.subr.bf16.mxu0 %v3099
  %6453 = vmatpush2.bf16.msra.mxu0 %v3098
  %6454 = vmatprep.subr.bf16.mxu0 %v3091
  %6455 = vmatpush2.bf16.msra.mxu0 %v3090
  %6456 = vmatprep.subr.bf16.mxu0 %v3083
  %6457 = vmatpush2.bf16.msra.mxu0 %v3082
  %6458 = vmatprep.subr.bf16.mxu0 %v3075
  %6459 = vmatpush2.bf16.msra.mxu0 %v3074
  %6460 = vmatprep.subr.bf16.mxu0 %v3067
  %6461 = vmatpush2.bf16.msra.mxu0 %v3066
  %6462 = vmatprep.subr.bf16.mxu0 %v3059
  %6463 = vmatpush2.bf16.msra.mxu0 %v3058
  %6464 = vmatprep.subr.bf16.mxu0 %v3051
  %6465 = vmatpush2.bf16.msra.mxu0 %v3050
  %6466 = vmatprep.mubr.bf16.mxu0 %v6101
  %6467 = vmatmul.mubr.bf16.gmra.mxu0 %v6100
  %v6468 = vpop.f32.mrf.mxu0
  %v6469 = vadd.f32 %v2181, %v6468
  %v6470 = vpop.f32.mrf.mxu0
  %v6471 = vadd.f32 %v2185, %v6470
  %v6472 = vpop.f32.mrf.mxu0
  %v6473 = vpop.f32.mrf.mxu0
  %6474 = vdwg.mxu0
  %6475 = vmatprep.subr.bf16.mxu0 %v3171
  %6476 = vmatpush1.bf16.msra.mxu0 %v3170
  %6477 = vmatprep.subr.bf16.mxu0 %v3163
  %6478 = vmatpush1.bf16.msra.mxu0 %v3162
  %6479 = vmatprep.subr.bf16.mxu0 %v3155
  %6480 = vmatpush1.bf16.msra.mxu0 %v3154
  %6481 = vmatprep.subr.bf16.mxu0 %v3147
  %6482 = vmatpush1.bf16.msra.mxu0 %v3146
  %6483 = vmatprep.subr.bf16.mxu0 %v3139
  %6484 = vmatpush1.bf16.msra.mxu0 %v3138
  %6485 = vmatprep.subr.bf16.mxu0 %v3131
  %6486 = vmatpush1.bf16.msra.mxu0 %v3130
  %6487 = vmatprep.subr.bf16.mxu0 %v3123
  %6488 = vmatpush1.bf16.msra.mxu0 %v3122
  %6489 = vmatprep.subr.bf16.mxu0 %v3115
  %6490 = vmatpush1.bf16.msra.mxu0 %v3114
  %6491 = vmatprep.subr.bf16.mxu0 %v3235
  %6492 = vmatpush2.bf16.msra.mxu0 %v3234
  %6493 = vmatprep.subr.bf16.mxu0 %v3227
  %6494 = vmatpush2.bf16.msra.mxu0 %v3226
  %6495 = vmatprep.subr.bf16.mxu0 %v3219
  %6496 = vmatpush2.bf16.msra.mxu0 %v3218
  %6497 = vmatprep.subr.bf16.mxu0 %v3211
  %6498 = vmatpush2.bf16.msra.mxu0 %v3210
  %6499 = vmatprep.subr.bf16.mxu0 %v3203
  %6500 = vmatpush2.bf16.msra.mxu0 %v3202
  %6501 = vmatprep.subr.bf16.mxu0 %v3195
  %6502 = vmatpush2.bf16.msra.mxu0 %v3194
  %6503 = vmatprep.subr.bf16.mxu0 %v3187
  %6504 = vmatpush2.bf16.msra.mxu0 %v3186
  %6505 = vmatprep.subr.bf16.mxu0 %v3179
  %6506 = vmatpush2.bf16.msra.mxu0 %v3178
  %6507 = vmatprep.mubr.bf16.mxu0 %v6103
  %6508 = vmatmul.mubr.bf16.gmra.mxu0 %v6102
  %v6509 = vpop.f32.mrf.mxu0
  %v6510 = vadd.f32 %v6469, %v6509
  %v6511 = vpop.f32.mrf.mxu0
  %v6512 = vadd.f32 %v6471, %v6511
  %v6513 = vpop.f32.mrf.mxu0
  %v6514 = vpop.f32.mrf.mxu0
  %6515 = vdwg.mxu0
  %6516 = vmatprep.subr.bf16.mxu0 %v3045
  %6517 = vmatpush1.bf16.msra.mxu0 %v3044
  %6518 = vmatprep.subr.bf16.mxu0 %v3037
  %6519 = vmatpush1.bf16.msra.mxu0 %v3036
  %6520 = vmatprep.subr.bf16.mxu0 %v3029
  %6521 = vmatpush1.bf16.msra.mxu0 %v3028
  %6522 = vmatprep.subr.bf16.mxu0 %v3021
  %6523 = vmatpush1.bf16.msra.mxu0 %v3020
  %6524 = vmatprep.subr.bf16.mxu0 %v3013
  %6525 = vmatpush1.bf16.msra.mxu0 %v3012
  %6526 = vmatprep.subr.bf16.mxu0 %v3005
  %6527 = vmatpush1.bf16.msra.mxu0 %v3004
  %6528 = vmatprep.subr.bf16.mxu0 %v2997
  %6529 = vmatpush1.bf16.msra.mxu0 %v2996
  %6530 = vmatprep.subr.bf16.mxu0 %v2989
  %6531 = vmatpush1.bf16.msra.mxu0 %v2988
  %6532 = vmatprep.subr.bf16.mxu0 %v3109
  %6533 = vmatpush2.bf16.msra.mxu0 %v3108
  %6534 = vmatprep.subr.bf16.mxu0 %v3101
  %6535 = vmatpush2.bf16.msra.mxu0 %v3100
  %6536 = vmatprep.subr.bf16.mxu0 %v3093
  %6537 = vmatpush2.bf16.msra.mxu0 %v3092
  %6538 = vmatprep.subr.bf16.mxu0 %v3085
  %6539 = vmatpush2.bf16.msra.mxu0 %v3084
  %6540 = vmatprep.subr.bf16.mxu0 %v3077
  %6541 = vmatpush2.bf16.msra.mxu0 %v3076
  %6542 = vmatprep.subr.bf16.mxu0 %v3069
  %6543 = vmatpush2.bf16.msra.mxu0 %v3068
  %6544 = vmatprep.subr.bf16.mxu0 %v3061
  %6545 = vmatpush2.bf16.msra.mxu0 %v3060
  %6546 = vmatprep.subr.bf16.mxu0 %v3053
  %6547 = vmatpush2.bf16.msra.mxu0 %v3052
  %6548 = vmatprep.mubr.bf16.mxu0 %v6101
  %6549 = vmatmul.mubr.bf16.gmra.mxu0 %v6100
  %v6550 = vpop.f32.mrf.mxu0
  %v6551 = vadd.f32 %v2189, %v6550
  %v6552 = vpop.f32.mrf.mxu0
  %v6553 = vadd.f32 %v2193, %v6552
  %v6554 = vpop.f32.mrf.mxu0
  %v6555 = vpop.f32.mrf.mxu0
  %6556 = vdwg.mxu0
  %6557 = vmatprep.subr.bf16.mxu0 %v3173
  %6558 = vmatpush1.bf16.msra.mxu0 %v3172
  %6559 = vmatprep.subr.bf16.mxu0 %v3165
  %6560 = vmatpush1.bf16.msra.mxu0 %v3164
  %6561 = vmatprep.subr.bf16.mxu0 %v3157
  %6562 = vmatpush1.bf16.msra.mxu0 %v3156
  %6563 = vmatprep.subr.bf16.mxu0 %v3149
  %6564 = vmatpush1.bf16.msra.mxu0 %v3148
  %6565 = vmatprep.subr.bf16.mxu0 %v3141
  %6566 = vmatpush1.bf16.msra.mxu0 %v3140
  %6567 = vmatprep.subr.bf16.mxu0 %v3133
  %6568 = vmatpush1.bf16.msra.mxu0 %v3132
  %6569 = vmatprep.subr.bf16.mxu0 %v3125
  %6570 = vmatpush1.bf16.msra.mxu0 %v3124
  %6571 = vmatprep.subr.bf16.mxu0 %v3117
  %6572 = vmatpush1.bf16.msra.mxu0 %v3116
  %6573 = vmatprep.subr.bf16.mxu0 %v3237
  %6574 = vmatpush2.bf16.msra.mxu0 %v3236
  %6575 = vmatprep.subr.bf16.mxu0 %v3229
  %6576 = vmatpush2.bf16.msra.mxu0 %v3228
  %6577 = vmatprep.subr.bf16.mxu0 %v3221
  %6578 = vmatpush2.bf16.msra.mxu0 %v3220
  %6579 = vmatprep.subr.bf16.mxu0 %v3213
  %6580 = vmatpush2.bf16.msra.mxu0 %v3212
  %6581 = vmatprep.subr.bf16.mxu0 %v3205
  %6582 = vmatpush2.bf16.msra.mxu0 %v3204
  %6583 = vmatprep.subr.bf16.mxu0 %v3197
  %6584 = vmatpush2.bf16.msra.mxu0 %v3196
  %6585 = vmatprep.subr.bf16.mxu0 %v3189
  %6586 = vmatpush2.bf16.msra.mxu0 %v3188
  %6587 = vmatprep.subr.bf16.mxu0 %v3181
  %6588 = vmatpush2.bf16.msra.mxu0 %v3180
  %6589 = vmatprep.mubr.bf16.mxu0 %v6103
  %6590 = vmatmul.mubr.bf16.gmra.mxu0 %v6102
  %v6591 = vpop.f32.mrf.mxu0
  %v6592 = vadd.f32 %v6551, %v6591
  %v6593 = vpop.f32.mrf.mxu0
  %v6594 = vadd.f32 %v6553, %v6593
  %v6595 = vpop.f32.mrf.mxu0
  %v6596 = vpop.f32.mrf.mxu0
  %6597 = vdwg.mxu0
  %6598 = vmatprep.subr.bf16.mxu0 %v3047
  %6599 = vmatpush1.bf16.msra.mxu0 %v3046
  %6600 = vmatprep.subr.bf16.mxu0 %v3039
  %6601 = vmatpush1.bf16.msra.mxu0 %v3038
  %6602 = vmatprep.subr.bf16.mxu0 %v3031
  %6603 = vmatpush1.bf16.msra.mxu0 %v3030
  %6604 = vmatprep.subr.bf16.mxu0 %v3023
  %6605 = vmatpush1.bf16.msra.mxu0 %v3022
  %6606 = vmatprep.subr.bf16.mxu0 %v3015
  %6607 = vmatpush1.bf16.msra.mxu0 %v3014
  %6608 = vmatprep.subr.bf16.mxu0 %v3007
  %6609 = vmatpush1.bf16.msra.mxu0 %v3006
  %6610 = vmatprep.subr.bf16.mxu0 %v2999
  %6611 = vmatpush1.bf16.msra.mxu0 %v2998
  %6612 = vmatprep.subr.bf16.mxu0 %v2991
  %6613 = vmatpush1.bf16.msra.mxu0 %v2990
  %6614 = vmatprep.subr.bf16.mxu0 %v3111
  %6615 = vmatpush2.bf16.msra.mxu0 %v3110
  %6616 = vmatprep.subr.bf16.mxu0 %v3103
  %6617 = vmatpush2.bf16.msra.mxu0 %v3102
  %6618 = vmatprep.subr.bf16.mxu0 %v3095
  %6619 = vmatpush2.bf16.msra.mxu0 %v3094
  %6620 = vmatprep.subr.bf16.mxu0 %v3087
  %6621 = vmatpush2.bf16.msra.mxu0 %v3086
  %6622 = vmatprep.subr.bf16.mxu0 %v3079
  %6623 = vmatpush2.bf16.msra.mxu0 %v3078
  %6624 = vmatprep.subr.bf16.mxu0 %v3071
  %6625 = vmatpush2.bf16.msra.mxu0 %v3070
  %6626 = vmatprep.subr.bf16.mxu0 %v3063
  %6627 = vmatpush2.bf16.msra.mxu0 %v3062
  %6628 = vmatprep.subr.bf16.mxu0 %v3055
  %6629 = vmatpush2.bf16.msra.mxu0 %v3054
  %6630 = vmatprep.mubr.bf16.mxu0 %v6101
  %6631 = vmatmul.mubr.bf16.gmra.mxu0 %v6100
  %v6632 = vpop.f32.mrf.mxu0
  %v6633 = vadd.f32 %v2197, %v6632
  %v6634 = vpop.f32.mrf.mxu0
  %v6635 = vadd.f32 %v2201, %v6634
  %v6636 = vpop.f32.mrf.mxu0
  %v6637 = vpop.f32.mrf.mxu0
  %6638 = vdwg.mxu0
  %6639 = vmatprep.subr.bf16.mxu0 %v3175
  %6640 = vmatpush1.bf16.msra.mxu0 %v3174
  %6641 = vmatprep.subr.bf16.mxu0 %v3167
  %6642 = vmatpush1.bf16.msra.mxu0 %v3166
  %6643 = vmatprep.subr.bf16.mxu0 %v3159
  %6644 = vmatpush1.bf16.msra.mxu0 %v3158
  %6645 = vmatprep.subr.bf16.mxu0 %v3151
  %6646 = vmatpush1.bf16.msra.mxu0 %v3150
  %6647 = vmatprep.subr.bf16.mxu0 %v3143
  %6648 = vmatpush1.bf16.msra.mxu0 %v3142
  %6649 = vmatprep.subr.bf16.mxu0 %v3135
  %6650 = vmatpush1.bf16.msra.mxu0 %v3134
  %6651 = vmatprep.subr.bf16.mxu0 %v3127
  %6652 = vmatpush1.bf16.msra.mxu0 %v3126
  %6653 = vmatprep.subr.bf16.mxu0 %v3119
  %6654 = vmatpush1.bf16.msra.mxu0 %v3118
  %6655 = vmatprep.subr.bf16.mxu0 %v3239
  %6656 = vmatpush2.bf16.msra.mxu0 %v3238
  %6657 = vmatprep.subr.bf16.mxu0 %v3231
  %6658 = vmatpush2.bf16.msra.mxu0 %v3230
  %6659 = vmatprep.subr.bf16.mxu0 %v3223
  %6660 = vmatpush2.bf16.msra.mxu0 %v3222
  %6661 = vmatprep.subr.bf16.mxu0 %v3215
  %6662 = vmatpush2.bf16.msra.mxu0 %v3214
  %6663 = vmatprep.subr.bf16.mxu0 %v3207
  %6664 = vmatpush2.bf16.msra.mxu0 %v3206
  %6665 = vmatprep.subr.bf16.mxu0 %v3199
  %6666 = vmatpush2.bf16.msra.mxu0 %v3198
  %6667 = vmatprep.subr.bf16.mxu0 %v3191
  %6668 = vmatpush2.bf16.msra.mxu0 %v3190
  %6669 = vmatprep.subr.bf16.mxu0 %v3183
  %6670 = vmatpush2.bf16.msra.mxu0 %v3182
  %6671 = vmatprep.mubr.bf16.mxu0 %v6103
  %6672 = vmatmul.mubr.bf16.gmra.mxu0 %v6102
  %v6673 = vpop.f32.mrf.mxu0
  %v6674 = vadd.f32 %v6633, %v6673
  %v6675 = vpop.f32.mrf.mxu0
  %v6676 = vadd.f32 %v6635, %v6675
  %v6677 = vpop.f32.mrf.mxu0
  %v6678 = vpop.f32.mrf.mxu0
  %6679 = vdwg.mxu0
  %6680 = vmatprep.subr.bf16.mxu0 %v3049
  %6681 = vmatpush1.bf16.msra.mxu0 %v3048
  %6682 = vmatprep.subr.bf16.mxu0 %v3041
  %6683 = vmatpush1.bf16.msra.mxu0 %v3040
  %6684 = vmatprep.subr.bf16.mxu0 %v3033
  %6685 = vmatpush1.bf16.msra.mxu0 %v3032
  %6686 = vmatprep.subr.bf16.mxu0 %v3025
  %6687 = vmatpush1.bf16.msra.mxu0 %v3024
  %6688 = vmatprep.subr.bf16.mxu0 %v3017
  %6689 = vmatpush1.bf16.msra.mxu0 %v3016
  %6690 = vmatprep.subr.bf16.mxu0 %v3009
  %6691 = vmatpush1.bf16.msra.mxu0 %v3008
  %6692 = vmatprep.subr.bf16.mxu0 %v3001
  %6693 = vmatpush1.bf16.msra.mxu0 %v3000
  %6694 = vmatprep.subr.bf16.mxu0 %v2993
  %6695 = vmatpush1.bf16.msra.mxu0 %v2992
  %6696 = vmatprep.subr.bf16.mxu0 %v3113
  %6697 = vmatpush2.bf16.msra.mxu0 %v3112
  %6698 = vmatprep.subr.bf16.mxu0 %v3105
  %6699 = vmatpush2.bf16.msra.mxu0 %v3104
  %6700 = vmatprep.subr.bf16.mxu0 %v3097
  %6701 = vmatpush2.bf16.msra.mxu0 %v3096
  %6702 = vmatprep.subr.bf16.mxu0 %v3089
  %6703 = vmatpush2.bf16.msra.mxu0 %v3088
  %6704 = vmatprep.subr.bf16.mxu0 %v3081
  %6705 = vmatpush2.bf16.msra.mxu0 %v3080
  %6706 = vmatprep.subr.bf16.mxu0 %v3073
  %6707 = vmatpush2.bf16.msra.mxu0 %v3072
  %6708 = vmatprep.subr.bf16.mxu0 %v3065
  %6709 = vmatpush2.bf16.msra.mxu0 %v3064
  %6710 = vmatprep.subr.bf16.mxu0 %v3057
  %6711 = vmatpush2.bf16.msra.mxu0 %v3056
  %6712 = vmatprep.mubr.bf16.mxu0 %v6101
  %6713 = vmatmul.mubr.bf16.gmra.mxu0 %v6100
  %v6714 = vpop.f32.mrf.mxu0
  %v6715 = vadd.f32 %v2205, %v6714
  %v6716 = vpop.f32.mrf.mxu0
  %v6717 = vadd.f32 %v2209, %v6716
  %v6718 = vpop.f32.mrf.mxu0
  %v6719 = vpop.f32.mrf.mxu0
  %6720 = vdwg.mxu0
  %6721 = vmatprep.subr.bf16.mxu0 %v3177
  %6722 = vmatpush1.bf16.msra.mxu0 %v3176
  %6723 = vmatprep.subr.bf16.mxu0 %v3169
  %6724 = vmatpush1.bf16.msra.mxu0 %v3168
  %6725 = vmatprep.subr.bf16.mxu0 %v3161
  %6726 = vmatpush1.bf16.msra.mxu0 %v3160
  %6727 = vmatprep.subr.bf16.mxu0 %v3153
  %6728 = vmatpush1.bf16.msra.mxu0 %v3152
  %6729 = vmatprep.subr.bf16.mxu0 %v3145
  %6730 = vmatpush1.bf16.msra.mxu0 %v3144
  %6731 = vmatprep.subr.bf16.mxu0 %v3137
  %6732 = vmatpush1.bf16.msra.mxu0 %v3136
  %6733 = vmatprep.subr.bf16.mxu0 %v3129
  %6734 = vmatpush1.bf16.msra.mxu0 %v3128
  %6735 = vmatprep.subr.bf16.mxu0 %v3121
  %6736 = vmatpush1.bf16.msra.mxu0 %v3120
  %6737 = vmatprep.subr.bf16.mxu0 %v3241
  %6738 = vmatpush2.bf16.msra.mxu0 %v3240
  %6739 = vmatprep.subr.bf16.mxu0 %v3233
  %6740 = vmatpush2.bf16.msra.mxu0 %v3232
  %6741 = vmatprep.subr.bf16.mxu0 %v3225
  %6742 = vmatpush2.bf16.msra.mxu0 %v3224
  %6743 = vmatprep.subr.bf16.mxu0 %v3217
  %6744 = vmatpush2.bf16.msra.mxu0 %v3216
  %6745 = vmatprep.subr.bf16.mxu0 %v3209
  %6746 = vmatpush2.bf16.msra.mxu0 %v3208
  %6747 = vmatprep.subr.bf16.mxu0 %v3201
  %6748 = vmatpush2.bf16.msra.mxu0 %v3200
  %6749 = vmatprep.subr.bf16.mxu0 %v3193
  %6750 = vmatpush2.bf16.msra.mxu0 %v3192
  %6751 = vmatprep.subr.bf16.mxu0 %v3185
  %6752 = vmatpush2.bf16.msra.mxu0 %v3184
  %6753 = vmatprep.mubr.bf16.mxu0 %v6103
  %6754 = vmatmul.mubr.bf16.gmra.mxu0 %v6102
  %v6755 = vpop.f32.mrf.mxu0
  %v6756 = vadd.f32 %v6715, %v6755
  %v6757 = vpop.f32.mrf.mxu0
  %v6758 = vadd.f32 %v6717, %v6757
  %v6759 = vpop.f32.mrf.mxu0
  %v6760 = vpop.f32.mrf.mxu0
  %6761 = vdwg.mxu0
  %v6762 = vmul.f32 %v6182, 0.5
  %v6763 = vmul.f32 %v6184, 0.5
  %v6764 = vtanh.pop %v6762
  %v6765 = vtanh.pop %v6763
  %v6766 = vadd.f32 %v6764, 1.0
  %v6767 = vadd.f32 %v6765, 1.0
  %v6768 = vmul.f32 %v6766, 0.5
  %v6769 = vmul.f32 %v6767, 0.5
  %v6770 = vmul.f32 %v6264, 0.5
  %v6771 = vmul.f32 %v6266, 0.5
  %v6772 = vtanh.pop %v6770
  %v6773 = vtanh.pop %v6771
  %v6774 = vadd.f32 %v6772, 1.0
  %v6775 = vadd.f32 %v6773, 1.0
  %v6776 = vmul.f32 %v6774, 0.5
  %v6777 = vmul.f32 %v6775, 0.5
  %v6778 = vtanh.pop %v6346
  %v6779 = vtanh.pop %v6348
  %v6780 = vmul.f32 %v6428, 0.5
  %v6781 = vmul.f32 %v6430, 0.5
  %v6782 = vtanh.pop %v6780
  %v6783 = vtanh.pop %v6781
  %v6784 = vadd.f32 %v6782, 1.0
  %v6785 = vadd.f32 %v6783, 1.0
  %v6786 = vmul.f32 %v6784, 0.5
  %v6787 = vmul.f32 %v6785, 0.5
  %v6788 = vmul.f32 %v6776, %v6058
  %v6789 = vmul.f32 %v6777, %v6059
  %v6790 = vmul.f32 %v6768, %v6778
  %v6791 = vmul.f32 %v6769, %v6779
  %v6792 = vadd.f32 %v6788, %v6790
  %v6793 = vadd.f32 %v6789, %v6791
  %v6794 = vtanh.pop %v6792
  %v6795 = vtanh.pop %v6793
  %v6796 = vmul.f32 %v6786, %v6794
  %v6797 = vmul.f32 %v6787, %v6795
  %v6798 = vmul.f32 %v6510, 0.5
  %v6799 = vmul.f32 %v6512, 0.5
  %v6800 = vtanh.pop %v6798
  %v6801 = vtanh.pop %v6799
  %v6802 = vadd.f32 %v6800, 1.0
  %v6803 = vadd.f32 %v6801, 1.0
  %v6804 = vmul.f32 %v6802, 0.5
  %v6805 = vmul.f32 %v6803, 0.5
  %v6806 = vmul.f32 %v6592, 0.5
  %v6807 = vmul.f32 %v6594, 0.5
  %v6808 = vtanh.pop %v6806
  %v6809 = vtanh.pop %v6807
  %v6810 = vadd.f32 %v6808, 1.0
  %v6811 = vadd.f32 %v6809, 1.0
  %v6812 = vmul.f32 %v6810, 0.5
  %v6813 = vmul.f32 %v6811, 0.5
  %v6814 = vtanh.pop %v6674
  %v6815 = vtanh.pop %v6676
  %v6816 = vmul.f32 %v6756, 0.5
  %v6817 = vmul.f32 %v6758, 0.5
  %v6818 = vtanh.pop %v6816
  %v6819 = vtanh.pop %v6817
  %v6820 = vadd.f32 %v6818, 1.0
  %v6821 = vadd.f32 %v6819, 1.0
  %v6822 = vmul.f32 %v6820, 0.5
  %v6823 = vmul.f32 %v6821, 0.5
  %v6824 = vmul.f32 %v6812, %v6094
  %v6825 = vmul.f32 %v6813, %v6095
  %v6826 = vmul.f32 %v6804, %v6814
  %v6827 = vmul.f32 %v6805, %v6815
  %v6828 = vadd.f32 %v6824, %v6826
  %v6829 = vadd.f32 %v6825, %v6827
  %v6830 = vtanh.pop %v6828
  %v6831 = vtanh.pop %v6829
  %v6832 = vmul.f32 %v6822, %v6830
  %v6833 = vmul.f32 %v6823, %v6831
  %v6834 = vpack.c.bf16 %v6796, %v6796
  %v6835 = vpack.c.bf16 %v6797, %v6797
  %v6836 = vpack.c.bf16 %v6832, %v6832
  %v6837 = vpack.c.bf16 %v6833, %v6833
  %s6838 = scalar_lea.vmem %s0, 6
  %v6839 = vld [vmem:[%s6838] sm:$0x1]
  %6840 = vmatprep.subr.bf16.mxu0 %v898
  %6841 = vmatpush1.bf16.msra.mxu0 %v897
  %6842 = vmatprep.subr.bf16.mxu0 %v890
  %6843 = vmatpush1.bf16.msra.mxu0 %v889
  %6844 = vmatprep.subr.bf16.mxu0 %v882
  %6845 = vmatpush1.bf16.msra.mxu0 %v881
  %6846 = vmatprep.subr.bf16.mxu0 %v874
  %6847 = vmatpush1.bf16.msra.mxu0 %v873
  %6848 = vmatprep.subr.bf16.mxu0 %v866
  %6849 = vmatpush1.bf16.msra.mxu0 %v865
  %6850 = vmatprep.subr.bf16.mxu0 %v858
  %6851 = vmatpush1.bf16.msra.mxu0 %v857
  %6852 = vmatprep.subr.bf16.mxu0 %v850
  %6853 = vmatpush1.bf16.msra.mxu0 %v849
  %6854 = vmatprep.subr.bf16.mxu0 %v842
  %6855 = vmatpush1.bf16.msra.mxu0 %v841
  %6856 = vmatprep.subr.bf16.mxu0 %v962
  %6857 = vmatpush2.bf16.msra.mxu0 %v961
  %6858 = vmatprep.subr.bf16.mxu0 %v954
  %6859 = vmatpush2.bf16.msra.mxu0 %v953
  %6860 = vmatprep.subr.bf16.mxu0 %v946
  %6861 = vmatpush2.bf16.msra.mxu0 %v945
  %6862 = vmatprep.subr.bf16.mxu0 %v938
  %6863 = vmatpush2.bf16.msra.mxu0 %v937
  %6864 = vmatprep.subr.bf16.mxu0 %v930
  %6865 = vmatpush2.bf16.msra.mxu0 %v929
  %6866 = vmatprep.subr.bf16.mxu0 %v922
  %6867 = vmatpush2.bf16.msra.mxu0 %v921
  %6868 = vmatprep.subr.bf16.mxu0 %v914
  %6869 = vmatpush2.bf16.msra.mxu0 %v913
  %6870 = vmatprep.subr.bf16.mxu0 %v906
  %6871 = vmatpush2.bf16.msra.mxu0 %v905
  %6872 = vmatprep.mubr.bf16.mxu0 %v6834
  %6873 = vmatmul.mubr.bf16.gmra.mxu0 %v6839
  %v6874 = vpop.f32.mrf.mxu0
  %v6875 = vadd.f32 %v228, %v6874
  %v6876 = vpop.f32.mrf.mxu0
  %v6877 = vadd.f32 %v232, %v6876
  %v6878 = vpop.f32.mrf.mxu0
  %v6879 = vpop.f32.mrf.mxu0
  %6880 = vdwg.mxu0
  %6881 = vmatprep.subr.bf16.mxu0 %v1026
  %6882 = vmatpush1.bf16.msra.mxu0 %v1025
  %6883 = vmatprep.subr.bf16.mxu0 %v1018
  %6884 = vmatpush1.bf16.msra.mxu0 %v1017
  %6885 = vmatprep.subr.bf16.mxu0 %v1010
  %6886 = vmatpush1.bf16.msra.mxu0 %v1009
  %6887 = vmatprep.subr.bf16.mxu0 %v1002
  %6888 = vmatpush1.bf16.msra.mxu0 %v1001
  %6889 = vmatprep.subr.bf16.mxu0 %v994
  %6890 = vmatpush1.bf16.msra.mxu0 %v993
  %6891 = vmatprep.subr.bf16.mxu0 %v986
  %6892 = vmatpush1.bf16.msra.mxu0 %v985
  %6893 = vmatprep.subr.bf16.mxu0 %v978
  %6894 = vmatpush1.bf16.msra.mxu0 %v977
  %6895 = vmatprep.subr.bf16.mxu0 %v970
  %6896 = vmatpush1.bf16.msra.mxu0 %v969
  %6897 = vmatprep.subr.bf16.mxu0 0
  %6898 = vmatpush2.bf16.msra.mxu0 0
  %6899 = vmatprep.subr.bf16.mxu0 0
  %6900 = vmatpush2.bf16.msra.mxu0 0
  %6901 = vmatprep.subr.bf16.mxu0 0
  %6902 = vmatpush2.bf16.msra.mxu0 0
  %6903 = vmatprep.subr.bf16.mxu0 0
  %6904 = vmatpush2.bf16.msra.mxu0 0
  %6905 = vmatprep.subr.bf16.mxu0 0
  %6906 = vmatpush2.bf16.msra.mxu0 0
  %6907 = vmatprep.subr.bf16.mxu0 0
  %6908 = vmatpush2.bf16.msra.mxu0 0
  %6909 = vmatprep.subr.bf16.mxu0 0
  %6910 = vmatpush2.bf16.msra.mxu0 0
  %6911 = vmatprep.subr.bf16.mxu0 0
  %6912 = vmatpush2.bf16.msra.mxu0 0
  %6913 = vmatprep.mubr.bf16.mxu0 0
  %6914 = vmatmul.mubr.bf16.gmra.mxu0 %v6835
  %v6915 = vpop.f32.mrf.mxu0
  %v6916 = vadd.f32 %v6875, %v6915
  %v6917 = vpop.f32.mrf.mxu0
  %v6918 = vadd.f32 %v6877, %v6917
  %v6919 = vpop.f32.mrf.mxu0
  %v6920 = vpop.f32.mrf.mxu0
  %6921 = vdwg.mxu0
  %6922 = vmatprep.subr.bf16.mxu0 %v900
  %6923 = vmatpush1.bf16.msra.mxu0 %v899
  %6924 = vmatprep.subr.bf16.mxu0 %v892
  %6925 = vmatpush1.bf16.msra.mxu0 %v891
  %6926 = vmatprep.subr.bf16.mxu0 %v884
  %6927 = vmatpush1.bf16.msra.mxu0 %v883
  %6928 = vmatprep.subr.bf16.mxu0 %v876
  %6929 = vmatpush1.bf16.msra.mxu0 %v875
  %6930 = vmatprep.subr.bf16.mxu0 %v868
  %6931 = vmatpush1.bf16.msra.mxu0 %v867
  %6932 = vmatprep.subr.bf16.mxu0 %v860
  %6933 = vmatpush1.bf16.msra.mxu0 %v859
  %6934 = vmatprep.subr.bf16.mxu0 %v852
  %6935 = vmatpush1.bf16.msra.mxu0 %v851
  %6936 = vmatprep.subr.bf16.mxu0 %v844
  %6937 = vmatpush1.bf16.msra.mxu0 %v843
  %6938 = vmatprep.subr.bf16.mxu0 %v964
  %6939 = vmatpush2.bf16.msra.mxu0 %v963
  %6940 = vmatprep.subr.bf16.mxu0 %v956
  %6941 = vmatpush2.bf16.msra.mxu0 %v955
  %6942 = vmatprep.subr.bf16.mxu0 %v948
  %6943 = vmatpush2.bf16.msra.mxu0 %v947
  %6944 = vmatprep.subr.bf16.mxu0 %v940
  %6945 = vmatpush2.bf16.msra.mxu0 %v939
  %6946 = vmatprep.subr.bf16.mxu0 %v932
  %6947 = vmatpush2.bf16.msra.mxu0 %v931
  %6948 = vmatprep.subr.bf16.mxu0 %v924
  %6949 = vmatpush2.bf16.msra.mxu0 %v923
  %6950 = vmatprep.subr.bf16.mxu0 %v916
  %6951 = vmatpush2.bf16.msra.mxu0 %v915
  %6952 = vmatprep.subr.bf16.mxu0 %v908
  %6953 = vmatpush2.bf16.msra.mxu0 %v907
  %6954 = vmatprep.mubr.bf16.mxu0 %v6834
  %6955 = vmatmul.mubr.bf16.gmra.mxu0 %v6839
  %v6956 = vpop.f32.mrf.mxu0
  %v6957 = vadd.f32 %v236, %v6956
  %v6958 = vpop.f32.mrf.mxu0
  %v6959 = vadd.f32 %v240, %v6958
  %v6960 = vpop.f32.mrf.mxu0
  %v6961 = vpop.f32.mrf.mxu0
  %6962 = vdwg.mxu0
  %6963 = vmatprep.subr.bf16.mxu0 %v1028
  %6964 = vmatpush1.bf16.msra.mxu0 %v1027
  %6965 = vmatprep.subr.bf16.mxu0 %v1020
  %6966 = vmatpush1.bf16.msra.mxu0 %v1019
  %6967 = vmatprep.subr.bf16.mxu0 %v1012
  %6968 = vmatpush1.bf16.msra.mxu0 %v1011
  %6969 = vmatprep.subr.bf16.mxu0 %v1004
  %6970 = vmatpush1.bf16.msra.mxu0 %v1003
  %6971 = vmatprep.subr.bf16.mxu0 %v996
  %6972 = vmatpush1.bf16.msra.mxu0 %v995
  %6973 = vmatprep.subr.bf16.mxu0 %v988
  %6974 = vmatpush1.bf16.msra.mxu0 %v987
  %6975 = vmatprep.subr.bf16.mxu0 %v980
  %6976 = vmatpush1.bf16.msra.mxu0 %v979
  %6977 = vmatprep.subr.bf16.mxu0 %v972
  %6978 = vmatpush1.bf16.msra.mxu0 %v971
  %6979 = vmatprep.subr.bf16.mxu0 0
  %6980 = vmatpush2.bf16.msra.mxu0 0
  %6981 = vmatprep.subr.bf16.mxu0 0
  %6982 = vmatpush2.bf16.msra.mxu0 0
  %6983 = vmatprep.subr.bf16.mxu0 0
  %6984 = vmatpush2.bf16.msra.mxu0 0
  %6985 = vmatprep.subr.bf16.mxu0 0
  %6986 = vmatpush2.bf16.msra.mxu0 0
  %6987 = vmatprep.subr.bf16.mxu0 0
  %6988 = vmatpush2.bf16.msra.mxu0 0
  %6989 = vmatprep.subr.bf16.mxu0 0
  %6990 = vmatpush2.bf16.msra.mxu0 0
  %6991 = vmatprep.subr.bf16.mxu0 0
  %6992 = vmatpush2.bf16.msra.mxu0 0
  %6993 = vmatprep.subr.bf16.mxu0 0
  %6994 = vmatpush2.bf16.msra.mxu0 0
  %6995 = vmatprep.mubr.bf16.mxu0 0
  %6996 = vmatmul.mubr.bf16.gmra.mxu0 %v6835
  %v6997 = vpop.f32.mrf.mxu0
  %v6998 = vadd.f32 %v6957, %v6997
  %v6999 = vpop.f32.mrf.mxu0
  %v7000 = vadd.f32 %v6959, %v6999
  %v7001 = vpop.f32.mrf.mxu0
  %v7002 = vpop.f32.mrf.mxu0
  %7003 = vdwg.mxu0
  %7004 = vmatprep.subr.bf16.mxu0 %v902
  %7005 = vmatpush1.bf16.msra.mxu0 %v901
  %7006 = vmatprep.subr.bf16.mxu0 %v894
  %7007 = vmatpush1.bf16.msra.mxu0 %v893
  %7008 = vmatprep.subr.bf16.mxu0 %v886
  %7009 = vmatpush1.bf16.msra.mxu0 %v885
  %7010 = vmatprep.subr.bf16.mxu0 %v878
  %7011 = vmatpush1.bf16.msra.mxu0 %v877
  %7012 = vmatprep.subr.bf16.mxu0 %v870
  %7013 = vmatpush1.bf16.msra.mxu0 %v869
  %7014 = vmatprep.subr.bf16.mxu0 %v862
  %7015 = vmatpush1.bf16.msra.mxu0 %v861
  %7016 = vmatprep.subr.bf16.mxu0 %v854
  %7017 = vmatpush1.bf16.msra.mxu0 %v853
  %7018 = vmatprep.subr.bf16.mxu0 %v846
  %7019 = vmatpush1.bf16.msra.mxu0 %v845
  %7020 = vmatprep.subr.bf16.mxu0 %v966
  %7021 = vmatpush2.bf16.msra.mxu0 %v965
  %7022 = vmatprep.subr.bf16.mxu0 %v958
  %7023 = vmatpush2.bf16.msra.mxu0 %v957
  %7024 = vmatprep.subr.bf16.mxu0 %v950
  %7025 = vmatpush2.bf16.msra.mxu0 %v949
  %7026 = vmatprep.subr.bf16.mxu0 %v942
  %7027 = vmatpush2.bf16.msra.mxu0 %v941
  %7028 = vmatprep.subr.bf16.mxu0 %v934
  %7029 = vmatpush2.bf16.msra.mxu0 %v933
  %7030 = vmatprep.subr.bf16.mxu0 %v926
  %7031 = vmatpush2.bf16.msra.mxu0 %v925
  %7032 = vmatprep.subr.bf16.mxu0 %v918
  %7033 = vmatpush2.bf16.msra.mxu0 %v917
  %7034 = vmatprep.subr.bf16.mxu0 %v910
  %7035 = vmatpush2.bf16.msra.mxu0 %v909
  %7036 = vmatprep.mubr.bf16.mxu0 %v6834
  %7037 = vmatmul.mubr.bf16.gmra.mxu0 %v6839
  %v7038 = vpop.f32.mrf.mxu0
  %v7039 = vadd.f32 %v244, %v7038
  %v7040 = vpop.f32.mrf.mxu0
  %v7041 = vadd.f32 %v248, %v7040
  %v7042 = vpop.f32.mrf.mxu0
  %v7043 = vpop.f32.mrf.mxu0
  %7044 = vdwg.mxu0
  %7045 = vmatprep.subr.bf16.mxu0 %v1030
  %7046 = vmatpush1.bf16.msra.mxu0 %v1029
  %7047 = vmatprep.subr.bf16.mxu0 %v1022
  %7048 = vmatpush1.bf16.msra.mxu0 %v1021
  %7049 = vmatprep.subr.bf16.mxu0 %v1014
  %7050 = vmatpush1.bf16.msra.mxu0 %v1013
  %7051 = vmatprep.subr.bf16.mxu0 %v1006
  %7052 = vmatpush1.bf16.msra.mxu0 %v1005
  %7053 = vmatprep.subr.bf16.mxu0 %v998
  %7054 = vmatpush1.bf16.msra.mxu0 %v997
  %7055 = vmatprep.subr.bf16.mxu0 %v990
  %7056 = vmatpush1.bf16.msra.mxu0 %v989
  %7057 = vmatprep.subr.bf16.mxu0 %v982
  %7058 = vmatpush1.bf16.msra.mxu0 %v981
  %7059 = vmatprep.subr.bf16.mxu0 %v974
  %7060 = vmatpush1.bf16.msra.mxu0 %v973
  %7061 = vmatprep.subr.bf16.mxu0 0
  %7062 = vmatpush2.bf16.msra.mxu0 0
  %7063 = vmatprep.subr.bf16.mxu0 0
  %7064 = vmatpush2.bf16.msra.mxu0 0
  %7065 = vmatprep.subr.bf16.mxu0 0
  %7066 = vmatpush2.bf16.msra.mxu0 0
  %7067 = vmatprep.subr.bf16.mxu0 0
  %7068 = vmatpush2.bf16.msra.mxu0 0
  %7069 = vmatprep.subr.bf16.mxu0 0
  %7070 = vmatpush2.bf16.msra.mxu0 0
  %7071 = vmatprep.subr.bf16.mxu0 0
  %7072 = vmatpush2.bf16.msra.mxu0 0
  %7073 = vmatprep.subr.bf16.mxu0 0
  %7074 = vmatpush2.bf16.msra.mxu0 0
  %7075 = vmatprep.subr.bf16.mxu0 0
  %7076 = vmatpush2.bf16.msra.mxu0 0
  %7077 = vmatprep.mubr.bf16.mxu0 0
  %7078 = vmatmul.mubr.bf16.gmra.mxu0 %v6835
  %v7079 = vpop.f32.mrf.mxu0
  %v7080 = vadd.f32 %v7039, %v7079
  %v7081 = vpop.f32.mrf.mxu0
  %v7082 = vadd.f32 %v7041, %v7081
  %v7083 = vpop.f32.mrf.mxu0
  %v7084 = vpop.f32.mrf.mxu0
  %7085 = vdwg.mxu0
  %7086 = vmatprep.subr.bf16.mxu0 %v904
  %7087 = vmatpush1.bf16.msra.mxu0 %v903
  %7088 = vmatprep.subr.bf16.mxu0 %v896
  %7089 = vmatpush1.bf16.msra.mxu0 %v895
  %7090 = vmatprep.subr.bf16.mxu0 %v888
  %7091 = vmatpush1.bf16.msra.mxu0 %v887
  %7092 = vmatprep.subr.bf16.mxu0 %v880
  %7093 = vmatpush1.bf16.msra.mxu0 %v879
  %7094 = vmatprep.subr.bf16.mxu0 %v872
  %7095 = vmatpush1.bf16.msra.mxu0 %v871
  %7096 = vmatprep.subr.bf16.mxu0 %v864
  %7097 = vmatpush1.bf16.msra.mxu0 %v863
  %7098 = vmatprep.subr.bf16.mxu0 %v856
  %7099 = vmatpush1.bf16.msra.mxu0 %v855
  %7100 = vmatprep.subr.bf16.mxu0 %v848
  %7101 = vmatpush1.bf16.msra.mxu0 %v847
  %7102 = vmatprep.subr.bf16.mxu0 %v968
  %7103 = vmatpush2.bf16.msra.mxu0 %v967
  %7104 = vmatprep.subr.bf16.mxu0 %v960
  %7105 = vmatpush2.bf16.msra.mxu0 %v959
  %7106 = vmatprep.subr.bf16.mxu0 %v952
  %7107 = vmatpush2.bf16.msra.mxu0 %v951
  %7108 = vmatprep.subr.bf16.mxu0 %v944
  %7109 = vmatpush2.bf16.msra.mxu0 %v943
  %7110 = vmatprep.subr.bf16.mxu0 %v936
  %7111 = vmatpush2.bf16.msra.mxu0 %v935
  %7112 = vmatprep.subr.bf16.mxu0 %v928
  %7113 = vmatpush2.bf16.msra.mxu0 %v927
  %7114 = vmatprep.subr.bf16.mxu0 %v920
  %7115 = vmatpush2.bf16.msra.mxu0 %v919
  %7116 = vmatprep.subr.bf16.mxu0 %v912
  %7117 = vmatpush2.bf16.msra.mxu0 %v911
  %7118 = vmatprep.mubr.bf16.mxu0 %v6834
  %7119 = vmatmul.mubr.bf16.gmra.mxu0 %v6839
  %v7120 = vpop.f32.mrf.mxu0
  %v7121 = vadd.f32 %v252, %v7120
  %v7122 = vpop.f32.mrf.mxu0
  %v7123 = vadd.f32 %v256, %v7122
  %v7124 = vpop.f32.mrf.mxu0
  %v7125 = vpop.f32.mrf.mxu0
  %7126 = vdwg.mxu0
  %7127 = vmatprep.subr.bf16.mxu0 %v1032
  %7128 = vmatpush1.bf16.msra.mxu0 %v1031
  %7129 = vmatprep.subr.bf16.mxu0 %v1024
  %7130 = vmatpush1.bf16.msra.mxu0 %v1023
  %7131 = vmatprep.subr.bf16.mxu0 %v1016
  %7132 = vmatpush1.bf16.msra.mxu0 %v1015
  %7133 = vmatprep.subr.bf16.mxu0 %v1008
  %7134 = vmatpush1.bf16.msra.mxu0 %v1007
  %7135 = vmatprep.subr.bf16.mxu0 %v1000
  %7136 = vmatpush1.bf16.msra.mxu0 %v999
  %7137 = vmatprep.subr.bf16.mxu0 %v992
  %7138 = vmatpush1.bf16.msra.mxu0 %v991
  %7139 = vmatprep.subr.bf16.mxu0 %v984
  %7140 = vmatpush1.bf16.msra.mxu0 %v983
  %7141 = vmatprep.subr.bf16.mxu0 %v976
  %7142 = vmatpush1.bf16.msra.mxu0 %v975
  %7143 = vmatprep.subr.bf16.mxu0 0
  %7144 = vmatpush2.bf16.msra.mxu0 0
  %7145 = vmatprep.subr.bf16.mxu0 0
  %7146 = vmatpush2.bf16.msra.mxu0 0
  %7147 = vmatprep.subr.bf16.mxu0 0
  %7148 = vmatpush2.bf16.msra.mxu0 0
  %7149 = vmatprep.subr.bf16.mxu0 0
  %7150 = vmatpush2.bf16.msra.mxu0 0
  %7151 = vmatprep.subr.bf16.mxu0 0
  %7152 = vmatpush2.bf16.msra.mxu0 0
  %7153 = vmatprep.subr.bf16.mxu0 0
  %7154 = vmatpush2.bf16.msra.mxu0 0
  %7155 = vmatprep.subr.bf16.mxu0 0
  %7156 = vmatpush2.bf16.msra.mxu0 0
  %7157 = vmatprep.subr.bf16.mxu0 0
  %7158 = vmatpush2.bf16.msra.mxu0 0
  %7159 = vmatprep.mubr.bf16.mxu0 0
  %7160 = vmatmul.mubr.bf16.gmra.mxu0 %v6835
  %v7161 = vpop.f32.mrf.mxu0
  %v7162 = vadd.f32 %v7121, %v7161
  %v7163 = vpop.f32.mrf.mxu0
  %v7164 = vadd.f32 %v7123, %v7163
  %v7165 = vpop.f32.mrf.mxu0
  %v7166 = vpop.f32.mrf.mxu0
  %7167 = vdwg.mxu0
  %7168 = vmatprep.subr.bf16.mxu0 %v3043
  %7169 = vmatpush1.bf16.msra.mxu0 %v3042
  %7170 = vmatprep.subr.bf16.mxu0 %v3035
  %7171 = vmatpush1.bf16.msra.mxu0 %v3034
  %7172 = vmatprep.subr.bf16.mxu0 %v3027
  %7173 = vmatpush1.bf16.msra.mxu0 %v3026
  %7174 = vmatprep.subr.bf16.mxu0 %v3019
  %7175 = vmatpush1.bf16.msra.mxu0 %v3018
  %7176 = vmatprep.subr.bf16.mxu0 %v3011
  %7177 = vmatpush1.bf16.msra.mxu0 %v3010
  %7178 = vmatprep.subr.bf16.mxu0 %v3003
  %7179 = vmatpush1.bf16.msra.mxu0 %v3002
  %7180 = vmatprep.subr.bf16.mxu0 %v2995
  %7181 = vmatpush1.bf16.msra.mxu0 %v2994
  %7182 = vmatprep.subr.bf16.mxu0 %v2987
  %7183 = vmatpush1.bf16.msra.mxu0 %v2986
  %7184 = vmatprep.subr.bf16.mxu0 %v3107
  %7185 = vmatpush2.bf16.msra.mxu0 %v3106
  %7186 = vmatprep.subr.bf16.mxu0 %v3099
  %7187 = vmatpush2.bf16.msra.mxu0 %v3098
  %7188 = vmatprep.subr.bf16.mxu0 %v3091
  %7189 = vmatpush2.bf16.msra.mxu0 %v3090
  %7190 = vmatprep.subr.bf16.mxu0 %v3083
  %7191 = vmatpush2.bf16.msra.mxu0 %v3082
  %7192 = vmatprep.subr.bf16.mxu0 %v3075
  %7193 = vmatpush2.bf16.msra.mxu0 %v3074
  %7194 = vmatprep.subr.bf16.mxu0 %v3067
  %7195 = vmatpush2.bf16.msra.mxu0 %v3066
  %7196 = vmatprep.subr.bf16.mxu0 %v3059
  %7197 = vmatpush2.bf16.msra.mxu0 %v3058
  %7198 = vmatprep.subr.bf16.mxu0 %v3051
  %7199 = vmatpush2.bf16.msra.mxu0 %v3050
  %7200 = vmatprep.mubr.bf16.mxu0 %v6835
  %7201 = vmatmul.mubr.bf16.gmra.mxu0 %v6834
  %v7202 = vpop.f32.mrf.mxu0
  %v7203 = vadd.f32 %v2181, %v7202
  %v7204 = vpop.f32.mrf.mxu0
  %v7205 = vadd.f32 %v2185, %v7204
  %v7206 = vpop.f32.mrf.mxu0
  %v7207 = vpop.f32.mrf.mxu0
  %7208 = vdwg.mxu0
  %7209 = vmatprep.subr.bf16.mxu0 %v3171
  %7210 = vmatpush1.bf16.msra.mxu0 %v3170
  %7211 = vmatprep.subr.bf16.mxu0 %v3163
  %7212 = vmatpush1.bf16.msra.mxu0 %v3162
  %7213 = vmatprep.subr.bf16.mxu0 %v3155
  %7214 = vmatpush1.bf16.msra.mxu0 %v3154
  %7215 = vmatprep.subr.bf16.mxu0 %v3147
  %7216 = vmatpush1.bf16.msra.mxu0 %v3146
  %7217 = vmatprep.subr.bf16.mxu0 %v3139
  %7218 = vmatpush1.bf16.msra.mxu0 %v3138
  %7219 = vmatprep.subr.bf16.mxu0 %v3131
  %7220 = vmatpush1.bf16.msra.mxu0 %v3130
  %7221 = vmatprep.subr.bf16.mxu0 %v3123
  %7222 = vmatpush1.bf16.msra.mxu0 %v3122
  %7223 = vmatprep.subr.bf16.mxu0 %v3115
  %7224 = vmatpush1.bf16.msra.mxu0 %v3114
  %7225 = vmatprep.subr.bf16.mxu0 %v3235
  %7226 = vmatpush2.bf16.msra.mxu0 %v3234
  %7227 = vmatprep.subr.bf16.mxu0 %v3227
  %7228 = vmatpush2.bf16.msra.mxu0 %v3226
  %7229 = vmatprep.subr.bf16.mxu0 %v3219
  %7230 = vmatpush2.bf16.msra.mxu0 %v3218
  %7231 = vmatprep.subr.bf16.mxu0 %v3211
  %7232 = vmatpush2.bf16.msra.mxu0 %v3210
  %7233 = vmatprep.subr.bf16.mxu0 %v3203
  %7234 = vmatpush2.bf16.msra.mxu0 %v3202
  %7235 = vmatprep.subr.bf16.mxu0 %v3195
  %7236 = vmatpush2.bf16.msra.mxu0 %v3194
  %7237 = vmatprep.subr.bf16.mxu0 %v3187
  %7238 = vmatpush2.bf16.msra.mxu0 %v3186
  %7239 = vmatprep.subr.bf16.mxu0 %v3179
  %7240 = vmatpush2.bf16.msra.mxu0 %v3178
  %7241 = vmatprep.mubr.bf16.mxu0 %v6837
  %7242 = vmatmul.mubr.bf16.gmra.mxu0 %v6836
  %v7243 = vpop.f32.mrf.mxu0
  %v7244 = vadd.f32 %v7203, %v7243
  %v7245 = vpop.f32.mrf.mxu0
  %v7246 = vadd.f32 %v7205, %v7245
  %v7247 = vpop.f32.mrf.mxu0
  %v7248 = vpop.f32.mrf.mxu0
  %7249 = vdwg.mxu0
  %7250 = vmatprep.subr.bf16.mxu0 %v3045
  %7251 = vmatpush1.bf16.msra.mxu0 %v3044
  %7252 = vmatprep.subr.bf16.mxu0 %v3037
  %7253 = vmatpush1.bf16.msra.mxu0 %v3036
  %7254 = vmatprep.subr.bf16.mxu0 %v3029
  %7255 = vmatpush1.bf16.msra.mxu0 %v3028
  %7256 = vmatprep.subr.bf16.mxu0 %v3021
  %7257 = vmatpush1.bf16.msra.mxu0 %v3020
  %7258 = vmatprep.subr.bf16.mxu0 %v3013
  %7259 = vmatpush1.bf16.msra.mxu0 %v3012
  %7260 = vmatprep.subr.bf16.mxu0 %v3005
  %7261 = vmatpush1.bf16.msra.mxu0 %v3004
  %7262 = vmatprep.subr.bf16.mxu0 %v2997
  %7263 = vmatpush1.bf16.msra.mxu0 %v2996
  %7264 = vmatprep.subr.bf16.mxu0 %v2989
  %7265 = vmatpush1.bf16.msra.mxu0 %v2988
  %7266 = vmatprep.subr.bf16.mxu0 %v3109
  %7267 = vmatpush2.bf16.msra.mxu0 %v3108
  %7268 = vmatprep.subr.bf16.mxu0 %v3101
  %7269 = vmatpush2.bf16.msra.mxu0 %v3100
  %7270 = vmatprep.subr.bf16.mxu0 %v3093
  %7271 = vmatpush2.bf16.msra.mxu0 %v3092
  %7272 = vmatprep.subr.bf16.mxu0 %v3085
  %7273 = vmatpush2.bf16.msra.mxu0 %v3084
  %7274 = vmatprep.subr.bf16.mxu0 %v3077
  %7275 = vmatpush2.bf16.msra.mxu0 %v3076
  %7276 = vmatprep.subr.bf16.mxu0 %v3069
  %7277 = vmatpush2.bf16.msra.mxu0 %v3068
  %7278 = vmatprep.subr.bf16.mxu0 %v3061
  %7279 = vmatpush2.bf16.msra.mxu0 %v3060
  %7280 = vmatprep.subr.bf16.mxu0 %v3053
  %7281 = vmatpush2.bf16.msra.mxu0 %v3052
  %7282 = vmatprep.mubr.bf16.mxu0 %v6835
  %7283 = vmatmul.mubr.bf16.gmra.mxu0 %v6834
  %v7284 = vpop.f32.mrf.mxu0
  %v7285 = vadd.f32 %v2189, %v7284
  %v7286 = vpop.f32.mrf.mxu0
  %v7287 = vadd.f32 %v2193, %v7286
  %v7288 = vpop.f32.mrf.mxu0
  %v7289 = vpop.f32.mrf.mxu0
  %7290 = vdwg.mxu0
  %7291 = vmatprep.subr.bf16.mxu0 %v3173
  %7292 = vmatpush1.bf16.msra.mxu0 %v3172
  %7293 = vmatprep.subr.bf16.mxu0 %v3165
  %7294 = vmatpush1.bf16.msra.mxu0 %v3164
  %7295 = vmatprep.subr.bf16.mxu0 %v3157
  %7296 = vmatpush1.bf16.msra.mxu0 %v3156
  %7297 = vmatprep.subr.bf16.mxu0 %v3149
  %7298 = vmatpush1.bf16.msra.mxu0 %v3148
  %7299 = vmatprep.subr.bf16.mxu0 %v3141
  %7300 = vmatpush1.bf16.msra.mxu0 %v3140
  %7301 = vmatprep.subr.bf16.mxu0 %v3133
  %7302 = vmatpush1.bf16.msra.mxu0 %v3132
  %7303 = vmatprep.subr.bf16.mxu0 %v3125
  %7304 = vmatpush1.bf16.msra.mxu0 %v3124
  %7305 = vmatprep.subr.bf16.mxu0 %v3117
  %7306 = vmatpush1.bf16.msra.mxu0 %v3116
  %7307 = vmatprep.subr.bf16.mxu0 %v3237
  %7308 = vmatpush2.bf16.msra.mxu0 %v3236
  %7309 = vmatprep.subr.bf16.mxu0 %v3229
  %7310 = vmatpush2.bf16.msra.mxu0 %v3228
  %7311 = vmatprep.subr.bf16.mxu0 %v3221
  %7312 = vmatpush2.bf16.msra.mxu0 %v3220
  %7313 = vmatprep.subr.bf16.mxu0 %v3213
  %7314 = vmatpush2.bf16.msra.mxu0 %v3212
  %7315 = vmatprep.subr.bf16.mxu0 %v3205
  %7316 = vmatpush2.bf16.msra.mxu0 %v3204
  %7317 = vmatprep.subr.bf16.mxu0 %v3197
  %7318 = vmatpush2.bf16.msra.mxu0 %v3196
  %7319 = vmatprep.subr.bf16.mxu0 %v3189
  %7320 = vmatpush2.bf16.msra.mxu0 %v3188
  %7321 = vmatprep.subr.bf16.mxu0 %v3181
  %7322 = vmatpush2.bf16.msra.mxu0 %v3180
  %7323 = vmatprep.mubr.bf16.mxu0 %v6837
  %7324 = vmatmul.mubr.bf16.gmra.mxu0 %v6836
  %v7325 = vpop.f32.mrf.mxu0
  %v7326 = vadd.f32 %v7285, %v7325
  %v7327 = vpop.f32.mrf.mxu0
  %v7328 = vadd.f32 %v7287, %v7327
  %v7329 = vpop.f32.mrf.mxu0
  %v7330 = vpop.f32.mrf.mxu0
  %7331 = vdwg.mxu0
  %7332 = vmatprep.subr.bf16.mxu0 %v3047
  %7333 = vmatpush1.bf16.msra.mxu0 %v3046
  %7334 = vmatprep.subr.bf16.mxu0 %v3039
  %7335 = vmatpush1.bf16.msra.mxu0 %v3038
  %7336 = vmatprep.subr.bf16.mxu0 %v3031
  %7337 = vmatpush1.bf16.msra.mxu0 %v3030
  %7338 = vmatprep.subr.bf16.mxu0 %v3023
  %7339 = vmatpush1.bf16.msra.mxu0 %v3022
  %7340 = vmatprep.subr.bf16.mxu0 %v3015
  %7341 = vmatpush1.bf16.msra.mxu0 %v3014
  %7342 = vmatprep.subr.bf16.mxu0 %v3007
  %7343 = vmatpush1.bf16.msra.mxu0 %v3006
  %7344 = vmatprep.subr.bf16.mxu0 %v2999
  %7345 = vmatpush1.bf16.msra.mxu0 %v2998
  %7346 = vmatprep.subr.bf16.mxu0 %v2991
  %7347 = vmatpush1.bf16.msra.mxu0 %v2990
  %7348 = vmatprep.subr.bf16.mxu0 %v3111
  %7349 = vmatpush2.bf16.msra.mxu0 %v3110
  %7350 = vmatprep.subr.bf16.mxu0 %v3103
  %7351 = vmatpush2.bf16.msra.mxu0 %v3102
  %7352 = vmatprep.subr.bf16.mxu0 %v3095
  %7353 = vmatpush2.bf16.msra.mxu0 %v3094
  %7354 = vmatprep.subr.bf16.mxu0 %v3087
  %7355 = vmatpush2.bf16.msra.mxu0 %v3086
  %7356 = vmatprep.subr.bf16.mxu0 %v3079
  %7357 = vmatpush2.bf16.msra.mxu0 %v3078
  %7358 = vmatprep.subr.bf16.mxu0 %v3071
  %7359 = vmatpush2.bf16.msra.mxu0 %v3070
  %7360 = vmatprep.subr.bf16.mxu0 %v3063
  %7361 = vmatpush2.bf16.msra.mxu0 %v3062
  %7362 = vmatprep.subr.bf16.mxu0 %v3055
  %7363 = vmatpush2.bf16.msra.mxu0 %v3054
  %7364 = vmatprep.mubr.bf16.mxu0 %v6835
  %7365 = vmatmul.mubr.bf16.gmra.mxu0 %v6834
  %v7366 = vpop.f32.mrf.mxu0
  %v7367 = vadd.f32 %v2197, %v7366
  %v7368 = vpop.f32.mrf.mxu0
  %v7369 = vadd.f32 %v2201, %v7368
  %v7370 = vpop.f32.mrf.mxu0
  %v7371 = vpop.f32.mrf.mxu0
  %7372 = vdwg.mxu0
  %7373 = vmatprep.subr.bf16.mxu0 %v3175
  %7374 = vmatpush1.bf16.msra.mxu0 %v3174
  %7375 = vmatprep.subr.bf16.mxu0 %v3167
  %7376 = vmatpush1.bf16.msra.mxu0 %v3166
  %7377 = vmatprep.subr.bf16.mxu0 %v3159
  %7378 = vmatpush1.bf16.msra.mxu0 %v3158
  %7379 = vmatprep.subr.bf16.mxu0 %v3151
  %7380 = vmatpush1.bf16.msra.mxu0 %v3150
  %7381 = vmatprep.subr.bf16.mxu0 %v3143
  %7382 = vmatpush1.bf16.msra.mxu0 %v3142
  %7383 = vmatprep.subr.bf16.mxu0 %v3135
  %7384 = vmatpush1.bf16.msra.mxu0 %v3134
  %7385 = vmatprep.subr.bf16.mxu0 %v3127
  %7386 = vmatpush1.bf16.msra.mxu0 %v3126
  %7387 = vmatprep.subr.bf16.mxu0 %v3119
  %7388 = vmatpush1.bf16.msra.mxu0 %v3118
  %7389 = vmatprep.subr.bf16.mxu0 %v3239
  %7390 = vmatpush2.bf16.msra.mxu0 %v3238
  %7391 = vmatprep.subr.bf16.mxu0 %v3231
  %7392 = vmatpush2.bf16.msra.mxu0 %v3230
  %7393 = vmatprep.subr.bf16.mxu0 %v3223
  %7394 = vmatpush2.bf16.msra.mxu0 %v3222
  %7395 = vmatprep.subr.bf16.mxu0 %v3215
  %7396 = vmatpush2.bf16.msra.mxu0 %v3214
  %7397 = vmatprep.subr.bf16.mxu0 %v3207
  %7398 = vmatpush2.bf16.msra.mxu0 %v3206
  %7399 = vmatprep.subr.bf16.mxu0 %v3199
  %7400 = vmatpush2.bf16.msra.mxu0 %v3198
  %7401 = vmatprep.subr.bf16.mxu0 %v3191
  %7402 = vmatpush2.bf16.msra.mxu0 %v3190
  %7403 = vmatprep.subr.bf16.mxu0 %v3183
  %7404 = vmatpush2.bf16.msra.mxu0 %v3182
  %7405 = vmatprep.mubr.bf16.mxu0 %v6837
  %7406 = vmatmul.mubr.bf16.gmra.mxu0 %v6836
  %v7407 = vpop.f32.mrf.mxu0
  %v7408 = vadd.f32 %v7367, %v7407
  %v7409 = vpop.f32.mrf.mxu0
  %v7410 = vadd.f32 %v7369, %v7409
  %v7411 = vpop.f32.mrf.mxu0
  %v7412 = vpop.f32.mrf.mxu0
  %7413 = vdwg.mxu0
  %7414 = vmatprep.subr.bf16.mxu0 %v3049
  %7415 = vmatpush1.bf16.msra.mxu0 %v3048
  %7416 = vmatprep.subr.bf16.mxu0 %v3041
  %7417 = vmatpush1.bf16.msra.mxu0 %v3040
  %7418 = vmatprep.subr.bf16.mxu0 %v3033
  %7419 = vmatpush1.bf16.msra.mxu0 %v3032
  %7420 = vmatprep.subr.bf16.mxu0 %v3025
  %7421 = vmatpush1.bf16.msra.mxu0 %v3024
  %7422 = vmatprep.subr.bf16.mxu0 %v3017
  %7423 = vmatpush1.bf16.msra.mxu0 %v3016
  %7424 = vmatprep.subr.bf16.mxu0 %v3009
  %7425 = vmatpush1.bf16.msra.mxu0 %v3008
  %7426 = vmatprep.subr.bf16.mxu0 %v3001
  %7427 = vmatpush1.bf16.msra.mxu0 %v3000
  %7428 = vmatprep.subr.bf16.mxu0 %v2993
  %7429 = vmatpush1.bf16.msra.mxu0 %v2992
  %7430 = vmatprep.subr.bf16.mxu0 %v3113
  %7431 = vmatpush2.bf16.msra.mxu0 %v3112
  %7432 = vmatprep.subr.bf16.mxu0 %v3105
  %7433 = vmatpush2.bf16.msra.mxu0 %v3104
  %7434 = vmatprep.subr.bf16.mxu0 %v3097
  %7435 = vmatpush2.bf16.msra.mxu0 %v3096
  %7436 = vmatprep.subr.bf16.mxu0 %v3089
  %7437 = vmatpush2.bf16.msra.mxu0 %v3088
  %7438 = vmatprep.subr.bf16.mxu0 %v3081
  %7439 = vmatpush2.bf16.msra.mxu0 %v3080
  %7440 = vmatprep.subr.bf16.mxu0 %v3073
  %7441 = vmatpush2.bf16.msra.mxu0 %v3072
  %7442 = vmatprep.subr.bf16.mxu0 %v3065
  %7443 = vmatpush2.bf16.msra.mxu0 %v3064
  %7444 = vmatprep.subr.bf16.mxu0 %v3057
  %7445 = vmatpush2.bf16.msra.mxu0 %v3056
  %7446 = vmatprep.mubr.bf16.mxu0 %v6835
  %7447 = vmatmul.mubr.bf16.gmra.mxu0 %v6834
  %v7448 = vpop.f32.mrf.mxu0
  %v7449 = vadd.f32 %v2205, %v7448
  %v7450 = vpop.f32.mrf.mxu0
  %v7451 = vadd.f32 %v2209, %v7450
  %v7452 = vpop.f32.mrf.mxu0
  %v7453 = vpop.f32.mrf.mxu0
  %7454 = vdwg.mxu0
  %7455 = vmatprep.subr.bf16.mxu0 %v3177
  %7456 = vmatpush1.bf16.msra.mxu0 %v3176
  %7457 = vmatprep.subr.bf16.mxu0 %v3169
  %7458 = vmatpush1.bf16.msra.mxu0 %v3168
  %7459 = vmatprep.subr.bf16.mxu0 %v3161
  %7460 = vmatpush1.bf16.msra.mxu0 %v3160
  %7461 = vmatprep.subr.bf16.mxu0 %v3153
  %7462 = vmatpush1.bf16.msra.mxu0 %v3152
  %7463 = vmatprep.subr.bf16.mxu0 %v3145
  %7464 = vmatpush1.bf16.msra.mxu0 %v3144
  %7465 = vmatprep.subr.bf16.mxu0 %v3137
  %7466 = vmatpush1.bf16.msra.mxu0 %v3136
  %7467 = vmatprep.subr.bf16.mxu0 %v3129
  %7468 = vmatpush1.bf16.msra.mxu0 %v3128
  %7469 = vmatprep.subr.bf16.mxu0 %v3121
  %7470 = vmatpush1.bf16.msra.mxu0 %v3120
  %7471 = vmatprep.subr.bf16.mxu0 %v3241
  %7472 = vmatpush2.bf16.msra.mxu0 %v3240
  %7473 = vmatprep.subr.bf16.mxu0 %v3233
  %7474 = vmatpush2.bf16.msra.mxu0 %v3232
  %7475 = vmatprep.subr.bf16.mxu0 %v3225
  %7476 = vmatpush2.bf16.msra.mxu0 %v3224
  %7477 = vmatprep.subr.bf16.mxu0 %v3217
  %7478 = vmatpush2.bf16.msra.mxu0 %v3216
  %7479 = vmatprep.subr.bf16.mxu0 %v3209
  %7480 = vmatpush2.bf16.msra.mxu0 %v3208
  %7481 = vmatprep.subr.bf16.mxu0 %v3201
  %7482 = vmatpush2.bf16.msra.mxu0 %v3200
  %7483 = vmatprep.subr.bf16.mxu0 %v3193
  %7484 = vmatpush2.bf16.msra.mxu0 %v3192
  %7485 = vmatprep.subr.bf16.mxu0 %v3185
  %7486 = vmatpush2.bf16.msra.mxu0 %v3184
  %7487 = vmatprep.mubr.bf16.mxu0 %v6837
  %7488 = vmatmul.mubr.bf16.gmra.mxu0 %v6836
  %v7489 = vpop.f32.mrf.mxu0
  %v7490 = vadd.f32 %v7449, %v7489
  %v7491 = vpop.f32.mrf.mxu0
  %v7492 = vadd.f32 %v7451, %v7491
  %v7493 = vpop.f32.mrf.mxu0
  %v7494 = vpop.f32.mrf.mxu0
  %7495 = vdwg.mxu0
  %v7496 = vmul.f32 %v6916, 0.5
  %v7497 = vmul.f32 %v6918, 0.5
  %v7498 = vtanh.pop %v7496
  %v7499 = vtanh.pop %v7497
  %v7500 = vadd.f32 %v7498, 1.0
  %v7501 = vadd.f32 %v7499, 1.0
  %v7502 = vmul.f32 %v7500, 0.5
  %v7503 = vmul.f32 %v7501, 0.5
  %v7504 = vmul.f32 %v6998, 0.5
  %v7505 = vmul.f32 %v7000, 0.5
  %v7506 = vtanh.pop %v7504
  %v7507 = vtanh.pop %v7505
  %v7508 = vadd.f32 %v7506, 1.0
  %v7509 = vadd.f32 %v7507, 1.0
  %v7510 = vmul.f32 %v7508, 0.5
  %v7511 = vmul.f32 %v7509, 0.5
  %v7512 = vtanh.pop %v7080
  %v7513 = vtanh.pop %v7082
  %v7514 = vmul.f32 %v7162, 0.5
  %v7515 = vmul.f32 %v7164, 0.5
  %v7516 = vtanh.pop %v7514
  %v7517 = vtanh.pop %v7515
  %v7518 = vadd.f32 %v7516, 1.0
  %v7519 = vadd.f32 %v7517, 1.0
  %v7520 = vmul.f32 %v7518, 0.5
  %v7521 = vmul.f32 %v7519, 0.5
  %v7522 = vmul.f32 %v7510, %v6792
  %v7523 = vmul.f32 %v7511, %v6793
  %v7524 = vmul.f32 %v7502, %v7512
  %v7525 = vmul.f32 %v7503, %v7513
  %v7526 = vadd.f32 %v7522, %v7524
  %v7527 = vadd.f32 %v7523, %v7525
  %v7528 = vtanh.pop %v7526
  %v7529 = vtanh.pop %v7527
  %v7530 = vmul.f32 %v7520, %v7528
  %v7531 = vmul.f32 %v7521, %v7529
  %v7532 = vmul.f32 %v7244, 0.5
  %v7533 = vmul.f32 %v7246, 0.5
  %v7534 = vtanh.pop %v7532
  %v7535 = vtanh.pop %v7533
  %v7536 = vadd.f32 %v7534, 1.0
  %v7537 = vadd.f32 %v7535, 1.0
  %v7538 = vmul.f32 %v7536, 0.5
  %v7539 = vmul.f32 %v7537, 0.5
  %v7540 = vmul.f32 %v7326, 0.5
  %v7541 = vmul.f32 %v7328, 0.5
  %v7542 = vtanh.pop %v7540
  %v7543 = vtanh.pop %v7541
  %v7544 = vadd.f32 %v7542, 1.0
  %v7545 = vadd.f32 %v7543, 1.0
  %v7546 = vmul.f32 %v7544, 0.5
  %v7547 = vmul.f32 %v7545, 0.5
  %v7548 = vtanh.pop %v7408
  %v7549 = vtanh.pop %v7410
  %v7550 = vmul.f32 %v7490, 0.5
  %v7551 = vmul.f32 %v7492, 0.5
  %v7552 = vtanh.pop %v7550
  %v7553 = vtanh.pop %v7551
  %v7554 = vadd.f32 %v7552, 1.0
  %v7555 = vadd.f32 %v7553, 1.0
  %v7556 = vmul.f32 %v7554, 0.5
  %v7557 = vmul.f32 %v7555, 0.5
  %v7558 = vmul.f32 %v7546, %v6828
  %v7559 = vmul.f32 %v7547, %v6829
  %v7560 = vmul.f32 %v7538, %v7548
  %v7561 = vmul.f32 %v7539, %v7549
  %v7562 = vadd.f32 %v7558, %v7560
  %v7563 = vadd.f32 %v7559, %v7561
  %v7564 = vtanh.pop %v7562
  %v7565 = vtanh.pop %v7563
  %v7566 = vmul.f32 %v7556, %v7564
  %v7567 = vmul.f32 %v7557, %v7565
  %v7568 = vpack.c.bf16 %v7530, %v7530
  %v7569 = vpack.c.bf16 %v7531, %v7531
  %v7570 = vpack.c.bf16 %v7566, %v7566
  %v7571 = vpack.c.bf16 %v7567, %v7567
  %s7572 = scalar_lea.vmem %s0, 7
  %v7573 = vld [vmem:[%s7572] sm:$0x1]
  %7574 = vmatprep.subr.bf16.mxu0 %v898
  %7575 = vmatpush1.bf16.msra.mxu0 %v897
  %7576 = vmatprep.subr.bf16.mxu0 %v890
  %7577 = vmatpush1.bf16.msra.mxu0 %v889
  %7578 = vmatprep.subr.bf16.mxu0 %v882
  %7579 = vmatpush1.bf16.msra.mxu0 %v881
  %7580 = vmatprep.subr.bf16.mxu0 %v874
  %7581 = vmatpush1.bf16.msra.mxu0 %v873
  %7582 = vmatprep.subr.bf16.mxu0 %v866
  %7583 = vmatpush1.bf16.msra.mxu0 %v865
  %7584 = vmatprep.subr.bf16.mxu0 %v858
  %7585 = vmatpush1.bf16.msra.mxu0 %v857
  %7586 = vmatprep.subr.bf16.mxu0 %v850
  %7587 = vmatpush1.bf16.msra.mxu0 %v849
  %7588 = vmatprep.subr.bf16.mxu0 %v842
  %7589 = vmatpush1.bf16.msra.mxu0 %v841
  %7590 = vmatprep.subr.bf16.mxu0 %v962
  %7591 = vmatpush2.bf16.msra.mxu0 %v961
  %7592 = vmatprep.subr.bf16.mxu0 %v954
  %7593 = vmatpush2.bf16.msra.mxu0 %v953
  %7594 = vmatprep.subr.bf16.mxu0 %v946
  %7595 = vmatpush2.bf16.msra.mxu0 %v945
  %7596 = vmatprep.subr.bf16.mxu0 %v938
  %7597 = vmatpush2.bf16.msra.mxu0 %v937
  %7598 = vmatprep.subr.bf16.mxu0 %v930
  %7599 = vmatpush2.bf16.msra.mxu0 %v929
  %7600 = vmatprep.subr.bf16.mxu0 %v922
  %7601 = vmatpush2.bf16.msra.mxu0 %v921
  %7602 = vmatprep.subr.bf16.mxu0 %v914
  %7603 = vmatpush2.bf16.msra.mxu0 %v913
  %7604 = vmatprep.subr.bf16.mxu0 %v906
  %7605 = vmatpush2.bf16.msra.mxu0 %v905
  %7606 = vmatprep.mubr.bf16.mxu0 %v7568
  %7607 = vmatmul.mubr.bf16.gmra.mxu0 %v7573
  %v7608 = vpop.f32.mrf.mxu0
  %v7609 = vadd.f32 %v228, %v7608
  %v7610 = vpop.f32.mrf.mxu0
  %v7611 = vadd.f32 %v232, %v7610
  %v7612 = vpop.f32.mrf.mxu0
  %v7613 = vpop.f32.mrf.mxu0
  %7614 = vdwg.mxu0
  %7615 = vmatprep.subr.bf16.mxu0 %v1026
  %7616 = vmatpush1.bf16.msra.mxu0 %v1025
  %7617 = vmatprep.subr.bf16.mxu0 %v1018
  %7618 = vmatpush1.bf16.msra.mxu0 %v1017
  %7619 = vmatprep.subr.bf16.mxu0 %v1010
  %7620 = vmatpush1.bf16.msra.mxu0 %v1009
  %7621 = vmatprep.subr.bf16.mxu0 %v1002
  %7622 = vmatpush1.bf16.msra.mxu0 %v1001
  %7623 = vmatprep.subr.bf16.mxu0 %v994
  %7624 = vmatpush1.bf16.msra.mxu0 %v993
  %7625 = vmatprep.subr.bf16.mxu0 %v986
  %7626 = vmatpush1.bf16.msra.mxu0 %v985
  %7627 = vmatprep.subr.bf16.mxu0 %v978
  %7628 = vmatpush1.bf16.msra.mxu0 %v977
  %7629 = vmatprep.subr.bf16.mxu0 %v970
  %7630 = vmatpush1.bf16.msra.mxu0 %v969
  %7631 = vmatprep.subr.bf16.mxu0 0
  %7632 = vmatpush2.bf16.msra.mxu0 0
  %7633 = vmatprep.subr.bf16.mxu0 0
  %7634 = vmatpush2.bf16.msra.mxu0 0
  %7635 = vmatprep.subr.bf16.mxu0 0
  %7636 = vmatpush2.bf16.msra.mxu0 0
  %7637 = vmatprep.subr.bf16.mxu0 0
  %7638 = vmatpush2.bf16.msra.mxu0 0
  %7639 = vmatprep.subr.bf16.mxu0 0
  %7640 = vmatpush2.bf16.msra.mxu0 0
  %7641 = vmatprep.subr.bf16.mxu0 0
  %7642 = vmatpush2.bf16.msra.mxu0 0
  %7643 = vmatprep.subr.bf16.mxu0 0
  %7644 = vmatpush2.bf16.msra.mxu0 0
  %7645 = vmatprep.subr.bf16.mxu0 0
  %7646 = vmatpush2.bf16.msra.mxu0 0
  %7647 = vmatprep.mubr.bf16.mxu0 0
  %7648 = vmatmul.mubr.bf16.gmra.mxu0 %v7569
  %v7649 = vpop.f32.mrf.mxu0
  %v7650 = vadd.f32 %v7609, %v7649
  %v7651 = vpop.f32.mrf.mxu0
  %v7652 = vadd.f32 %v7611, %v7651
  %v7653 = vpop.f32.mrf.mxu0
  %v7654 = vpop.f32.mrf.mxu0
  %7655 = vdwg.mxu0
  %7656 = vmatprep.subr.bf16.mxu0 %v900
  %7657 = vmatpush1.bf16.msra.mxu0 %v899
  %7658 = vmatprep.subr.bf16.mxu0 %v892
  %7659 = vmatpush1.bf16.msra.mxu0 %v891
  %7660 = vmatprep.subr.bf16.mxu0 %v884
  %7661 = vmatpush1.bf16.msra.mxu0 %v883
  %7662 = vmatprep.subr.bf16.mxu0 %v876
  %7663 = vmatpush1.bf16.msra.mxu0 %v875
  %7664 = vmatprep.subr.bf16.mxu0 %v868
  %7665 = vmatpush1.bf16.msra.mxu0 %v867
  %7666 = vmatprep.subr.bf16.mxu0 %v860
  %7667 = vmatpush1.bf16.msra.mxu0 %v859
  %7668 = vmatprep.subr.bf16.mxu0 %v852
  %7669 = vmatpush1.bf16.msra.mxu0 %v851
  %7670 = vmatprep.subr.bf16.mxu0 %v844
  %7671 = vmatpush1.bf16.msra.mxu0 %v843
  %7672 = vmatprep.subr.bf16.mxu0 %v964
  %7673 = vmatpush2.bf16.msra.mxu0 %v963
  %7674 = vmatprep.subr.bf16.mxu0 %v956
  %7675 = vmatpush2.bf16.msra.mxu0 %v955
  %7676 = vmatprep.subr.bf16.mxu0 %v948
  %7677 = vmatpush2.bf16.msra.mxu0 %v947
  %7678 = vmatprep.subr.bf16.mxu0 %v940
  %7679 = vmatpush2.bf16.msra.mxu0 %v939
  %7680 = vmatprep.subr.bf16.mxu0 %v932
  %7681 = vmatpush2.bf16.msra.mxu0 %v931
  %7682 = vmatprep.subr.bf16.mxu0 %v924
  %7683 = vmatpush2.bf16.msra.mxu0 %v923
  %7684 = vmatprep.subr.bf16.mxu0 %v916
  %7685 = vmatpush2.bf16.msra.mxu0 %v915
  %7686 = vmatprep.subr.bf16.mxu0 %v908
  %7687 = vmatpush2.bf16.msra.mxu0 %v907
  %7688 = vmatprep.mubr.bf16.mxu0 %v7568
  %7689 = vmatmul.mubr.bf16.gmra.mxu0 %v7573
  %v7690 = vpop.f32.mrf.mxu0
  %v7691 = vadd.f32 %v236, %v7690
  %v7692 = vpop.f32.mrf.mxu0
  %v7693 = vadd.f32 %v240, %v7692
  %v7694 = vpop.f32.mrf.mxu0
  %v7695 = vpop.f32.mrf.mxu0
  %7696 = vdwg.mxu0
  %7697 = vmatprep.subr.bf16.mxu0 %v1028
  %7698 = vmatpush1.bf16.msra.mxu0 %v1027
  %7699 = vmatprep.subr.bf16.mxu0 %v1020
  %7700 = vmatpush1.bf16.msra.mxu0 %v1019
  %7701 = vmatprep.subr.bf16.mxu0 %v1012
  %7702 = vmatpush1.bf16.msra.mxu0 %v1011
  %7703 = vmatprep.subr.bf16.mxu0 %v1004
  %7704 = vmatpush1.bf16.msra.mxu0 %v1003
  %7705 = vmatprep.subr.bf16.mxu0 %v996
  %7706 = vmatpush1.bf16.msra.mxu0 %v995
  %7707 = vmatprep.subr.bf16.mxu0 %v988
  %7708 = vmatpush1.bf16.msra.mxu0 %v987
  %7709 = vmatprep.subr.bf16.mxu0 %v980
  %7710 = vmatpush1.bf16.msra.mxu0 %v979
  %7711 = vmatprep.subr.bf16.mxu0 %v972
  %7712 = vmatpush1.bf16.msra.mxu0 %v971
  %7713 = vmatprep.subr.bf16.mxu0 0
  %7714 = vmatpush2.bf16.msra.mxu0 0
  %7715 = vmatprep.subr.bf16.mxu0 0
  %7716 = vmatpush2.bf16.msra.mxu0 0
  %7717 = vmatprep.subr.bf16.mxu0 0
  %7718 = vmatpush2.bf16.msra.mxu0 0
  %7719 = vmatprep.subr.bf16.mxu0 0
  %7720 = vmatpush2.bf16.msra.mxu0 0
  %7721 = vmatprep.subr.bf16.mxu0 0
  %7722 = vmatpush2.bf16.msra.mxu0 0
  %7723 = vmatprep.subr.bf16.mxu0 0
  %7724 = vmatpush2.bf16.msra.mxu0 0
  %7725 = vmatprep.subr.bf16.mxu0 0
  %7726 = vmatpush2.bf16.msra.mxu0 0
  %7727 = vmatprep.subr.bf16.mxu0 0
  %7728 = vmatpush2.bf16.msra.mxu0 0
  %7729 = vmatprep.mubr.bf16.mxu0 0
  %7730 = vmatmul.mubr.bf16.gmra.mxu0 %v7569
  %v7731 = vpop.f32.mrf.mxu0
  %v7732 = vadd.f32 %v7691, %v7731
  %v7733 = vpop.f32.mrf.mxu0
  %v7734 = vadd.f32 %v7693, %v7733
  %v7735 = vpop.f32.mrf.mxu0
  %v7736 = vpop.f32.mrf.mxu0
  %7737 = vdwg.mxu0
  %7738 = vmatprep.subr.bf16.mxu0 %v902
  %7739 = vmatpush1.bf16.msra.mxu0 %v901
  %7740 = vmatprep.subr.bf16.mxu0 %v894
  %7741 = vmatpush1.bf16.msra.mxu0 %v893
  %7742 = vmatprep.subr.bf16.mxu0 %v886
  %7743 = vmatpush1.bf16.msra.mxu0 %v885
  %7744 = vmatprep.subr.bf16.mxu0 %v878
  %7745 = vmatpush1.bf16.msra.mxu0 %v877
  %7746 = vmatprep.subr.bf16.mxu0 %v870
  %7747 = vmatpush1.bf16.msra.mxu0 %v869
  %7748 = vmatprep.subr.bf16.mxu0 %v862
  %7749 = vmatpush1.bf16.msra.mxu0 %v861
  %7750 = vmatprep.subr.bf16.mxu0 %v854
  %7751 = vmatpush1.bf16.msra.mxu0 %v853
  %7752 = vmatprep.subr.bf16.mxu0 %v846
  %7753 = vmatpush1.bf16.msra.mxu0 %v845
  %7754 = vmatprep.subr.bf16.mxu0 %v966
  %7755 = vmatpush2.bf16.msra.mxu0 %v965
  %7756 = vmatprep.subr.bf16.mxu0 %v958
  %7757 = vmatpush2.bf16.msra.mxu0 %v957
  %7758 = vmatprep.subr.bf16.mxu0 %v950
  %7759 = vmatpush2.bf16.msra.mxu0 %v949
  %7760 = vmatprep.subr.bf16.mxu0 %v942
  %7761 = vmatpush2.bf16.msra.mxu0 %v941
  %7762 = vmatprep.subr.bf16.mxu0 %v934
  %7763 = vmatpush2.bf16.msra.mxu0 %v933
  %7764 = vmatprep.subr.bf16.mxu0 %v926
  %7765 = vmatpush2.bf16.msra.mxu0 %v925
  %7766 = vmatprep.subr.bf16.mxu0 %v918
  %7767 = vmatpush2.bf16.msra.mxu0 %v917
  %7768 = vmatprep.subr.bf16.mxu0 %v910
  %7769 = vmatpush2.bf16.msra.mxu0 %v909
  %7770 = vmatprep.mubr.bf16.mxu0 %v7568
  %7771 = vmatmul.mubr.bf16.gmra.mxu0 %v7573
  %v7772 = vpop.f32.mrf.mxu0
  %v7773 = vadd.f32 %v244, %v7772
  %v7774 = vpop.f32.mrf.mxu0
  %v7775 = vadd.f32 %v248, %v7774
  %v7776 = vpop.f32.mrf.mxu0
  %v7777 = vpop.f32.mrf.mxu0
  %7778 = vdwg.mxu0
  %7779 = vmatprep.subr.bf16.mxu0 %v1030
  %7780 = vmatpush1.bf16.msra.mxu0 %v1029
  %7781 = vmatprep.subr.bf16.mxu0 %v1022
  %7782 = vmatpush1.bf16.msra.mxu0 %v1021
  %7783 = vmatprep.subr.bf16.mxu0 %v1014
  %7784 = vmatpush1.bf16.msra.mxu0 %v1013
  %7785 = vmatprep.subr.bf16.mxu0 %v1006
  %7786 = vmatpush1.bf16.msra.mxu0 %v1005
  %7787 = vmatprep.subr.bf16.mxu0 %v998
  %7788 = vmatpush1.bf16.msra.mxu0 %v997
  %7789 = vmatprep.subr.bf16.mxu0 %v990
  %7790 = vmatpush1.bf16.msra.mxu0 %v989
  %7791 = vmatprep.subr.bf16.mxu0 %v982
  %7792 = vmatpush1.bf16.msra.mxu0 %v981
  %7793 = vmatprep.subr.bf16.mxu0 %v974
  %7794 = vmatpush1.bf16.msra.mxu0 %v973
  %7795 = vmatprep.subr.bf16.mxu0 0
  %7796 = vmatpush2.bf16.msra.mxu0 0
  %7797 = vmatprep.subr.bf16.mxu0 0
  %7798 = vmatpush2.bf16.msra.mxu0 0
  %7799 = vmatprep.subr.bf16.mxu0 0
  %7800 = vmatpush2.bf16.msra.mxu0 0
  %7801 = vmatprep.subr.bf16.mxu0 0
  %7802 = vmatpush2.bf16.msra.mxu0 0
  %7803 = vmatprep.subr.bf16.mxu0 0
  %7804 = vmatpush2.bf16.msra.mxu0 0
  %7805 = vmatprep.subr.bf16.mxu0 0
  %7806 = vmatpush2.bf16.msra.mxu0 0
  %7807 = vmatprep.subr.bf16.mxu0 0
  %7808 = vmatpush2.bf16.msra.mxu0 0
  %7809 = vmatprep.subr.bf16.mxu0 0
  %7810 = vmatpush2.bf16.msra.mxu0 0
  %7811 = vmatprep.mubr.bf16.mxu0 0
  %7812 = vmatmul.mubr.bf16.gmra.mxu0 %v7569
  %v7813 = vpop.f32.mrf.mxu0
  %v7814 = vadd.f32 %v7773, %v7813
  %v7815 = vpop.f32.mrf.mxu0
  %v7816 = vadd.f32 %v7775, %v7815
  %v7817 = vpop.f32.mrf.mxu0
  %v7818 = vpop.f32.mrf.mxu0
  %7819 = vdwg.mxu0
  %7820 = vmatprep.subr.bf16.mxu0 %v904
  %7821 = vmatpush1.bf16.msra.mxu0 %v903
  %7822 = vmatprep.subr.bf16.mxu0 %v896
  %7823 = vmatpush1.bf16.msra.mxu0 %v895
  %7824 = vmatprep.subr.bf16.mxu0 %v888
  %7825 = vmatpush1.bf16.msra.mxu0 %v887
  %7826 = vmatprep.subr.bf16.mxu0 %v880
  %7827 = vmatpush1.bf16.msra.mxu0 %v879
  %7828 = vmatprep.subr.bf16.mxu0 %v872
  %7829 = vmatpush1.bf16.msra.mxu0 %v871
  %7830 = vmatprep.subr.bf16.mxu0 %v864
  %7831 = vmatpush1.bf16.msra.mxu0 %v863
  %7832 = vmatprep.subr.bf16.mxu0 %v856
  %7833 = vmatpush1.bf16.msra.mxu0 %v855
  %7834 = vmatprep.subr.bf16.mxu0 %v848
  %7835 = vmatpush1.bf16.msra.mxu0 %v847
  %7836 = vmatprep.subr.bf16.mxu0 %v968
  %7837 = vmatpush2.bf16.msra.mxu0 %v967
  %7838 = vmatprep.subr.bf16.mxu0 %v960
  %7839 = vmatpush2.bf16.msra.mxu0 %v959
  %7840 = vmatprep.subr.bf16.mxu0 %v952
  %7841 = vmatpush2.bf16.msra.mxu0 %v951
  %7842 = vmatprep.subr.bf16.mxu0 %v944
  %7843 = vmatpush2.bf16.msra.mxu0 %v943
  %7844 = vmatprep.subr.bf16.mxu0 %v936
  %7845 = vmatpush2.bf16.msra.mxu0 %v935
  %7846 = vmatprep.subr.bf16.mxu0 %v928
  %7847 = vmatpush2.bf16.msra.mxu0 %v927
  %7848 = vmatprep.subr.bf16.mxu0 %v920
  %7849 = vmatpush2.bf16.msra.mxu0 %v919
  %7850 = vmatprep.subr.bf16.mxu0 %v912
  %7851 = vmatpush2.bf16.msra.mxu0 %v911
  %7852 = vmatprep.mubr.bf16.mxu0 %v7568
  %7853 = vmatmul.mubr.bf16.gmra.mxu0 %v7573
  %v7854 = vpop.f32.mrf.mxu0
  %v7855 = vadd.f32 %v252, %v7854
  %v7856 = vpop.f32.mrf.mxu0
  %v7857 = vadd.f32 %v256, %v7856
  %v7858 = vpop.f32.mrf.mxu0
  %v7859 = vpop.f32.mrf.mxu0
  %7860 = vdwg.mxu0
  %7861 = vmatprep.subr.bf16.mxu0 %v1032
  %7862 = vmatpush1.bf16.msra.mxu0 %v1031
  %7863 = vmatprep.subr.bf16.mxu0 %v1024
  %7864 = vmatpush1.bf16.msra.mxu0 %v1023
  %7865 = vmatprep.subr.bf16.mxu0 %v1016
  %7866 = vmatpush1.bf16.msra.mxu0 %v1015
  %7867 = vmatprep.subr.bf16.mxu0 %v1008
  %7868 = vmatpush1.bf16.msra.mxu0 %v1007
  %7869 = vmatprep.subr.bf16.mxu0 %v1000
  %7870 = vmatpush1.bf16.msra.mxu0 %v999
  %7871 = vmatprep.subr.bf16.mxu0 %v992
  %7872 = vmatpush1.bf16.msra.mxu0 %v991
  %7873 = vmatprep.subr.bf16.mxu0 %v984
  %7874 = vmatpush1.bf16.msra.mxu0 %v983
  %7875 = vmatprep.subr.bf16.mxu0 %v976
  %7876 = vmatpush1.bf16.msra.mxu0 %v975
  %7877 = vmatprep.subr.bf16.mxu0 0
  %7878 = vmatpush2.bf16.msra.mxu0 0
  %7879 = vmatprep.subr.bf16.mxu0 0
  %7880 = vmatpush2.bf16.msra.mxu0 0
  %7881 = vmatprep.subr.bf16.mxu0 0
  %7882 = vmatpush2.bf16.msra.mxu0 0
  %7883 = vmatprep.subr.bf16.mxu0 0
  %7884 = vmatpush2.bf16.msra.mxu0 0
  %7885 = vmatprep.subr.bf16.mxu0 0
  %7886 = vmatpush2.bf16.msra.mxu0 0
  %7887 = vmatprep.subr.bf16.mxu0 0
  %7888 = vmatpush2.bf16.msra.mxu0 0
  %7889 = vmatprep.subr.bf16.mxu0 0
  %7890 = vmatpush2.bf16.msra.mxu0 0
  %7891 = vmatprep.subr.bf16.mxu0 0
  %7892 = vmatpush2.bf16.msra.mxu0 0
  %7893 = vmatprep.mubr.bf16.mxu0 0
  %7894 = vmatmul.mubr.bf16.gmra.mxu0 %v7569
  %v7895 = vpop.f32.mrf.mxu0
  %v7896 = vadd.f32 %v7855, %v7895
  %v7897 = vpop.f32.mrf.mxu0
  %v7898 = vadd.f32 %v7857, %v7897
  %v7899 = vpop.f32.mrf.mxu0
  %v7900 = vpop.f32.mrf.mxu0
  %7901 = vdwg.mxu0
  %7902 = vmatprep.subr.bf16.mxu0 %v3043
  %7903 = vmatpush1.bf16.msra.mxu0 %v3042
  %7904 = vmatprep.subr.bf16.mxu0 %v3035
  %7905 = vmatpush1.bf16.msra.mxu0 %v3034
  %7906 = vmatprep.subr.bf16.mxu0 %v3027
  %7907 = vmatpush1.bf16.msra.mxu0 %v3026
  %7908 = vmatprep.subr.bf16.mxu0 %v3019
  %7909 = vmatpush1.bf16.msra.mxu0 %v3018
  %7910 = vmatprep.subr.bf16.mxu0 %v3011
  %7911 = vmatpush1.bf16.msra.mxu0 %v3010
  %7912 = vmatprep.subr.bf16.mxu0 %v3003
  %7913 = vmatpush1.bf16.msra.mxu0 %v3002
  %7914 = vmatprep.subr.bf16.mxu0 %v2995
  %7915 = vmatpush1.bf16.msra.mxu0 %v2994
  %7916 = vmatprep.subr.bf16.mxu0 %v2987
  %7917 = vmatpush1.bf16.msra.mxu0 %v2986
  %7918 = vmatprep.subr.bf16.mxu0 %v3107
  %7919 = vmatpush2.bf16.msra.mxu0 %v3106
  %7920 = vmatprep.subr.bf16.mxu0 %v3099
  %7921 = vmatpush2.bf16.msra.mxu0 %v3098
  %7922 = vmatprep.subr.bf16.mxu0 %v3091
  %7923 = vmatpush2.bf16.msra.mxu0 %v3090
  %7924 = vmatprep.subr.bf16.mxu0 %v3083
  %7925 = vmatpush2.bf16.msra.mxu0 %v3082
  %7926 = vmatprep.subr.bf16.mxu0 %v3075
  %7927 = vmatpush2.bf16.msra.mxu0 %v3074
  %7928 = vmatprep.subr.bf16.mxu0 %v3067
  %7929 = vmatpush2.bf16.msra.mxu0 %v3066
  %7930 = vmatprep.subr.bf16.mxu0 %v3059
  %7931 = vmatpush2.bf16.msra.mxu0 %v3058
  %7932 = vmatprep.subr.bf16.mxu0 %v3051
  %7933 = vmatpush2.bf16.msra.mxu0 %v3050
  %7934 = vmatprep.mubr.bf16.mxu0 %v7569
  %7935 = vmatmul.mubr.bf16.gmra.mxu0 %v7568
  %v7936 = vpop.f32.mrf.mxu0
  %v7937 = vadd.f32 %v2181, %v7936
  %v7938 = vpop.f32.mrf.mxu0
  %v7939 = vadd.f32 %v2185, %v7938
  %v7940 = vpop.f32.mrf.mxu0
  %v7941 = vpop.f32.mrf.mxu0
  %7942 = vdwg.mxu0
  %7943 = vmatprep.subr.bf16.mxu0 %v3171
  %7944 = vmatpush1.bf16.msra.mxu0 %v3170
  %7945 = vmatprep.subr.bf16.mxu0 %v3163
  %7946 = vmatpush1.bf16.msra.mxu0 %v3162
  %7947 = vmatprep.subr.bf16.mxu0 %v3155
  %7948 = vmatpush1.bf16.msra.mxu0 %v3154
  %7949 = vmatprep.subr.bf16.mxu0 %v3147
  %7950 = vmatpush1.bf16.msra.mxu0 %v3146
  %7951 = vmatprep.subr.bf16.mxu0 %v3139
  %7952 = vmatpush1.bf16.msra.mxu0 %v3138
  %7953 = vmatprep.subr.bf16.mxu0 %v3131
  %7954 = vmatpush1.bf16.msra.mxu0 %v3130
  %7955 = vmatprep.subr.bf16.mxu0 %v3123
  %7956 = vmatpush1.bf16.msra.mxu0 %v3122
  %7957 = vmatprep.subr.bf16.mxu0 %v3115
  %7958 = vmatpush1.bf16.msra.mxu0 %v3114
  %7959 = vmatprep.subr.bf16.mxu0 %v3235
  %7960 = vmatpush2.bf16.msra.mxu0 %v3234
  %7961 = vmatprep.subr.bf16.mxu0 %v3227
  %7962 = vmatpush2.bf16.msra.mxu0 %v3226
  %7963 = vmatprep.subr.bf16.mxu0 %v3219
  %7964 = vmatpush2.bf16.msra.mxu0 %v3218
  %7965 = vmatprep.subr.bf16.mxu0 %v3211
  %7966 = vmatpush2.bf16.msra.mxu0 %v3210
  %7967 = vmatprep.subr.bf16.mxu0 %v3203
  %7968 = vmatpush2.bf16.msra.mxu0 %v3202
  %7969 = vmatprep.subr.bf16.mxu0 %v3195
  %7970 = vmatpush2.bf16.msra.mxu0 %v3194
  %7971 = vmatprep.subr.bf16.mxu0 %v3187
  %7972 = vmatpush2.bf16.msra.mxu0 %v3186
  %7973 = vmatprep.subr.bf16.mxu0 %v3179
  %7974 = vmatpush2.bf16.msra.mxu0 %v3178
  %7975 = vmatprep.mubr.bf16.mxu0 %v7571
  %7976 = vmatmul.mubr.bf16.gmra.mxu0 %v7570
  %v7977 = vpop.f32.mrf.mxu0
  %v7978 = vadd.f32 %v7937, %v7977
  %v7979 = vpop.f32.mrf.mxu0
  %v7980 = vadd.f32 %v7939, %v7979
  %v7981 = vpop.f32.mrf.mxu0
  %v7982 = vpop.f32.mrf.mxu0
  %7983 = vdwg.mxu0
  %7984 = vmatprep.subr.bf16.mxu0 %v3045
  %7985 = vmatpush1.bf16.msra.mxu0 %v3044
  %7986 = vmatprep.subr.bf16.mxu0 %v3037
  %7987 = vmatpush1.bf16.msra.mxu0 %v3036
  %7988 = vmatprep.subr.bf16.mxu0 %v3029
  %7989 = vmatpush1.bf16.msra.mxu0 %v3028
  %7990 = vmatprep.subr.bf16.mxu0 %v3021
  %7991 = vmatpush1.bf16.msra.mxu0 %v3020
  %7992 = vmatprep.subr.bf16.mxu0 %v3013
  %7993 = vmatpush1.bf16.msra.mxu0 %v3012
  %7994 = vmatprep.subr.bf16.mxu0 %v3005
  %7995 = vmatpush1.bf16.msra.mxu0 %v3004
  %7996 = vmatprep.subr.bf16.mxu0 %v2997
  %7997 = vmatpush1.bf16.msra.mxu0 %v2996
  %7998 = vmatprep.subr.bf16.mxu0 %v2989
  %7999 = vmatpush1.bf16.msra.mxu0 %v2988
  %8000 = vmatprep.subr.bf16.mxu0 %v3109
  %8001 = vmatpush2.bf16.msra.mxu0 %v3108
  %8002 = vmatprep.subr.bf16.mxu0 %v3101
  %8003 = vmatpush2.bf16.msra.mxu0 %v3100
  %8004 = vmatprep.subr.bf16.mxu0 %v3093
  %8005 = vmatpush2.bf16.msra.mxu0 %v3092
  %8006 = vmatprep.subr.bf16.mxu0 %v3085
  %8007 = vmatpush2.bf16.msra.mxu0 %v3084
  %8008 = vmatprep.subr.bf16.mxu0 %v3077
  %8009 = vmatpush2.bf16.msra.mxu0 %v3076
  %8010 = vmatprep.subr.bf16.mxu0 %v3069
  %8011 = vmatpush2.bf16.msra.mxu0 %v3068
  %8012 = vmatprep.subr.bf16.mxu0 %v3061
  %8013 = vmatpush2.bf16.msra.mxu0 %v3060
  %8014 = vmatprep.subr.bf16.mxu0 %v3053
  %8015 = vmatpush2.bf16.msra.mxu0 %v3052
  %8016 = vmatprep.mubr.bf16.mxu0 %v7569
  %8017 = vmatmul.mubr.bf16.gmra.mxu0 %v7568
  %v8018 = vpop.f32.mrf.mxu0
  %v8019 = vadd.f32 %v2189, %v8018
  %v8020 = vpop.f32.mrf.mxu0
  %v8021 = vadd.f32 %v2193, %v8020
  %v8022 = vpop.f32.mrf.mxu0
  %v8023 = vpop.f32.mrf.mxu0
  %8024 = vdwg.mxu0
  %8025 = vmatprep.subr.bf16.mxu0 %v3173
  %8026 = vmatpush1.bf16.msra.mxu0 %v3172
  %8027 = vmatprep.subr.bf16.mxu0 %v3165
  %8028 = vmatpush1.bf16.msra.mxu0 %v3164
  %8029 = vmatprep.subr.bf16.mxu0 %v3157
  %8030 = vmatpush1.bf16.msra.mxu0 %v3156
  %8031 = vmatprep.subr.bf16.mxu0 %v3149
  %8032 = vmatpush1.bf16.msra.mxu0 %v3148
  %8033 = vmatprep.subr.bf16.mxu0 %v3141
  %8034 = vmatpush1.bf16.msra.mxu0 %v3140
  %8035 = vmatprep.subr.bf16.mxu0 %v3133
  %8036 = vmatpush1.bf16.msra.mxu0 %v3132
  %8037 = vmatprep.subr.bf16.mxu0 %v3125
  %8038 = vmatpush1.bf16.msra.mxu0 %v3124
  %8039 = vmatprep.subr.bf16.mxu0 %v3117
  %8040 = vmatpush1.bf16.msra.mxu0 %v3116
  %8041 = vmatprep.subr.bf16.mxu0 %v3237
  %8042 = vmatpush2.bf16.msra.mxu0 %v3236
  %8043 = vmatprep.subr.bf16.mxu0 %v3229
  %8044 = vmatpush2.bf16.msra.mxu0 %v3228
  %8045 = vmatprep.subr.bf16.mxu0 %v3221
  %8046 = vmatpush2.bf16.msra.mxu0 %v3220
  %8047 = vmatprep.subr.bf16.mxu0 %v3213
  %8048 = vmatpush2.bf16.msra.mxu0 %v3212
  %8049 = vmatprep.subr.bf16.mxu0 %v3205
  %8050 = vmatpush2.bf16.msra.mxu0 %v3204
  %8051 = vmatprep.subr.bf16.mxu0 %v3197
  %8052 = vmatpush2.bf16.msra.mxu0 %v3196
  %8053 = vmatprep.subr.bf16.mxu0 %v3189
  %8054 = vmatpush2.bf16.msra.mxu0 %v3188
  %8055 = vmatprep.subr.bf16.mxu0 %v3181
  %8056 = vmatpush2.bf16.msra.mxu0 %v3180
  %8057 = vmatprep.mubr.bf16.mxu0 %v7571
  %8058 = vmatmul.mubr.bf16.gmra.mxu0 %v7570
  %v8059 = vpop.f32.mrf.mxu0
  %v8060 = vadd.f32 %v8019, %v8059
  %v8061 = vpop.f32.mrf.mxu0
  %v8062 = vadd.f32 %v8021, %v8061
  %v8063 = vpop.f32.mrf.mxu0
  %v8064 = vpop.f32.mrf.mxu0
  %8065 = vdwg.mxu0
  %8066 = vmatprep.subr.bf16.mxu0 %v3047
  %8067 = vmatpush1.bf16.msra.mxu0 %v3046
  %8068 = vmatprep.subr.bf16.mxu0 %v3039
  %8069 = vmatpush1.bf16.msra.mxu0 %v3038
  %8070 = vmatprep.subr.bf16.mxu0 %v3031
  %8071 = vmatpush1.bf16.msra.mxu0 %v3030
  %8072 = vmatprep.subr.bf16.mxu0 %v3023
  %8073 = vmatpush1.bf16.msra.mxu0 %v3022
  %8074 = vmatprep.subr.bf16.mxu0 %v3015
  %8075 = vmatpush1.bf16.msra.mxu0 %v3014
  %8076 = vmatprep.subr.bf16.mxu0 %v3007
  %8077 = vmatpush1.bf16.msra.mxu0 %v3006
  %8078 = vmatprep.subr.bf16.mxu0 %v2999
  %8079 = vmatpush1.bf16.msra.mxu0 %v2998
  %8080 = vmatprep.subr.bf16.mxu0 %v2991
  %8081 = vmatpush1.bf16.msra.mxu0 %v2990
  %8082 = vmatprep.subr.bf16.mxu0 %v3111
  %8083 = vmatpush2.bf16.msra.mxu0 %v3110
  %8084 = vmatprep.subr.bf16.mxu0 %v3103
  %8085 = vmatpush2.bf16.msra.mxu0 %v3102
  %8086 = vmatprep.subr.bf16.mxu0 %v3095
  %8087 = vmatpush2.bf16.msra.mxu0 %v3094
  %8088 = vmatprep.subr.bf16.mxu0 %v3087
  %8089 = vmatpush2.bf16.msra.mxu0 %v3086
  %8090 = vmatprep.subr.bf16.mxu0 %v3079
  %8091 = vmatpush2.bf16.msra.mxu0 %v3078
  %8092 = vmatprep.subr.bf16.mxu0 %v3071
  %8093 = vmatpush2.bf16.msra.mxu0 %v3070
  %8094 = vmatprep.subr.bf16.mxu0 %v3063
  %8095 = vmatpush2.bf16.msra.mxu0 %v3062
  %8096 = vmatprep.subr.bf16.mxu0 %v3055
  %8097 = vmatpush2.bf16.msra.mxu0 %v3054
  %8098 = vmatprep.mubr.bf16.mxu0 %v7569
  %8099 = vmatmul.mubr.bf16.gmra.mxu0 %v7568
  %v8100 = vpop.f32.mrf.mxu0
  %v8101 = vadd.f32 %v2197, %v8100
  %v8102 = vpop.f32.mrf.mxu0
  %v8103 = vadd.f32 %v2201, %v8102
  %v8104 = vpop.f32.mrf.mxu0
  %v8105 = vpop.f32.mrf.mxu0
  %8106 = vdwg.mxu0
  %8107 = vmatprep.subr.bf16.mxu0 %v3175
  %8108 = vmatpush1.bf16.msra.mxu0 %v3174
  %8109 = vmatprep.subr.bf16.mxu0 %v3167
  %8110 = vmatpush1.bf16.msra.mxu0 %v3166
  %8111 = vmatprep.subr.bf16.mxu0 %v3159
  %8112 = vmatpush1.bf16.msra.mxu0 %v3158
  %8113 = vmatprep.subr.bf16.mxu0 %v3151
  %8114 = vmatpush1.bf16.msra.mxu0 %v3150
  %8115 = vmatprep.subr.bf16.mxu0 %v3143
  %8116 = vmatpush1.bf16.msra.mxu0 %v3142
  %8117 = vmatprep.subr.bf16.mxu0 %v3135
  %8118 = vmatpush1.bf16.msra.mxu0 %v3134
  %8119 = vmatprep.subr.bf16.mxu0 %v3127
  %8120 = vmatpush1.bf16.msra.mxu0 %v3126
  %8121 = vmatprep.subr.bf16.mxu0 %v3119
  %8122 = vmatpush1.bf16.msra.mxu0 %v3118
  %8123 = vmatprep.subr.bf16.mxu0 %v3239
  %8124 = vmatpush2.bf16.msra.mxu0 %v3238
  %8125 = vmatprep.subr.bf16.mxu0 %v3231
  %8126 = vmatpush2.bf16.msra.mxu0 %v3230
  %8127 = vmatprep.subr.bf16.mxu0 %v3223
  %8128 = vmatpush2.bf16.msra.mxu0 %v3222
  %8129 = vmatprep.subr.bf16.mxu0 %v3215
  %8130 = vmatpush2.bf16.msra.mxu0 %v3214
  %8131 = vmatprep.subr.bf16.mxu0 %v3207
  %8132 = vmatpush2.bf16.msra.mxu0 %v3206
  %8133 = vmatprep.subr.bf16.mxu0 %v3199
  %8134 = vmatpush2.bf16.msra.mxu0 %v3198
  %8135 = vmatprep.subr.bf16.mxu0 %v3191
  %8136 = vmatpush2.bf16.msra.mxu0 %v3190
  %8137 = vmatprep.subr.bf16.mxu0 %v3183
  %8138 = vmatpush2.bf16.msra.mxu0 %v3182
  %8139 = vmatprep.mubr.bf16.mxu0 %v7571
  %8140 = vmatmul.mubr.bf16.gmra.mxu0 %v7570
  %v8141 = vpop.f32.mrf.mxu0
  %v8142 = vadd.f32 %v8101, %v8141
  %v8143 = vpop.f32.mrf.mxu0
  %v8144 = vadd.f32 %v8103, %v8143
  %v8145 = vpop.f32.mrf.mxu0
  %v8146 = vpop.f32.mrf.mxu0
  %8147 = vdwg.mxu0
  %8148 = vmatprep.subr.bf16.mxu0 %v3049
  %8149 = vmatpush1.bf16.msra.mxu0 %v3048
  %8150 = vmatprep.subr.bf16.mxu0 %v3041
  %8151 = vmatpush1.bf16.msra.mxu0 %v3040
  %8152 = vmatprep.subr.bf16.mxu0 %v3033
  %8153 = vmatpush1.bf16.msra.mxu0 %v3032
  %8154 = vmatprep.subr.bf16.mxu0 %v3025
  %8155 = vmatpush1.bf16.msra.mxu0 %v3024
  %8156 = vmatprep.subr.bf16.mxu0 %v3017
  %8157 = vmatpush1.bf16.msra.mxu0 %v3016
  %8158 = vmatprep.subr.bf16.mxu0 %v3009
  %8159 = vmatpush1.bf16.msra.mxu0 %v3008
  %8160 = vmatprep.subr.bf16.mxu0 %v3001
  %8161 = vmatpush1.bf16.msra.mxu0 %v3000
  %8162 = vmatprep.subr.bf16.mxu0 %v2993
  %8163 = vmatpush1.bf16.msra.mxu0 %v2992
  %8164 = vmatprep.subr.bf16.mxu0 %v3113
  %8165 = vmatpush2.bf16.msra.mxu0 %v3112
  %8166 = vmatprep.subr.bf16.mxu0 %v3105
  %8167 = vmatpush2.bf16.msra.mxu0 %v3104
  %8168 = vmatprep.subr.bf16.mxu0 %v3097
  %8169 = vmatpush2.bf16.msra.mxu0 %v3096
  %8170 = vmatprep.subr.bf16.mxu0 %v3089
  %8171 = vmatpush2.bf16.msra.mxu0 %v3088
  %8172 = vmatprep.subr.bf16.mxu0 %v3081
  %8173 = vmatpush2.bf16.msra.mxu0 %v3080
  %8174 = vmatprep.subr.bf16.mxu0 %v3073
  %8175 = vmatpush2.bf16.msra.mxu0 %v3072
  %8176 = vmatprep.subr.bf16.mxu0 %v3065
  %8177 = vmatpush2.bf16.msra.mxu0 %v3064
  %8178 = vmatprep.subr.bf16.mxu0 %v3057
  %8179 = vmatpush2.bf16.msra.mxu0 %v3056
  %8180 = vmatprep.mubr.bf16.mxu0 %v7569
  %8181 = vmatmul.mubr.bf16.gmra.mxu0 %v7568
  %v8182 = vpop.f32.mrf.mxu0
  %v8183 = vadd.f32 %v2205, %v8182
  %v8184 = vpop.f32.mrf.mxu0
  %v8185 = vadd.f32 %v2209, %v8184
  %v8186 = vpop.f32.mrf.mxu0
  %v8187 = vpop.f32.mrf.mxu0
  %8188 = vdwg.mxu0
  %8189 = vmatprep.subr.bf16.mxu0 %v3177
  %8190 = vmatpush1.bf16.msra.mxu0 %v3176
  %8191 = vmatprep.subr.bf16.mxu0 %v3169
  %8192 = vmatpush1.bf16.msra.mxu0 %v3168
  %8193 = vmatprep.subr.bf16.mxu0 %v3161
  %8194 = vmatpush1.bf16.msra.mxu0 %v3160
  %8195 = vmatprep.subr.bf16.mxu0 %v3153
  %8196 = vmatpush1.bf16.msra.mxu0 %v3152
  %8197 = vmatprep.subr.bf16.mxu0 %v3145
  %8198 = vmatpush1.bf16.msra.mxu0 %v3144
  %8199 = vmatprep.subr.bf16.mxu0 %v3137
  %8200 = vmatpush1.bf16.msra.mxu0 %v3136
  %8201 = vmatprep.subr.bf16.mxu0 %v3129
  %8202 = vmatpush1.bf16.msra.mxu0 %v3128
  %8203 = vmatprep.subr.bf16.mxu0 %v3121
  %8204 = vmatpush1.bf16.msra.mxu0 %v3120
  %8205 = vmatprep.subr.bf16.mxu0 %v3241
  %8206 = vmatpush2.bf16.msra.mxu0 %v3240
  %8207 = vmatprep.subr.bf16.mxu0 %v3233
  %8208 = vmatpush2.bf16.msra.mxu0 %v3232
  %8209 = vmatprep.subr.bf16.mxu0 %v3225
  %8210 = vmatpush2.bf16.msra.mxu0 %v3224
  %8211 = vmatprep.subr.bf16.mxu0 %v3217
  %8212 = vmatpush2.bf16.msra.mxu0 %v3216
  %8213 = vmatprep.subr.bf16.mxu0 %v3209
  %8214 = vmatpush2.bf16.msra.mxu0 %v3208
  %8215 = vmatprep.subr.bf16.mxu0 %v3201
  %8216 = vmatpush2.bf16.msra.mxu0 %v3200
  %8217 = vmatprep.subr.bf16.mxu0 %v3193
  %8218 = vmatpush2.bf16.msra.mxu0 %v3192
  %8219 = vmatprep.subr.bf16.mxu0 %v3185
  %8220 = vmatpush2.bf16.msra.mxu0 %v3184
  %8221 = vmatprep.mubr.bf16.mxu0 %v7571
  %8222 = vmatmul.mubr.bf16.gmra.mxu0 %v7570
  %v8223 = vpop.f32.mrf.mxu0
  %v8224 = vadd.f32 %v8183, %v8223
  %v8225 = vpop.f32.mrf.mxu0
  %v8226 = vadd.f32 %v8185, %v8225
  %v8227 = vpop.f32.mrf.mxu0
  %v8228 = vpop.f32.mrf.mxu0
  %8229 = vdwg.mxu0
  %v8230 = vmul.f32 %v7650, 0.5
  %v8231 = vmul.f32 %v7652, 0.5
  %v8232 = vtanh.pop %v8230
  %v8233 = vtanh.pop %v8231
  %v8234 = vadd.f32 %v8232, 1.0
  %v8235 = vadd.f32 %v8233, 1.0
  %v8236 = vmul.f32 %v8234, 0.5
  %v8237 = vmul.f32 %v8235, 0.5
  %v8238 = vmul.f32 %v7732, 0.5
  %v8239 = vmul.f32 %v7734, 0.5
  %v8240 = vtanh.pop %v8238
  %v8241 = vtanh.pop %v8239
  %v8242 = vadd.f32 %v8240, 1.0
  %v8243 = vadd.f32 %v8241, 1.0
  %v8244 = vmul.f32 %v8242, 0.5
  %v8245 = vmul.f32 %v8243, 0.5
  %v8246 = vtanh.pop %v7814
  %v8247 = vtanh.pop %v7816
  %v8248 = vmul.f32 %v7896, 0.5
  %v8249 = vmul.f32 %v7898, 0.5
  %v8250 = vtanh.pop %v8248
  %v8251 = vtanh.pop %v8249
  %v8252 = vadd.f32 %v8250, 1.0
  %v8253 = vadd.f32 %v8251, 1.0
  %v8254 = vmul.f32 %v8252, 0.5
  %v8255 = vmul.f32 %v8253, 0.5
  %v8256 = vmul.f32 %v8244, %v7526
  %v8257 = vmul.f32 %v8245, %v7527
  %v8258 = vmul.f32 %v8236, %v8246
  %v8259 = vmul.f32 %v8237, %v8247
  %v8260 = vadd.f32 %v8256, %v8258
  %v8261 = vadd.f32 %v8257, %v8259
  %v8262 = vtanh.pop %v8260
  %v8263 = vtanh.pop %v8261
  %v8264 = vmul.f32 %v8254, %v8262
  %v8265 = vmul.f32 %v8255, %v8263
  %v8266 = vmul.f32 %v7978, 0.5
  %v8267 = vmul.f32 %v7980, 0.5
  %v8268 = vtanh.pop %v8266
  %v8269 = vtanh.pop %v8267
  %v8270 = vadd.f32 %v8268, 1.0
  %v8271 = vadd.f32 %v8269, 1.0
  %v8272 = vmul.f32 %v8270, 0.5
  %v8273 = vmul.f32 %v8271, 0.5
  %v8274 = vmul.f32 %v8060, 0.5
  %v8275 = vmul.f32 %v8062, 0.5
  %v8276 = vtanh.pop %v8274
  %v8277 = vtanh.pop %v8275
  %v8278 = vadd.f32 %v8276, 1.0
  %v8279 = vadd.f32 %v8277, 1.0
  %v8280 = vmul.f32 %v8278, 0.5
  %v8281 = vmul.f32 %v8279, 0.5
  %v8282 = vtanh.pop %v8142
  %v8283 = vtanh.pop %v8144
  %v8284 = vmul.f32 %v8224, 0.5
  %v8285 = vmul.f32 %v8226, 0.5
  %v8286 = vtanh.pop %v8284
  %v8287 = vtanh.pop %v8285
  %v8288 = vadd.f32 %v8286, 1.0
  %v8289 = vadd.f32 %v8287, 1.0
  %v8290 = vmul.f32 %v8288, 0.5
  %v8291 = vmul.f32 %v8289, 0.5
  %v8292 = vmul.f32 %v8280, %v7562
  %v8293 = vmul.f32 %v8281, %v7563
  %v8294 = vmul.f32 %v8272, %v8282
  %v8295 = vmul.f32 %v8273, %v8283
  %v8296 = vadd.f32 %v8292, %v8294
  %v8297 = vadd.f32 %v8293, %v8295
  %v8298 = vtanh.pop %v8296
  %v8299 = vtanh.pop %v8297
  %v8300 = vmul.f32 %v8290, %v8298
  %v8301 = vmul.f32 %v8291, %v8299
  %v8302 = vpack.c.bf16 %v8264, %v8264
  %v8303 = vpack.c.bf16 %v8265, %v8265
  %v8304 = vpack.c.bf16 %v8300, %v8300
  %v8305 = vpack.c.bf16 %v8301, %v8301
  %8306 = vmatprep.subr.bf16.mxu0 %v3043
  %8307 = vmatpush1.bf16.msra.mxu0 %v3042
  %8308 = vmatprep.subr.bf16.mxu0 %v3035
  %8309 = vmatpush1.bf16.msra.mxu0 %v3034
  %8310 = vmatprep.subr.bf16.mxu0 %v3027
  %8311 = vmatpush1.bf16.msra.mxu0 %v3026
  %8312 = vmatprep.subr.bf16.mxu0 %v3019
  %8313 = vmatpush1.bf16.msra.mxu0 %v3018
  %8314 = vmatprep.subr.bf16.mxu0 %v3011
  %8315 = vmatpush1.bf16.msra.mxu0 %v3010
  %8316 = vmatprep.subr.bf16.mxu0 %v3003
  %8317 = vmatpush1.bf16.msra.mxu0 %v3002
  %8318 = vmatprep.subr.bf16.mxu0 %v2995
  %8319 = vmatpush1.bf16.msra.mxu0 %v2994
  %8320 = vmatprep.subr.bf16.mxu0 %v2987
  %8321 = vmatpush1.bf16.msra.mxu0 %v2986
  %8322 = vmatprep.subr.bf16.mxu0 %v3107
  %8323 = vmatpush2.bf16.msra.mxu0 %v3106
  %8324 = vmatprep.subr.bf16.mxu0 %v3099
  %8325 = vmatpush2.bf16.msra.mxu0 %v3098
  %8326 = vmatprep.subr.bf16.mxu0 %v3091
  %8327 = vmatpush2.bf16.msra.mxu0 %v3090
  %8328 = vmatprep.subr.bf16.mxu0 %v3083
  %8329 = vmatpush2.bf16.msra.mxu0 %v3082
  %8330 = vmatprep.subr.bf16.mxu0 %v3075
  %8331 = vmatpush2.bf16.msra.mxu0 %v3074
  %8332 = vmatprep.subr.bf16.mxu0 %v3067
  %8333 = vmatpush2.bf16.msra.mxu0 %v3066
  %8334 = vmatprep.subr.bf16.mxu0 %v3059
  %8335 = vmatpush2.bf16.msra.mxu0 %v3058
  %8336 = vmatprep.subr.bf16.mxu0 %v3051
  %8337 = vmatpush2.bf16.msra.mxu0 %v3050
  %8338 = vmatprep.mubr.bf16.mxu0 %v8303
  %8339 = vmatmul.mubr.bf16.gmra.mxu0 %v8302
  %v8340 = vpop.f32.mrf.mxu0
  %v8341 = vadd.f32 %v2181, %v8340
  %v8342 = vpop.f32.mrf.mxu0
  %v8343 = vadd.f32 %v2185, %v8342
  %v8344 = vpop.f32.mrf.mxu0
  %v8345 = vpop.f32.mrf.mxu0
  %8346 = vdwg.mxu0
  %8347 = vmatprep.subr.bf16.mxu0 %v3171
  %8348 = vmatpush1.bf16.msra.mxu0 %v3170
  %8349 = vmatprep.subr.bf16.mxu0 %v3163
  %8350 = vmatpush1.bf16.msra.mxu0 %v3162
  %8351 = vmatprep.subr.bf16.mxu0 %v3155
  %8352 = vmatpush1.bf16.msra.mxu0 %v3154
  %8353 = vmatprep.subr.bf16.mxu0 %v3147
  %8354 = vmatpush1.bf16.msra.mxu0 %v3146
  %8355 = vmatprep.subr.bf16.mxu0 %v3139
  %8356 = vmatpush1.bf16.msra.mxu0 %v3138
  %8357 = vmatprep.subr.bf16.mxu0 %v3131
  %8358 = vmatpush1.bf16.msra.mxu0 %v3130
  %8359 = vmatprep.subr.bf16.mxu0 %v3123
  %8360 = vmatpush1.bf16.msra.mxu0 %v3122
  %8361 = vmatprep.subr.bf16.mxu0 %v3115
  %8362 = vmatpush1.bf16.msra.mxu0 %v3114
  %8363 = vmatprep.subr.bf16.mxu0 %v3235
  %8364 = vmatpush2.bf16.msra.mxu0 %v3234
  %8365 = vmatprep.subr.bf16.mxu0 %v3227
  %8366 = vmatpush2.bf16.msra.mxu0 %v3226
  %8367 = vmatprep.subr.bf16.mxu0 %v3219
  %8368 = vmatpush2.bf16.msra.mxu0 %v3218
  %8369 = vmatprep.subr.bf16.mxu0 %v3211
  %8370 = vmatpush2.bf16.msra.mxu0 %v3210
  %8371 = vmatprep.subr.bf16.mxu0 %v3203
  %8372 = vmatpush2.bf16.msra.mxu0 %v3202
  %8373 = vmatprep.subr.bf16.mxu0 %v3195
  %8374 = vmatpush2.bf16.msra.mxu0 %v3194
  %8375 = vmatprep.subr.bf16.mxu0 %v3187
  %8376 = vmatpush2.bf16.msra.mxu0 %v3186
  %8377 = vmatprep.subr.bf16.mxu0 %v3179
  %8378 = vmatpush2.bf16.msra.mxu0 %v3178
  %8379 = vmatprep.mubr.bf16.mxu0 %v8305
  %8380 = vmatmul.mubr.bf16.gmra.mxu0 %v8304
  %v8381 = vpop.f32.mrf.mxu0
  %v8382 = vadd.f32 %v8341, %v8381
  %v8383 = vpop.f32.mrf.mxu0
  %v8384 = vadd.f32 %v8343, %v8383
  %v8385 = vpop.f32.mrf.mxu0
  %v8386 = vpop.f32.mrf.mxu0
  %8387 = vdwg.mxu0
  %8388 = vmatprep.subr.bf16.mxu0 %v3045
  %8389 = vmatpush1.bf16.msra.mxu0 %v3044
  %8390 = vmatprep.subr.bf16.mxu0 %v3037
  %8391 = vmatpush1.bf16.msra.mxu0 %v3036
  %8392 = vmatprep.subr.bf16.mxu0 %v3029
  %8393 = vmatpush1.bf16.msra.mxu0 %v3028
  %8394 = vmatprep.subr.bf16.mxu0 %v3021
  %8395 = vmatpush1.bf16.msra.mxu0 %v3020
  %8396 = vmatprep.subr.bf16.mxu0 %v3013
  %8397 = vmatpush1.bf16.msra.mxu0 %v3012
  %8398 = vmatprep.subr.bf16.mxu0 %v3005
  %8399 = vmatpush1.bf16.msra.mxu0 %v3004
  %8400 = vmatprep.subr.bf16.mxu0 %v2997
  %8401 = vmatpush1.bf16.msra.mxu0 %v2996
  %8402 = vmatprep.subr.bf16.mxu0 %v2989
  %8403 = vmatpush1.bf16.msra.mxu0 %v2988
  %8404 = vmatprep.subr.bf16.mxu0 %v3109
  %8405 = vmatpush2.bf16.msra.mxu0 %v3108
  %8406 = vmatprep.subr.bf16.mxu0 %v3101
  %8407 = vmatpush2.bf16.msra.mxu0 %v3100
  %8408 = vmatprep.subr.bf16.mxu0 %v3093
  %8409 = vmatpush2.bf16.msra.mxu0 %v3092
  %8410 = vmatprep.subr.bf16.mxu0 %v3085
  %8411 = vmatpush2.bf16.msra.mxu0 %v3084
  %8412 = vmatprep.subr.bf16.mxu0 %v3077
  %8413 = vmatpush2.bf16.msra.mxu0 %v3076
  %8414 = vmatprep.subr.bf16.mxu0 %v3069
  %8415 = vmatpush2.bf16.msra.mxu0 %v3068
  %8416 = vmatprep.subr.bf16.mxu0 %v3061
  %8417 = vmatpush2.bf16.msra.mxu0 %v3060
  %8418 = vmatprep.subr.bf16.mxu0 %v3053
  %8419 = vmatpush2.bf16.msra.mxu0 %v3052
  %8420 = vmatprep.mubr.bf16.mxu0 %v8303
  %8421 = vmatmul.mubr.bf16.gmra.mxu0 %v8302
  %v8422 = vpop.f32.mrf.mxu0
  %v8423 = vadd.f32 %v2189, %v8422
  %v8424 = vpop.f32.mrf.mxu0
  %v8425 = vadd.f32 %v2193, %v8424
  %v8426 = vpop.f32.mrf.mxu0
  %v8427 = vpop.f32.mrf.mxu0
  %8428 = vdwg.mxu0
  %8429 = vmatprep.subr.bf16.mxu0 %v3173
  %8430 = vmatpush1.bf16.msra.mxu0 %v3172
  %8431 = vmatprep.subr.bf16.mxu0 %v3165
  %8432 = vmatpush1.bf16.msra.mxu0 %v3164
  %8433 = vmatprep.subr.bf16.mxu0 %v3157
  %8434 = vmatpush1.bf16.msra.mxu0 %v3156
  %8435 = vmatprep.subr.bf16.mxu0 %v3149
  %8436 = vmatpush1.bf16.msra.mxu0 %v3148
  %8437 = vmatprep.subr.bf16.mxu0 %v3141
  %8438 = vmatpush1.bf16.msra.mxu0 %v3140
  %8439 = vmatprep.subr.bf16.mxu0 %v3133
  %8440 = vmatpush1.bf16.msra.mxu0 %v3132
  %8441 = vmatprep.subr.bf16.mxu0 %v3125
  %8442 = vmatpush1.bf16.msra.mxu0 %v3124
  %8443 = vmatprep.subr.bf16.mxu0 %v3117
  %8444 = vmatpush1.bf16.msra.mxu0 %v3116
  %8445 = vmatprep.subr.bf16.mxu0 %v3237
  %8446 = vmatpush2.bf16.msra.mxu0 %v3236
  %8447 = vmatprep.subr.bf16.mxu0 %v3229
  %8448 = vmatpush2.bf16.msra.mxu0 %v3228
  %8449 = vmatprep.subr.bf16.mxu0 %v3221
  %8450 = vmatpush2.bf16.msra.mxu0 %v3220
  %8451 = vmatprep.subr.bf16.mxu0 %v3213
  %8452 = vmatpush2.bf16.msra.mxu0 %v3212
  %8453 = vmatprep.subr.bf16.mxu0 %v3205
  %8454 = vmatpush2.bf16.msra.mxu0 %v3204
  %8455 = vmatprep.subr.bf16.mxu0 %v3197
  %8456 = vmatpush2.bf16.msra.mxu0 %v3196
  %8457 = vmatprep.subr.bf16.mxu0 %v3189
  %8458 = vmatpush2.bf16.msra.mxu0 %v3188
  %8459 = vmatprep.subr.bf16.mxu0 %v3181
  %8460 = vmatpush2.bf16.msra.mxu0 %v3180
  %8461 = vmatprep.mubr.bf16.mxu0 %v8305
  %8462 = vmatmul.mubr.bf16.gmra.mxu0 %v8304
  %v8463 = vpop.f32.mrf.mxu0
  %v8464 = vadd.f32 %v8423, %v8463
  %v8465 = vpop.f32.mrf.mxu0
  %v8466 = vadd.f32 %v8425, %v8465
  %v8467 = vpop.f32.mrf.mxu0
  %v8468 = vpop.f32.mrf.mxu0
  %8469 = vdwg.mxu0
  %8470 = vmatprep.subr.bf16.mxu0 %v3047
  %8471 = vmatpush1.bf16.msra.mxu0 %v3046
  %8472 = vmatprep.subr.bf16.mxu0 %v3039
  %8473 = vmatpush1.bf16.msra.mxu0 %v3038
  %8474 = vmatprep.subr.bf16.mxu0 %v3031
  %8475 = vmatpush1.bf16.msra.mxu0 %v3030
  %8476 = vmatprep.subr.bf16.mxu0 %v3023
  %8477 = vmatpush1.bf16.msra.mxu0 %v3022
  %8478 = vmatprep.subr.bf16.mxu0 %v3015
  %8479 = vmatpush1.bf16.msra.mxu0 %v3014
  %8480 = vmatprep.subr.bf16.mxu0 %v3007
  %8481 = vmatpush1.bf16.msra.mxu0 %v3006
  %8482 = vmatprep.subr.bf16.mxu0 %v2999
  %8483 = vmatpush1.bf16.msra.mxu0 %v2998
  %8484 = vmatprep.subr.bf16.mxu0 %v2991
  %8485 = vmatpush1.bf16.msra.mxu0 %v2990
  %8486 = vmatprep.subr.bf16.mxu0 %v3111
  %8487 = vmatpush2.bf16.msra.mxu0 %v3110
  %8488 = vmatprep.subr.bf16.mxu0 %v3103
  %8489 = vmatpush2.bf16.msra.mxu0 %v3102
  %8490 = vmatprep.subr.bf16.mxu0 %v3095
  %8491 = vmatpush2.bf16.msra.mxu0 %v3094
  %8492 = vmatprep.subr.bf16.mxu0 %v3087
  %8493 = vmatpush2.bf16.msra.mxu0 %v3086
  %8494 = vmatprep.subr.bf16.mxu0 %v3079
  %8495 = vmatpush2.bf16.msra.mxu0 %v3078
  %8496 = vmatprep.subr.bf16.mxu0 %v3071
  %8497 = vmatpush2.bf16.msra.mxu0 %v3070
  %8498 = vmatprep.subr.bf16.mxu0 %v3063
  %8499 = vmatpush2.bf16.msra.mxu0 %v3062
  %8500 = vmatprep.subr.bf16.mxu0 %v3055
  %8501 = vmatpush2.bf16.msra.mxu0 %v3054
  %8502 = vmatprep.mubr.bf16.mxu0 %v8303
  %8503 = vmatmul.mubr.bf16.gmra.mxu0 %v8302
  %v8504 = vpop.f32.mrf.mxu0
  %v8505 = vadd.f32 %v2197, %v8504
  %v8506 = vpop.f32.mrf.mxu0
  %v8507 = vadd.f32 %v2201, %v8506
  %v8508 = vpop.f32.mrf.mxu0
  %v8509 = vpop.f32.mrf.mxu0
  %8510 = vdwg.mxu0
  %8511 = vmatprep.subr.bf16.mxu0 %v3175
  %8512 = vmatpush1.bf16.msra.mxu0 %v3174
  %8513 = vmatprep.subr.bf16.mxu0 %v3167
  %8514 = vmatpush1.bf16.msra.mxu0 %v3166
  %8515 = vmatprep.subr.bf16.mxu0 %v3159
  %8516 = vmatpush1.bf16.msra.mxu0 %v3158
  %8517 = vmatprep.subr.bf16.mxu0 %v3151
  %8518 = vmatpush1.bf16.msra.mxu0 %v3150
  %8519 = vmatprep.subr.bf16.mxu0 %v3143
  %8520 = vmatpush1.bf16.msra.mxu0 %v3142
  %8521 = vmatprep.subr.bf16.mxu0 %v3135
  %8522 = vmatpush1.bf16.msra.mxu0 %v3134
  %8523 = vmatprep.subr.bf16.mxu0 %v3127
  %8524 = vmatpush1.bf16.msra.mxu0 %v3126
  %8525 = vmatprep.subr.bf16.mxu0 %v3119
  %8526 = vmatpush1.bf16.msra.mxu0 %v3118
  %8527 = vmatprep.subr.bf16.mxu0 %v3239
  %8528 = vmatpush2.bf16.msra.mxu0 %v3238
  %8529 = vmatprep.subr.bf16.mxu0 %v3231
  %8530 = vmatpush2.bf16.msra.mxu0 %v3230
  %8531 = vmatprep.subr.bf16.mxu0 %v3223
  %8532 = vmatpush2.bf16.msra.mxu0 %v3222
  %8533 = vmatprep.subr.bf16.mxu0 %v3215
  %8534 = vmatpush2.bf16.msra.mxu0 %v3214
  %8535 = vmatprep.subr.bf16.mxu0 %v3207
  %8536 = vmatpush2.bf16.msra.mxu0 %v3206
  %8537 = vmatprep.subr.bf16.mxu0 %v3199
  %8538 = vmatpush2.bf16.msra.mxu0 %v3198
  %8539 = vmatprep.subr.bf16.mxu0 %v3191
  %8540 = vmatpush2.bf16.msra.mxu0 %v3190
  %8541 = vmatprep.subr.bf16.mxu0 %v3183
  %8542 = vmatpush2.bf16.msra.mxu0 %v3182
  %8543 = vmatprep.mubr.bf16.mxu0 %v8305
  %8544 = vmatmul.mubr.bf16.gmra.mxu0 %v8304
  %v8545 = vpop.f32.mrf.mxu0
  %v8546 = vadd.f32 %v8505, %v8545
  %v8547 = vpop.f32.mrf.mxu0
  %v8548 = vadd.f32 %v8507, %v8547
  %v8549 = vpop.f32.mrf.mxu0
  %v8550 = vpop.f32.mrf.mxu0
  %8551 = vdwg.mxu0
  %8552 = vmatprep.subr.bf16.mxu0 %v3049
  %8553 = vmatpush1.bf16.msra.mxu0 %v3048
  %8554 = vmatprep.subr.bf16.mxu0 %v3041
  %8555 = vmatpush1.bf16.msra.mxu0 %v3040
  %8556 = vmatprep.subr.bf16.mxu0 %v3033
  %8557 = vmatpush1.bf16.msra.mxu0 %v3032
  %8558 = vmatprep.subr.bf16.mxu0 %v3025
  %8559 = vmatpush1.bf16.msra.mxu0 %v3024
  %8560 = vmatprep.subr.bf16.mxu0 %v3017
  %8561 = vmatpush1.bf16.msra.mxu0 %v3016
  %8562 = vmatprep.subr.bf16.mxu0 %v3009
  %8563 = vmatpush1.bf16.msra.mxu0 %v3008
  %8564 = vmatprep.subr.bf16.mxu0 %v3001
  %8565 = vmatpush1.bf16.msra.mxu0 %v3000
  %8566 = vmatprep.subr.bf16.mxu0 %v2993
  %8567 = vmatpush1.bf16.msra.mxu0 %v2992
  %8568 = vmatprep.subr.bf16.mxu0 %v3113
  %8569 = vmatpush2.bf16.msra.mxu0 %v3112
  %8570 = vmatprep.subr.bf16.mxu0 %v3105
  %8571 = vmatpush2.bf16.msra.mxu0 %v3104
  %8572 = vmatprep.subr.bf16.mxu0 %v3097
  %8573 = vmatpush2.bf16.msra.mxu0 %v3096
  %8574 = vmatprep.subr.bf16.mxu0 %v3089
  %8575 = vmatpush2.bf16.msra.mxu0 %v3088
  %8576 = vmatprep.subr.bf16.mxu0 %v3081
  %8577 = vmatpush2.bf16.msra.mxu0 %v3080
  %8578 = vmatprep.subr.bf16.mxu0 %v3073
  %8579 = vmatpush2.bf16.msra.mxu0 %v3072
  %8580 = vmatprep.subr.bf16.mxu0 %v3065
  %8581 = vmatpush2.bf16.msra.mxu0 %v3064
  %8582 = vmatprep.subr.bf16.mxu0 %v3057
  %8583 = vmatpush2.bf16.msra.mxu0 %v3056
  %8584 = vmatprep.mubr.bf16.mxu0 %v8303
  %8585 = vmatmul.mubr.bf16.gmra.mxu0 %v8302
  %v8586 = vpop.f32.mrf.mxu0
  %v8587 = vadd.f32 %v2205, %v8586
  %v8588 = vpop.f32.mrf.mxu0
  %v8589 = vadd.f32 %v2209, %v8588
  %v8590 = vpop.f32.mrf.mxu0
  %v8591 = vpop.f32.mrf.mxu0
  %8592 = vdwg.mxu0
  %8593 = vmatprep.subr.bf16.mxu0 %v3177
  %8594 = vmatpush1.bf16.msra.mxu0 %v3176
  %8595 = vmatprep.subr.bf16.mxu0 %v3169
  %8596 = vmatpush1.bf16.msra.mxu0 %v3168
  %8597 = vmatprep.subr.bf16.mxu0 %v3161
  %8598 = vmatpush1.bf16.msra.mxu0 %v3160
  %8599 = vmatprep.subr.bf16.mxu0 %v3153
  %8600 = vmatpush1.bf16.msra.mxu0 %v3152
  %8601 = vmatprep.subr.bf16.mxu0 %v3145
  %8602 = vmatpush1.bf16.msra.mxu0 %v3144
  %8603 = vmatprep.subr.bf16.mxu0 %v3137
  %8604 = vmatpush1.bf16.msra.mxu0 %v3136
  %8605 = vmatprep.subr.bf16.mxu0 %v3129
  %8606 = vmatpush1.bf16.msra.mxu0 %v3128
  %8607 = vmatprep.subr.bf16.mxu0 %v3121
  %8608 = vmatpush1.bf16.msra.mxu0 %v3120
  %8609 = vmatprep.subr.bf16.mxu0 %v3241
  %8610 = vmatpush2.bf16.msra.mxu0 %v3240
  %8611 = vmatprep.subr.bf16.mxu0 %v3233
  %8612 = vmatpush2.bf16.msra.mxu0 %v3232
  %8613 = vmatprep.subr.bf16.mxu0 %v3225
  %8614 = vmatpush2.bf16.msra.mxu0 %v3224
  %8615 = vmatprep.subr.bf16.mxu0 %v3217
  %8616 = vmatpush2.bf16.msra.mxu0 %v3216
  %8617 = vmatprep.subr.bf16.mxu0 %v3209
  %8618 = vmatpush2.bf16.msra.mxu0 %v3208
  %8619 = vmatprep.subr.bf16.mxu0 %v3201
  %8620 = vmatpush2.bf16.msra.mxu0 %v3200
  %8621 = vmatprep.subr.bf16.mxu0 %v3193
  %8622 = vmatpush2.bf16.msra.mxu0 %v3192
  %8623 = vmatprep.subr.bf16.mxu0 %v3185
  %8624 = vmatpush2.bf16.msra.mxu0 %v3184
  %8625 = vmatprep.mubr.bf16.mxu0 %v8305
  %8626 = vmatmul.mubr.bf16.gmra.mxu0 %v8304
  %v8627 = vpop.f32.mrf.mxu0
  %v8628 = vadd.f32 %v8587, %v8627
  %v8629 = vpop.f32.mrf.mxu0
  %v8630 = vadd.f32 %v8589, %v8629
  %v8631 = vpop.f32.mrf.mxu0
  %v8632 = vpop.f32.mrf.mxu0
  %8633 = vdwg.mxu0
  %v8634 = vmul.f32 %v8382, 0.5
  %v8635 = vmul.f32 %v8384, 0.5
  %v8636 = vtanh.pop %v8634
  %v8637 = vtanh.pop %v8635
  %v8638 = vadd.f32 %v8636, 1.0
  %v8639 = vadd.f32 %v8637, 1.0
  %v8640 = vmul.f32 %v8638, 0.5
  %v8641 = vmul.f32 %v8639, 0.5
  %v8642 = vmul.f32 %v8464, 0.5
  %v8643 = vmul.f32 %v8466, 0.5
  %v8644 = vtanh.pop %v8642
  %v8645 = vtanh.pop %v8643
  %v8646 = vadd.f32 %v8644, 1.0
  %v8647 = vadd.f32 %v8645, 1.0
  %v8648 = vmul.f32 %v8646, 0.5
  %v8649 = vmul.f32 %v8647, 0.5
  %v8650 = vtanh.pop %v8546
  %v8651 = vtanh.pop %v8548
  %v8652 = vmul.f32 %v8628, 0.5
  %v8653 = vmul.f32 %v8630, 0.5
  %v8654 = vtanh.pop %v8652
  %v8655 = vtanh.pop %v8653
  %v8656 = vadd.f32 %v8654, 1.0
  %v8657 = vadd.f32 %v8655, 1.0
  %v8658 = vmul.f32 %v8656, 0.5
  %v8659 = vmul.f32 %v8657, 0.5
  %v8660 = vmul.f32 %v8648, %v8296
  %v8661 = vmul.f32 %v8649, %v8297
  %v8662 = vmul.f32 %v8640, %v8650
  %v8663 = vmul.f32 %v8641, %v8651
  %v8664 = vadd.f32 %v8660, %v8662
  %v8665 = vadd.f32 %v8661, %v8663
  %v8666 = vtanh.pop %v8664
  %v8667 = vtanh.pop %v8665
  %v8668 = vmul.f32 %v8658, %v8666
  %v8669 = vmul.f32 %v8659, %v8667
  %v8670 = vld [vmem:[%s5] sm:$0x3]
  %v8672 = vlaneseq
  %v8673 = vshrl.u32 %v8672, 7
  %v8674 = vsub.s32 0, %v8673
  %v8675 = vrot.slane %v8670, %v8674
  %v8676 = vlaneseq
  %v8677 = vshrl.u32 %v8676, 7
  %v8678 = vsub.s32 1, %v8677
  %v8679 = vrot.slane %v8670, %v8678
  %v8682 = vmul.f32 %v8668, %v8675
  %v8683 = vmul.f32 %v8669, %v8679
  %vm8684 = vcmask 1041408
  %v8685 = vsel %vm8684, %v8682, 0.0
  %v8686 = vsel %vm8684, %v8683, 0.0
  %v8687 = vadd.f32 %v8685, %v8686
  %8688 = vadd.xlane.f32.xlu0 %v8687
  %v8689 = vpop.xlane.xlu0 %8688
  %v8690 = vld [vmem:[#allocation2] sm:$0x1]
  %v8692 = vlaneseq
  %v8693 = vshrl.u32 %v8692, 7
  %v8694 = vsub.s32 0, %v8693
  %v8695 = vrot.slane %v8690, %v8694
  %v8697 = vadd.f32 %v8689, %v8695
  %vm8698 = vcmask 1024
  %8699 = vst.msk [vmem:[%s7] sm:$0x3] %vm8698, %v8697
  // Predicated region
  $region30: #{lstm_model_forward.1} parent=0 // pred_check
    _
  $region31: #{lstm_model_forward.1} parent=0 // pred_check_branch
    %8701 = sbr.rel (0) target = $region33
  $region32: #{lstm_model_forward.1} parent=0 // pred_region
    _
  $region33: #{lstm_model_forward.1} parent=0 // pred_fallthru
    _
  // Predicated region
  $region34: #{lstm_model_forward.1} parent=0 // pred_check
    _
  $region35: #{lstm_model_forward.1} parent=0 // pred_check_branch
    %8703 = sbr.rel (0) target = $region37
  $region36: #{lstm_model_forward.1} parent=0 // pred_region
    _
  $region37: #{lstm_model_forward.1} parent=0 // pred_fallthru
    _

</llo_original>
